<compile_context>
chip_gen: v7x
topology: tpu7x:2x2x1
jax: 0.10.0
libtpu: 0.0.40
codegen_flags: <defaults>
</compile_context>

<pallas_src>
import jax
import jax.numpy as jnp
from jax.experimental import pallas as pl
from jax.experimental.pallas import tpu as pltpu

# ----- small-model config (t5-small analogue, shrunk) -----
D_MODEL = 32
N_HEADS = 4
D_KV = 8                        # inner dim per head (N_HEADS * D_KV == D_MODEL)
INNER = N_HEADS * D_KV
D_FF = 64
N_LAYERS = 2
VOCAB = 64
VOCAB_PAD = 128                 # pad final projection to a full 128-lane vreg
NUM_BUCKETS = 8
MAX_DIST = 16
EPS = 1e-6
NEG = -1e9


# ============================ in-kernel helpers ============================

def _rms(x, w):
    """T5LayerNorm = RMSNorm. x: (T, D) f32, w broadcastable to (T, D)."""
    var = jnp.mean(x * x, axis=-1, keepdims=True)
    return x * jax.lax.rsqrt(var + EPS) * w


def _softmax(s):
    """Row softmax; divide replaced by EUP reciprocal."""
    s = s - jnp.max(s, axis=-1, keepdims=True)
    p = jnp.exp(s)
    return p * pl.reciprocal(jnp.sum(p, axis=-1, keepdims=True), approx=True)


def _mha(q_all, k_all, v_all, bias_per_head):
    """Packed multi-head attention.

    q_all: (Tq, INNER), k_all/v_all: (Tk, INNER); bias_per_head[h] broadcasts
    to (Tq, Tk).  No 1/sqrt(d_kv) scaling (T5 convention).
    Returns (Tq, INNER): per-head contexts concatenated along lanes.
    """
    ctxs = []
    for h in range(N_HEADS):                          # static unroll, H = 4
        sl = slice(h * D_KV, (h + 1) * D_KV)
        s = jnp.dot(q_all[:, sl], k_all[:, sl].T,
                    preferred_element_type=jnp.float32)
        p = _softmax(s + bias_per_head[h])
        ctxs.append(jnp.dot(p, v_all[:, sl], preferred_element_type=jnp.float32))
    return jnp.concatenate(ctxs, axis=-1)


def _self_attn_block(x, lnw, wqkv, wo, bias_per_head):
    """x + MHA(RMSNorm(x)); Q|K|V packed into one (D, 3*INNER) matmul."""
    xn = _rms(x, lnw)
    qkv = jnp.dot(xn, wqkv, preferred_element_type=jnp.float32)   # (T, 3*INNER)
    ctx = _mha(qkv[:, :INNER], qkv[:, INNER:2 * INNER], qkv[:, 2 * INNER:],
               bias_per_head)
    return x + jnp.dot(ctx, wo, preferred_element_type=jnp.float32)


def _cross_attn_block(x, kv_src, lnw, wq, wkv, wo, bias_per_head):
    """x + MHA(q=RMSNorm(x), kv=enc_out); K|V packed into one matmul."""
    xn = _rms(x, lnw)
    q = jnp.dot(xn, wq, preferred_element_type=jnp.float32)        # (Tq, INNER)
    kv = jnp.dot(kv_src, wkv, preferred_element_type=jnp.float32)  # (Tk, 2*INNER)
    ctx = _mha(q, kv[:, :INNER], kv[:, INNER:], bias_per_head)
    return x + jnp.dot(ctx, wo, preferred_element_type=jnp.float32)


def _ffn_block(x, lnw, wi, wo):
    """x + ReLU(RMSNorm(x) @ Wi) @ Wo."""
    xn = _rms(x, lnw)
    h = jnp.maximum(jnp.dot(xn, wi, preferred_element_type=jnp.float32), 0.0)
    return x + jnp.dot(h, wo, preferred_element_type=jnp.float32)


# ============================ the fused kernel ============================

def _t5_fused_kernel(
        # per-batch activations / masks (batch axis squeezed by BlockSpec)
        src_ref, trg_ref, enc_bias_ref, dec_bias_ref, src_am_ref, trg_am_ref,
        # encoder weights, stacked over layers on the leading axis
        e_ln1_ref, e_wqkv_ref, e_wo_ref, e_ln2_ref, e_wi_ref, e_wf_ref,
        e_fln_ref,
        # decoder weights, stacked over layers
        d_ln1_ref, d_wqkv_ref, d_wo_ref, d_ln2_ref, d_cwq_ref, d_cwkv_ref,
        d_cwo_ref, d_ln3_ref, d_wi_ref, d_wf_ref, d_fln_ref,
        # output head (lane-padded)
        ow_ref, ob_ref,
        # output
        o_ref):
    f32 = jnp.float32
    src = src_ref[...].astype(f32)                    # (Ts, D)
    trg = trg_ref[...].astype(f32)                    # (Tt, D)
    src_am = src_am_ref[...]                          # (1, Ts) additive key mask
    trg_am = trg_am_ref[...]                          # (1, Tt)

    # bias + key-mask broadcasts, hoisted ONCE (not re-emitted per head/layer)
    enc_bias = enc_bias_ref[...] + src_am             # (H, Ts, Ts)
    dec_bias = dec_bias_ref[...] + trg_am             # (H, Tt, Tt), causal folded in
    cross_bias = [src_am] * N_HEADS                   # zero pos. bias for cross-attn

    # ---------------- encoder ----------------
    x = src
    for l in range(N_LAYERS):                         # static unroll, weights in VMEM
        x = _self_attn_block(x, e_ln1_ref[l], e_wqkv_ref[l], e_wo_ref[l], enc_bias)
        x = _ffn_block(x, e_ln2_ref[l], e_wi_ref[l], e_wf_ref[l])
    enc_out = _rms(x, e_fln_ref[...])

    # ---------------- decoder ----------------
    y = trg
    for l in range(N_LAYERS):
        y = _self_attn_block(y, d_ln1_ref[l], d_wqkv_ref[l], d_wo_ref[l], dec_bias)
        y = _cross_attn_block(y, enc_out, d_ln2_ref[l], d_cwq_ref[l],
                              d_cwkv_ref[l], d_cwo_ref[l], cross_bias)
        y = _ffn_block(y, d_ln3_ref[l], d_wi_ref[l], d_wf_ref[l])

    # ---- decoder final RMSNorm fused with lane-padded vocab projection ----
    yn = _rms(y, d_fln_ref[...])
    o_ref[...] = (jnp.dot(yn, ow_ref[...], preferred_element_type=f32)
                  + ob_ref[...]).astype(o_ref.dtype)


# ============================ pallas_call wrapper ============================

def t5_fused(params, src_emb, trg_emb, enc_bias, dec_bias, src_amask, trg_amask):
    B, Ts, D = src_emb.shape
    Tt = trg_emb.shape[1]
    enc, dec = params["encoder"], params["decoder"]

    weights = (enc["ln1"], enc["wqkv"], enc["wo_attn"], enc["ln2"],
               enc["wi"], enc["wo_ffn"], enc["final_ln"],
               dec["ln1"], dec["sa_wqkv"], dec["sa_wo"], dec["ln2"],
               dec["ca_wq"], dec["ca_wkv"], dec["ca_wo"], dec["ln3"],
               dec["wi"], dec["wo_ffn"], dec["final_ln"],
               params["out_w_pad"], params["out_b_pad"])

    def rep(a):
        """Whole-array block, replicated across the batch grid."""
        zeros = (0,) * a.ndim
        return pl.BlockSpec(a.shape, lambda b, _z=zeros: _z)

    def bat(t, d):
        """Per-batch slab, batch axis squeezed."""
        return pl.BlockSpec((None, t, d), lambda b: (b, 0, 0))

    return pl.pallas_call(
        _t5_fused_kernel,
        out_shape=jax.ShapeDtypeStruct((B, Tt, VOCAB_PAD), jnp.float32),
        grid=(B,),
        in_specs=[bat(Ts, D), bat(Tt, D), rep(enc_bias), rep(dec_bias),
                  bat(1, Ts), bat(1, Tt)] + [rep(w) for w in weights],
        out_specs=bat(Tt, VOCAB_PAD),
        compiler_params=pltpu.CompilerParams(
            dimension_semantics=("parallel",)),     # 2nd TC on v7x; no-op on v5e/v6e
    )(src_emb, trg_emb, enc_bias, dec_bias, src_amask, trg_amask, *weights)


# ============================ T5 glue (plain JAX precompute) ============================

def relative_position_bucket(rel_pos, bidirectional, num_buckets, max_distance):
    rel_buckets = jnp.zeros_like(rel_pos)
    if bidirectional:
        num_buckets = num_buckets // 2
        rel_buckets = rel_buckets + (rel_pos > 0).astype(jnp.int32) * num_buckets
        rel_pos = jnp.abs(rel_pos)
    else:
        rel_pos = -jnp.minimum(rel_pos, jnp.zeros_like(rel_pos))
    max_exact = num_buckets // 2
    is_small = rel_pos < max_exact
    rp = jnp.maximum(rel_pos, 1).astype(jnp.float32)
    rel_if_large = max_exact + (
        jnp.log(rp / max_exact) / jnp.log(max_distance / max_exact)
        * (num_buckets - max_exact)
    ).astype(jnp.int32)
    rel_if_large = jnp.minimum(rel_if_large, num_buckets - 1)
    return rel_buckets + jnp.where(is_small, rel_pos, rel_if_large)


def compute_bias(qlen, klen, rel_emb, bidirectional):
    """Relative-position bias, NOT batch-broadcast: (H, qlen, klen)."""
    ctx = jnp.arange(qlen)[:, None]
    mem = jnp.arange(klen)[None, :]
    buckets = relative_position_bucket(mem - ctx, bidirectional,
                                       NUM_BUCKETS, MAX_DIST)
    vals = jnp.take(rel_emb, buckets, axis=0)           # (q, k, H)
    return jnp.transpose(vals, (2, 0, 1))                # (H, q, k)


def t5_network(params, src, trg):
    B, Ts = src.shape
    Tt = trg.shape[1]
    emb = params["shared_emb"]
    # TODO(synk): embedding gather kept in plain JAX (data-dependent gather).
    src_emb = jnp.take(emb, src, axis=0)     # T5 does NOT scale embeddings
    trg_emb = jnp.take(emb, trg, axis=0)

    src_mask = jnp.ones((B, Ts), jnp.float32)
    trg_mask = jnp.ones((B, Tt), jnp.float32)

    enc_bias = compute_bias(Ts, Ts, params["encoder"]["rel_bias"],
                            bidirectional=True)                      # (H,Ts,Ts)
    dec_pos = compute_bias(Tt, Tt, params["decoder"]["rel_bias"],
                           bidirectional=False)
    causal = (jnp.arange(Tt)[None, :] <= jnp.arange(Tt)[:, None]).astype(jnp.float32)
    dec_bias = dec_pos + (1.0 - causal)[None] * NEG                  # (H,Tt,Tt)

    src_amask = (1.0 - src_mask)[:, None, :] * NEG                   # (B,1,Ts)
    trg_amask = (1.0 - trg_mask)[:, None, :] * NEG                   # (B,1,Tt)

    logits_pad = t5_fused(params, src_emb, trg_emb, enc_bias, dec_bias,
                          src_amask, trg_amask)                      # (B,Tt,128)
    return logits_pad[..., :VOCAB]           # nn.Linear(d_model, vocab)


# ============================ deterministic params ============================

def init_params(key):
    kit = iter(jax.random.split(key, 64))

    def w(shape, scale=0.05):
        return jax.random.normal(next(kit), shape, jnp.float32) * scale

    def lns(n):
        return jnp.ones((n, 1, D_MODEL), jnp.float32)

    enc = {
        "ln1": lns(N_LAYERS),
        "wqkv": w((N_LAYERS, D_MODEL, 3 * INNER)),      # [Q | K | V] lane-packed
        "wo_attn": w((N_LAYERS, INNER, D_MODEL)),
        "ln2": lns(N_LAYERS),
        "wi": w((N_LAYERS, D_MODEL, D_FF)),
        "wo_ffn": w((N_LAYERS, D_FF, D_MODEL)),
        "final_ln": jnp.ones((1, D_MODEL), jnp.float32),
        "rel_bias": w((NUM_BUCKETS, N_HEADS)),
    }
    dec = {
        "ln1": lns(N_LAYERS),
        "sa_wqkv": w((N_LAYERS, D_MODEL, 3 * INNER)),
        "sa_wo": w((N_LAYERS, INNER, D_MODEL)),
        "ln2": lns(N_LAYERS),
        "ca_wq": w((N_LAYERS, D_MODEL, INNER)),
        "ca_wkv": w((N_LAYERS, D_MODEL, 2 * INNER)),    # [K | V] lane-packed
        "ca_wo": w((N_LAYERS, INNER, D_MODEL)),
        "ln3": lns(N_LAYERS),
        "wi": w((N_LAYERS, D_MODEL, D_FF)),
        "wo_ffn": w((N_LAYERS, D_FF, D_MODEL)),
        "final_ln": jnp.ones((1, D_MODEL), jnp.float32),
        "rel_bias": w((NUM_BUCKETS, N_HEADS)),
    }

    out_w = w((D_MODEL, VOCAB))
    out_b = w((VOCAB,))
    out_w_pad = jnp.zeros((D_MODEL, VOCAB_PAD), jnp.float32).at[:, :VOCAB].set(out_w)
    out_b_pad = jnp.zeros((1, VOCAB_PAD), jnp.float32).at[:, :VOCAB].set(out_b)

    return {
        "shared_emb": w((VOCAB, D_MODEL), 1.0),
        "encoder": enc,
        "decoder": dec,
        "out_w_pad": out_w_pad,
        "out_b_pad": out_b_pad,
    }


if __name__ == "__main__":
    key = jax.random.PRNGKey(0)
    k_params, k_src, k_trg = jax.random.split(key, 3)
    params = init_params(k_params)
    src = jax.random.randint(k_src, (2, 8), 0, VOCAB, jnp.int32)
    trg = jax.random.randint(k_trg, (2, 8), 0, VOCAB, jnp.int32)

    out = jax.jit(t5_network)(params, src, trg)
    jax.block_until_ready(out)

    assert out.shape == (2, 8, VOCAB), out.shape
    assert out.dtype == jnp.float32
    assert bool(jnp.all(jnp.isfinite(out)))
    print("KERNEL_OK")
</pallas_src>

<mosaic_0001>
module attributes {stable_mosaic.version = 11 : i64} {
  func.func @_t5_fused_kernel(%arg0: i32, %arg1: memref<1x8x32xf32, #tpu.memory_space<vmem>>, %arg2: memref<1x8x32xf32, #tpu.memory_space<vmem>>, %arg3: memref<4x8x8xf32, #tpu.memory_space<vmem>>, %arg4: memref<4x8x8xf32, #tpu.memory_space<vmem>>, %arg5: memref<1x1x8xf32, #tpu.memory_space<vmem>>, %arg6: memref<1x1x8xf32, #tpu.memory_space<vmem>>, %arg7: memref<2x1x32xf32, #tpu.memory_space<vmem>>, %arg8: memref<2x32x96xf32, #tpu.memory_space<vmem>>, %arg9: memref<2x32x32xf32, #tpu.memory_space<vmem>>, %arg10: memref<2x1x32xf32, #tpu.memory_space<vmem>>, %arg11: memref<2x32x64xf32, #tpu.memory_space<vmem>>, %arg12: memref<2x64x32xf32, #tpu.memory_space<vmem>>, %arg13: memref<1x32xf32, #tpu.memory_space<vmem>>, %arg14: memref<2x1x32xf32, #tpu.memory_space<vmem>>, %arg15: memref<2x32x96xf32, #tpu.memory_space<vmem>>, %arg16: memref<2x32x32xf32, #tpu.memory_space<vmem>>, %arg17: memref<2x1x32xf32, #tpu.memory_space<vmem>>, %arg18: memref<2x32x32xf32, #tpu.memory_space<vmem>>, %arg19: memref<2x32x64xf32, #tpu.memory_space<vmem>>, %arg20: memref<2x32x32xf32, #tpu.memory_space<vmem>>, %arg21: memref<2x1x32xf32, #tpu.memory_space<vmem>>, %arg22: memref<2x32x64xf32, #tpu.memory_space<vmem>>, %arg23: memref<2x64x32xf32, #tpu.memory_space<vmem>>, %arg24: memref<1x32xf32, #tpu.memory_space<vmem>>, %arg25: memref<32x128xf32, #tpu.memory_space<vmem>>, %arg26: memref<1x128xf32, #tpu.memory_space<vmem>>, %arg27: memref<1x8x128xf32, #tpu.memory_space<vmem>>) attributes {dimension_semantics = [#tpu.dimension_semantics<parallel>], iteration_bounds = array<i64: 2>, scalar_prefetch = 0 : i64, scratch_operands = 0 : i64, tpu.core_type = #tpu.core_type<tc>, window_params = [{transform_indices = @transform_0, window_bounds = array<i64: 1, 8, 32>}, {transform_indices = @transform_1, window_bounds = array<i64: 1, 8, 32>}, {pipeline_mode = #tpu.pipeline_mode<synchronous>, transform_indices = @transform_2, window_bounds = array<i64: 4, 8, 8>}, {pipeline_mode = #tpu.pipeline_mode<synchronous>, transform_indices = @transform_3, window_bounds = array<i64: 4, 8, 8>}, {transform_indices = @transform_4, window_bounds = array<i64: 1, 1, 8>}, {transform_indices = @transform_5, window_bounds = array<i64: 1, 1, 8>}, {pipeline_mode = #tpu.pipeline_mode<synchronous>, transform_indices = @transform_6, window_bounds = array<i64: 2, 1, 32>}, {pipeline_mode = #tpu.pipeline_mode<synchronous>, transform_indices = @transform_7, window_bounds = array<i64: 2, 32, 96>}, {pipeline_mode = #tpu.pipeline_mode<synchronous>, transform_indices = @transform_8, window_bounds = array<i64: 2, 32, 32>}, {pipeline_mode = #tpu.pipeline_mode<synchronous>, transform_indices = @transform_9, window_bounds = array<i64: 2, 1, 32>}, {pipeline_mode = #tpu.pipeline_mode<synchronous>, transform_indices = @transform_10, window_bounds = array<i64: 2, 32, 64>}, {pipeline_mode = #tpu.pipeline_mode<synchronous>, transform_indices = @transform_11, window_bounds = array<i64: 2, 64, 32>}, {pipeline_mode = #tpu.pipeline_mode<synchronous>, transform_indices = @transform_12, window_bounds = array<i64: 1, 32>}, {pipeline_mode = #tpu.pipeline_mode<synchronous>, transform_indices = @transform_13, window_bounds = array<i64: 2, 1, 32>}, {pipeline_mode = #tpu.pipeline_mode<synchronous>, transform_indices = @transform_14, window_bounds = array<i64: 2, 32, 96>}, {pipeline_mode = #tpu.pipeline_mode<synchronous>, transform_indices = @transform_15, window_bounds = array<i64: 2, 32, 32>}, {pipeline_mode = #tpu.pipeline_mode<synchronous>, transform_indices = @transform_16, window_bounds = array<i64: 2, 1, 32>}, {pipeline_mode = #tpu.pipeline_mode<synchronous>, transform_indices = @transform_17, window_bounds = array<i64: 2, 32, 32>}, {pipeline_mode = #tpu.pipeline_mode<synchronous>, transform_indices = @transform_18, window_bounds = array<i64: 2, 32, 64>}, {pipeline_mode = #tpu.pipeline_mode<synchronous>, transform_indices = @transform_19, window_bounds = array<i64: 2, 32, 32>}, {pipeline_mode = #tpu.pipeline_mode<synchronous>, transform_indices = @transform_20, window_bounds = array<i64: 2, 1, 32>}, {pipeline_mode = #tpu.pipeline_mode<synchronous>, transform_indices = @transform_21, window_bounds = array<i64: 2, 32, 64>}, {pipeline_mode = #tpu.pipeline_mode<synchronous>, transform_indices = @transform_22, window_bounds = array<i64: 2, 64, 32>}, {pipeline_mode = #tpu.pipeline_mode<synchronous>, transform_indices = @transform_23, window_bounds = array<i64: 1, 32>}, {pipeline_mode = #tpu.pipeline_mode<synchronous>, transform_indices = @transform_24, window_bounds = array<i64: 32, 128>}, {pipeline_mode = #tpu.pipeline_mode<synchronous>, transform_indices = @transform_25, window_bounds = array<i64: 1, 128>}, {transform_indices = @transform_26, window_bounds = array<i64: 1, 8, 128>}]} {
    %c0 = arith.constant 0 : index
    %c0_0 = arith.constant 0 : index
    %c0_1 = arith.constant 0 : index
    %0 = vector.load %arg1[%c0, %c0_0, %c0_1] : memref<1x8x32xf32, #tpu.memory_space<vmem>>, vector<1x8x32xf32>
    %1 = vector.shape_cast %0 : vector<1x8x32xf32> to vector<8x32xf32>
    %c0_2 = arith.constant 0 : index
    %c0_3 = arith.constant 0 : index
    %c0_4 = arith.constant 0 : index
    %2 = vector.load %arg2[%c0_2, %c0_3, %c0_4] : memref<1x8x32xf32, #tpu.memory_space<vmem>>, vector<1x8x32xf32>
    %3 = vector.shape_cast %2 : vector<1x8x32xf32> to vector<8x32xf32>
    %c0_5 = arith.constant 0 : index
    %c0_6 = arith.constant 0 : index
    %c0_7 = arith.constant 0 : index
    %4 = vector.load %arg5[%c0_5, %c0_6, %c0_7] : memref<1x1x8xf32, #tpu.memory_space<vmem>>, vector<1x1x8xf32>
    %5 = vector.shape_cast %4 : vector<1x1x8xf32> to vector<1x8xf32>
    %c0_8 = arith.constant 0 : index
    %c0_9 = arith.constant 0 : index
    %c0_10 = arith.constant 0 : index
    %6 = vector.load %arg6[%c0_8, %c0_9, %c0_10] : memref<1x1x8xf32, #tpu.memory_space<vmem>>, vector<1x1x8xf32>
    %7 = vector.shape_cast %6 : vector<1x1x8xf32> to vector<1x8xf32>
    %c0_11 = arith.constant 0 : index
    %c0_12 = arith.constant 0 : index
    %c0_13 = arith.constant 0 : index
    %8 = vector.load %arg3[%c0_11, %c0_12, %c0_13] : memref<4x8x8xf32, #tpu.memory_space<vmem>>, vector<4x8x8xf32>
    %9 = vector.shape_cast %5 : vector<1x8xf32> to vector<1x1x8xf32>
    %10 = vector.broadcast %9 : vector<1x1x8xf32> to vector<4x8x8xf32>
    %11 = arith.addf %8, %10 : vector<4x8x8xf32>
    %c0_14 = arith.constant 0 : index
    %c0_15 = arith.constant 0 : index
    %c0_16 = arith.constant 0 : index
    %12 = vector.load %arg4[%c0_14, %c0_15, %c0_16] : memref<4x8x8xf32, #tpu.memory_space<vmem>>, vector<4x8x8xf32>
    %13 = vector.shape_cast %7 : vector<1x8xf32> to vector<1x1x8xf32>
    %14 = vector.broadcast %13 : vector<1x1x8xf32> to vector<4x8x8xf32>
    %15 = arith.addf %12, %14 : vector<4x8x8xf32>
    %c0_17 = arith.constant 0 : index
    %c0_18 = arith.constant 0 : index
    %c0_19 = arith.constant 0 : index
    %16 = vector.load %arg7[%c0_17, %c0_18, %c0_19] : memref<2x1x32xf32, #tpu.memory_space<vmem>>, vector<1x1x32xf32>
    %17 = vector.shape_cast %16 : vector<1x1x32xf32> to vector<1x32xf32>
    %c0_20 = arith.constant 0 : index
    %c0_21 = arith.constant 0 : index
    %c0_22 = arith.constant 0 : index
    %18 = vector.load %arg8[%c0_20, %c0_21, %c0_22] : memref<2x32x96xf32, #tpu.memory_space<vmem>>, vector<1x32x96xf32>
    %19 = vector.shape_cast %18 : vector<1x32x96xf32> to vector<32x96xf32>
    %c0_23 = arith.constant 0 : index
    %c0_24 = arith.constant 0 : index
    %c0_25 = arith.constant 0 : index
    %20 = vector.load %arg9[%c0_23, %c0_24, %c0_25] : memref<2x32x32xf32, #tpu.memory_space<vmem>>, vector<1x32x32xf32>
    %21 = vector.shape_cast %20 : vector<1x32x32xf32> to vector<32x32xf32>
    %22 = arith.mulf %1, %1 : vector<8x32xf32>
    %cst = arith.constant dense<0.000000e+00> : vector<8xf32>
    %23 = vector.multi_reduction <add>, %22, %cst [1] : vector<8x32xf32> to vector<8xf32>
    %24 = vector.shape_cast %23 : vector<8xf32> to vector<8x1xf32>
    %cst_26 = arith.constant 3.200000e+01 : f32
    %25 = vector.broadcast %cst_26 : f32 to vector<8x1xf32>
    %26 = arith.divf %24, %25 : vector<8x1xf32>
    %cst_27 = arith.constant 9.99999997E-7 : f32
    %27 = vector.broadcast %cst_27 : f32 to vector<8x1xf32>
    %28 = arith.addf %26, %27 : vector<8x1xf32>
    %29 = math.rsqrt %28 : vector<8x1xf32>
    %30 = vector.broadcast %29 : vector<8x1xf32> to vector<8x32xf32>
    %31 = arith.mulf %1, %30 : vector<8x32xf32>
    %32 = vector.broadcast %17 : vector<1x32xf32> to vector<8x32xf32>
    %33 = arith.mulf %31, %32 : vector<8x32xf32>
    %cst_28 = arith.constant dense<0.000000e+00> : vector<8x96xf32>
    %34 = tpu.matmul %33, %19, %cst_28 {dimension_numbers = #tpu.dot_dimension_numbers<[1], [0], [0], [1], [0, 0, 1, 1], [], []>} : vector<8x32xf32>, vector<32x96xf32>, vector<8x96xf32> -> vector<8x96xf32>
    %35 = vector.extract_strided_slice %34 {offsets = [0, 0], sizes = [8, 32], strides = [1, 1]} : vector<8x96xf32> to vector<8x32xf32>
    %36 = vector.extract_strided_slice %34 {offsets = [0, 32], sizes = [8, 32], strides = [1, 1]} : vector<8x96xf32> to vector<8x32xf32>
    %37 = vector.extract_strided_slice %34 {offsets = [0, 64], sizes = [8, 32], strides = [1, 1]} : vector<8x96xf32> to vector<8x32xf32>
    %38 = vector.extract_strided_slice %35 {offsets = [0, 0], sizes = [8, 8], strides = [1, 1]} : vector<8x32xf32> to vector<8x8xf32>
    %39 = vector.extract_strided_slice %36 {offsets = [0, 0], sizes = [8, 8], strides = [1, 1]} : vector<8x32xf32> to vector<8x8xf32>
    %40 = tpu.transpose %39, [1, 0] : vector<8x8xf32> -> vector<8x8xf32>
    %cst_29 = arith.constant dense<0.000000e+00> : vector<8x8xf32>
    %41 = tpu.matmul %38, %40, %cst_29 {dimension_numbers = #tpu.dot_dimension_numbers<[1], [0], [0], [1], [0, 0, 1, 1], [], []>} : vector<8x8xf32>, vector<8x8xf32>, vector<8x8xf32> -> vector<8x8xf32>
    %42 = vector.extract_strided_slice %11 {offsets = [0, 0, 0], sizes = [1, 8, 8], strides = [1, 1, 1]} : vector<4x8x8xf32> to vector<1x8x8xf32>
    %43 = vector.shape_cast %42 : vector<1x8x8xf32> to vector<8x8xf32>
    %44 = arith.addf %41, %43 : vector<8x8xf32>
    %cst_30 = arith.constant dense<0xFF800000> : vector<8xf32>
    %45 = vector.multi_reduction <maximumf>, %44, %cst_30 [1] : vector<8x8xf32> to vector<8xf32>
    %46 = vector.shape_cast %45 : vector<8xf32> to vector<8x1xf32>
    %47 = vector.broadcast %46 : vector<8x1xf32> to vector<8x8xf32>
    %48 = arith.subf %44, %47 : vector<8x8xf32>
    %49 = math.exp %48 : vector<8x8xf32>
    %cst_31 = arith.constant dense<0.000000e+00> : vector<8xf32>
    %50 = vector.multi_reduction <add>, %49, %cst_31 [1] : vector<8x8xf32> to vector<8xf32>
    %51 = vector.shape_cast %50 : vector<8xf32> to vector<8x1xf32>
    %52 = tpu.reciprocal %51 {approx = true} : vector<8x1xf32> -> vector<8x1xf32>
    %53 = vector.broadcast %52 : vector<8x1xf32> to vector<8x8xf32>
    %54 = arith.mulf %49, %53 : vector<8x8xf32>
    %55 = vector.extract_strided_slice %37 {offsets = [0, 0], sizes = [8, 8], strides = [1, 1]} : vector<8x32xf32> to vector<8x8xf32>
    %cst_32 = arith.constant dense<0.000000e+00> : vector<8x8xf32>
    %56 = tpu.matmul %54, %55, %cst_32 {dimension_numbers = #tpu.dot_dimension_numbers<[1], [0], [0], [1], [0, 0, 1, 1], [], []>} : vector<8x8xf32>, vector<8x8xf32>, vector<8x8xf32> -> vector<8x8xf32>
    %57 = vector.extract_strided_slice %35 {offsets = [0, 8], sizes = [8, 8], strides = [1, 1]} : vector<8x32xf32> to vector<8x8xf32>
    %58 = vector.extract_strided_slice %36 {offsets = [0, 8], sizes = [8, 8], strides = [1, 1]} : vector<8x32xf32> to vector<8x8xf32>
    %59 = tpu.transpose %58, [1, 0] : vector<8x8xf32> -> vector<8x8xf32>
    %cst_33 = arith.constant dense<0.000000e+00> : vector<8x8xf32>
    %60 = tpu.matmul %57, %59, %cst_33 {dimension_numbers = #tpu.dot_dimension_numbers<[1], [0], [0], [1], [0, 0, 1, 1], [], []>} : vector<8x8xf32>, vector<8x8xf32>, vector<8x8xf32> -> vector<8x8xf32>
    %61 = vector.extract_strided_slice %11 {offsets = [1, 0, 0], sizes = [1, 8, 8], strides = [1, 1, 1]} : vector<4x8x8xf32> to vector<1x8x8xf32>
    %62 = vector.shape_cast %61 : vector<1x8x8xf32> to vector<8x8xf32>
    %63 = arith.addf %60, %62 : vector<8x8xf32>
    %cst_34 = arith.constant dense<0xFF800000> : vector<8xf32>
    %64 = vector.multi_reduction <maximumf>, %63, %cst_34 [1] : vector<8x8xf32> to vector<8xf32>
    %65 = vector.shape_cast %64 : vector<8xf32> to vector<8x1xf32>
    %66 = vector.broadcast %65 : vector<8x1xf32> to vector<8x8xf32>
    %67 = arith.subf %63, %66 : vector<8x8xf32>
    %68 = math.exp %67 : vector<8x8xf32>
    %cst_35 = arith.constant dense<0.000000e+00> : vector<8xf32>
    %69 = vector.multi_reduction <add>, %68, %cst_35 [1] : vector<8x8xf32> to vector<8xf32>
    %70 = vector.shape_cast %69 : vector<8xf32> to vector<8x1xf32>
    %71 = tpu.reciprocal %70 {approx = true} : vector<8x1xf32> -> vector<8x1xf32>
    %72 = vector.broadcast %71 : vector<8x1xf32> to vector<8x8xf32>
    %73 = arith.mulf %68, %72 : vector<8x8xf32>
    %74 = vector.extract_strided_slice %37 {offsets = [0, 8], sizes = [8, 8], strides = [1, 1]} : vector<8x32xf32> to vector<8x8xf32>
    %cst_36 = arith.constant dense<0.000000e+00> : vector<8x8xf32>
    %75 = tpu.matmul %73, %74, %cst_36 {dimension_numbers = #tpu.dot_dimension_numbers<[1], [0], [0], [1], [0, 0, 1, 1], [], []>} : vector<8x8xf32>, vector<8x8xf32>, vector<8x8xf32> -> vector<8x8xf32>
    %76 = vector.extract_strided_slice %35 {offsets = [0, 16], sizes = [8, 8], strides = [1, 1]} : vector<8x32xf32> to vector<8x8xf32>
    %77 = vector.extract_strided_slice %36 {offsets = [0, 16], sizes = [8, 8], strides = [1, 1]} : vector<8x32xf32> to vector<8x8xf32>
    %78 = tpu.transpose %77, [1, 0] : vector<8x8xf32> -> vector<8x8xf32>
    %cst_37 = arith.constant dense<0.000000e+00> : vector<8x8xf32>
    %79 = tpu.matmul %76, %78, %cst_37 {dimension_numbers = #tpu.dot_dimension_numbers<[1], [0], [0], [1], [0, 0, 1, 1], [], []>} : vector<8x8xf32>, vector<8x8xf32>, vector<8x8xf32> -> vector<8x8xf32>
    %80 = vector.extract_strided_slice %11 {offsets = [2, 0, 0], sizes = [1, 8, 8], strides = [1, 1, 1]} : vector<4x8x8xf32> to vector<1x8x8xf32>
    %81 = vector.shape_cast %80 : vector<1x8x8xf32> to vector<8x8xf32>
    %82 = arith.addf %79, %81 : vector<8x8xf32>
    %cst_38 = arith.constant dense<0xFF800000> : vector<8xf32>
    %83 = vector.multi_reduction <maximumf>, %82, %cst_38 [1] : vector<8x8xf32> to vector<8xf32>
    %84 = vector.shape_cast %83 : vector<8xf32> to vector<8x1xf32>
    %85 = vector.broadcast %84 : vector<8x1xf32> to vector<8x8xf32>
    %86 = arith.subf %82, %85 : vector<8x8xf32>
    %87 = math.exp %86 : vector<8x8xf32>
    %cst_39 = arith.constant dense<0.000000e+00> : vector<8xf32>
    %88 = vector.multi_reduction <add>, %87, %cst_39 [1] : vector<8x8xf32> to vector<8xf32>
    %89 = vector.shape_cast %88 : vector<8xf32> to vector<8x1xf32>
    %90 = tpu.reciprocal %89 {approx = true} : vector<8x1xf32> -> vector<8x1xf32>
    %91 = vector.broadcast %90 : vector<8x1xf32> to vector<8x8xf32>
    %92 = arith.mulf %87, %91 : vector<8x8xf32>
    %93 = vector.extract_strided_slice %37 {offsets = [0, 16], sizes = [8, 8], strides = [1, 1]} : vector<8x32xf32> to vector<8x8xf32>
    %cst_40 = arith.constant dense<0.000000e+00> : vector<8x8xf32>
    %94 = tpu.matmul %92, %93, %cst_40 {dimension_numbers = #tpu.dot_dimension_numbers<[1], [0], [0], [1], [0, 0, 1, 1], [], []>} : vector<8x8xf32>, vector<8x8xf32>, vector<8x8xf32> -> vector<8x8xf32>
    %95 = vector.extract_strided_slice %35 {offsets = [0, 24], sizes = [8, 8], strides = [1, 1]} : vector<8x32xf32> to vector<8x8xf32>
    %96 = vector.extract_strided_slice %36 {offsets = [0, 24], sizes = [8, 8], strides = [1, 1]} : vector<8x32xf32> to vector<8x8xf32>
    %97 = tpu.transpose %96, [1, 0] : vector<8x8xf32> -> vector<8x8xf32>
    %cst_41 = arith.constant dense<0.000000e+00> : vector<8x8xf32>
    %98 = tpu.matmul %95, %97, %cst_41 {dimension_numbers = #tpu.dot_dimension_numbers<[1], [0], [0], [1], [0, 0, 1, 1], [], []>} : vector<8x8xf32>, vector<8x8xf32>, vector<8x8xf32> -> vector<8x8xf32>
    %99 = vector.extract_strided_slice %11 {offsets = [3, 0, 0], sizes = [1, 8, 8], strides = [1, 1, 1]} : vector<4x8x8xf32> to vector<1x8x8xf32>
    %100 = vector.shape_cast %99 : vector<1x8x8xf32> to vector<8x8xf32>
    %101 = arith.addf %98, %100 : vector<8x8xf32>
    %cst_42 = arith.constant dense<0xFF800000> : vector<8xf32>
    %102 = vector.multi_reduction <maximumf>, %101, %cst_42 [1] : vector<8x8xf32> to vector<8xf32>
    %103 = vector.shape_cast %102 : vector<8xf32> to vector<8x1xf32>
    %104 = vector.broadcast %103 : vector<8x1xf32> to vector<8x8xf32>
    %105 = arith.subf %101, %104 : vector<8x8xf32>
    %106 = math.exp %105 : vector<8x8xf32>
    %cst_43 = arith.constant dense<0.000000e+00> : vector<8xf32>
    %107 = vector.multi_reduction <add>, %106, %cst_43 [1] : vector<8x8xf32> to vector<8xf32>
    %108 = vector.shape_cast %107 : vector<8xf32> to vector<8x1xf32>
    %109 = tpu.reciprocal %108 {approx = true} : vector<8x1xf32> -> vector<8x1xf32>
    %110 = vector.broadcast %109 : vector<8x1xf32> to vector<8x8xf32>
    %111 = arith.mulf %106, %110 : vector<8x8xf32>
    %112 = vector.extract_strided_slice %37 {offsets = [0, 24], sizes = [8, 8], strides = [1, 1]} : vector<8x32xf32> to vector<8x8xf32>
    %cst_44 = arith.constant dense<0.000000e+00> : vector<8x8xf32>
    %113 = tpu.matmul %111, %112, %cst_44 {dimension_numbers = #tpu.dot_dimension_numbers<[1], [0], [0], [1], [0, 0, 1, 1], [], []>} : vector<8x8xf32>, vector<8x8xf32>, vector<8x8xf32> -> vector<8x8xf32>
    %114 = tpu.concatenate %56, %75, %94, %113 in 1 : vector<8x8xf32>, vector<8x8xf32>, vector<8x8xf32>, vector<8x8xf32> -> vector<8x32xf32>
    %cst_45 = arith.constant dense<0.000000e+00> : vector<8x32xf32>
    %115 = tpu.matmul %114, %21, %cst_45 {dimension_numbers = #tpu.dot_dimension_numbers<[1], [0], [0], [1], [0, 0, 1, 1], [], []>} : vector<8x32xf32>, vector<32x32xf32>, vector<8x32xf32> -> vector<8x32xf32>
    %116 = arith.addf %1, %115 : vector<8x32xf32>
    %c0_46 = arith.constant 0 : index
    %c0_47 = arith.constant 0 : index
    %c0_48 = arith.constant 0 : index
    %117 = vector.load %arg10[%c0_46, %c0_47, %c0_48] : memref<2x1x32xf32, #tpu.memory_space<vmem>>, vector<1x1x32xf32>
    %118 = vector.shape_cast %117 : vector<1x1x32xf32> to vector<1x32xf32>
    %c0_49 = arith.constant 0 : index
    %c0_50 = arith.constant 0 : index
    %c0_51 = arith.constant 0 : index
    %119 = vector.load %arg11[%c0_49, %c0_50, %c0_51] : memref<2x32x64xf32, #tpu.memory_space<vmem>>, vector<1x32x64xf32>
    %120 = vector.shape_cast %119 : vector<1x32x64xf32> to vector<32x64xf32>
    %c0_52 = arith.constant 0 : index
    %c0_53 = arith.constant 0 : index
    %c0_54 = arith.constant 0 : index
    %121 = vector.load %arg12[%c0_52, %c0_53, %c0_54] : memref<2x64x32xf32, #tpu.memory_space<vmem>>, vector<1x64x32xf32>
    %122 = vector.shape_cast %121 : vector<1x64x32xf32> to vector<64x32xf32>
    %123 = arith.mulf %116, %116 : vector<8x32xf32>
    %cst_55 = arith.constant dense<0.000000e+00> : vector<8xf32>
    %124 = vector.multi_reduction <add>, %123, %cst_55 [1] : vector<8x32xf32> to vector<8xf32>
    %125 = vector.shape_cast %124 : vector<8xf32> to vector<8x1xf32>
    %cst_56 = arith.constant 3.200000e+01 : f32
    %126 = vector.broadcast %cst_56 : f32 to vector<8x1xf32>
    %127 = arith.divf %125, %126 : vector<8x1xf32>
    %cst_57 = arith.constant 9.99999997E-7 : f32
    %128 = vector.broadcast %cst_57 : f32 to vector<8x1xf32>
    %129 = arith.addf %127, %128 : vector<8x1xf32>
    %130 = math.rsqrt %129 : vector<8x1xf32>
    %131 = vector.broadcast %130 : vector<8x1xf32> to vector<8x32xf32>
    %132 = arith.mulf %116, %131 : vector<8x32xf32>
    %133 = vector.broadcast %118 : vector<1x32xf32> to vector<8x32xf32>
    %134 = arith.mulf %132, %133 : vector<8x32xf32>
    %cst_58 = arith.constant dense<0.000000e+00> : vector<8x64xf32>
    %135 = tpu.matmul %134, %120, %cst_58 {dimension_numbers = #tpu.dot_dimension_numbers<[1], [0], [0], [1], [0, 0, 1, 1], [], []>} : vector<8x32xf32>, vector<32x64xf32>, vector<8x64xf32> -> vector<8x64xf32>
    %cst_59 = arith.constant 0.000000e+00 : f32
    %136 = vector.broadcast %cst_59 : f32 to vector<8x64xf32>
    %137 = arith.maximumf %135, %136 : vector<8x64xf32>
    %cst_60 = arith.constant dense<0.000000e+00> : vector<8x32xf32>
    %138 = tpu.matmul %137, %122, %cst_60 {dimension_numbers = #tpu.dot_dimension_numbers<[1], [0], [0], [1], [0, 0, 1, 1], [], []>} : vector<8x64xf32>, vector<64x32xf32>, vector<8x32xf32> -> vector<8x32xf32>
    %139 = arith.addf %116, %138 : vector<8x32xf32>
    %c1 = arith.constant 1 : index
    %c0_61 = arith.constant 0 : index
    %c0_62 = arith.constant 0 : index
    %140 = vector.load %arg7[%c1, %c0_61, %c0_62] : memref<2x1x32xf32, #tpu.memory_space<vmem>>, vector<1x1x32xf32>
    %141 = vector.shape_cast %140 : vector<1x1x32xf32> to vector<1x32xf32>
    %c1_63 = arith.constant 1 : index
    %c0_64 = arith.constant 0 : index
    %c0_65 = arith.constant 0 : index
    %142 = vector.load %arg8[%c1_63, %c0_64, %c0_65] : memref<2x32x96xf32, #tpu.memory_space<vmem>>, vector<1x32x96xf32>
    %143 = vector.shape_cast %142 : vector<1x32x96xf32> to vector<32x96xf32>
    %c1_66 = arith.constant 1 : index
    %c0_67 = arith.constant 0 : index
    %c0_68 = arith.constant 0 : index
    %144 = vector.load %arg9[%c1_66, %c0_67, %c0_68] : memref<2x32x32xf32, #tpu.memory_space<vmem>>, vector<1x32x32xf32>
    %145 = vector.shape_cast %144 : vector<1x32x32xf32> to vector<32x32xf32>
    %146 = arith.mulf %139, %139 : vector<8x32xf32>
    %cst_69 = arith.constant dense<0.000000e+00> : vector<8xf32>
    %147 = vector.multi_reduction <add>, %146, %cst_69 [1] : vector<8x32xf32> to vector<8xf32>
    %148 = vector.shape_cast %147 : vector<8xf32> to vector<8x1xf32>
    %cst_70 = arith.constant 3.200000e+01 : f32
    %149 = vector.broadcast %cst_70 : f32 to vector<8x1xf32>
    %150 = arith.divf %148, %149 : vector<8x1xf32>
    %cst_71 = arith.constant 9.99999997E-7 : f32
    %151 = vector.broadcast %cst_71 : f32 to vector<8x1xf32>
    %152 = arith.addf %150, %151 : vector<8x1xf32>
    %153 = math.rsqrt %152 : vector<8x1xf32>
    %154 = vector.broadcast %153 : vector<8x1xf32> to vector<8x32xf32>
    %155 = arith.mulf %139, %154 : vector<8x32xf32>
    %156 = vector.broadcast %141 : vector<1x32xf32> to vector<8x32xf32>
    %157 = arith.mulf %155, %156 : vector<8x32xf32>
    %cst_72 = arith.constant dense<0.000000e+00> : vector<8x96xf32>
    %158 = tpu.matmul %157, %143, %cst_72 {dimension_numbers = #tpu.dot_dimension_numbers<[1], [0], [0], [1], [0, 0, 1, 1], [], []>} : vector<8x32xf32>, vector<32x96xf32>, vector<8x96xf32> -> vector<8x96xf32>
    %159 = vector.extract_strided_slice %158 {offsets = [0, 0], sizes = [8, 32], strides = [1, 1]} : vector<8x96xf32> to vector<8x32xf32>
    %160 = vector.extract_strided_slice %158 {offsets = [0, 32], sizes = [8, 32], strides = [1, 1]} : vector<8x96xf32> to vector<8x32xf32>
    %161 = vector.extract_strided_slice %158 {offsets = [0, 64], sizes = [8, 32], strides = [1, 1]} : vector<8x96xf32> to vector<8x32xf32>
    %162 = vector.extract_strided_slice %159 {offsets = [0, 0], sizes = [8, 8], strides = [1, 1]} : vector<8x32xf32> to vector<8x8xf32>
    %163 = vector.extract_strided_slice %160 {offsets = [0, 0], sizes = [8, 8], strides = [1, 1]} : vector<8x32xf32> to vector<8x8xf32>
    %164 = tpu.transpose %163, [1, 0] : vector<8x8xf32> -> vector<8x8xf32>
    %cst_73 = arith.constant dense<0.000000e+00> : vector<8x8xf32>
    %165 = tpu.matmul %162, %164, %cst_73 {dimension_numbers = #tpu.dot_dimension_numbers<[1], [0], [0], [1], [0, 0, 1, 1], [], []>} : vector<8x8xf32>, vector<8x8xf32>, vector<8x8xf32> -> vector<8x8xf32>
    %166 = vector.extract_strided_slice %11 {offsets = [0, 0, 0], sizes = [1, 8, 8], strides = [1, 1, 1]} : vector<4x8x8xf32> to vector<1x8x8xf32>
    %167 = vector.shape_cast %166 : vector<1x8x8xf32> to vector<8x8xf32>
    %168 = arith.addf %165, %167 : vector<8x8xf32>
    %cst_74 = arith.constant dense<0xFF800000> : vector<8xf32>
    %169 = vector.multi_reduction <maximumf>, %168, %cst_74 [1] : vector<8x8xf32> to vector<8xf32>
    %170 = vector.shape_cast %169 : vector<8xf32> to vector<8x1xf32>
    %171 = vector.broadcast %170 : vector<8x1xf32> to vector<8x8xf32>
    %172 = arith.subf %168, %171 : vector<8x8xf32>
    %173 = math.exp %172 : vector<8x8xf32>
    %cst_75 = arith.constant dense<0.000000e+00> : vector<8xf32>
    %174 = vector.multi_reduction <add>, %173, %cst_75 [1] : vector<8x8xf32> to vector<8xf32>
    %175 = vector.shape_cast %174 : vector<8xf32> to vector<8x1xf32>
    %176 = tpu.reciprocal %175 {approx = true} : vector<8x1xf32> -> vector<8x1xf32>
    %177 = vector.broadcast %176 : vector<8x1xf32> to vector<8x8xf32>
    %178 = arith.mulf %173, %177 : vector<8x8xf32>
    %179 = vector.extract_strided_slice %161 {offsets = [0, 0], sizes = [8, 8], strides = [1, 1]} : vector<8x32xf32> to vector<8x8xf32>
    %cst_76 = arith.constant dense<0.000000e+00> : vector<8x8xf32>
    %180 = tpu.matmul %178, %179, %cst_76 {dimension_numbers = #tpu.dot_dimension_numbers<[1], [0], [0], [1], [0, 0, 1, 1], [], []>} : vector<8x8xf32>, vector<8x8xf32>, vector<8x8xf32> -> vector<8x8xf32>
    %181 = vector.extract_strided_slice %159 {offsets = [0, 8], sizes = [8, 8], strides = [1, 1]} : vector<8x32xf32> to vector<8x8xf32>
    %182 = vector.extract_strided_slice %160 {offsets = [0, 8], sizes = [8, 8], strides = [1, 1]} : vector<8x32xf32> to vector<8x8xf32>
    %183 = tpu.transpose %182, [1, 0] : vector<8x8xf32> -> vector<8x8xf32>
    %cst_77 = arith.constant dense<0.000000e+00> : vector<8x8xf32>
    %184 = tpu.matmul %181, %183, %cst_77 {dimension_numbers = #tpu.dot_dimension_numbers<[1], [0], [0], [1], [0, 0, 1, 1], [], []>} : vector<8x8xf32>, vector<8x8xf32>, vector<8x8xf32> -> vector<8x8xf32>
    %185 = vector.extract_strided_slice %11 {offsets = [1, 0, 0], sizes = [1, 8, 8], strides = [1, 1, 1]} : vector<4x8x8xf32> to vector<1x8x8xf32>
    %186 = vector.shape_cast %185 : vector<1x8x8xf32> to vector<8x8xf32>
    %187 = arith.addf %184, %186 : vector<8x8xf32>
    %cst_78 = arith.constant dense<0xFF800000> : vector<8xf32>
    %188 = vector.multi_reduction <maximumf>, %187, %cst_78 [1] : vector<8x8xf32> to vector<8xf32>
    %189 = vector.shape_cast %188 : vector<8xf32> to vector<8x1xf32>
    %190 = vector.broadcast %189 : vector<8x1xf32> to vector<8x8xf32>
    %191 = arith.subf %187, %190 : vector<8x8xf32>
    %192 = math.exp %191 : vector<8x8xf32>
    %cst_79 = arith.constant dense<0.000000e+00> : vector<8xf32>
    %193 = vector.multi_reduction <add>, %192, %cst_79 [1] : vector<8x8xf32> to vector<8xf32>
    %194 = vector.shape_cast %193 : vector<8xf32> to vector<8x1xf32>
    %195 = tpu.reciprocal %194 {approx = true} : vector<8x1xf32> -> vector<8x1xf32>
    %196 = vector.broadcast %195 : vector<8x1xf32> to vector<8x8xf32>
    %197 = arith.mulf %192, %196 : vector<8x8xf32>
    %198 = vector.extract_strided_slice %161 {offsets = [0, 8], sizes = [8, 8], strides = [1, 1]} : vector<8x32xf32> to vector<8x8xf32>
    %cst_80 = arith.constant dense<0.000000e+00> : vector<8x8xf32>
    %199 = tpu.matmul %197, %198, %cst_80 {dimension_numbers = #tpu.dot_dimension_numbers<[1], [0], [0], [1], [0, 0, 1, 1], [], []>} : vector<8x8xf32>, vector<8x8xf32>, vector<8x8xf32> -> vector<8x8xf32>
    %200 = vector.extract_strided_slice %159 {offsets = [0, 16], sizes = [8, 8], strides = [1, 1]} : vector<8x32xf32> to vector<8x8xf32>
    %201 = vector.extract_strided_slice %160 {offsets = [0, 16], sizes = [8, 8], strides = [1, 1]} : vector<8x32xf32> to vector<8x8xf32>
    %202 = tpu.transpose %201, [1, 0] : vector<8x8xf32> -> vector<8x8xf32>
    %cst_81 = arith.constant dense<0.000000e+00> : vector<8x8xf32>
    %203 = tpu.matmul %200, %202, %cst_81 {dimension_numbers = #tpu.dot_dimension_numbers<[1], [0], [0], [1], [0, 0, 1, 1], [], []>} : vector<8x8xf32>, vector<8x8xf32>, vector<8x8xf32> -> vector<8x8xf32>
    %204 = vector.extract_strided_slice %11 {offsets = [2, 0, 0], sizes = [1, 8, 8], strides = [1, 1, 1]} : vector<4x8x8xf32> to vector<1x8x8xf32>
    %205 = vector.shape_cast %204 : vector<1x8x8xf32> to vector<8x8xf32>
    %206 = arith.addf %203, %205 : vector<8x8xf32>
    %cst_82 = arith.constant dense<0xFF800000> : vector<8xf32>
    %207 = vector.multi_reduction <maximumf>, %206, %cst_82 [1] : vector<8x8xf32> to vector<8xf32>
    %208 = vector.shape_cast %207 : vector<8xf32> to vector<8x1xf32>
    %209 = vector.broadcast %208 : vector<8x1xf32> to vector<8x8xf32>
    %210 = arith.subf %206, %209 : vector<8x8xf32>
    %211 = math.exp %210 : vector<8x8xf32>
    %cst_83 = arith.constant dense<0.000000e+00> : vector<8xf32>
    %212 = vector.multi_reduction <add>, %211, %cst_83 [1] : vector<8x8xf32> to vector<8xf32>
    %213 = vector.shape_cast %212 : vector<8xf32> to vector<8x1xf32>
    %214 = tpu.reciprocal %213 {approx = true} : vector<8x1xf32> -> vector<8x1xf32>
    %215 = vector.broadcast %214 : vector<8x1xf32> to vector<8x8xf32>
    %216 = arith.mulf %211, %215 : vector<8x8xf32>
    %217 = vector.extract_strided_slice %161 {offsets = [0, 16], sizes = [8, 8], strides = [1, 1]} : vector<8x32xf32> to vector<8x8xf32>
    %cst_84 = arith.constant dense<0.000000e+00> : vector<8x8xf32>
    %218 = tpu.matmul %216, %217, %cst_84 {dimension_numbers = #tpu.dot_dimension_numbers<[1], [0], [0], [1], [0, 0, 1, 1], [], []>} : vector<8x8xf32>, vector<8x8xf32>, vector<8x8xf32> -> vector<8x8xf32>
    %219 = vector.extract_strided_slice %159 {offsets = [0, 24], sizes = [8, 8], strides = [1, 1]} : vector<8x32xf32> to vector<8x8xf32>
    %220 = vector.extract_strided_slice %160 {offsets = [0, 24], sizes = [8, 8], strides = [1, 1]} : vector<8x32xf32> to vector<8x8xf32>
    %221 = tpu.transpose %220, [1, 0] : vector<8x8xf32> -> vector<8x8xf32>
    %cst_85 = arith.constant dense<0.000000e+00> : vector<8x8xf32>
    %222 = tpu.matmul %219, %221, %cst_85 {dimension_numbers = #tpu.dot_dimension_numbers<[1], [0], [0], [1], [0, 0, 1, 1], [], []>} : vector<8x8xf32>, vector<8x8xf32>, vector<8x8xf32> -> vector<8x8xf32>
    %223 = vector.extract_strided_slice %11 {offsets = [3, 0, 0], sizes = [1, 8, 8], strides = [1, 1, 1]} : vector<4x8x8xf32> to vector<1x8x8xf32>
    %224 = vector.shape_cast %223 : vector<1x8x8xf32> to vector<8x8xf32>
    %225 = arith.addf %222, %224 : vector<8x8xf32>
    %cst_86 = arith.constant dense<0xFF800000> : vector<8xf32>
    %226 = vector.multi_reduction <maximumf>, %225, %cst_86 [1] : vector<8x8xf32> to vector<8xf32>
    %227 = vector.shape_cast %226 : vector<8xf32> to vector<8x1xf32>
    %228 = vector.broadcast %227 : vector<8x1xf32> to vector<8x8xf32>
    %229 = arith.subf %225, %228 : vector<8x8xf32>
    %230 = math.exp %229 : vector<8x8xf32>
    %cst_87 = arith.constant dense<0.000000e+00> : vector<8xf32>
    %231 = vector.multi_reduction <add>, %230, %cst_87 [1] : vector<8x8xf32> to vector<8xf32>
    %232 = vector.shape_cast %231 : vector<8xf32> to vector<8x1xf32>
    %233 = tpu.reciprocal %232 {approx = true} : vector<8x1xf32> -> vector<8x1xf32>
    %234 = vector.broadcast %233 : vector<8x1xf32> to vector<8x8xf32>
    %235 = arith.mulf %230, %234 : vector<8x8xf32>
    %236 = vector.extract_strided_slice %161 {offsets = [0, 24], sizes = [8, 8], strides = [1, 1]} : vector<8x32xf32> to vector<8x8xf32>
    %cst_88 = arith.constant dense<0.000000e+00> : vector<8x8xf32>
    %237 = tpu.matmul %235, %236, %cst_88 {dimension_numbers = #tpu.dot_dimension_numbers<[1], [0], [0], [1], [0, 0, 1, 1], [], []>} : vector<8x8xf32>, vector<8x8xf32>, vector<8x8xf32> -> vector<8x8xf32>
    %238 = tpu.concatenate %180, %199, %218, %237 in 1 : vector<8x8xf32>, vector<8x8xf32>, vector<8x8xf32>, vector<8x8xf32> -> vector<8x32xf32>
    %cst_89 = arith.constant dense<0.000000e+00> : vector<8x32xf32>
    %239 = tpu.matmul %238, %145, %cst_89 {dimension_numbers = #tpu.dot_dimension_numbers<[1], [0], [0], [1], [0, 0, 1, 1], [], []>} : vector<8x32xf32>, vector<32x32xf32>, vector<8x32xf32> -> vector<8x32xf32>
    %240 = arith.addf %139, %239 : vector<8x32xf32>
    %c1_90 = arith.constant 1 : index
    %c0_91 = arith.constant 0 : index
    %c0_92 = arith.constant 0 : index
    %241 = vector.load %arg10[%c1_90, %c0_91, %c0_92] : memref<2x1x32xf32, #tpu.memory_space<vmem>>, vector<1x1x32xf32>
    %242 = vector.shape_cast %241 : vector<1x1x32xf32> to vector<1x32xf32>
    %c1_93 = arith.constant 1 : index
    %c0_94 = arith.constant 0 : index
    %c0_95 = arith.constant 0 : index
    %243 = vector.load %arg11[%c1_93, %c0_94, %c0_95] : memref<2x32x64xf32, #tpu.memory_space<vmem>>, vector<1x32x64xf32>
    %244 = vector.shape_cast %243 : vector<1x32x64xf32> to vector<32x64xf32>
    %c1_96 = arith.constant 1 : index
    %c0_97 = arith.constant 0 : index
    %c0_98 = arith.constant 0 : index
    %245 = vector.load %arg12[%c1_96, %c0_97, %c0_98] : memref<2x64x32xf32, #tpu.memory_space<vmem>>, vector<1x64x32xf32>
    %246 = vector.shape_cast %245 : vector<1x64x32xf32> to vector<64x32xf32>
    %247 = arith.mulf %240, %240 : vector<8x32xf32>
    %cst_99 = arith.constant dense<0.000000e+00> : vector<8xf32>
    %248 = vector.multi_reduction <add>, %247, %cst_99 [1] : vector<8x32xf32> to vector<8xf32>
    %249 = vector.shape_cast %248 : vector<8xf32> to vector<8x1xf32>
    %cst_100 = arith.constant 3.200000e+01 : f32
    %250 = vector.broadcast %cst_100 : f32 to vector<8x1xf32>
    %251 = arith.divf %249, %250 : vector<8x1xf32>
    %cst_101 = arith.constant 9.99999997E-7 : f32
    %252 = vector.broadcast %cst_101 : f32 to vector<8x1xf32>
    %253 = arith.addf %251, %252 : vector<8x1xf32>
    %254 = math.rsqrt %253 : vector<8x1xf32>
    %255 = vector.broadcast %254 : vector<8x1xf32> to vector<8x32xf32>
    %256 = arith.mulf %240, %255 : vector<8x32xf32>
    %257 = vector.broadcast %242 : vector<1x32xf32> to vector<8x32xf32>
    %258 = arith.mulf %256, %257 : vector<8x32xf32>
    %cst_102 = arith.constant dense<0.000000e+00> : vector<8x64xf32>
    %259 = tpu.matmul %258, %244, %cst_102 {dimension_numbers = #tpu.dot_dimension_numbers<[1], [0], [0], [1], [0, 0, 1, 1], [], []>} : vector<8x32xf32>, vector<32x64xf32>, vector<8x64xf32> -> vector<8x64xf32>
    %cst_103 = arith.constant 0.000000e+00 : f32
    %260 = vector.broadcast %cst_103 : f32 to vector<8x64xf32>
    %261 = arith.maximumf %259, %260 : vector<8x64xf32>
    %cst_104 = arith.constant dense<0.000000e+00> : vector<8x32xf32>
    %262 = tpu.matmul %261, %246, %cst_104 {dimension_numbers = #tpu.dot_dimension_numbers<[1], [0], [0], [1], [0, 0, 1, 1], [], []>} : vector<8x64xf32>, vector<64x32xf32>, vector<8x32xf32> -> vector<8x32xf32>
    %263 = arith.addf %240, %262 : vector<8x32xf32>
    %c0_105 = arith.constant 0 : index
    %c0_106 = arith.constant 0 : index
    %264 = vector.load %arg13[%c0_105, %c0_106] : memref<1x32xf32, #tpu.memory_space<vmem>>, vector<1x32xf32>
    %265 = arith.mulf %263, %263 : vector<8x32xf32>
    %cst_107 = arith.constant dense<0.000000e+00> : vector<8xf32>
    %266 = vector.multi_reduction <add>, %265, %cst_107 [1] : vector<8x32xf32> to vector<8xf32>
    %267 = vector.shape_cast %266 : vector<8xf32> to vector<8x1xf32>
    %cst_108 = arith.constant 3.200000e+01 : f32
    %268 = vector.broadcast %cst_108 : f32 to vector<8x1xf32>
    %269 = arith.divf %267, %268 : vector<8x1xf32>
    %cst_109 = arith.constant 9.99999997E-7 : f32
    %270 = vector.broadcast %cst_109 : f32 to vector<8x1xf32>
    %271 = arith.addf %269, %270 : vector<8x1xf32>
    %272 = math.rsqrt %271 : vector<8x1xf32>
    %273 = vector.broadcast %272 : vector<8x1xf32> to vector<8x32xf32>
    %274 = arith.mulf %263, %273 : vector<8x32xf32>
    %275 = vector.broadcast %264 : vector<1x32xf32> to vector<8x32xf32>
    %276 = arith.mulf %274, %275 : vector<8x32xf32>
    %c0_110 = arith.constant 0 : index
    %c0_111 = arith.constant 0 : index
    %c0_112 = arith.constant 0 : index
    %277 = vector.load %arg14[%c0_110, %c0_111, %c0_112] : memref<2x1x32xf32, #tpu.memory_space<vmem>>, vector<1x1x32xf32>
    %278 = vector.shape_cast %277 : vector<1x1x32xf32> to vector<1x32xf32>
    %c0_113 = arith.constant 0 : index
    %c0_114 = arith.constant 0 : index
    %c0_115 = arith.constant 0 : index
    %279 = vector.load %arg15[%c0_113, %c0_114, %c0_115] : memref<2x32x96xf32, #tpu.memory_space<vmem>>, vector<1x32x96xf32>
    %280 = vector.shape_cast %279 : vector<1x32x96xf32> to vector<32x96xf32>
    %c0_116 = arith.constant 0 : index
    %c0_117 = arith.constant 0 : index
    %c0_118 = arith.constant 0 : index
    %281 = vector.load %arg16[%c0_116, %c0_117, %c0_118] : memref<2x32x32xf32, #tpu.memory_space<vmem>>, vector<1x32x32xf32>
    %282 = vector.shape_cast %281 : vector<1x32x32xf32> to vector<32x32xf32>
    %283 = arith.mulf %3, %3 : vector<8x32xf32>
    %cst_119 = arith.constant dense<0.000000e+00> : vector<8xf32>
    %284 = vector.multi_reduction <add>, %283, %cst_119 [1] : vector<8x32xf32> to vector<8xf32>
    %285 = vector.shape_cast %284 : vector<8xf32> to vector<8x1xf32>
    %cst_120 = arith.constant 3.200000e+01 : f32
    %286 = vector.broadcast %cst_120 : f32 to vector<8x1xf32>
    %287 = arith.divf %285, %286 : vector<8x1xf32>
    %cst_121 = arith.constant 9.99999997E-7 : f32
    %288 = vector.broadcast %cst_121 : f32 to vector<8x1xf32>
    %289 = arith.addf %287, %288 : vector<8x1xf32>
    %290 = math.rsqrt %289 : vector<8x1xf32>
    %291 = vector.broadcast %290 : vector<8x1xf32> to vector<8x32xf32>
    %292 = arith.mulf %3, %291 : vector<8x32xf32>
    %293 = vector.broadcast %278 : vector<1x32xf32> to vector<8x32xf32>
    %294 = arith.mulf %292, %293 : vector<8x32xf32>
    %cst_122 = arith.constant dense<0.000000e+00> : vector<8x96xf32>
    %295 = tpu.matmul %294, %280, %cst_122 {dimension_numbers = #tpu.dot_dimension_numbers<[1], [0], [0], [1], [0, 0, 1, 1], [], []>} : vector<8x32xf32>, vector<32x96xf32>, vector<8x96xf32> -> vector<8x96xf32>
    %296 = vector.extract_strided_slice %295 {offsets = [0, 0], sizes = [8, 32], strides = [1, 1]} : vector<8x96xf32> to vector<8x32xf32>
    %297 = vector.extract_strided_slice %295 {offsets = [0, 32], sizes = [8, 32], strides = [1, 1]} : vector<8x96xf32> to vector<8x32xf32>
    %298 = vector.extract_strided_slice %295 {offsets = [0, 64], sizes = [8, 32], strides = [1, 1]} : vector<8x96xf32> to vector<8x32xf32>
    %299 = vector.extract_strided_slice %296 {offsets = [0, 0], sizes = [8, 8], strides = [1, 1]} : vector<8x32xf32> to vector<8x8xf32>
    %300 = vector.extract_strided_slice %297 {offsets = [0, 0], sizes = [8, 8], strides = [1, 1]} : vector<8x32xf32> to vector<8x8xf32>
    %301 = tpu.transpose %300, [1, 0] : vector<8x8xf32> -> vector<8x8xf32>
    %cst_123 = arith.constant dense<0.000000e+00> : vector<8x8xf32>
    %302 = tpu.matmul %299, %301, %cst_123 {dimension_numbers = #tpu.dot_dimension_numbers<[1], [0], [0], [1], [0, 0, 1, 1], [], []>} : vector<8x8xf32>, vector<8x8xf32>, vector<8x8xf32> -> vector<8x8xf32>
    %303 = vector.extract_strided_slice %15 {offsets = [0, 0, 0], sizes = [1, 8, 8], strides = [1, 1, 1]} : vector<4x8x8xf32> to vector<1x8x8xf32>
    %304 = vector.shape_cast %303 : vector<1x8x8xf32> to vector<8x8xf32>
    %305 = arith.addf %302, %304 : vector<8x8xf32>
    %cst_124 = arith.constant dense<0xFF800000> : vector<8xf32>
    %306 = vector.multi_reduction <maximumf>, %305, %cst_124 [1] : vector<8x8xf32> to vector<8xf32>
    %307 = vector.shape_cast %306 : vector<8xf32> to vector<8x1xf32>
    %308 = vector.broadcast %307 : vector<8x1xf32> to vector<8x8xf32>
    %309 = arith.subf %305, %308 : vector<8x8xf32>
    %310 = math.exp %309 : vector<8x8xf32>
    %cst_125 = arith.constant dense<0.000000e+00> : vector<8xf32>
    %311 = vector.multi_reduction <add>, %310, %cst_125 [1] : vector<8x8xf32> to vector<8xf32>
    %312 = vector.shape_cast %311 : vector<8xf32> to vector<8x1xf32>
    %313 = tpu.reciprocal %312 {approx = true} : vector<8x1xf32> -> vector<8x1xf32>
    %314 = vector.broadcast %313 : vector<8x1xf32> to vector<8x8xf32>
    %315 = arith.mulf %310, %314 : vector<8x8xf32>
    %316 = vector.extract_strided_slice %298 {offsets = [0, 0], sizes = [8, 8], strides = [1, 1]} : vector<8x32xf32> to vector<8x8xf32>
    %cst_126 = arith.constant dense<0.000000e+00> : vector<8x8xf32>
    %317 = tpu.matmul %315, %316, %cst_126 {dimension_numbers = #tpu.dot_dimension_numbers<[1], [0], [0], [1], [0, 0, 1, 1], [], []>} : vector<8x8xf32>, vector<8x8xf32>, vector<8x8xf32> -> vector<8x8xf32>
    %318 = vector.extract_strided_slice %296 {offsets = [0, 8], sizes = [8, 8], strides = [1, 1]} : vector<8x32xf32> to vector<8x8xf32>
    %319 = vector.extract_strided_slice %297 {offsets = [0, 8], sizes = [8, 8], strides = [1, 1]} : vector<8x32xf32> to vector<8x8xf32>
    %320 = tpu.transpose %319, [1, 0] : vector<8x8xf32> -> vector<8x8xf32>
    %cst_127 = arith.constant dense<0.000000e+00> : vector<8x8xf32>
    %321 = tpu.matmul %318, %320, %cst_127 {dimension_numbers = #tpu.dot_dimension_numbers<[1], [0], [0], [1], [0, 0, 1, 1], [], []>} : vector<8x8xf32>, vector<8x8xf32>, vector<8x8xf32> -> vector<8x8xf32>
    %322 = vector.extract_strided_slice %15 {offsets = [1, 0, 0], sizes = [1, 8, 8], strides = [1, 1, 1]} : vector<4x8x8xf32> to vector<1x8x8xf32>
    %323 = vector.shape_cast %322 : vector<1x8x8xf32> to vector<8x8xf32>
    %324 = arith.addf %321, %323 : vector<8x8xf32>
    %cst_128 = arith.constant dense<0xFF800000> : vector<8xf32>
    %325 = vector.multi_reduction <maximumf>, %324, %cst_128 [1] : vector<8x8xf32> to vector<8xf32>
    %326 = vector.shape_cast %325 : vector<8xf32> to vector<8x1xf32>
    %327 = vector.broadcast %326 : vector<8x1xf32> to vector<8x8xf32>
    %328 = arith.subf %324, %327 : vector<8x8xf32>
    %329 = math.exp %328 : vector<8x8xf32>
    %cst_129 = arith.constant dense<0.000000e+00> : vector<8xf32>
    %330 = vector.multi_reduction <add>, %329, %cst_129 [1] : vector<8x8xf32> to vector<8xf32>
    %331 = vector.shape_cast %330 : vector<8xf32> to vector<8x1xf32>
    %332 = tpu.reciprocal %331 {approx = true} : vector<8x1xf32> -> vector<8x1xf32>
    %333 = vector.broadcast %332 : vector<8x1xf32> to vector<8x8xf32>
    %334 = arith.mulf %329, %333 : vector<8x8xf32>
    %335 = vector.extract_strided_slice %298 {offsets = [0, 8], sizes = [8, 8], strides = [1, 1]} : vector<8x32xf32> to vector<8x8xf32>
    %cst_130 = arith.constant dense<0.000000e+00> : vector<8x8xf32>
    %336 = tpu.matmul %334, %335, %cst_130 {dimension_numbers = #tpu.dot_dimension_numbers<[1], [0], [0], [1], [0, 0, 1, 1], [], []>} : vector<8x8xf32>, vector<8x8xf32>, vector<8x8xf32> -> vector<8x8xf32>
    %337 = vector.extract_strided_slice %296 {offsets = [0, 16], sizes = [8, 8], strides = [1, 1]} : vector<8x32xf32> to vector<8x8xf32>
    %338 = vector.extract_strided_slice %297 {offsets = [0, 16], sizes = [8, 8], strides = [1, 1]} : vector<8x32xf32> to vector<8x8xf32>
    %339 = tpu.transpose %338, [1, 0] : vector<8x8xf32> -> vector<8x8xf32>
    %cst_131 = arith.constant dense<0.000000e+00> : vector<8x8xf32>
    %340 = tpu.matmul %337, %339, %cst_131 {dimension_numbers = #tpu.dot_dimension_numbers<[1], [0], [0], [1], [0, 0, 1, 1], [], []>} : vector<8x8xf32>, vector<8x8xf32>, vector<8x8xf32> -> vector<8x8xf32>
    %341 = vector.extract_strided_slice %15 {offsets = [2, 0, 0], sizes = [1, 8, 8], strides = [1, 1, 1]} : vector<4x8x8xf32> to vector<1x8x8xf32>
    %342 = vector.shape_cast %341 : vector<1x8x8xf32> to vector<8x8xf32>
    %343 = arith.addf %340, %342 : vector<8x8xf32>
    %cst_132 = arith.constant dense<0xFF800000> : vector<8xf32>
    %344 = vector.multi_reduction <maximumf>, %343, %cst_132 [1] : vector<8x8xf32> to vector<8xf32>
    %345 = vector.shape_cast %344 : vector<8xf32> to vector<8x1xf32>
    %346 = vector.broadcast %345 : vector<8x1xf32> to vector<8x8xf32>
    %347 = arith.subf %343, %346 : vector<8x8xf32>
    %348 = math.exp %347 : vector<8x8xf32>
    %cst_133 = arith.constant dense<0.000000e+00> : vector<8xf32>
    %349 = vector.multi_reduction <add>, %348, %cst_133 [1] : vector<8x8xf32> to vector<8xf32>
    %350 = vector.shape_cast %349 : vector<8xf32> to vector<8x1xf32>
    %351 = tpu.reciprocal %350 {approx = true} : vector<8x1xf32> -> vector<8x1xf32>
    %352 = vector.broadcast %351 : vector<8x1xf32> to vector<8x8xf32>
    %353 = arith.mulf %348, %352 : vector<8x8xf32>
    %354 = vector.extract_strided_slice %298 {offsets = [0, 16], sizes = [8, 8], strides = [1, 1]} : vector<8x32xf32> to vector<8x8xf32>
    %cst_134 = arith.constant dense<0.000000e+00> : vector<8x8xf32>
    %355 = tpu.matmul %353, %354, %cst_134 {dimension_numbers = #tpu.dot_dimension_numbers<[1], [0], [0], [1], [0, 0, 1, 1], [], []>} : vector<8x8xf32>, vector<8x8xf32>, vector<8x8xf32> -> vector<8x8xf32>
    %356 = vector.extract_strided_slice %296 {offsets = [0, 24], sizes = [8, 8], strides = [1, 1]} : vector<8x32xf32> to vector<8x8xf32>
    %357 = vector.extract_strided_slice %297 {offsets = [0, 24], sizes = [8, 8], strides = [1, 1]} : vector<8x32xf32> to vector<8x8xf32>
    %358 = tpu.transpose %357, [1, 0] : vector<8x8xf32> -> vector<8x8xf32>
    %cst_135 = arith.constant dense<0.000000e+00> : vector<8x8xf32>
    %359 = tpu.matmul %356, %358, %cst_135 {dimension_numbers = #tpu.dot_dimension_numbers<[1], [0], [0], [1], [0, 0, 1, 1], [], []>} : vector<8x8xf32>, vector<8x8xf32>, vector<8x8xf32> -> vector<8x8xf32>
    %360 = vector.extract_strided_slice %15 {offsets = [3, 0, 0], sizes = [1, 8, 8], strides = [1, 1, 1]} : vector<4x8x8xf32> to vector<1x8x8xf32>
    %361 = vector.shape_cast %360 : vector<1x8x8xf32> to vector<8x8xf32>
    %362 = arith.addf %359, %361 : vector<8x8xf32>
    %cst_136 = arith.constant dense<0xFF800000> : vector<8xf32>
    %363 = vector.multi_reduction <maximumf>, %362, %cst_136 [1] : vector<8x8xf32> to vector<8xf32>
    %364 = vector.shape_cast %363 : vector<8xf32> to vector<8x1xf32>
    %365 = vector.broadcast %364 : vector<8x1xf32> to vector<8x8xf32>
    %366 = arith.subf %362, %365 : vector<8x8xf32>
    %367 = math.exp %366 : vector<8x8xf32>
    %cst_137 = arith.constant dense<0.000000e+00> : vector<8xf32>
    %368 = vector.multi_reduction <add>, %367, %cst_137 [1] : vector<8x8xf32> to vector<8xf32>
    %369 = vector.shape_cast %368 : vector<8xf32> to vector<8x1xf32>
    %370 = tpu.reciprocal %369 {approx = true} : vector<8x1xf32> -> vector<8x1xf32>
    %371 = vector.broadcast %370 : vector<8x1xf32> to vector<8x8xf32>
    %372 = arith.mulf %367, %371 : vector<8x8xf32>
    %373 = vector.extract_strided_slice %298 {offsets = [0, 24], sizes = [8, 8], strides = [1, 1]} : vector<8x32xf32> to vector<8x8xf32>
    %cst_138 = arith.constant dense<0.000000e+00> : vector<8x8xf32>
    %374 = tpu.matmul %372, %373, %cst_138 {dimension_numbers = #tpu.dot_dimension_numbers<[1], [0], [0], [1], [0, 0, 1, 1], [], []>} : vector<8x8xf32>, vector<8x8xf32>, vector<8x8xf32> -> vector<8x8xf32>
    %375 = tpu.concatenate %317, %336, %355, %374 in 1 : vector<8x8xf32>, vector<8x8xf32>, vector<8x8xf32>, vector<8x8xf32> -> vector<8x32xf32>
    %cst_139 = arith.constant dense<0.000000e+00> : vector<8x32xf32>
    %376 = tpu.matmul %375, %282, %cst_139 {dimension_numbers = #tpu.dot_dimension_numbers<[1], [0], [0], [1], [0, 0, 1, 1], [], []>} : vector<8x32xf32>, vector<32x32xf32>, vector<8x32xf32> -> vector<8x32xf32>
    %377 = arith.addf %3, %376 : vector<8x32xf32>
    %c0_140 = arith.constant 0 : index
    %c0_141 = arith.constant 0 : index
    %c0_142 = arith.constant 0 : index
    %378 = vector.load %arg17[%c0_140, %c0_141, %c0_142] : memref<2x1x32xf32, #tpu.memory_space<vmem>>, vector<1x1x32xf32>
    %379 = vector.shape_cast %378 : vector<1x1x32xf32> to vector<1x32xf32>
    %c0_143 = arith.constant 0 : index
    %c0_144 = arith.constant 0 : index
    %c0_145 = arith.constant 0 : index
    %380 = vector.load %arg18[%c0_143, %c0_144, %c0_145] : memref<2x32x32xf32, #tpu.memory_space<vmem>>, vector<1x32x32xf32>
    %381 = vector.shape_cast %380 : vector<1x32x32xf32> to vector<32x32xf32>
    %c0_146 = arith.constant 0 : index
    %c0_147 = arith.constant 0 : index
    %c0_148 = arith.constant 0 : index
    %382 = vector.load %arg19[%c0_146, %c0_147, %c0_148] : memref<2x32x64xf32, #tpu.memory_space<vmem>>, vector<1x32x64xf32>
    %383 = vector.shape_cast %382 : vector<1x32x64xf32> to vector<32x64xf32>
    %c0_149 = arith.constant 0 : index
    %c0_150 = arith.constant 0 : index
    %c0_151 = arith.constant 0 : index
    %384 = vector.load %arg20[%c0_149, %c0_150, %c0_151] : memref<2x32x32xf32, #tpu.memory_space<vmem>>, vector<1x32x32xf32>
    %385 = vector.shape_cast %384 : vector<1x32x32xf32> to vector<32x32xf32>
    %386 = arith.mulf %377, %377 : vector<8x32xf32>
    %cst_152 = arith.constant dense<0.000000e+00> : vector<8xf32>
    %387 = vector.multi_reduction <add>, %386, %cst_152 [1] : vector<8x32xf32> to vector<8xf32>
    %388 = vector.shape_cast %387 : vector<8xf32> to vector<8x1xf32>
    %cst_153 = arith.constant 3.200000e+01 : f32
    %389 = vector.broadcast %cst_153 : f32 to vector<8x1xf32>
    %390 = arith.divf %388, %389 : vector<8x1xf32>
    %cst_154 = arith.constant 9.99999997E-7 : f32
    %391 = vector.broadcast %cst_154 : f32 to vector<8x1xf32>
    %392 = arith.addf %390, %391 : vector<8x1xf32>
    %393 = math.rsqrt %392 : vector<8x1xf32>
    %394 = vector.broadcast %393 : vector<8x1xf32> to vector<8x32xf32>
    %395 = arith.mulf %377, %394 : vector<8x32xf32>
    %396 = vector.broadcast %379 : vector<1x32xf32> to vector<8x32xf32>
    %397 = arith.mulf %395, %396 : vector<8x32xf32>
    %cst_155 = arith.constant dense<0.000000e+00> : vector<8x32xf32>
    %398 = tpu.matmul %397, %381, %cst_155 {dimension_numbers = #tpu.dot_dimension_numbers<[1], [0], [0], [1], [0, 0, 1, 1], [], []>} : vector<8x32xf32>, vector<32x32xf32>, vector<8x32xf32> -> vector<8x32xf32>
    %cst_156 = arith.constant dense<0.000000e+00> : vector<8x64xf32>
    %399 = tpu.matmul %276, %383, %cst_156 {dimension_numbers = #tpu.dot_dimension_numbers<[1], [0], [0], [1], [0, 0, 1, 1], [], []>} : vector<8x32xf32>, vector<32x64xf32>, vector<8x64xf32> -> vector<8x64xf32>
    %400 = vector.extract_strided_slice %399 {offsets = [0, 0], sizes = [8, 32], strides = [1, 1]} : vector<8x64xf32> to vector<8x32xf32>
    %401 = vector.extract_strided_slice %399 {offsets = [0, 32], sizes = [8, 32], strides = [1, 1]} : vector<8x64xf32> to vector<8x32xf32>
    %402 = vector.extract_strided_slice %398 {offsets = [0, 0], sizes = [8, 8], strides = [1, 1]} : vector<8x32xf32> to vector<8x8xf32>
    %403 = vector.extract_strided_slice %400 {offsets = [0, 0], sizes = [8, 8], strides = [1, 1]} : vector<8x32xf32> to vector<8x8xf32>
    %404 = tpu.transpose %403, [1, 0] : vector<8x8xf32> -> vector<8x8xf32>
    %cst_157 = arith.constant dense<0.000000e+00> : vector<8x8xf32>
    %405 = tpu.matmul %402, %404, %cst_157 {dimension_numbers = #tpu.dot_dimension_numbers<[1], [0], [0], [1], [0, 0, 1, 1], [], []>} : vector<8x8xf32>, vector<8x8xf32>, vector<8x8xf32> -> vector<8x8xf32>
    %406 = vector.broadcast %5 : vector<1x8xf32> to vector<8x8xf32>
    %407 = arith.addf %405, %406 : vector<8x8xf32>
    %cst_158 = arith.constant dense<0xFF800000> : vector<8xf32>
    %408 = vector.multi_reduction <maximumf>, %407, %cst_158 [1] : vector<8x8xf32> to vector<8xf32>
    %409 = vector.shape_cast %408 : vector<8xf32> to vector<8x1xf32>
    %410 = vector.broadcast %409 : vector<8x1xf32> to vector<8x8xf32>
    %411 = arith.subf %407, %410 : vector<8x8xf32>
    %412 = math.exp %411 : vector<8x8xf32>
    %cst_159 = arith.constant dense<0.000000e+00> : vector<8xf32>
    %413 = vector.multi_reduction <add>, %412, %cst_159 [1] : vector<8x8xf32> to vector<8xf32>
    %414 = vector.shape_cast %413 : vector<8xf32> to vector<8x1xf32>
    %415 = tpu.reciprocal %414 {approx = true} : vector<8x1xf32> -> vector<8x1xf32>
    %416 = vector.broadcast %415 : vector<8x1xf32> to vector<8x8xf32>
    %417 = arith.mulf %412, %416 : vector<8x8xf32>
    %418 = vector.extract_strided_slice %401 {offsets = [0, 0], sizes = [8, 8], strides = [1, 1]} : vector<8x32xf32> to vector<8x8xf32>
    %cst_160 = arith.constant dense<0.000000e+00> : vector<8x8xf32>
    %419 = tpu.matmul %417, %418, %cst_160 {dimension_numbers = #tpu.dot_dimension_numbers<[1], [0], [0], [1], [0, 0, 1, 1], [], []>} : vector<8x8xf32>, vector<8x8xf32>, vector<8x8xf32> -> vector<8x8xf32>
    %420 = vector.extract_strided_slice %398 {offsets = [0, 8], sizes = [8, 8], strides = [1, 1]} : vector<8x32xf32> to vector<8x8xf32>
    %421 = vector.extract_strided_slice %400 {offsets = [0, 8], sizes = [8, 8], strides = [1, 1]} : vector<8x32xf32> to vector<8x8xf32>
    %422 = tpu.transpose %421, [1, 0] : vector<8x8xf32> -> vector<8x8xf32>
    %cst_161 = arith.constant dense<0.000000e+00> : vector<8x8xf32>
    %423 = tpu.matmul %420, %422, %cst_161 {dimension_numbers = #tpu.dot_dimension_numbers<[1], [0], [0], [1], [0, 0, 1, 1], [], []>} : vector<8x8xf32>, vector<8x8xf32>, vector<8x8xf32> -> vector<8x8xf32>
    %424 = vector.broadcast %5 : vector<1x8xf32> to vector<8x8xf32>
    %425 = arith.addf %423, %424 : vector<8x8xf32>
    %cst_162 = arith.constant dense<0xFF800000> : vector<8xf32>
    %426 = vector.multi_reduction <maximumf>, %425, %cst_162 [1] : vector<8x8xf32> to vector<8xf32>
    %427 = vector.shape_cast %426 : vector<8xf32> to vector<8x1xf32>
    %428 = vector.broadcast %427 : vector<8x1xf32> to vector<8x8xf32>
    %429 = arith.subf %425, %428 : vector<8x8xf32>
    %430 = math.exp %429 : vector<8x8xf32>
    %cst_163 = arith.constant dense<0.000000e+00> : vector<8xf32>
    %431 = vector.multi_reduction <add>, %430, %cst_163 [1] : vector<8x8xf32> to vector<8xf32>
    %432 = vector.shape_cast %431 : vector<8xf32> to vector<8x1xf32>
    %433 = tpu.reciprocal %432 {approx = true} : vector<8x1xf32> -> vector<8x1xf32>
    %434 = vector.broadcast %433 : vector<8x1xf32> to vector<8x8xf32>
    %435 = arith.mulf %430, %434 : vector<8x8xf32>
    %436 = vector.extract_strided_slice %401 {offsets = [0, 8], sizes = [8, 8], strides = [1, 1]} : vector<8x32xf32> to vector<8x8xf32>
    %cst_164 = arith.constant dense<0.000000e+00> : vector<8x8xf32>
    %437 = tpu.matmul %435, %436, %cst_164 {dimension_numbers = #tpu.dot_dimension_numbers<[1], [0], [0], [1], [0, 0, 1, 1], [], []>} : vector<8x8xf32>, vector<8x8xf32>, vector<8x8xf32> -> vector<8x8xf32>
    %438 = vector.extract_strided_slice %398 {offsets = [0, 16], sizes = [8, 8], strides = [1, 1]} : vector<8x32xf32> to vector<8x8xf32>
    %439 = vector.extract_strided_slice %400 {offsets = [0, 16], sizes = [8, 8], strides = [1, 1]} : vector<8x32xf32> to vector<8x8xf32>
    %440 = tpu.transpose %439, [1, 0] : vector<8x8xf32> -> vector<8x8xf32>
    %cst_165 = arith.constant dense<0.000000e+00> : vector<8x8xf32>
    %441 = tpu.matmul %438, %440, %cst_165 {dimension_numbers = #tpu.dot_dimension_numbers<[1], [0], [0], [1], [0, 0, 1, 1], [], []>} : vector<8x8xf32>, vector<8x8xf32>, vector<8x8xf32> -> vector<8x8xf32>
    %442 = vector.broadcast %5 : vector<1x8xf32> to vector<8x8xf32>
    %443 = arith.addf %441, %442 : vector<8x8xf32>
    %cst_166 = arith.constant dense<0xFF800000> : vector<8xf32>
    %444 = vector.multi_reduction <maximumf>, %443, %cst_166 [1] : vector<8x8xf32> to vector<8xf32>
    %445 = vector.shape_cast %444 : vector<8xf32> to vector<8x1xf32>
    %446 = vector.broadcast %445 : vector<8x1xf32> to vector<8x8xf32>
    %447 = arith.subf %443, %446 : vector<8x8xf32>
    %448 = math.exp %447 : vector<8x8xf32>
    %cst_167 = arith.constant dense<0.000000e+00> : vector<8xf32>
    %449 = vector.multi_reduction <add>, %448, %cst_167 [1] : vector<8x8xf32> to vector<8xf32>
    %450 = vector.shape_cast %449 : vector<8xf32> to vector<8x1xf32>
    %451 = tpu.reciprocal %450 {approx = true} : vector<8x1xf32> -> vector<8x1xf32>
    %452 = vector.broadcast %451 : vector<8x1xf32> to vector<8x8xf32>
    %453 = arith.mulf %448, %452 : vector<8x8xf32>
    %454 = vector.extract_strided_slice %401 {offsets = [0, 16], sizes = [8, 8], strides = [1, 1]} : vector<8x32xf32> to vector<8x8xf32>
    %cst_168 = arith.constant dense<0.000000e+00> : vector<8x8xf32>
    %455 = tpu.matmul %453, %454, %cst_168 {dimension_numbers = #tpu.dot_dimension_numbers<[1], [0], [0], [1], [0, 0, 1, 1], [], []>} : vector<8x8xf32>, vector<8x8xf32>, vector<8x8xf32> -> vector<8x8xf32>
    %456 = vector.extract_strided_slice %398 {offsets = [0, 24], sizes = [8, 8], strides = [1, 1]} : vector<8x32xf32> to vector<8x8xf32>
    %457 = vector.extract_strided_slice %400 {offsets = [0, 24], sizes = [8, 8], strides = [1, 1]} : vector<8x32xf32> to vector<8x8xf32>
    %458 = tpu.transpose %457, [1, 0] : vector<8x8xf32> -> vector<8x8xf32>
    %cst_169 = arith.constant dense<0.000000e+00> : vector<8x8xf32>
    %459 = tpu.matmul %456, %458, %cst_169 {dimension_numbers = #tpu.dot_dimension_numbers<[1], [0], [0], [1], [0, 0, 1, 1], [], []>} : vector<8x8xf32>, vector<8x8xf32>, vector<8x8xf32> -> vector<8x8xf32>
    %460 = vector.broadcast %5 : vector<1x8xf32> to vector<8x8xf32>
    %461 = arith.addf %459, %460 : vector<8x8xf32>
    %cst_170 = arith.constant dense<0xFF800000> : vector<8xf32>
    %462 = vector.multi_reduction <maximumf>, %461, %cst_170 [1] : vector<8x8xf32> to vector<8xf32>
    %463 = vector.shape_cast %462 : vector<8xf32> to vector<8x1xf32>
    %464 = vector.broadcast %463 : vector<8x1xf32> to vector<8x8xf32>
    %465 = arith.subf %461, %464 : vector<8x8xf32>
    %466 = math.exp %465 : vector<8x8xf32>
    %cst_171 = arith.constant dense<0.000000e+00> : vector<8xf32>
    %467 = vector.multi_reduction <add>, %466, %cst_171 [1] : vector<8x8xf32> to vector<8xf32>
    %468 = vector.shape_cast %467 : vector<8xf32> to vector<8x1xf32>
    %469 = tpu.reciprocal %468 {approx = true} : vector<8x1xf32> -> vector<8x1xf32>
    %470 = vector.broadcast %469 : vector<8x1xf32> to vector<8x8xf32>
    %471 = arith.mulf %466, %470 : vector<8x8xf32>
    %472 = vector.extract_strided_slice %401 {offsets = [0, 24], sizes = [8, 8], strides = [1, 1]} : vector<8x32xf32> to vector<8x8xf32>
    %cst_172 = arith.constant dense<0.000000e+00> : vector<8x8xf32>
    %473 = tpu.matmul %471, %472, %cst_172 {dimension_numbers = #tpu.dot_dimension_numbers<[1], [0], [0], [1], [0, 0, 1, 1], [], []>} : vector<8x8xf32>, vector<8x8xf32>, vector<8x8xf32> -> vector<8x8xf32>
    %474 = tpu.concatenate %419, %437, %455, %473 in 1 : vector<8x8xf32>, vector<8x8xf32>, vector<8x8xf32>, vector<8x8xf32> -> vector<8x32xf32>
    %cst_173 = arith.constant dense<0.000000e+00> : vector<8x32xf32>
    %475 = tpu.matmul %474, %385, %cst_173 {dimension_numbers = #tpu.dot_dimension_numbers<[1], [0], [0], [1], [0, 0, 1, 1], [], []>} : vector<8x32xf32>, vector<32x32xf32>, vector<8x32xf32> -> vector<8x32xf32>
    %476 = arith.addf %377, %475 : vector<8x32xf32>
    %c0_174 = arith.constant 0 : index
    %c0_175 = arith.constant 0 : index
    %c0_176 = arith.constant 0 : index
    %477 = vector.load %arg21[%c0_174, %c0_175, %c0_176] : memref<2x1x32xf32, #tpu.memory_space<vmem>>, vector<1x1x32xf32>
    %478 = vector.shape_cast %477 : vector<1x1x32xf32> to vector<1x32xf32>
    %c0_177 = arith.constant 0 : index
    %c0_178 = arith.constant 0 : index
    %c0_179 = arith.constant 0 : index
    %479 = vector.load %arg22[%c0_177, %c0_178, %c0_179] : memref<2x32x64xf32, #tpu.memory_space<vmem>>, vector<1x32x64xf32>
    %480 = vector.shape_cast %479 : vector<1x32x64xf32> to vector<32x64xf32>
    %c0_180 = arith.constant 0 : index
    %c0_181 = arith.constant 0 : index
    %c0_182 = arith.constant 0 : index
    %481 = vector.load %arg23[%c0_180, %c0_181, %c0_182] : memref<2x64x32xf32, #tpu.memory_space<vmem>>, vector<1x64x32xf32>
    %482 = vector.shape_cast %481 : vector<1x64x32xf32> to vector<64x32xf32>
    %483 = arith.mulf %476, %476 : vector<8x32xf32>
    %cst_183 = arith.constant dense<0.000000e+00> : vector<8xf32>
    %484 = vector.multi_reduction <add>, %483, %cst_183 [1] : vector<8x32xf32> to vector<8xf32>
    %485 = vector.shape_cast %484 : vector<8xf32> to vector<8x1xf32>
    %cst_184 = arith.constant 3.200000e+01 : f32
    %486 = vector.broadcast %cst_184 : f32 to vector<8x1xf32>
    %487 = arith.divf %485, %486 : vector<8x1xf32>
    %cst_185 = arith.constant 9.99999997E-7 : f32
    %488 = vector.broadcast %cst_185 : f32 to vector<8x1xf32>
    %489 = arith.addf %487, %488 : vector<8x1xf32>
    %490 = math.rsqrt %489 : vector<8x1xf32>
    %491 = vector.broadcast %490 : vector<8x1xf32> to vector<8x32xf32>
    %492 = arith.mulf %476, %491 : vector<8x32xf32>
    %493 = vector.broadcast %478 : vector<1x32xf32> to vector<8x32xf32>
    %494 = arith.mulf %492, %493 : vector<8x32xf32>
    %cst_186 = arith.constant dense<0.000000e+00> : vector<8x64xf32>
    %495 = tpu.matmul %494, %480, %cst_186 {dimension_numbers = #tpu.dot_dimension_numbers<[1], [0], [0], [1], [0, 0, 1, 1], [], []>} : vector<8x32xf32>, vector<32x64xf32>, vector<8x64xf32> -> vector<8x64xf32>
    %cst_187 = arith.constant 0.000000e+00 : f32
    %496 = vector.broadcast %cst_187 : f32 to vector<8x64xf32>
    %497 = arith.maximumf %495, %496 : vector<8x64xf32>
    %cst_188 = arith.constant dense<0.000000e+00> : vector<8x32xf32>
    %498 = tpu.matmul %497, %482, %cst_188 {dimension_numbers = #tpu.dot_dimension_numbers<[1], [0], [0], [1], [0, 0, 1, 1], [], []>} : vector<8x64xf32>, vector<64x32xf32>, vector<8x32xf32> -> vector<8x32xf32>
    %499 = arith.addf %476, %498 : vector<8x32xf32>
    %c1_189 = arith.constant 1 : index
    %c0_190 = arith.constant 0 : index
    %c0_191 = arith.constant 0 : index
    %500 = vector.load %arg14[%c1_189, %c0_190, %c0_191] : memref<2x1x32xf32, #tpu.memory_space<vmem>>, vector<1x1x32xf32>
    %501 = vector.shape_cast %500 : vector<1x1x32xf32> to vector<1x32xf32>
    %c1_192 = arith.constant 1 : index
    %c0_193 = arith.constant 0 : index
    %c0_194 = arith.constant 0 : index
    %502 = vector.load %arg15[%c1_192, %c0_193, %c0_194] : memref<2x32x96xf32, #tpu.memory_space<vmem>>, vector<1x32x96xf32>
    %503 = vector.shape_cast %502 : vector<1x32x96xf32> to vector<32x96xf32>
    %c1_195 = arith.constant 1 : index
    %c0_196 = arith.constant 0 : index
    %c0_197 = arith.constant 0 : index
    %504 = vector.load %arg16[%c1_195, %c0_196, %c0_197] : memref<2x32x32xf32, #tpu.memory_space<vmem>>, vector<1x32x32xf32>
    %505 = vector.shape_cast %504 : vector<1x32x32xf32> to vector<32x32xf32>
    %506 = arith.mulf %499, %499 : vector<8x32xf32>
    %cst_198 = arith.constant dense<0.000000e+00> : vector<8xf32>
    %507 = vector.multi_reduction <add>, %506, %cst_198 [1] : vector<8x32xf32> to vector<8xf32>
    %508 = vector.shape_cast %507 : vector<8xf32> to vector<8x1xf32>
    %cst_199 = arith.constant 3.200000e+01 : f32
    %509 = vector.broadcast %cst_199 : f32 to vector<8x1xf32>
    %510 = arith.divf %508, %509 : vector<8x1xf32>
    %cst_200 = arith.constant 9.99999997E-7 : f32
    %511 = vector.broadcast %cst_200 : f32 to vector<8x1xf32>
    %512 = arith.addf %510, %511 : vector<8x1xf32>
    %513 = math.rsqrt %512 : vector<8x1xf32>
    %514 = vector.broadcast %513 : vector<8x1xf32> to vector<8x32xf32>
    %515 = arith.mulf %499, %514 : vector<8x32xf32>
    %516 = vector.broadcast %501 : vector<1x32xf32> to vector<8x32xf32>
    %517 = arith.mulf %515, %516 : vector<8x32xf32>
    %cst_201 = arith.constant dense<0.000000e+00> : vector<8x96xf32>
    %518 = tpu.matmul %517, %503, %cst_201 {dimension_numbers = #tpu.dot_dimension_numbers<[1], [0], [0], [1], [0, 0, 1, 1], [], []>} : vector<8x32xf32>, vector<32x96xf32>, vector<8x96xf32> -> vector<8x96xf32>
    %519 = vector.extract_strided_slice %518 {offsets = [0, 0], sizes = [8, 32], strides = [1, 1]} : vector<8x96xf32> to vector<8x32xf32>
    %520 = vector.extract_strided_slice %518 {offsets = [0, 32], sizes = [8, 32], strides = [1, 1]} : vector<8x96xf32> to vector<8x32xf32>
    %521 = vector.extract_strided_slice %518 {offsets = [0, 64], sizes = [8, 32], strides = [1, 1]} : vector<8x96xf32> to vector<8x32xf32>
    %522 = vector.extract_strided_slice %519 {offsets = [0, 0], sizes = [8, 8], strides = [1, 1]} : vector<8x32xf32> to vector<8x8xf32>
    %523 = vector.extract_strided_slice %520 {offsets = [0, 0], sizes = [8, 8], strides = [1, 1]} : vector<8x32xf32> to vector<8x8xf32>
    %524 = tpu.transpose %523, [1, 0] : vector<8x8xf32> -> vector<8x8xf32>
    %cst_202 = arith.constant dense<0.000000e+00> : vector<8x8xf32>
    %525 = tpu.matmul %522, %524, %cst_202 {dimension_numbers = #tpu.dot_dimension_numbers<[1], [0], [0], [1], [0, 0, 1, 1], [], []>} : vector<8x8xf32>, vector<8x8xf32>, vector<8x8xf32> -> vector<8x8xf32>
    %526 = vector.extract_strided_slice %15 {offsets = [0, 0, 0], sizes = [1, 8, 8], strides = [1, 1, 1]} : vector<4x8x8xf32> to vector<1x8x8xf32>
    %527 = vector.shape_cast %526 : vector<1x8x8xf32> to vector<8x8xf32>
    %528 = arith.addf %525, %527 : vector<8x8xf32>
    %cst_203 = arith.constant dense<0xFF800000> : vector<8xf32>
    %529 = vector.multi_reduction <maximumf>, %528, %cst_203 [1] : vector<8x8xf32> to vector<8xf32>
    %530 = vector.shape_cast %529 : vector<8xf32> to vector<8x1xf32>
    %531 = vector.broadcast %530 : vector<8x1xf32> to vector<8x8xf32>
    %532 = arith.subf %528, %531 : vector<8x8xf32>
    %533 = math.exp %532 : vector<8x8xf32>
    %cst_204 = arith.constant dense<0.000000e+00> : vector<8xf32>
    %534 = vector.multi_reduction <add>, %533, %cst_204 [1] : vector<8x8xf32> to vector<8xf32>
    %535 = vector.shape_cast %534 : vector<8xf32> to vector<8x1xf32>
    %536 = tpu.reciprocal %535 {approx = true} : vector<8x1xf32> -> vector<8x1xf32>
    %537 = vector.broadcast %536 : vector<8x1xf32> to vector<8x8xf32>
    %538 = arith.mulf %533, %537 : vector<8x8xf32>
    %539 = vector.extract_strided_slice %521 {offsets = [0, 0], sizes = [8, 8], strides = [1, 1]} : vector<8x32xf32> to vector<8x8xf32>
    %cst_205 = arith.constant dense<0.000000e+00> : vector<8x8xf32>
    %540 = tpu.matmul %538, %539, %cst_205 {dimension_numbers = #tpu.dot_dimension_numbers<[1], [0], [0], [1], [0, 0, 1, 1], [], []>} : vector<8x8xf32>, vector<8x8xf32>, vector<8x8xf32> -> vector<8x8xf32>
    %541 = vector.extract_strided_slice %519 {offsets = [0, 8], sizes = [8, 8], strides = [1, 1]} : vector<8x32xf32> to vector<8x8xf32>
    %542 = vector.extract_strided_slice %520 {offsets = [0, 8], sizes = [8, 8], strides = [1, 1]} : vector<8x32xf32> to vector<8x8xf32>
    %543 = tpu.transpose %542, [1, 0] : vector<8x8xf32> -> vector<8x8xf32>
    %cst_206 = arith.constant dense<0.000000e+00> : vector<8x8xf32>
    %544 = tpu.matmul %541, %543, %cst_206 {dimension_numbers = #tpu.dot_dimension_numbers<[1], [0], [0], [1], [0, 0, 1, 1], [], []>} : vector<8x8xf32>, vector<8x8xf32>, vector<8x8xf32> -> vector<8x8xf32>
    %545 = vector.extract_strided_slice %15 {offsets = [1, 0, 0], sizes = [1, 8, 8], strides = [1, 1, 1]} : vector<4x8x8xf32> to vector<1x8x8xf32>
    %546 = vector.shape_cast %545 : vector<1x8x8xf32> to vector<8x8xf32>
    %547 = arith.addf %544, %546 : vector<8x8xf32>
    %cst_207 = arith.constant dense<0xFF800000> : vector<8xf32>
    %548 = vector.multi_reduction <maximumf>, %547, %cst_207 [1] : vector<8x8xf32> to vector<8xf32>
    %549 = vector.shape_cast %548 : vector<8xf32> to vector<8x1xf32>
    %550 = vector.broadcast %549 : vector<8x1xf32> to vector<8x8xf32>
    %551 = arith.subf %547, %550 : vector<8x8xf32>
    %552 = math.exp %551 : vector<8x8xf32>
    %cst_208 = arith.constant dense<0.000000e+00> : vector<8xf32>
    %553 = vector.multi_reduction <add>, %552, %cst_208 [1] : vector<8x8xf32> to vector<8xf32>
    %554 = vector.shape_cast %553 : vector<8xf32> to vector<8x1xf32>
    %555 = tpu.reciprocal %554 {approx = true} : vector<8x1xf32> -> vector<8x1xf32>
    %556 = vector.broadcast %555 : vector<8x1xf32> to vector<8x8xf32>
    %557 = arith.mulf %552, %556 : vector<8x8xf32>
    %558 = vector.extract_strided_slice %521 {offsets = [0, 8], sizes = [8, 8], strides = [1, 1]} : vector<8x32xf32> to vector<8x8xf32>
    %cst_209 = arith.constant dense<0.000000e+00> : vector<8x8xf32>
    %559 = tpu.matmul %557, %558, %cst_209 {dimension_numbers = #tpu.dot_dimension_numbers<[1], [0], [0], [1], [0, 0, 1, 1], [], []>} : vector<8x8xf32>, vector<8x8xf32>, vector<8x8xf32> -> vector<8x8xf32>
    %560 = vector.extract_strided_slice %519 {offsets = [0, 16], sizes = [8, 8], strides = [1, 1]} : vector<8x32xf32> to vector<8x8xf32>
    %561 = vector.extract_strided_slice %520 {offsets = [0, 16], sizes = [8, 8], strides = [1, 1]} : vector<8x32xf32> to vector<8x8xf32>
    %562 = tpu.transpose %561, [1, 0] : vector<8x8xf32> -> vector<8x8xf32>
    %cst_210 = arith.constant dense<0.000000e+00> : vector<8x8xf32>
    %563 = tpu.matmul %560, %562, %cst_210 {dimension_numbers = #tpu.dot_dimension_numbers<[1], [0], [0], [1], [0, 0, 1, 1], [], []>} : vector<8x8xf32>, vector<8x8xf32>, vector<8x8xf32> -> vector<8x8xf32>
    %564 = vector.extract_strided_slice %15 {offsets = [2, 0, 0], sizes = [1, 8, 8], strides = [1, 1, 1]} : vector<4x8x8xf32> to vector<1x8x8xf32>
    %565 = vector.shape_cast %564 : vector<1x8x8xf32> to vector<8x8xf32>
    %566 = arith.addf %563, %565 : vector<8x8xf32>
    %cst_211 = arith.constant dense<0xFF800000> : vector<8xf32>
    %567 = vector.multi_reduction <maximumf>, %566, %cst_211 [1] : vector<8x8xf32> to vector<8xf32>
    %568 = vector.shape_cast %567 : vector<8xf32> to vector<8x1xf32>
    %569 = vector.broadcast %568 : vector<8x1xf32> to vector<8x8xf32>
    %570 = arith.subf %566, %569 : vector<8x8xf32>
    %571 = math.exp %570 : vector<8x8xf32>
    %cst_212 = arith.constant dense<0.000000e+00> : vector<8xf32>
    %572 = vector.multi_reduction <add>, %571, %cst_212 [1] : vector<8x8xf32> to vector<8xf32>
    %573 = vector.shape_cast %572 : vector<8xf32> to vector<8x1xf32>
    %574 = tpu.reciprocal %573 {approx = true} : vector<8x1xf32> -> vector<8x1xf32>
    %575 = vector.broadcast %574 : vector<8x1xf32> to vector<8x8xf32>
    %576 = arith.mulf %571, %575 : vector<8x8xf32>
    %577 = vector.extract_strided_slice %521 {offsets = [0, 16], sizes = [8, 8], strides = [1, 1]} : vector<8x32xf32> to vector<8x8xf32>
    %cst_213 = arith.constant dense<0.000000e+00> : vector<8x8xf32>
    %578 = tpu.matmul %576, %577, %cst_213 {dimension_numbers = #tpu.dot_dimension_numbers<[1], [0], [0], [1], [0, 0, 1, 1], [], []>} : vector<8x8xf32>, vector<8x8xf32>, vector<8x8xf32> -> vector<8x8xf32>
    %579 = vector.extract_strided_slice %519 {offsets = [0, 24], sizes = [8, 8], strides = [1, 1]} : vector<8x32xf32> to vector<8x8xf32>
    %580 = vector.extract_strided_slice %520 {offsets = [0, 24], sizes = [8, 8], strides = [1, 1]} : vector<8x32xf32> to vector<8x8xf32>
    %581 = tpu.transpose %580, [1, 0] : vector<8x8xf32> -> vector<8x8xf32>
    %cst_214 = arith.constant dense<0.000000e+00> : vector<8x8xf32>
    %582 = tpu.matmul %579, %581, %cst_214 {dimension_numbers = #tpu.dot_dimension_numbers<[1], [0], [0], [1], [0, 0, 1, 1], [], []>} : vector<8x8xf32>, vector<8x8xf32>, vector<8x8xf32> -> vector<8x8xf32>
    %583 = vector.extract_strided_slice %15 {offsets = [3, 0, 0], sizes = [1, 8, 8], strides = [1, 1, 1]} : vector<4x8x8xf32> to vector<1x8x8xf32>
    %584 = vector.shape_cast %583 : vector<1x8x8xf32> to vector<8x8xf32>
    %585 = arith.addf %582, %584 : vector<8x8xf32>
    %cst_215 = arith.constant dense<0xFF800000> : vector<8xf32>
    %586 = vector.multi_reduction <maximumf>, %585, %cst_215 [1] : vector<8x8xf32> to vector<8xf32>
    %587 = vector.shape_cast %586 : vector<8xf32> to vector<8x1xf32>
    %588 = vector.broadcast %587 : vector<8x1xf32> to vector<8x8xf32>
    %589 = arith.subf %585, %588 : vector<8x8xf32>
    %590 = math.exp %589 : vector<8x8xf32>
    %cst_216 = arith.constant dense<0.000000e+00> : vector<8xf32>
    %591 = vector.multi_reduction <add>, %590, %cst_216 [1] : vector<8x8xf32> to vector<8xf32>
    %592 = vector.shape_cast %591 : vector<8xf32> to vector<8x1xf32>
    %593 = tpu.reciprocal %592 {approx = true} : vector<8x1xf32> -> vector<8x1xf32>
    %594 = vector.broadcast %593 : vector<8x1xf32> to vector<8x8xf32>
    %595 = arith.mulf %590, %594 : vector<8x8xf32>
    %596 = vector.extract_strided_slice %521 {offsets = [0, 24], sizes = [8, 8], strides = [1, 1]} : vector<8x32xf32> to vector<8x8xf32>
    %cst_217 = arith.constant dense<0.000000e+00> : vector<8x8xf32>
    %597 = tpu.matmul %595, %596, %cst_217 {dimension_numbers = #tpu.dot_dimension_numbers<[1], [0], [0], [1], [0, 0, 1, 1], [], []>} : vector<8x8xf32>, vector<8x8xf32>, vector<8x8xf32> -> vector<8x8xf32>
    %598 = tpu.concatenate %540, %559, %578, %597 in 1 : vector<8x8xf32>, vector<8x8xf32>, vector<8x8xf32>, vector<8x8xf32> -> vector<8x32xf32>
    %cst_218 = arith.constant dense<0.000000e+00> : vector<8x32xf32>
    %599 = tpu.matmul %598, %505, %cst_218 {dimension_numbers = #tpu.dot_dimension_numbers<[1], [0], [0], [1], [0, 0, 1, 1], [], []>} : vector<8x32xf32>, vector<32x32xf32>, vector<8x32xf32> -> vector<8x32xf32>
    %600 = arith.addf %499, %599 : vector<8x32xf32>
    %c1_219 = arith.constant 1 : index
    %c0_220 = arith.constant 0 : index
    %c0_221 = arith.constant 0 : index
    %601 = vector.load %arg17[%c1_219, %c0_220, %c0_221] : memref<2x1x32xf32, #tpu.memory_space<vmem>>, vector<1x1x32xf32>
    %602 = vector.shape_cast %601 : vector<1x1x32xf32> to vector<1x32xf32>
    %c1_222 = arith.constant 1 : index
    %c0_223 = arith.constant 0 : index
    %c0_224 = arith.constant 0 : index
    %603 = vector.load %arg18[%c1_222, %c0_223, %c0_224] : memref<2x32x32xf32, #tpu.memory_space<vmem>>, vector<1x32x32xf32>
    %604 = vector.shape_cast %603 : vector<1x32x32xf32> to vector<32x32xf32>
    %c1_225 = arith.constant 1 : index
    %c0_226 = arith.constant 0 : index
    %c0_227 = arith.constant 0 : index
    %605 = vector.load %arg19[%c1_225, %c0_226, %c0_227] : memref<2x32x64xf32, #tpu.memory_space<vmem>>, vector<1x32x64xf32>
    %606 = vector.shape_cast %605 : vector<1x32x64xf32> to vector<32x64xf32>
    %c1_228 = arith.constant 1 : index
    %c0_229 = arith.constant 0 : index
    %c0_230 = arith.constant 0 : index
    %607 = vector.load %arg20[%c1_228, %c0_229, %c0_230] : memref<2x32x32xf32, #tpu.memory_space<vmem>>, vector<1x32x32xf32>
    %608 = vector.shape_cast %607 : vector<1x32x32xf32> to vector<32x32xf32>
    %609 = arith.mulf %600, %600 : vector<8x32xf32>
    %cst_231 = arith.constant dense<0.000000e+00> : vector<8xf32>
    %610 = vector.multi_reduction <add>, %609, %cst_231 [1] : vector<8x32xf32> to vector<8xf32>
    %611 = vector.shape_cast %610 : vector<8xf32> to vector<8x1xf32>
    %cst_232 = arith.constant 3.200000e+01 : f32
    %612 = vector.broadcast %cst_232 : f32 to vector<8x1xf32>
    %613 = arith.divf %611, %612 : vector<8x1xf32>
    %cst_233 = arith.constant 9.99999997E-7 : f32
    %614 = vector.broadcast %cst_233 : f32 to vector<8x1xf32>
    %615 = arith.addf %613, %614 : vector<8x1xf32>
    %616 = math.rsqrt %615 : vector<8x1xf32>
    %617 = vector.broadcast %616 : vector<8x1xf32> to vector<8x32xf32>
    %618 = arith.mulf %600, %617 : vector<8x32xf32>
    %619 = vector.broadcast %602 : vector<1x32xf32> to vector<8x32xf32>
    %620 = arith.mulf %618, %619 : vector<8x32xf32>
    %cst_234 = arith.constant dense<0.000000e+00> : vector<8x32xf32>
    %621 = tpu.matmul %620, %604, %cst_234 {dimension_numbers = #tpu.dot_dimension_numbers<[1], [0], [0], [1], [0, 0, 1, 1], [], []>} : vector<8x32xf32>, vector<32x32xf32>, vector<8x32xf32> -> vector<8x32xf32>
    %cst_235 = arith.constant dense<0.000000e+00> : vector<8x64xf32>
    %622 = tpu.matmul %276, %606, %cst_235 {dimension_numbers = #tpu.dot_dimension_numbers<[1], [0], [0], [1], [0, 0, 1, 1], [], []>} : vector<8x32xf32>, vector<32x64xf32>, vector<8x64xf32> -> vector<8x64xf32>
    %623 = vector.extract_strided_slice %622 {offsets = [0, 0], sizes = [8, 32], strides = [1, 1]} : vector<8x64xf32> to vector<8x32xf32>
    %624 = vector.extract_strided_slice %622 {offsets = [0, 32], sizes = [8, 32], strides = [1, 1]} : vector<8x64xf32> to vector<8x32xf32>
    %625 = vector.extract_strided_slice %621 {offsets = [0, 0], sizes = [8, 8], strides = [1, 1]} : vector<8x32xf32> to vector<8x8xf32>
    %626 = vector.extract_strided_slice %623 {offsets = [0, 0], sizes = [8, 8], strides = [1, 1]} : vector<8x32xf32> to vector<8x8xf32>
    %627 = tpu.transpose %626, [1, 0] : vector<8x8xf32> -> vector<8x8xf32>
    %cst_236 = arith.constant dense<0.000000e+00> : vector<8x8xf32>
    %628 = tpu.matmul %625, %627, %cst_236 {dimension_numbers = #tpu.dot_dimension_numbers<[1], [0], [0], [1], [0, 0, 1, 1], [], []>} : vector<8x8xf32>, vector<8x8xf32>, vector<8x8xf32> -> vector<8x8xf32>
    %629 = vector.broadcast %5 : vector<1x8xf32> to vector<8x8xf32>
    %630 = arith.addf %628, %629 : vector<8x8xf32>
    %cst_237 = arith.constant dense<0xFF800000> : vector<8xf32>
    %631 = vector.multi_reduction <maximumf>, %630, %cst_237 [1] : vector<8x8xf32> to vector<8xf32>
    %632 = vector.shape_cast %631 : vector<8xf32> to vector<8x1xf32>
    %633 = vector.broadcast %632 : vector<8x1xf32> to vector<8x8xf32>
    %634 = arith.subf %630, %633 : vector<8x8xf32>
    %635 = math.exp %634 : vector<8x8xf32>
    %cst_238 = arith.constant dense<0.000000e+00> : vector<8xf32>
    %636 = vector.multi_reduction <add>, %635, %cst_238 [1] : vector<8x8xf32> to vector<8xf32>
    %637 = vector.shape_cast %636 : vector<8xf32> to vector<8x1xf32>
    %638 = tpu.reciprocal %637 {approx = true} : vector<8x1xf32> -> vector<8x1xf32>
    %639 = vector.broadcast %638 : vector<8x1xf32> to vector<8x8xf32>
    %640 = arith.mulf %635, %639 : vector<8x8xf32>
    %641 = vector.extract_strided_slice %624 {offsets = [0, 0], sizes = [8, 8], strides = [1, 1]} : vector<8x32xf32> to vector<8x8xf32>
    %cst_239 = arith.constant dense<0.000000e+00> : vector<8x8xf32>
    %642 = tpu.matmul %640, %641, %cst_239 {dimension_numbers = #tpu.dot_dimension_numbers<[1], [0], [0], [1], [0, 0, 1, 1], [], []>} : vector<8x8xf32>, vector<8x8xf32>, vector<8x8xf32> -> vector<8x8xf32>
    %643 = vector.extract_strided_slice %621 {offsets = [0, 8], sizes = [8, 8], strides = [1, 1]} : vector<8x32xf32> to vector<8x8xf32>
    %644 = vector.extract_strided_slice %623 {offsets = [0, 8], sizes = [8, 8], strides = [1, 1]} : vector<8x32xf32> to vector<8x8xf32>
    %645 = tpu.transpose %644, [1, 0] : vector<8x8xf32> -> vector<8x8xf32>
    %cst_240 = arith.constant dense<0.000000e+00> : vector<8x8xf32>
    %646 = tpu.matmul %643, %645, %cst_240 {dimension_numbers = #tpu.dot_dimension_numbers<[1], [0], [0], [1], [0, 0, 1, 1], [], []>} : vector<8x8xf32>, vector<8x8xf32>, vector<8x8xf32> -> vector<8x8xf32>
    %647 = vector.broadcast %5 : vector<1x8xf32> to vector<8x8xf32>
    %648 = arith.addf %646, %647 : vector<8x8xf32>
    %cst_241 = arith.constant dense<0xFF800000> : vector<8xf32>
    %649 = vector.multi_reduction <maximumf>, %648, %cst_241 [1] : vector<8x8xf32> to vector<8xf32>
    %650 = vector.shape_cast %649 : vector<8xf32> to vector<8x1xf32>
    %651 = vector.broadcast %650 : vector<8x1xf32> to vector<8x8xf32>
    %652 = arith.subf %648, %651 : vector<8x8xf32>
    %653 = math.exp %652 : vector<8x8xf32>
    %cst_242 = arith.constant dense<0.000000e+00> : vector<8xf32>
    %654 = vector.multi_reduction <add>, %653, %cst_242 [1] : vector<8x8xf32> to vector<8xf32>
    %655 = vector.shape_cast %654 : vector<8xf32> to vector<8x1xf32>
    %656 = tpu.reciprocal %655 {approx = true} : vector<8x1xf32> -> vector<8x1xf32>
    %657 = vector.broadcast %656 : vector<8x1xf32> to vector<8x8xf32>
    %658 = arith.mulf %653, %657 : vector<8x8xf32>
    %659 = vector.extract_strided_slice %624 {offsets = [0, 8], sizes = [8, 8], strides = [1, 1]} : vector<8x32xf32> to vector<8x8xf32>
    %cst_243 = arith.constant dense<0.000000e+00> : vector<8x8xf32>
    %660 = tpu.matmul %658, %659, %cst_243 {dimension_numbers = #tpu.dot_dimension_numbers<[1], [0], [0], [1], [0, 0, 1, 1], [], []>} : vector<8x8xf32>, vector<8x8xf32>, vector<8x8xf32> -> vector<8x8xf32>
    %661 = vector.extract_strided_slice %621 {offsets = [0, 16], sizes = [8, 8], strides = [1, 1]} : vector<8x32xf32> to vector<8x8xf32>
    %662 = vector.extract_strided_slice %623 {offsets = [0, 16], sizes = [8, 8], strides = [1, 1]} : vector<8x32xf32> to vector<8x8xf32>
    %663 = tpu.transpose %662, [1, 0] : vector<8x8xf32> -> vector<8x8xf32>
    %cst_244 = arith.constant dense<0.000000e+00> : vector<8x8xf32>
    %664 = tpu.matmul %661, %663, %cst_244 {dimension_numbers = #tpu.dot_dimension_numbers<[1], [0], [0], [1], [0, 0, 1, 1], [], []>} : vector<8x8xf32>, vector<8x8xf32>, vector<8x8xf32> -> vector<8x8xf32>
    %665 = vector.broadcast %5 : vector<1x8xf32> to vector<8x8xf32>
    %666 = arith.addf %664, %665 : vector<8x8xf32>
    %cst_245 = arith.constant dense<0xFF800000> : vector<8xf32>
    %667 = vector.multi_reduction <maximumf>, %666, %cst_245 [1] : vector<8x8xf32> to vector<8xf32>
    %668 = vector.shape_cast %667 : vector<8xf32> to vector<8x1xf32>
    %669 = vector.broadcast %668 : vector<8x1xf32> to vector<8x8xf32>
    %670 = arith.subf %666, %669 : vector<8x8xf32>
    %671 = math.exp %670 : vector<8x8xf32>
    %cst_246 = arith.constant dense<0.000000e+00> : vector<8xf32>
    %672 = vector.multi_reduction <add>, %671, %cst_246 [1] : vector<8x8xf32> to vector<8xf32>
    %673 = vector.shape_cast %672 : vector<8xf32> to vector<8x1xf32>
    %674 = tpu.reciprocal %673 {approx = true} : vector<8x1xf32> -> vector<8x1xf32>
    %675 = vector.broadcast %674 : vector<8x1xf32> to vector<8x8xf32>
    %676 = arith.mulf %671, %675 : vector<8x8xf32>
    %677 = vector.extract_strided_slice %624 {offsets = [0, 16], sizes = [8, 8], strides = [1, 1]} : vector<8x32xf32> to vector<8x8xf32>
    %cst_247 = arith.constant dense<0.000000e+00> : vector<8x8xf32>
    %678 = tpu.matmul %676, %677, %cst_247 {dimension_numbers = #tpu.dot_dimension_numbers<[1], [0], [0], [1], [0, 0, 1, 1], [], []>} : vector<8x8xf32>, vector<8x8xf32>, vector<8x8xf32> -> vector<8x8xf32>
    %679 = vector.extract_strided_slice %621 {offsets = [0, 24], sizes = [8, 8], strides = [1, 1]} : vector<8x32xf32> to vector<8x8xf32>
    %680 = vector.extract_strided_slice %623 {offsets = [0, 24], sizes = [8, 8], strides = [1, 1]} : vector<8x32xf32> to vector<8x8xf32>
    %681 = tpu.transpose %680, [1, 0] : vector<8x8xf32> -> vector<8x8xf32>
    %cst_248 = arith.constant dense<0.000000e+00> : vector<8x8xf32>
    %682 = tpu.matmul %679, %681, %cst_248 {dimension_numbers = #tpu.dot_dimension_numbers<[1], [0], [0], [1], [0, 0, 1, 1], [], []>} : vector<8x8xf32>, vector<8x8xf32>, vector<8x8xf32> -> vector<8x8xf32>
    %683 = vector.broadcast %5 : vector<1x8xf32> to vector<8x8xf32>
    %684 = arith.addf %682, %683 : vector<8x8xf32>
    %cst_249 = arith.constant dense<0xFF800000> : vector<8xf32>
    %685 = vector.multi_reduction <maximumf>, %684, %cst_249 [1] : vector<8x8xf32> to vector<8xf32>
    %686 = vector.shape_cast %685 : vector<8xf32> to vector<8x1xf32>
    %687 = vector.broadcast %686 : vector<8x1xf32> to vector<8x8xf32>
    %688 = arith.subf %684, %687 : vector<8x8xf32>
    %689 = math.exp %688 : vector<8x8xf32>
    %cst_250 = arith.constant dense<0.000000e+00> : vector<8xf32>
    %690 = vector.multi_reduction <add>, %689, %cst_250 [1] : vector<8x8xf32> to vector<8xf32>
    %691 = vector.shape_cast %690 : vector<8xf32> to vector<8x1xf32>
    %692 = tpu.reciprocal %691 {approx = true} : vector<8x1xf32> -> vector<8x1xf32>
    %693 = vector.broadcast %692 : vector<8x1xf32> to vector<8x8xf32>
    %694 = arith.mulf %689, %693 : vector<8x8xf32>
    %695 = vector.extract_strided_slice %624 {offsets = [0, 24], sizes = [8, 8], strides = [1, 1]} : vector<8x32xf32> to vector<8x8xf32>
    %cst_251 = arith.constant dense<0.000000e+00> : vector<8x8xf32>
    %696 = tpu.matmul %694, %695, %cst_251 {dimension_numbers = #tpu.dot_dimension_numbers<[1], [0], [0], [1], [0, 0, 1, 1], [], []>} : vector<8x8xf32>, vector<8x8xf32>, vector<8x8xf32> -> vector<8x8xf32>
    %697 = tpu.concatenate %642, %660, %678, %696 in 1 : vector<8x8xf32>, vector<8x8xf32>, vector<8x8xf32>, vector<8x8xf32> -> vector<8x32xf32>
    %cst_252 = arith.constant dense<0.000000e+00> : vector<8x32xf32>
    %698 = tpu.matmul %697, %608, %cst_252 {dimension_numbers = #tpu.dot_dimension_numbers<[1], [0], [0], [1], [0, 0, 1, 1], [], []>} : vector<8x32xf32>, vector<32x32xf32>, vector<8x32xf32> -> vector<8x32xf32>
    %699 = arith.addf %600, %698 : vector<8x32xf32>
    %c1_253 = arith.constant 1 : index
    %c0_254 = arith.constant 0 : index
    %c0_255 = arith.constant 0 : index
    %700 = vector.load %arg21[%c1_253, %c0_254, %c0_255] : memref<2x1x32xf32, #tpu.memory_space<vmem>>, vector<1x1x32xf32>
    %701 = vector.shape_cast %700 : vector<1x1x32xf32> to vector<1x32xf32>
    %c1_256 = arith.constant 1 : index
    %c0_257 = arith.constant 0 : index
    %c0_258 = arith.constant 0 : index
    %702 = vector.load %arg22[%c1_256, %c0_257, %c0_258] : memref<2x32x64xf32, #tpu.memory_space<vmem>>, vector<1x32x64xf32>
    %703 = vector.shape_cast %702 : vector<1x32x64xf32> to vector<32x64xf32>
    %c1_259 = arith.constant 1 : index
    %c0_260 = arith.constant 0 : index
    %c0_261 = arith.constant 0 : index
    %704 = vector.load %arg23[%c1_259, %c0_260, %c0_261] : memref<2x64x32xf32, #tpu.memory_space<vmem>>, vector<1x64x32xf32>
    %705 = vector.shape_cast %704 : vector<1x64x32xf32> to vector<64x32xf32>
    %706 = arith.mulf %699, %699 : vector<8x32xf32>
    %cst_262 = arith.constant dense<0.000000e+00> : vector<8xf32>
    %707 = vector.multi_reduction <add>, %706, %cst_262 [1] : vector<8x32xf32> to vector<8xf32>
    %708 = vector.shape_cast %707 : vector<8xf32> to vector<8x1xf32>
    %cst_263 = arith.constant 3.200000e+01 : f32
    %709 = vector.broadcast %cst_263 : f32 to vector<8x1xf32>
    %710 = arith.divf %708, %709 : vector<8x1xf32>
    %cst_264 = arith.constant 9.99999997E-7 : f32
    %711 = vector.broadcast %cst_264 : f32 to vector<8x1xf32>
    %712 = arith.addf %710, %711 : vector<8x1xf32>
    %713 = math.rsqrt %712 : vector<8x1xf32>
    %714 = vector.broadcast %713 : vector<8x1xf32> to vector<8x32xf32>
    %715 = arith.mulf %699, %714 : vector<8x32xf32>
    %716 = vector.broadcast %701 : vector<1x32xf32> to vector<8x32xf32>
    %717 = arith.mulf %715, %716 : vector<8x32xf32>
    %cst_265 = arith.constant dense<0.000000e+00> : vector<8x64xf32>
    %718 = tpu.matmul %717, %703, %cst_265 {dimension_numbers = #tpu.dot_dimension_numbers<[1], [0], [0], [1], [0, 0, 1, 1], [], []>} : vector<8x32xf32>, vector<32x64xf32>, vector<8x64xf32> -> vector<8x64xf32>
    %cst_266 = arith.constant 0.000000e+00 : f32
    %719 = vector.broadcast %cst_266 : f32 to vector<8x64xf32>
    %720 = arith.maximumf %718, %719 : vector<8x64xf32>
    %cst_267 = arith.constant dense<0.000000e+00> : vector<8x32xf32>
    %721 = tpu.matmul %720, %705, %cst_267 {dimension_numbers = #tpu.dot_dimension_numbers<[1], [0], [0], [1], [0, 0, 1, 1], [], []>} : vector<8x64xf32>, vector<64x32xf32>, vector<8x32xf32> -> vector<8x32xf32>
    %722 = arith.addf %699, %721 : vector<8x32xf32>
    %c0_268 = arith.constant 0 : index
    %c0_269 = arith.constant 0 : index
    %723 = vector.load %arg24[%c0_268, %c0_269] : memref<1x32xf32, #tpu.memory_space<vmem>>, vector<1x32xf32>
    %724 = arith.mulf %722, %722 : vector<8x32xf32>
    %cst_270 = arith.constant dense<0.000000e+00> : vector<8xf32>
    %725 = vector.multi_reduction <add>, %724, %cst_270 [1] : vector<8x32xf32> to vector<8xf32>
    %726 = vector.shape_cast %725 : vector<8xf32> to vector<8x1xf32>
    %cst_271 = arith.constant 3.200000e+01 : f32
    %727 = vector.broadcast %cst_271 : f32 to vector<8x1xf32>
    %728 = arith.divf %726, %727 : vector<8x1xf32>
    %cst_272 = arith.constant 9.99999997E-7 : f32
    %729 = vector.broadcast %cst_272 : f32 to vector<8x1xf32>
    %730 = arith.addf %728, %729 : vector<8x1xf32>
    %731 = math.rsqrt %730 : vector<8x1xf32>
    %732 = vector.broadcast %731 : vector<8x1xf32> to vector<8x32xf32>
    %733 = arith.mulf %722, %732 : vector<8x32xf32>
    %734 = vector.broadcast %723 : vector<1x32xf32> to vector<8x32xf32>
    %735 = arith.mulf %733, %734 : vector<8x32xf32>
    %c0_273 = arith.constant 0 : index
    %c0_274 = arith.constant 0 : index
    %736 = vector.load %arg25[%c0_273, %c0_274] : memref<32x128xf32, #tpu.memory_space<vmem>>, vector<32x128xf32>
    %cst_275 = arith.constant dense<0.000000e+00> : vector<8x128xf32>
    %737 = tpu.matmul %735, %736, %cst_275 {dimension_numbers = #tpu.dot_dimension_numbers<[1], [0], [0], [1], [0, 0, 1, 1], [], []>} : vector<8x32xf32>, vector<32x128xf32>, vector<8x128xf32> -> vector<8x128xf32>
    %c0_276 = arith.constant 0 : index
    %c0_277 = arith.constant 0 : index
    %738 = vector.load %arg26[%c0_276, %c0_277] : memref<1x128xf32, #tpu.memory_space<vmem>>, vector<1x128xf32>
    %739 = vector.broadcast %738 : vector<1x128xf32> to vector<8x128xf32>
    %740 = arith.addf %737, %739 : vector<8x128xf32>
    %c0_278 = arith.constant 0 : index
    %c0_279 = arith.constant 0 : index
    %c0_280 = arith.constant 0 : index
    %741 = vector.load %arg27[%c0_278, %c0_279, %c0_280] : memref<1x8x128xf32, #tpu.memory_space<vmem>>, vector<1x8x128xf32>
    %742 = vector.shape_cast %741 : vector<1x8x128xf32> to vector<8x128xf32>
    %743 = vector.shape_cast %740 : vector<8x128xf32> to vector<1x8x128xf32>
    tpu.vector_store %arg27[%c0_278, %c0_279, %c0_280], %743 {strides = array<i32>} : memref<1x8x128xf32, #tpu.memory_space<vmem>>, vector<1x8x128xf32>,
    return
  }
  func.func @transform_0(%arg0: i32) -> (i32, i32, i32) {
    %c0_i32 = arith.constant 0 : i32
    %c0_i32_0 = arith.constant 0 : i32
    %c0_i32_1 = arith.constant 0 : i32
    return %arg0, %c0_i32, %c0_i32_0 : i32, i32, i32
  }
  func.func @transform_1(%arg0: i32) -> (i32, i32, i32) {
    %c0_i32 = arith.constant 0 : i32
    %c0_i32_0 = arith.constant 0 : i32
    %c0_i32_1 = arith.constant 0 : i32
    return %arg0, %c0_i32, %c0_i32_0 : i32, i32, i32
  }
  func.func @transform_2(%arg0: i32) -> (i32, i32, i32) {
    %c0_i32 = arith.constant 0 : i32
    %c0_i32_0 = arith.constant 0 : i32
    %c0_i32_1 = arith.constant 0 : i32
    %c0_i32_2 = arith.constant 0 : i32
    return %c0_i32, %c0_i32_0, %c0_i32_1 : i32, i32, i32
  }
  func.func @transform_3(%arg0: i32) -> (i32, i32, i32) {
    %c0_i32 = arith.constant 0 : i32
    %c0_i32_0 = arith.constant 0 : i32
    %c0_i32_1 = arith.constant 0 : i32
    %c0_i32_2 = arith.constant 0 : i32
    return %c0_i32, %c0_i32_0, %c0_i32_1 : i32, i32, i32
  }
  func.func @transform_4(%arg0: i32) -> (i32, i32, i32) {
    %c0_i32 = arith.constant 0 : i32
    %c0_i32_0 = arith.constant 0 : i32
    %c0_i32_1 = arith.constant 0 : i32
    return %arg0, %c0_i32, %c0_i32_0 : i32, i32, i32
  }
  func.func @transform_5(%arg0: i32) -> (i32, i32, i32) {
    %c0_i32 = arith.constant 0 : i32
    %c0_i32_0 = arith.constant 0 : i32
    %c0_i32_1 = arith.constant 0 : i32
    return %arg0, %c0_i32, %c0_i32_0 : i32, i32, i32
  }
  func.func @transform_6(%arg0: i32) -> (i32, i32, i32) {
    %c0_i32 = arith.constant 0 : i32
    %c0_i32_0 = arith.constant 0 : i32
    %c0_i32_1 = arith.constant 0 : i32
    %c0_i32_2 = arith.constant 0 : i32
    return %c0_i32, %c0_i32_0, %c0_i32_1 : i32, i32, i32
  }
  func.func @transform_7(%arg0: i32) -> (i32, i32, i32) {
    %c0_i32 = arith.constant 0 : i32
    %c0_i32_0 = arith.constant 0 : i32
    %c0_i32_1 = arith.constant 0 : i32
    %c0_i32_2 = arith.constant 0 : i32
    return %c0_i32, %c0_i32_0, %c0_i32_1 : i32, i32, i32
  }
  func.func @transform_8(%arg0: i32) -> (i32, i32, i32) {
    %c0_i32 = arith.constant 0 : i32
    %c0_i32_0 = arith.constant 0 : i32
    %c0_i32_1 = arith.constant 0 : i32
    %c0_i32_2 = arith.constant 0 : i32
    return %c0_i32, %c0_i32_0, %c0_i32_1 : i32, i32, i32
  }
  func.func @transform_9(%arg0: i32) -> (i32, i32, i32) {
    %c0_i32 = arith.constant 0 : i32
    %c0_i32_0 = arith.constant 0 : i32
    %c0_i32_1 = arith.constant 0 : i32
    %c0_i32_2 = arith.constant 0 : i32
    return %c0_i32, %c0_i32_0, %c0_i32_1 : i32, i32, i32
  }
  func.func @transform_10(%arg0: i32) -> (i32, i32, i32) {
    %c0_i32 = arith.constant 0 : i32
    %c0_i32_0 = arith.constant 0 : i32
    %c0_i32_1 = arith.constant 0 : i32
    %c0_i32_2 = arith.constant 0 : i32
    return %c0_i32, %c0_i32_0, %c0_i32_1 : i32, i32, i32
  }
  func.func @transform_11(%arg0: i32) -> (i32, i32, i32) {
    %c0_i32 = arith.constant 0 : i32
    %c0_i32_0 = arith.constant 0 : i32
    %c0_i32_1 = arith.constant 0 : i32
    %c0_i32_2 = arith.constant 0 : i32
    return %c0_i32, %c0_i32_0, %c0_i32_1 : i32, i32, i32
  }
  func.func @transform_12(%arg0: i32) -> (i32, i32) {
    %c0_i32 = arith.constant 0 : i32
    %c0_i32_0 = arith.constant 0 : i32
    %c0_i32_1 = arith.constant 0 : i32
    return %c0_i32, %c0_i32_0 : i32, i32
  }
  func.func @transform_13(%arg0: i32) -> (i32, i32, i32) {
    %c0_i32 = arith.constant 0 : i32
    %c0_i32_0 = arith.constant 0 : i32
    %c0_i32_1 = arith.constant 0 : i32
    %c0_i32_2 = arith.constant 0 : i32
    return %c0_i32, %c0_i32_0, %c0_i32_1 : i32, i32, i32
  }
  func.func @transform_14(%arg0: i32) -> (i32, i32, i32) {
    %c0_i32 = arith.constant 0 : i32
    %c0_i32_0 = arith.constant 0 : i32
    %c0_i32_1 = arith.constant 0 : i32
    %c0_i32_2 = arith.constant 0 : i32
    return %c0_i32, %c0_i32_0, %c0_i32_1 : i32, i32, i32
  }
  func.func @transform_15(%arg0: i32) -> (i32, i32, i32) {
    %c0_i32 = arith.constant 0 : i32
    %c0_i32_0 = arith.constant 0 : i32
    %c0_i32_1 = arith.constant 0 : i32
    %c0_i32_2 = arith.constant 0 : i32
    return %c0_i32, %c0_i32_0, %c0_i32_1 : i32, i32, i32
  }
  func.func @transform_16(%arg0: i32) -> (i32, i32, i32) {
    %c0_i32 = arith.constant 0 : i32
    %c0_i32_0 = arith.constant 0 : i32
    %c0_i32_1 = arith.constant 0 : i32
    %c0_i32_2 = arith.constant 0 : i32
    return %c0_i32, %c0_i32_0, %c0_i32_1 : i32, i32, i32
  }
  func.func @transform_17(%arg0: i32) -> (i32, i32, i32) {
    %c0_i32 = arith.constant 0 : i32
    %c0_i32_0 = arith.constant 0 : i32
    %c0_i32_1 = arith.constant 0 : i32
    %c0_i32_2 = arith.constant 0 : i32
    return %c0_i32, %c0_i32_0, %c0_i32_1 : i32, i32, i32
  }
  func.func @transform_18(%arg0: i32) -> (i32, i32, i32) {
    %c0_i32 = arith.constant 0 : i32
    %c0_i32_0 = arith.constant 0 : i32
    %c0_i32_1 = arith.constant 0 : i32
    %c0_i32_2 = arith.constant 0 : i32
    return %c0_i32, %c0_i32_0, %c0_i32_1 : i32, i32, i32
  }
  func.func @transform_19(%arg0: i32) -> (i32, i32, i32) {
    %c0_i32 = arith.constant 0 : i32
    %c0_i32_0 = arith.constant 0 : i32
    %c0_i32_1 = arith.constant 0 : i32
    %c0_i32_2 = arith.constant 0 : i32
    return %c0_i32, %c0_i32_0, %c0_i32_1 : i32, i32, i32
  }
  func.func @transform_20(%arg0: i32) -> (i32, i32, i32) {
    %c0_i32 = arith.constant 0 : i32
    %c0_i32_0 = arith.constant 0 : i32
    %c0_i32_1 = arith.constant 0 : i32
    %c0_i32_2 = arith.constant 0 : i32
    return %c0_i32, %c0_i32_0, %c0_i32_1 : i32, i32, i32
  }
  func.func @transform_21(%arg0: i32) -> (i32, i32, i32) {
    %c0_i32 = arith.constant 0 : i32
    %c0_i32_0 = arith.constant 0 : i32
    %c0_i32_1 = arith.constant 0 : i32
    %c0_i32_2 = arith.constant 0 : i32
    return %c0_i32, %c0_i32_0, %c0_i32_1 : i32, i32, i32
  }
  func.func @transform_22(%arg0: i32) -> (i32, i32, i32) {
    %c0_i32 = arith.constant 0 : i32
    %c0_i32_0 = arith.constant 0 : i32
    %c0_i32_1 = arith.constant 0 : i32
    %c0_i32_2 = arith.constant 0 : i32
    return %c0_i32, %c0_i32_0, %c0_i32_1 : i32, i32, i32
  }
  func.func @transform_23(%arg0: i32) -> (i32, i32) {
    %c0_i32 = arith.constant 0 : i32
    %c0_i32_0 = arith.constant 0 : i32
    %c0_i32_1 = arith.constant 0 : i32
    return %c0_i32, %c0_i32_0 : i32, i32
  }
  func.func @transform_24(%arg0: i32) -> (i32, i32) {
    %c0_i32 = arith.constant 0 : i32
    %c0_i32_0 = arith.constant 0 : i32
    %c0_i32_1 = arith.constant 0 : i32
    return %c0_i32, %c0_i32_0 : i32, i32
  }
  func.func @transform_25(%arg0: i32) -> (i32, i32) {
    %c0_i32 = arith.constant 0 : i32
    %c0_i32_0 = arith.constant 0 : i32
    %c0_i32_1 = arith.constant 0 : i32
    return %c0_i32, %c0_i32_0 : i32, i32
  }
  func.func @transform_26(%arg0: i32) -> (i32, i32, i32) {
    %c0_i32 = arith.constant 0 : i32
    %c0_i32_0 = arith.constant 0 : i32
    %c0_i32_1 = arith.constant 0 : i32
    return %arg0, %c0_i32, %c0_i32_0 : i32, i32, i32
  }
}

</mosaic_0001>

<llo_original>
// kernel: t5_network.1
$region0: #{t5_network.1}
  #allocation0 [shape = 'u32[]', space=smem, size = 0x4, offset = 0x4, fixed_abs, tag = 'smem constant byte address 0x4 - core index']
  #allocation1 [shape = 'u32[144,128]{1,0:T(1,128)}', space=vmem, size = 0x12000, scoped, tag = 'internal scratch']
  %s0 = inlined_call_operand.vmem [shape: f32[2,8,32], index: 0, kind: input, shape index: {}]
  %s1 = inlined_call_operand.vmem [shape: f32[2,8,32], index: 1, kind: input, shape index: {}]
  %s2 = inlined_call_operand.vmem [shape: f32[4,8,8], index: 2, kind: input, shape index: {}]
  %s3 = inlined_call_operand.vmem [shape: f32[4,8,8], index: 3, kind: input, shape index: {}]
  %s4 = inlined_call_operand.vmem [shape: f32[2,1,8], index: 4, kind: input, shape index: {}, may-alias: {4,5}]
  %s5 = inlined_call_operand.vmem [shape: f32[2,1,8], index: 5, kind: input, shape index: {}, may-alias: {4,5}]
  %s6 = inlined_call_operand.vmem [shape: f32[2,1,32], index: 6, kind: input, shape index: {}]
  %s7 = inlined_call_operand.vmem [shape: f32[2,32,96], index: 7, kind: input, shape index: {}]
  %s8 = inlined_call_operand.vmem [shape: f32[2,32,32], index: 8, kind: input, shape index: {}]
  %s9 = inlined_call_operand.vmem [shape: f32[2,1,32], index: 9, kind: input, shape index: {}]
  %s10 = inlined_call_operand.vmem [shape: f32[2,32,64], index: 10, kind: input, shape index: {}]
  %s11 = inlined_call_operand.vmem [shape: f32[2,64,32], index: 11, kind: input, shape index: {}]
  %s12 = inlined_call_operand.vmem [shape: f32[1,32], index: 12, kind: input, shape index: {}]
  %s13 = inlined_call_operand.vmem [shape: f32[2,1,32], index: 13, kind: input, shape index: {}]
  %s14 = inlined_call_operand.vmem [shape: f32[2,32,96], index: 14, kind: input, shape index: {}]
  %s15 = inlined_call_operand.vmem [shape: f32[2,32,32], index: 15, kind: input, shape index: {}]
  %s16 = inlined_call_operand.vmem [shape: f32[2,1,32], index: 16, kind: input, shape index: {}]
  %s17 = inlined_call_operand.vmem [shape: f32[2,32,32], index: 17, kind: input, shape index: {}]
  %s18 = inlined_call_operand.vmem [shape: f32[2,32,64], index: 18, kind: input, shape index: {}]
  %s19 = inlined_call_operand.vmem [shape: f32[2,32,32], index: 19, kind: input, shape index: {}]
  %s20 = inlined_call_operand.vmem [shape: f32[2,1,32], index: 20, kind: input, shape index: {}]
  %s21 = inlined_call_operand.vmem [shape: f32[2,32,64], index: 21, kind: input, shape index: {}]
  %s22 = inlined_call_operand.vmem [shape: f32[2,64,32], index: 22, kind: input, shape index: {}]
  %s23 = inlined_call_operand.vmem [shape: f32[1,32], index: 23, kind: input, shape index: {}]
  %s24 = inlined_call_operand.vmem [shape: f32[32,128], index: 24, kind: input, shape index: {}]
  %s25 = inlined_call_operand.vmem [shape: f32[1,128], index: 25, kind: input, shape index: {}]
  %s26 = inlined_call_operand.hbm [shape: f32[2,8,128], index: 26, kind: output, shape index: {}]
  %s27 = sld [smem:[#allocation0]]
  $region137: #{t5_network.1} parent=0
    _
  %s29 = ssub.s32 1, %s27
  %s30 = scalar_select 0, %s29, %s27
  $region1: #{t5_network.1} parent=0
    #allocation2 [shape = 'u8[8192]{0}', space=vmem, size = 0x2000, scoped, tag = 'output window, operand 0']
    #allocation3 [shape = 's32[2]{0}', space=sflag, size = 0x8, scoped, tag = 'scoped memory for t5_network.1']
    %31 = vsyncpa [#allocation3], 0
    %s32 = scalar_lea.sflag [#allocation3], 1
    %33 = vsyncpa %s32, 0
    loop: start=0, step=1, limit=4
    $region2: #{t5_network.1} parent=1 // loop_pre_header
      _
    $region3: #{t5_network.1} parent=1 // loop_header
      %s35 = sphi 0, %s39
      %p36 = scmp.ge.s32.totalorder %s35, 4
      %s45 = sphi 0, %s47
      %s48 = sphi 0, %s45
      %s49 = sphi 0, %s48
      %s65 = sphi 0, %s49
      %s71 = sphi 0, %s73
      %s74 = sphi 0, %s71
      %s75 = sphi 0, %s74
      %s91 = sphi 0, %s75
      %s95 = sphi 0, %s95
      %s97 = sphi 0, %s95
      %s98 = sphi 0, %s97
      %s112 = sphi 0, %s98
      %s116 = sphi 0, %s116
      %s118 = sphi 0, %s116
      %s119 = sphi 0, %s118
      %s133 = sphi 0, %s119
      %s139 = sphi 0, %s141
      %s142 = sphi 0, %s139
      %s143 = sphi 0, %s142
      %s159 = sphi 0, %s143
      %s165 = sphi 0, %s167
      %s168 = sphi 0, %s165
      %s169 = sphi 0, %s168
      %s185 = sphi 0, %s169
      %s189 = sphi 0, %s189
      %s191 = sphi 0, %s189
      %s192 = sphi 0, %s191
      %s206 = sphi 0, %s192
      %s210 = sphi 0, %s210
      %s212 = sphi 0, %s210
      %s213 = sphi 0, %s212
      %s227 = sphi 0, %s213
      %s231 = sphi 0, %s231
      %s233 = sphi 0, %s231
      %s234 = sphi 0, %s233
      %s248 = sphi 0, %s234
      %s252 = sphi 0, %s252
      %s254 = sphi 0, %s252
      %s255 = sphi 0, %s254
      %s269 = sphi 0, %s255
      %s273 = sphi 0, %s273
      %s275 = sphi 0, %s273
      %s276 = sphi 0, %s275
      %s290 = sphi 0, %s276
      %s294 = sphi 0, %s294
      %s296 = sphi 0, %s294
      %s297 = sphi 0, %s296
      %s311 = sphi 0, %s297
      %s315 = sphi 0, %s315
      %s317 = sphi 0, %s315
      %s318 = sphi 0, %s317
      %s332 = sphi 0, %s318
      %s336 = sphi 0, %s336
      %s338 = sphi 0, %s336
      %s339 = sphi 0, %s338
      %s353 = sphi 0, %s339
      %s357 = sphi 0, %s357
      %s359 = sphi 0, %s357
      %s360 = sphi 0, %s359
      %s374 = sphi 0, %s360
      %s378 = sphi 0, %s378
      %s380 = sphi 0, %s378
      %s381 = sphi 0, %s380
      %s395 = sphi 0, %s381
      %s399 = sphi 0, %s399
      %s401 = sphi 0, %s399
      %s402 = sphi 0, %s401
      %s416 = sphi 0, %s402
      %s420 = sphi 0, %s420
      %s422 = sphi 0, %s420
      %s423 = sphi 0, %s422
      %s437 = sphi 0, %s423
      %s441 = sphi 0, %s441
      %s443 = sphi 0, %s441
      %s444 = sphi 0, %s443
      %s458 = sphi 0, %s444
      %s462 = sphi 0, %s462
      %s464 = sphi 0, %s462
      %s465 = sphi 0, %s464
      %s479 = sphi 0, %s465
      %s483 = sphi 0, %s483
      %s485 = sphi 0, %s483
      %s486 = sphi 0, %s485
      %s500 = sphi 0, %s486
      %s504 = sphi 0, %s504
      %s506 = sphi 0, %s504
      %s507 = sphi 0, %s506
      %s521 = sphi 0, %s507
      %s525 = sphi 0, %s525
      %s527 = sphi 0, %s525
      %s528 = sphi 0, %s527
      %s542 = sphi 0, %s528
      %s546 = sphi 0, %s546
      %s548 = sphi 0, %s546
      %s549 = sphi 0, %s548
      %s563 = sphi 0, %s549
      %s567 = sphi 0, %s567
      %s569 = sphi 0, %s567
      %s570 = sphi 0, %s569
      %s584 = sphi 0, %s570
      %s588 = sphi 0, %s588
      %s590 = sphi 0, %s588
      %s591 = sphi 0, %s590
      %s605 = sphi 0, %s591
      %s611 = sphi 0, %s613
      %s614 = sphi 0, %s611
      %s615 = sphi 0, %s614
      %s631 = sphi 0, %s615
    $region4: #{t5_network.1} parent=1 // loop_header_branch
      %38 = sbr.rel (%p36) target = $region8
    $region5: #{t5_network.1} parent=1 // loop_body
      %s40 = ssub.s32 %s35, 1
      %s41 = ssub.s32 %s35, 2
      %s42 = sadd.s32 %s35, 1
      %s43 = ssub.s32 %s35, %s42
      %p44 = scmp.eq.s32.totalorder %s43, 0
      %s46 = sadd.s32 %s45, 1
      %s47 = scalar_select %p44, %s45, %s46
      %p50 = pneg %p44
      %p51 = scmp.eq.s32.totalorder %s35, 1
      %p52 = por %p50, %p51
      %p53 = scmp.ne.s32.totalorder %s45, %s48
      %p54 = scmp.eq.s32.totalorder %s35, 0
      %p55 = por %p53, %p54
      %p56 = scmp.ne.s32.totalorder %s45, %s48
      %p57 = scmp.eq.s32.totalorder %s40, 1
      %p58 = por %p56, %p57
      %p59 = scmp.ne.s32.totalorder %s48, %s49
      %p60 = scmp.eq.s32.totalorder %s40, 0
      %p61 = por %p59, %p60
      %p62 = scmp.ne.s32.totalorder %s48, %s49
      %p63 = scmp.eq.s32.totalorder %s41, 1
      %p64 = por %p62, %p63
      %p66 = scmp.ne.s32.totalorder %s49, %s65
      %p67 = scmp.eq.s32.totalorder %s41, 0
      %p68 = por %p66, %p67
      %s69 = ssub.s32 %s35, %s42
      %p70 = scmp.eq.s32.totalorder %s69, 0
      %s72 = sadd.s32 %s71, 1
      %s73 = scalar_select %p70, %s71, %s72
      %p76 = pneg %p70
      %p77 = scmp.eq.s32.totalorder %s35, 1
      %p78 = por %p76, %p77
      %p79 = scmp.ne.s32.totalorder %s71, %s74
      %p80 = scmp.eq.s32.totalorder %s35, 0
      %p81 = por %p79, %p80
      %p82 = scmp.ne.s32.totalorder %s71, %s74
      %p83 = scmp.eq.s32.totalorder %s40, 1
      %p84 = por %p82, %p83
      %p85 = scmp.ne.s32.totalorder %s74, %s75
      %p86 = scmp.eq.s32.totalorder %s40, 0
      %p87 = por %p85, %p86
      %p88 = scmp.ne.s32.totalorder %s74, %s75
      %p89 = scmp.eq.s32.totalorder %s41, 1
      %p90 = por %p88, %p89
      %p92 = scmp.ne.s32.totalorder %s75, %s91
      %p93 = scmp.eq.s32.totalorder %s41, 0
      %p94 = por %p92, %p93
      %s96 = sadd.s32 %s95, 1
      %p99 = scmp.eq.s32.totalorder %s35, 1
      %p100 = scmp.ne.s32.totalorder %s95, %s97
      %p101 = scmp.eq.s32.totalorder %s35, 0
      %p102 = por %p100, %p101
      %p103 = scmp.ne.s32.totalorder %s95, %s97
      %p104 = scmp.eq.s32.totalorder %s40, 1
      %p105 = por %p103, %p104
      %p106 = scmp.ne.s32.totalorder %s97, %s98
      %p107 = scmp.eq.s32.totalorder %s40, 0
      %p108 = por %p106, %p107
      %p109 = scmp.ne.s32.totalorder %s97, %s98
      %p110 = scmp.eq.s32.totalorder %s41, 1
      %p111 = por %p109, %p110
      %p113 = scmp.ne.s32.totalorder %s98, %s112
      %p114 = scmp.eq.s32.totalorder %s41, 0
      %p115 = por %p113, %p114
      %s117 = sadd.s32 %s116, 1
      %p120 = scmp.eq.s32.totalorder %s35, 1
      %p121 = scmp.ne.s32.totalorder %s116, %s118
      %p122 = scmp.eq.s32.totalorder %s35, 0
      %p123 = por %p121, %p122
      %p124 = scmp.ne.s32.totalorder %s116, %s118
      %p125 = scmp.eq.s32.totalorder %s40, 1
      %p126 = por %p124, %p125
      %p127 = scmp.ne.s32.totalorder %s118, %s119
      %p128 = scmp.eq.s32.totalorder %s40, 0
      %p129 = por %p127, %p128
      %p130 = scmp.ne.s32.totalorder %s118, %s119
      %p131 = scmp.eq.s32.totalorder %s41, 1
      %p132 = por %p130, %p131
      %p134 = scmp.ne.s32.totalorder %s119, %s133
      %p135 = scmp.eq.s32.totalorder %s41, 0
      %p136 = por %p134, %p135
      %s137 = ssub.s32 %s35, %s42
      %p138 = scmp.eq.s32.totalorder %s137, 0
      %s140 = sadd.s32 %s139, 1
      %s141 = scalar_select %p138, %s139, %s140
      %p144 = pneg %p138
      %p145 = scmp.eq.s32.totalorder %s35, 1
      %p146 = por %p144, %p145
      %p147 = scmp.ne.s32.totalorder %s139, %s142
      %p148 = scmp.eq.s32.totalorder %s35, 0
      %p149 = por %p147, %p148
      %p150 = scmp.ne.s32.totalorder %s139, %s142
      %p151 = scmp.eq.s32.totalorder %s40, 1
      %p152 = por %p150, %p151
      %p153 = scmp.ne.s32.totalorder %s142, %s143
      %p154 = scmp.eq.s32.totalorder %s40, 0
      %p155 = por %p153, %p154
      %p156 = scmp.ne.s32.totalorder %s142, %s143
      %p157 = scmp.eq.s32.totalorder %s41, 1
      %p158 = por %p156, %p157
      %p160 = scmp.ne.s32.totalorder %s143, %s159
      %p161 = scmp.eq.s32.totalorder %s41, 0
      %p162 = por %p160, %p161
      %s163 = ssub.s32 %s35, %s42
      %p164 = scmp.eq.s32.totalorder %s163, 0
      %s166 = sadd.s32 %s165, 1
      %s167 = scalar_select %p164, %s165, %s166
      %p170 = pneg %p164
      %p171 = scmp.eq.s32.totalorder %s35, 1
      %p172 = por %p170, %p171
      %p173 = scmp.ne.s32.totalorder %s165, %s168
      %p174 = scmp.eq.s32.totalorder %s35, 0
      %p175 = por %p173, %p174
      %p176 = scmp.ne.s32.totalorder %s165, %s168
      %p177 = scmp.eq.s32.totalorder %s40, 1
      %p178 = por %p176, %p177
      %p179 = scmp.ne.s32.totalorder %s168, %s169
      %p180 = scmp.eq.s32.totalorder %s40, 0
      %p181 = por %p179, %p180
      %p182 = scmp.ne.s32.totalorder %s168, %s169
      %p183 = scmp.eq.s32.totalorder %s41, 1
      %p184 = por %p182, %p183
      %p186 = scmp.ne.s32.totalorder %s169, %s185
      %p187 = scmp.eq.s32.totalorder %s41, 0
      %p188 = por %p186, %p187
      %s190 = sadd.s32 %s189, 1
      %p193 = scmp.eq.s32.totalorder %s35, 1
      %p194 = scmp.ne.s32.totalorder %s189, %s191
      %p195 = scmp.eq.s32.totalorder %s35, 0
      %p196 = por %p194, %p195
      %p197 = scmp.ne.s32.totalorder %s189, %s191
      %p198 = scmp.eq.s32.totalorder %s40, 1
      %p199 = por %p197, %p198
      %p200 = scmp.ne.s32.totalorder %s191, %s192
      %p201 = scmp.eq.s32.totalorder %s40, 0
      %p202 = por %p200, %p201
      %p203 = scmp.ne.s32.totalorder %s191, %s192
      %p204 = scmp.eq.s32.totalorder %s41, 1
      %p205 = por %p203, %p204
      %p207 = scmp.ne.s32.totalorder %s192, %s206
      %p208 = scmp.eq.s32.totalorder %s41, 0
      %p209 = por %p207, %p208
      %s211 = sadd.s32 %s210, 1
      %p214 = scmp.eq.s32.totalorder %s35, 1
      %p215 = scmp.ne.s32.totalorder %s210, %s212
      %p216 = scmp.eq.s32.totalorder %s35, 0
      %p217 = por %p215, %p216
      %p218 = scmp.ne.s32.totalorder %s210, %s212
      %p219 = scmp.eq.s32.totalorder %s40, 1
      %p220 = por %p218, %p219
      %p221 = scmp.ne.s32.totalorder %s212, %s213
      %p222 = scmp.eq.s32.totalorder %s40, 0
      %p223 = por %p221, %p222
      %p224 = scmp.ne.s32.totalorder %s212, %s213
      %p225 = scmp.eq.s32.totalorder %s41, 1
      %p226 = por %p224, %p225
      %p228 = scmp.ne.s32.totalorder %s213, %s227
      %p229 = scmp.eq.s32.totalorder %s41, 0
      %p230 = por %p228, %p229
      %s232 = sadd.s32 %s231, 1
      %p235 = scmp.eq.s32.totalorder %s35, 1
      %p236 = scmp.ne.s32.totalorder %s231, %s233
      %p237 = scmp.eq.s32.totalorder %s35, 0
      %p238 = por %p236, %p237
      %p239 = scmp.ne.s32.totalorder %s231, %s233
      %p240 = scmp.eq.s32.totalorder %s40, 1
      %p241 = por %p239, %p240
      %p242 = scmp.ne.s32.totalorder %s233, %s234
      %p243 = scmp.eq.s32.totalorder %s40, 0
      %p244 = por %p242, %p243
      %p245 = scmp.ne.s32.totalorder %s233, %s234
      %p246 = scmp.eq.s32.totalorder %s41, 1
      %p247 = por %p245, %p246
      %p249 = scmp.ne.s32.totalorder %s234, %s248
      %p250 = scmp.eq.s32.totalorder %s41, 0
      %p251 = por %p249, %p250
      %s253 = sadd.s32 %s252, 1
      %p256 = scmp.eq.s32.totalorder %s35, 1
      %p257 = scmp.ne.s32.totalorder %s252, %s254
      %p258 = scmp.eq.s32.totalorder %s35, 0
      %p259 = por %p257, %p258
      %p260 = scmp.ne.s32.totalorder %s252, %s254
      %p261 = scmp.eq.s32.totalorder %s40, 1
      %p262 = por %p260, %p261
      %p263 = scmp.ne.s32.totalorder %s254, %s255
      %p264 = scmp.eq.s32.totalorder %s40, 0
      %p265 = por %p263, %p264
      %p266 = scmp.ne.s32.totalorder %s254, %s255
      %p267 = scmp.eq.s32.totalorder %s41, 1
      %p268 = por %p266, %p267
      %p270 = scmp.ne.s32.totalorder %s255, %s269
      %p271 = scmp.eq.s32.totalorder %s41, 0
      %p272 = por %p270, %p271
      %s274 = sadd.s32 %s273, 1
      %p277 = scmp.eq.s32.totalorder %s35, 1
      %p278 = scmp.ne.s32.totalorder %s273, %s275
      %p279 = scmp.eq.s32.totalorder %s35, 0
      %p280 = por %p278, %p279
      %p281 = scmp.ne.s32.totalorder %s273, %s275
      %p282 = scmp.eq.s32.totalorder %s40, 1
      %p283 = por %p281, %p282
      %p284 = scmp.ne.s32.totalorder %s275, %s276
      %p285 = scmp.eq.s32.totalorder %s40, 0
      %p286 = por %p284, %p285
      %p287 = scmp.ne.s32.totalorder %s275, %s276
      %p288 = scmp.eq.s32.totalorder %s41, 1
      %p289 = por %p287, %p288
      %p291 = scmp.ne.s32.totalorder %s276, %s290
      %p292 = scmp.eq.s32.totalorder %s41, 0
      %p293 = por %p291, %p292
      %s295 = sadd.s32 %s294, 1
      %p298 = scmp.eq.s32.totalorder %s35, 1
      %p299 = scmp.ne.s32.totalorder %s294, %s296
      %p300 = scmp.eq.s32.totalorder %s35, 0
      %p301 = por %p299, %p300
      %p302 = scmp.ne.s32.totalorder %s294, %s296
      %p303 = scmp.eq.s32.totalorder %s40, 1
      %p304 = por %p302, %p303
      %p305 = scmp.ne.s32.totalorder %s296, %s297
      %p306 = scmp.eq.s32.totalorder %s40, 0
      %p307 = por %p305, %p306
      %p308 = scmp.ne.s32.totalorder %s296, %s297
      %p309 = scmp.eq.s32.totalorder %s41, 1
      %p310 = por %p308, %p309
      %p312 = scmp.ne.s32.totalorder %s297, %s311
      %p313 = scmp.eq.s32.totalorder %s41, 0
      %p314 = por %p312, %p313
      %s316 = sadd.s32 %s315, 1
      %p319 = scmp.eq.s32.totalorder %s35, 1
      %p320 = scmp.ne.s32.totalorder %s315, %s317
      %p321 = scmp.eq.s32.totalorder %s35, 0
      %p322 = por %p320, %p321
      %p323 = scmp.ne.s32.totalorder %s315, %s317
      %p324 = scmp.eq.s32.totalorder %s40, 1
      %p325 = por %p323, %p324
      %p326 = scmp.ne.s32.totalorder %s317, %s318
      %p327 = scmp.eq.s32.totalorder %s40, 0
      %p328 = por %p326, %p327
      %p329 = scmp.ne.s32.totalorder %s317, %s318
      %p330 = scmp.eq.s32.totalorder %s41, 1
      %p331 = por %p329, %p330
      %p333 = scmp.ne.s32.totalorder %s318, %s332
      %p334 = scmp.eq.s32.totalorder %s41, 0
      %p335 = por %p333, %p334
      %s337 = sadd.s32 %s336, 1
      %p340 = scmp.eq.s32.totalorder %s35, 1
      %p341 = scmp.ne.s32.totalorder %s336, %s338
      %p342 = scmp.eq.s32.totalorder %s35, 0
      %p343 = por %p341, %p342
      %p344 = scmp.ne.s32.totalorder %s336, %s338
      %p345 = scmp.eq.s32.totalorder %s40, 1
      %p346 = por %p344, %p345
      %p347 = scmp.ne.s32.totalorder %s338, %s339
      %p348 = scmp.eq.s32.totalorder %s40, 0
      %p349 = por %p347, %p348
      %p350 = scmp.ne.s32.totalorder %s338, %s339
      %p351 = scmp.eq.s32.totalorder %s41, 1
      %p352 = por %p350, %p351
      %p354 = scmp.ne.s32.totalorder %s339, %s353
      %p355 = scmp.eq.s32.totalorder %s41, 0
      %p356 = por %p354, %p355
      %s358 = sadd.s32 %s357, 1
      %p361 = scmp.eq.s32.totalorder %s35, 1
      %p362 = scmp.ne.s32.totalorder %s357, %s359
      %p363 = scmp.eq.s32.totalorder %s35, 0
      %p364 = por %p362, %p363
      %p365 = scmp.ne.s32.totalorder %s357, %s359
      %p366 = scmp.eq.s32.totalorder %s40, 1
      %p367 = por %p365, %p366
      %p368 = scmp.ne.s32.totalorder %s359, %s360
      %p369 = scmp.eq.s32.totalorder %s40, 0
      %p370 = por %p368, %p369
      %p371 = scmp.ne.s32.totalorder %s359, %s360
      %p372 = scmp.eq.s32.totalorder %s41, 1
      %p373 = por %p371, %p372
      %p375 = scmp.ne.s32.totalorder %s360, %s374
      %p376 = scmp.eq.s32.totalorder %s41, 0
      %p377 = por %p375, %p376
      %s379 = sadd.s32 %s378, 1
      %p382 = scmp.eq.s32.totalorder %s35, 1
      %p383 = scmp.ne.s32.totalorder %s378, %s380
      %p384 = scmp.eq.s32.totalorder %s35, 0
      %p385 = por %p383, %p384
      %p386 = scmp.ne.s32.totalorder %s378, %s380
      %p387 = scmp.eq.s32.totalorder %s40, 1
      %p388 = por %p386, %p387
      %p389 = scmp.ne.s32.totalorder %s380, %s381
      %p390 = scmp.eq.s32.totalorder %s40, 0
      %p391 = por %p389, %p390
      %p392 = scmp.ne.s32.totalorder %s380, %s381
      %p393 = scmp.eq.s32.totalorder %s41, 1
      %p394 = por %p392, %p393
      %p396 = scmp.ne.s32.totalorder %s381, %s395
      %p397 = scmp.eq.s32.totalorder %s41, 0
      %p398 = por %p396, %p397
      %s400 = sadd.s32 %s399, 1
      %p403 = scmp.eq.s32.totalorder %s35, 1
      %p404 = scmp.ne.s32.totalorder %s399, %s401
      %p405 = scmp.eq.s32.totalorder %s35, 0
      %p406 = por %p404, %p405
      %p407 = scmp.ne.s32.totalorder %s399, %s401
      %p408 = scmp.eq.s32.totalorder %s40, 1
      %p409 = por %p407, %p408
      %p410 = scmp.ne.s32.totalorder %s401, %s402
      %p411 = scmp.eq.s32.totalorder %s40, 0
      %p412 = por %p410, %p411
      %p413 = scmp.ne.s32.totalorder %s401, %s402
      %p414 = scmp.eq.s32.totalorder %s41, 1
      %p415 = por %p413, %p414
      %p417 = scmp.ne.s32.totalorder %s402, %s416
      %p418 = scmp.eq.s32.totalorder %s41, 0
      %p419 = por %p417, %p418
      %s421 = sadd.s32 %s420, 1
      %p424 = scmp.eq.s32.totalorder %s35, 1
      %p425 = scmp.ne.s32.totalorder %s420, %s422
      %p426 = scmp.eq.s32.totalorder %s35, 0
      %p427 = por %p425, %p426
      %p428 = scmp.ne.s32.totalorder %s420, %s422
      %p429 = scmp.eq.s32.totalorder %s40, 1
      %p430 = por %p428, %p429
      %p431 = scmp.ne.s32.totalorder %s422, %s423
      %p432 = scmp.eq.s32.totalorder %s40, 0
      %p433 = por %p431, %p432
      %p434 = scmp.ne.s32.totalorder %s422, %s423
      %p435 = scmp.eq.s32.totalorder %s41, 1
      %p436 = por %p434, %p435
      %p438 = scmp.ne.s32.totalorder %s423, %s437
      %p439 = scmp.eq.s32.totalorder %s41, 0
      %p440 = por %p438, %p439
      %s442 = sadd.s32 %s441, 1
      %p445 = scmp.eq.s32.totalorder %s35, 1
      %p446 = scmp.ne.s32.totalorder %s441, %s443
      %p447 = scmp.eq.s32.totalorder %s35, 0
      %p448 = por %p446, %p447
      %p449 = scmp.ne.s32.totalorder %s441, %s443
      %p450 = scmp.eq.s32.totalorder %s40, 1
      %p451 = por %p449, %p450
      %p452 = scmp.ne.s32.totalorder %s443, %s444
      %p453 = scmp.eq.s32.totalorder %s40, 0
      %p454 = por %p452, %p453
      %p455 = scmp.ne.s32.totalorder %s443, %s444
      %p456 = scmp.eq.s32.totalorder %s41, 1
      %p457 = por %p455, %p456
      %p459 = scmp.ne.s32.totalorder %s444, %s458
      %p460 = scmp.eq.s32.totalorder %s41, 0
      %p461 = por %p459, %p460
      %s463 = sadd.s32 %s462, 1
      %p466 = scmp.eq.s32.totalorder %s35, 1
      %p467 = scmp.ne.s32.totalorder %s462, %s464
      %p468 = scmp.eq.s32.totalorder %s35, 0
      %p469 = por %p467, %p468
      %p470 = scmp.ne.s32.totalorder %s462, %s464
      %p471 = scmp.eq.s32.totalorder %s40, 1
      %p472 = por %p470, %p471
      %p473 = scmp.ne.s32.totalorder %s464, %s465
      %p474 = scmp.eq.s32.totalorder %s40, 0
      %p475 = por %p473, %p474
      %p476 = scmp.ne.s32.totalorder %s464, %s465
      %p477 = scmp.eq.s32.totalorder %s41, 1
      %p478 = por %p476, %p477
      %p480 = scmp.ne.s32.totalorder %s465, %s479
      %p481 = scmp.eq.s32.totalorder %s41, 0
      %p482 = por %p480, %p481
      %s484 = sadd.s32 %s483, 1
      %p487 = scmp.eq.s32.totalorder %s35, 1
      %p488 = scmp.ne.s32.totalorder %s483, %s485
      %p489 = scmp.eq.s32.totalorder %s35, 0
      %p490 = por %p488, %p489
      %p491 = scmp.ne.s32.totalorder %s483, %s485
      %p492 = scmp.eq.s32.totalorder %s40, 1
      %p493 = por %p491, %p492
      %p494 = scmp.ne.s32.totalorder %s485, %s486
      %p495 = scmp.eq.s32.totalorder %s40, 0
      %p496 = por %p494, %p495
      %p497 = scmp.ne.s32.totalorder %s485, %s486
      %p498 = scmp.eq.s32.totalorder %s41, 1
      %p499 = por %p497, %p498
      %p501 = scmp.ne.s32.totalorder %s486, %s500
      %p502 = scmp.eq.s32.totalorder %s41, 0
      %p503 = por %p501, %p502
      %s505 = sadd.s32 %s504, 1
      %p508 = scmp.eq.s32.totalorder %s35, 1
      %p509 = scmp.ne.s32.totalorder %s504, %s506
      %p510 = scmp.eq.s32.totalorder %s35, 0
      %p511 = por %p509, %p510
      %p512 = scmp.ne.s32.totalorder %s504, %s506
      %p513 = scmp.eq.s32.totalorder %s40, 1
      %p514 = por %p512, %p513
      %p515 = scmp.ne.s32.totalorder %s506, %s507
      %p516 = scmp.eq.s32.totalorder %s40, 0
      %p517 = por %p515, %p516
      %p518 = scmp.ne.s32.totalorder %s506, %s507
      %p519 = scmp.eq.s32.totalorder %s41, 1
      %p520 = por %p518, %p519
      %p522 = scmp.ne.s32.totalorder %s507, %s521
      %p523 = scmp.eq.s32.totalorder %s41, 0
      %p524 = por %p522, %p523
      %s526 = sadd.s32 %s525, 1
      %p529 = scmp.eq.s32.totalorder %s35, 1
      %p530 = scmp.ne.s32.totalorder %s525, %s527
      %p531 = scmp.eq.s32.totalorder %s35, 0
      %p532 = por %p530, %p531
      %p533 = scmp.ne.s32.totalorder %s525, %s527
      %p534 = scmp.eq.s32.totalorder %s40, 1
      %p535 = por %p533, %p534
      %p536 = scmp.ne.s32.totalorder %s527, %s528
      %p537 = scmp.eq.s32.totalorder %s40, 0
      %p538 = por %p536, %p537
      %p539 = scmp.ne.s32.totalorder %s527, %s528
      %p540 = scmp.eq.s32.totalorder %s41, 1
      %p541 = por %p539, %p540
      %p543 = scmp.ne.s32.totalorder %s528, %s542
      %p544 = scmp.eq.s32.totalorder %s41, 0
      %p545 = por %p543, %p544
      %s547 = sadd.s32 %s546, 1
      %p550 = scmp.eq.s32.totalorder %s35, 1
      %p551 = scmp.ne.s32.totalorder %s546, %s548
      %p552 = scmp.eq.s32.totalorder %s35, 0
      %p553 = por %p551, %p552
      %p554 = scmp.ne.s32.totalorder %s546, %s548
      %p555 = scmp.eq.s32.totalorder %s40, 1
      %p556 = por %p554, %p555
      %p557 = scmp.ne.s32.totalorder %s548, %s549
      %p558 = scmp.eq.s32.totalorder %s40, 0
      %p559 = por %p557, %p558
      %p560 = scmp.ne.s32.totalorder %s548, %s549
      %p561 = scmp.eq.s32.totalorder %s41, 1
      %p562 = por %p560, %p561
      %p564 = scmp.ne.s32.totalorder %s549, %s563
      %p565 = scmp.eq.s32.totalorder %s41, 0
      %p566 = por %p564, %p565
      %s568 = sadd.s32 %s567, 1
      %p571 = scmp.eq.s32.totalorder %s35, 1
      %p572 = scmp.ne.s32.totalorder %s567, %s569
      %p573 = scmp.eq.s32.totalorder %s35, 0
      %p574 = por %p572, %p573
      %p575 = scmp.ne.s32.totalorder %s567, %s569
      %p576 = scmp.eq.s32.totalorder %s40, 1
      %p577 = por %p575, %p576
      %p578 = scmp.ne.s32.totalorder %s569, %s570
      %p579 = scmp.eq.s32.totalorder %s40, 0
      %p580 = por %p578, %p579
      %p581 = scmp.ne.s32.totalorder %s569, %s570
      %p582 = scmp.eq.s32.totalorder %s41, 1
      %p583 = por %p581, %p582
      %p585 = scmp.ne.s32.totalorder %s570, %s584
      %p586 = scmp.eq.s32.totalorder %s41, 0
      %p587 = por %p585, %p586
      %s589 = sadd.s32 %s588, 1
      %p592 = scmp.eq.s32.totalorder %s35, 1
      %p593 = scmp.ne.s32.totalorder %s588, %s590
      %p594 = scmp.eq.s32.totalorder %s35, 0
      %p595 = por %p593, %p594
      %p596 = scmp.ne.s32.totalorder %s588, %s590
      %p597 = scmp.eq.s32.totalorder %s40, 1
      %p598 = por %p596, %p597
      %p599 = scmp.ne.s32.totalorder %s590, %s591
      %p600 = scmp.eq.s32.totalorder %s40, 0
      %p601 = por %p599, %p600
      %p602 = scmp.ne.s32.totalorder %s590, %s591
      %p603 = scmp.eq.s32.totalorder %s41, 1
      %p604 = por %p602, %p603
      %p606 = scmp.ne.s32.totalorder %s591, %s605
      %p607 = scmp.eq.s32.totalorder %s41, 0
      %p608 = por %p606, %p607
      %s609 = ssub.s32 %s35, %s42
      %p610 = scmp.eq.s32.totalorder %s609, 0
      %s612 = sadd.s32 %s611, 1
      %s613 = scalar_select %p610, %s611, %s612
      %p616 = pneg %p610
      %p617 = scmp.eq.s32.totalorder %s35, 1
      %p618 = por %p616, %p617
      %p619 = scmp.ne.s32.totalorder %s611, %s614
      %p620 = scmp.eq.s32.totalorder %s35, 0
      %p621 = por %p619, %p620
      %p622 = scmp.ne.s32.totalorder %s611, %s614
      %p623 = scmp.eq.s32.totalorder %s40, 1
      %p624 = por %p622, %p623
      %p625 = scmp.ne.s32.totalorder %s614, %s615
      %p626 = scmp.eq.s32.totalorder %s40, 0
      %p627 = por %p625, %p626
      %p628 = scmp.ne.s32.totalorder %s614, %s615
      %p629 = scmp.eq.s32.totalorder %s41, 1
      %p630 = por %p628, %p629
      %p632 = scmp.ne.s32.totalorder %s615, %s631
      %p633 = scmp.eq.s32.totalorder %s41, 0
      %p634 = por %p632, %p633
      %p635 = scmp.le.s32.totalorder 1, %s35
      %p636 = scmp.lt.s32.totalorder %s35, 3
      %p637 = pnand %p635, %p636
      %p638 = pneg %p637
      // Predicated region
      $region9: #{t5_network.1} parent=5 // pred_check
        _
      $region10: #{t5_network.1} parent=5 // pred_check_branch
        %640 = sbr.rel (%p637) target = $region12
      $region11: #{t5_network.1} parent=5 // pred_region
        %s641 = ssub.s32 %s35, 1
        // Predicated region
        $region13: #{t5_network.1} parent=11 // pred_check
          %p642 = pneg %p108
        $region14: #{t5_network.1} parent=11 // pred_check_branch
          %644 = sbr.rel (%p642) target = $region16
        $region15: #{t5_network.1} parent=11 // pred_region
          _
        $region16: #{t5_network.1} parent=11 // pred_fallthru
          _
        // Predicated region
        $region17: #{t5_network.1} parent=11 // pred_check
          %p645 = pneg %p129
        $region18: #{t5_network.1} parent=11 // pred_check_branch
          %647 = sbr.rel (%p645) target = $region20
        $region19: #{t5_network.1} parent=11 // pred_region
          _
        $region20: #{t5_network.1} parent=11 // pred_fallthru
          _
        // Predicated region
        $region21: #{t5_network.1} parent=11 // pred_check
          %p648 = pneg %p202
        $region22: #{t5_network.1} parent=11 // pred_check_branch
          %650 = sbr.rel (%p648) target = $region24
        $region23: #{t5_network.1} parent=11 // pred_region
          _
        $region24: #{t5_network.1} parent=11 // pred_fallthru
          _
        // Predicated region
        $region25: #{t5_network.1} parent=11 // pred_check
          %p651 = pneg %p223
        $region26: #{t5_network.1} parent=11 // pred_check_branch
          %653 = sbr.rel (%p651) target = $region28
        $region27: #{t5_network.1} parent=11 // pred_region
          _
        $region28: #{t5_network.1} parent=11 // pred_fallthru
          _
        // Predicated region
        $region29: #{t5_network.1} parent=11 // pred_check
          %p654 = pneg %p244
        $region30: #{t5_network.1} parent=11 // pred_check_branch
          %656 = sbr.rel (%p654) target = $region32
        $region31: #{t5_network.1} parent=11 // pred_region
          _
        $region32: #{t5_network.1} parent=11 // pred_fallthru
          _
        // Predicated region
        $region33: #{t5_network.1} parent=11 // pred_check
          %p657 = pneg %p265
        $region34: #{t5_network.1} parent=11 // pred_check_branch
          %659 = sbr.rel (%p657) target = $region36
        $region35: #{t5_network.1} parent=11 // pred_region
          _
        $region36: #{t5_network.1} parent=11 // pred_fallthru
          _
        // Predicated region
        $region37: #{t5_network.1} parent=11 // pred_check
          %p660 = pneg %p286
        $region38: #{t5_network.1} parent=11 // pred_check_branch
          %662 = sbr.rel (%p660) target = $region40
        $region39: #{t5_network.1} parent=11 // pred_region
          _
        $region40: #{t5_network.1} parent=11 // pred_fallthru
          _
        // Predicated region
        $region41: #{t5_network.1} parent=11 // pred_check
          %p663 = pneg %p307
        $region42: #{t5_network.1} parent=11 // pred_check_branch
          %665 = sbr.rel (%p663) target = $region44
        $region43: #{t5_network.1} parent=11 // pred_region
          _
        $region44: #{t5_network.1} parent=11 // pred_fallthru
          _
        // Predicated region
        $region45: #{t5_network.1} parent=11 // pred_check
          %p666 = pneg %p328
        $region46: #{t5_network.1} parent=11 // pred_check_branch
          %668 = sbr.rel (%p666) target = $region48
        $region47: #{t5_network.1} parent=11 // pred_region
          _
        $region48: #{t5_network.1} parent=11 // pred_fallthru
          _
        // Predicated region
        $region49: #{t5_network.1} parent=11 // pred_check
          %p669 = pneg %p349
        $region50: #{t5_network.1} parent=11 // pred_check_branch
          %671 = sbr.rel (%p669) target = $region52
        $region51: #{t5_network.1} parent=11 // pred_region
          _
        $region52: #{t5_network.1} parent=11 // pred_fallthru
          _
        // Predicated region
        $region53: #{t5_network.1} parent=11 // pred_check
          %p672 = pneg %p370
        $region54: #{t5_network.1} parent=11 // pred_check_branch
          %674 = sbr.rel (%p672) target = $region56
        $region55: #{t5_network.1} parent=11 // pred_region
          _
        $region56: #{t5_network.1} parent=11 // pred_fallthru
          _
        // Predicated region
        $region57: #{t5_network.1} parent=11 // pred_check
          %p675 = pneg %p391
        $region58: #{t5_network.1} parent=11 // pred_check_branch
          %677 = sbr.rel (%p675) target = $region60
        $region59: #{t5_network.1} parent=11 // pred_region
          _
        $region60: #{t5_network.1} parent=11 // pred_fallthru
          _
        // Predicated region
        $region61: #{t5_network.1} parent=11 // pred_check
          %p678 = pneg %p412
        $region62: #{t5_network.1} parent=11 // pred_check_branch
          %680 = sbr.rel (%p678) target = $region64
        $region63: #{t5_network.1} parent=11 // pred_region
          _
        $region64: #{t5_network.1} parent=11 // pred_fallthru
          _
        // Predicated region
        $region65: #{t5_network.1} parent=11 // pred_check
          %p681 = pneg %p433
        $region66: #{t5_network.1} parent=11 // pred_check_branch
          %683 = sbr.rel (%p681) target = $region68
        $region67: #{t5_network.1} parent=11 // pred_region
          _
        $region68: #{t5_network.1} parent=11 // pred_fallthru
          _
        // Predicated region
        $region69: #{t5_network.1} parent=11 // pred_check
          %p684 = pneg %p454
        $region70: #{t5_network.1} parent=11 // pred_check_branch
          %686 = sbr.rel (%p684) target = $region72
        $region71: #{t5_network.1} parent=11 // pred_region
          _
        $region72: #{t5_network.1} parent=11 // pred_fallthru
          _
        // Predicated region
        $region73: #{t5_network.1} parent=11 // pred_check
          %p687 = pneg %p475
        $region74: #{t5_network.1} parent=11 // pred_check_branch
          %689 = sbr.rel (%p687) target = $region76
        $region75: #{t5_network.1} parent=11 // pred_region
          _
        $region76: #{t5_network.1} parent=11 // pred_fallthru
          _
        // Predicated region
        $region77: #{t5_network.1} parent=11 // pred_check
          %p690 = pneg %p496
        $region78: #{t5_network.1} parent=11 // pred_check_branch
          %692 = sbr.rel (%p690) target = $region80
        $region79: #{t5_network.1} parent=11 // pred_region
          _
        $region80: #{t5_network.1} parent=11 // pred_fallthru
          _
        // Predicated region
        $region81: #{t5_network.1} parent=11 // pred_check
          %p693 = pneg %p517
        $region82: #{t5_network.1} parent=11 // pred_check_branch
          %695 = sbr.rel (%p693) target = $region84
        $region83: #{t5_network.1} parent=11 // pred_region
          _
        $region84: #{t5_network.1} parent=11 // pred_fallthru
          _
        // Predicated region
        $region85: #{t5_network.1} parent=11 // pred_check
          %p696 = pneg %p538
        $region86: #{t5_network.1} parent=11 // pred_check_branch
          %698 = sbr.rel (%p696) target = $region88
        $region87: #{t5_network.1} parent=11 // pred_region
          _
        $region88: #{t5_network.1} parent=11 // pred_fallthru
          _
        // Predicated region
        $region89: #{t5_network.1} parent=11 // pred_check
          %p699 = pneg %p559
        $region90: #{t5_network.1} parent=11 // pred_check_branch
          %701 = sbr.rel (%p699) target = $region92
        $region91: #{t5_network.1} parent=11 // pred_region
          _
        $region92: #{t5_network.1} parent=11 // pred_fallthru
          _
        // Predicated region
        $region93: #{t5_network.1} parent=11 // pred_check
          %p702 = pneg %p580
        $region94: #{t5_network.1} parent=11 // pred_check_branch
          %704 = sbr.rel (%p702) target = $region96
        $region95: #{t5_network.1} parent=11 // pred_region
          _
        $region96: #{t5_network.1} parent=11 // pred_fallthru
          _
        // Predicated region
        $region97: #{t5_network.1} parent=11 // pred_check
          %p705 = pneg %p601
        $region98: #{t5_network.1} parent=11 // pred_check_branch
          %707 = sbr.rel (%p705) target = $region100
        $region99: #{t5_network.1} parent=11 // pred_region
          _
        $region100: #{t5_network.1} parent=11 // pred_fallthru
          _
      $region12: #{t5_network.1} parent=5 // pred_fallthru
        _
      %p708 = scmp.lt.s32.totalorder %s35, 2
      // Predicated region
      $region101: #{t5_network.1} parent=5 // pred_check
        %p709 = pneg %p708
      $region102: #{t5_network.1} parent=5 // pred_check_branch
        %711 = sbr.rel (%p709) target = $region104
      $region103: #{t5_network.1} parent=5 // pred_region
        // Predicated region
        $region105: #{t5_network.1} parent=103 // pred_check
          %p712 = pneg %p55
        $region106: #{t5_network.1} parent=103 // pred_check_branch
          %714 = sbr.rel (%p712) target = $region108
        $region107: #{t5_network.1} parent=103 // pred_region
          %p715 = scmp.lt.s32.totalorder %s35, 1
          %s716 = scalar_select %p715, %s35, 1
          %s717 = smul.addr %s716, 8
          %s718 = scalar_lea.vmem %s0, %s717
        $region108: #{t5_network.1} parent=103 // pred_fallthru
          _
        // Predicated region
        $region109: #{t5_network.1} parent=103 // pred_check
          %p719 = pneg %p81
        $region110: #{t5_network.1} parent=103 // pred_check_branch
          %721 = sbr.rel (%p719) target = $region112
        $region111: #{t5_network.1} parent=103 // pred_region
          %p722 = scmp.lt.s32.totalorder %s35, 1
          %s723 = scalar_select %p722, %s35, 1
          %s724 = smul.addr %s723, 8
          %s725 = scalar_lea.vmem %s1, %s724
        $region112: #{t5_network.1} parent=103 // pred_fallthru
          _
        // Predicated region
        $region113: #{t5_network.1} parent=103 // pred_check
          %p726 = pneg %p149
        $region114: #{t5_network.1} parent=103 // pred_check_branch
          %728 = sbr.rel (%p726) target = $region116
        $region115: #{t5_network.1} parent=103 // pred_region
          %p729 = scmp.lt.s32.totalorder %s35, 1
          %s730 = scalar_select %p729, %s35, 1
          %s731 = scalar_lea.vmem %s4, %s730
        $region116: #{t5_network.1} parent=103 // pred_fallthru
          _
        // Predicated region
        $region117: #{t5_network.1} parent=103 // pred_check
          %p732 = pneg %p175
        $region118: #{t5_network.1} parent=103 // pred_check_branch
          %734 = sbr.rel (%p732) target = $region120
        $region119: #{t5_network.1} parent=103 // pred_region
          %p735 = scmp.lt.s32.totalorder %s35, 1
          %s736 = scalar_select %p735, %s35, 1
          %s737 = scalar_lea.vmem %s5, %s736
        $region120: #{t5_network.1} parent=103 // pred_fallthru
          _
      $region104: #{t5_network.1} parent=5 // pred_fallthru
        _
      %p738 = scmp.le.s32.totalorder 1, %s35
      %p739 = scmp.lt.s32.totalorder %s35, 3
      %p740 = pnand %p738, %p739
      %p741 = pneg %p740
      // Predicated region
      $region121: #{t5_network.1} parent=5 // pred_check
        _
      $region122: #{t5_network.1} parent=5 // pred_check_branch
        %743 = sbr.rel (%p740) target = $region124
      $region123: #{t5_network.1} parent=5 // pred_region
        %s744 = ssub.s32 %s35, 1
        %p745 = scmp.lt.s32.totalorder %s40, 1
        %s746 = scalar_select %p745, %s40, 1
        %s747 = smul.addr %s746, 8
        %s748 = scalar_lea.vmem %s0, %s747
        %p749 = pneg %p61
        %p750 = pneg %p58
        %p751 = scmp.lt.s32.totalorder %s40, 1
        %s752 = scalar_select %p751, %s40, 1
        %s753 = smul.addr %s752, 8
        %s754 = scalar_lea.vmem %s1, %s753
        %p755 = pneg %p87
        %p756 = pneg %p84
        %p757 = pneg %p108
        %p758 = pneg %p105
        %p759 = pneg %p129
        %p760 = pneg %p126
        %p761 = scmp.lt.s32.totalorder %s40, 1
        %s762 = scalar_select %p761, %s40, 1
        %s763 = scalar_lea.vmem %s4, %s762
        %p764 = pneg %p155
        %p765 = pneg %p152
        %p766 = scmp.lt.s32.totalorder %s40, 1
        %s767 = scalar_select %p766, %s40, 1
        %s768 = scalar_lea.vmem %s5, %s767
        %p769 = pneg %p181
        %p770 = pneg %p178
        %p771 = pneg %p202
        %p772 = pneg %p199
        %p773 = pneg %p223
        %p774 = pneg %p220
        %p775 = pneg %p244
        %p776 = pneg %p241
        %p777 = pneg %p265
        %p778 = pneg %p262
        %p779 = pneg %p286
        %p780 = pneg %p283
        %p781 = pneg %p307
        %p782 = pneg %p304
        %p783 = pneg %p328
        %p784 = pneg %p325
        %p785 = pneg %p349
        %p786 = pneg %p346
        %p787 = pneg %p370
        %p788 = pneg %p367
        %p789 = pneg %p391
        %p790 = pneg %p388
        %p791 = pneg %p412
        %p792 = pneg %p409
        %p793 = pneg %p433
        %p794 = pneg %p430
        %p795 = pneg %p454
        %p796 = pneg %p451
        %p797 = pneg %p475
        %p798 = pneg %p472
        %p799 = pneg %p496
        %p800 = pneg %p493
        %p801 = pneg %p517
        %p802 = pneg %p514
        %p803 = pneg %p538
        %p804 = pneg %p535
        %p805 = pneg %p559
        %p806 = pneg %p556
        %p807 = pneg %p580
        %p808 = pneg %p577
        %p809 = pneg %p601
        %p810 = pneg %p598
        %p811 = pneg %p627
        %p812 = pneg %p624
        %s813 = sand.u32 %s614, 1
        %s814 = scalar_lea.sflag [#allocation3], %s813
        %s815 = sand.u32 %s614, 1
        %s816 = smul.addr %s815, 8
        %s817 = scalar_lea.vmem [#allocation2], %s816
        %p818 = scmp.lt.s32.totalorder %s40, 1
        %s819 = scalar_select %p818, %s40, 1
        %s820 = smul.addr %s819, 8
        %s821 = scalar_lea.vmem %s0, %s820
        %p822 = scmp.lt.s32.totalorder %s40, 1
        %s823 = scalar_select %p822, %s40, 1
        %s824 = smul.addr %s823, 8
        %s825 = scalar_lea.vmem %s1, %s824
        %p826 = scmp.lt.s32.totalorder %s40, 1
        %s827 = scalar_select %p826, %s40, 1
        %s828 = scalar_lea.vmem %s4, %s827
        %p829 = scmp.lt.s32.totalorder %s40, 1
        %s830 = scalar_select %p829, %s40, 1
        %s831 = scalar_lea.vmem %s5, %s830
        %v832 = vld [vmem:[%s821] sm:$0xff]
        %v833 = vld [vmem:[%s825] sm:$0xff]
        %v834 = vld [vmem:[%s828] sm:$0x1]
        %v835 = vld [vmem:[%s831] sm:$0x1]
        %v836 = vld [vmem:[%s2] sm:$0xff]
        %v837 = vld [vmem:[%s2 + $0x8] sm:$0xff]
        %v838 = vld [vmem:[%s2 + $0x10] sm:$0xff]
        %v839 = vld [vmem:[%s2 + $0x18] sm:$0xff]
        %v841 = vlaneseq
        %v842 = vshrl.u32 %v841, 7
        %v843 = vsub.s32 0, %v842
        %v844 = vrot.slane %v834, %v843
        %v846 = vadd.f32 %v836, %v844
        %v847 = vadd.f32 %v837, %v844
        %v848 = vadd.f32 %v838, %v844
        %v849 = vadd.f32 %v839, %v844
        %v850 = vld [vmem:[%s3] sm:$0xff]
        %v851 = vld [vmem:[%s3 + $0x8] sm:$0xff]
        %v852 = vld [vmem:[%s3 + $0x10] sm:$0xff]
        %v853 = vld [vmem:[%s3 + $0x18] sm:$0xff]
        %v855 = vlaneseq
        %v856 = vshrl.u32 %v855, 7
        %v857 = vsub.s32 0, %v856
        %v858 = vrot.slane %v835, %v857
        %v860 = vadd.f32 %v850, %v858
        %v861 = vadd.f32 %v851, %v858
        %v862 = vadd.f32 %v852, %v858
        %v863 = vadd.f32 %v853, %v858
        %v864 = vld [vmem:[%s6] sm:$0x1]
        %v865 = vld [vmem:[%s7] sm:$0xff]
        %v866 = vld [vmem:[%s7 + $0x8] sm:$0xff]
        %v867 = vld [vmem:[%s7 + $0x10] sm:$0xff]
        %v868 = vld [vmem:[%s7 + $0x18] sm:$0xff]
        %v869 = vld [vmem:[%s8] sm:$0xff]
        %v870 = vld [vmem:[%s8 + $0x8] sm:$0xff]
        %v871 = vld [vmem:[%s8 + $0x10] sm:$0xff]
        %v872 = vld [vmem:[%s8 + $0x18] sm:$0xff]
        %v873 = vmul.f32 %v832, %v832
        %vm874 = vcmask 261120
        %v875 = vsel %vm874, %v873, 0.0
        %876 = vadd.xlane.f32.xlu0 %v875
        %v877 = vpop.xlane.xlu0 %876
        %v878 = vrcp.pop 32.0
        %v879 = vmul.f32 %v877, %v878
        %v880 = vadd.f32 %v879, 1e-06
        %v881 = vrsqrt.pop %v880
        %v882 = vmul.f32 %v832, %v881
        %v884 = vlaneseq
        %v885 = vshrl.u32 %v884, 7
        %v886 = vsub.s32 0, %v885
        %v887 = vrot.slane %v864, %v886
        %v889 = vmul.f32 %v882, %v887
        %v891 = vsel %vm874, %v889, 0
        %893 = vmatprep.subr.mxu0 0.0
        %894 = vmatpush1.msra.mxu0 %v865
        %895 = vmatprep.subr.mxu0 0.0
        %896 = vmatpush1.msra.mxu0 %v866
        %897 = vmatprep.subr.mxu0 0.0
        %898 = vmatpush1.msra.mxu0 %v867
        %899 = vmatprep.subr.mxu0 0.0
        %900 = vmatpush1.msra.mxu0 %v868
        %901 = vmatprep.subr.mxu0 0.0
        %902 = vmatpush1.msra.mxu0 0.0
        %903 = vmatprep.subr.mxu0 0.0
        %904 = vmatpush1.msra.mxu0 0.0
        %905 = vmatprep.subr.mxu0 0.0
        %906 = vmatpush1.msra.mxu0 0.0
        %907 = vmatprep.subr.mxu0 0.0
        %908 = vmatpush1.msra.mxu0 0.0
        %909 = vmatprep.subr.mxu0 0.0
        %910 = vmatpush1.msra.mxu0 0.0
        %911 = vmatprep.subr.mxu0 0.0
        %912 = vmatpush1.msra.mxu0 0.0
        %913 = vmatprep.subr.mxu0 0.0
        %914 = vmatpush1.msra.mxu0 0.0
        %915 = vmatprep.subr.mxu0 0.0
        %916 = vmatpush1.msra.mxu0 0.0
        %917 = vmatprep.subr.mxu0 0.0
        %918 = vmatpush1.msra.mxu0 0.0
        %919 = vmatprep.subr.mxu0 0.0
        %920 = vmatpush1.msra.mxu0 0.0
        %921 = vmatprep.subr.mxu0 0.0
        %922 = vmatpush1.msra.mxu0 0.0
        %923 = vmatprep.subr.mxu0 0.0
        %924 = vmatpush1.msra.mxu0 0.0
        %925 = vmatprep.subr.mxu0 0.0
        %926 = vmatpush1.msra.mxu0 0.0
        %927 = vmatprep.subr.mxu0 0.0
        %928 = vmatpush1.msra.mxu0 0.0
        %929 = vmatprep.subr.mxu0 0.0
        %930 = vmatpush1.msra.mxu0 0.0
        %931 = vmatprep.subr.mxu0 0.0
        %932 = vmatpush1.msra.mxu0 0.0
        %933 = vmatprep.subr.mxu0 0.0
        %934 = vmatpush1.msra.mxu0 0.0
        %935 = vmatprep.subr.mxu0 0.0
        %936 = vmatpush1.msra.mxu0 0.0
        %937 = vmatprep.subr.mxu0 0.0
        %938 = vmatpush1.msra.mxu0 0.0
        %939 = vmatprep.subr.mxu0 0.0
        %940 = vmatpush1.msra.mxu0 0.0
        %941 = vmatprep.subr.mxu0 0.0
        %942 = vmatpush1.msra.mxu0 0.0
        %943 = vmatprep.subr.mxu0 0.0
        %944 = vmatpush1.msra.mxu0 0.0
        %945 = vmatprep.subr.mxu0 0.0
        %946 = vmatpush1.msra.mxu0 0.0
        %947 = vmatprep.subr.mxu0 0.0
        %948 = vmatpush1.msra.mxu0 0.0
        %949 = vmatprep.subr.mxu0 0.0
        %950 = vmatpush1.msra.mxu0 0.0
        %951 = vmatprep.subr.mxu0 0.0
        %952 = vmatpush1.msra.mxu0 0.0
        %953 = vmatprep.subr.mxu0 0.0
        %954 = vmatpush1.msra.mxu0 0.0
        %955 = vmatprep.subr.mxu0 0.0
        %956 = vmatpush1.msra.mxu0 0.0
        %957 = vmatprep.mubr.f32.mxu0 0.0
        %958 = vmatmul.mubr.f32.gmra.mrb[0].mxu0 %v891
        %v959 = vpop.f32.mrb[0].mxu0
        %v960 = vadd.f32 0.0, %v959
        %v961 = vpop.f32.mrb[0].mxu0
        %962 = vdwg.mxu0
        %964 = vrot.lane.b32.xlu0 %v960, 96
        %v965 = vpop.permute.xlu0 %964
        %vm966 = vcmask 64512
        %v967 = vsel %vm966, %v960, 0
        %v969 = vsel %vm966, %v965, 0
        %971 = vmatprep.subr.mxu0 0.0
        %972 = vmatpush1.xpose.msra.mxu0 %v969
        %973 = vmatprep.subr.mxu0 0.0
        %974 = vmatpush1.xpose.msra.mxu0 0.0
        %975 = vmatprep.subr.mxu0 0.0
        %976 = vmatpush1.xpose.msra.mxu0 0.0
        %977 = vmatprep.subr.mxu0 0.0
        %978 = vmatpush1.xpose.msra.mxu0 0.0
        %979 = vmatprep.subr.mxu0 0.0
        %980 = vmatpush1.xpose.msra.mxu0 0.0
        %981 = vmatprep.subr.mxu0 0.0
        %982 = vmatpush1.xpose.msra.mxu0 0.0
        %983 = vmatprep.subr.mxu0 0.0
        %984 = vmatpush1.xpose.msra.mxu0 0.0
        %985 = vmatprep.subr.mxu0 0.0
        %986 = vmatpush1.xpose.msra.mxu0 0.0
        %987 = vmatprep.subr.mxu0 0.0
        %988 = vmatpush1.xpose.msra.mxu0 0.0
        %989 = vmatprep.subr.mxu0 0.0
        %990 = vmatpush1.xpose.msra.mxu0 0.0
        %991 = vmatprep.subr.mxu0 0.0
        %992 = vmatpush1.xpose.msra.mxu0 0.0
        %993 = vmatprep.subr.mxu0 0.0
        %994 = vmatpush1.xpose.msra.mxu0 0.0
        %995 = vmatprep.subr.mxu0 0.0
        %996 = vmatpush1.xpose.msra.mxu0 0.0
        %997 = vmatprep.subr.mxu0 0.0
        %998 = vmatpush1.xpose.msra.mxu0 0.0
        %999 = vmatprep.subr.mxu0 0.0
        %1000 = vmatpush1.xpose.msra.mxu0 0.0
        %1001 = vmatprep.subr.mxu0 0.0
        %1002 = vmatpush1.xpose.msra.mxu0 0.0
        %1003 = vmatprep.subr.mxu0 0.0
        %1004 = vmatpush1.xpose.msra.mxu0 0.0
        %1005 = vmatprep.subr.mxu0 0.0
        %1006 = vmatpush1.xpose.msra.mxu0 0.0
        %1007 = vmatprep.subr.mxu0 0.0
        %1008 = vmatpush1.xpose.msra.mxu0 0.0
        %1009 = vmatprep.subr.mxu0 0.0
        %1010 = vmatpush1.xpose.msra.mxu0 0.0
        %1011 = vmatprep.subr.mxu0 0.0
        %1012 = vmatpush1.xpose.msra.mxu0 0.0
        %1013 = vmatprep.subr.mxu0 0.0
        %1014 = vmatpush1.xpose.msra.mxu0 0.0
        %1015 = vmatprep.subr.mxu0 0.0
        %1016 = vmatpush1.xpose.msra.mxu0 0.0
        %1017 = vmatprep.subr.mxu0 0.0
        %1018 = vmatpush1.xpose.msra.mxu0 0.0
        %1019 = vmatprep.subr.mxu0 0.0
        %1020 = vmatpush1.xpose.msra.mxu0 0.0
        %1021 = vmatprep.subr.mxu0 0.0
        %1022 = vmatpush1.xpose.msra.mxu0 0.0
        %1023 = vmatprep.subr.mxu0 0.0
        %1024 = vmatpush1.xpose.msra.mxu0 0.0
        %1025 = vmatprep.subr.mxu0 0.0
        %1026 = vmatpush1.xpose.msra.mxu0 0.0
        %1027 = vmatprep.subr.mxu0 0.0
        %1028 = vmatpush1.xpose.msra.mxu0 0.0
        %1029 = vmatprep.subr.mxu0 0.0
        %1030 = vmatpush1.xpose.msra.mxu0 0.0
        %1031 = vmatprep.subr.mxu0 0.0
        %1032 = vmatpush1.xpose.msra.mxu0 0.0
        %1033 = vmatprep.subr.mxu0 0.0
        %1034 = vmatpush1.xpose.msra.mxu0 0.0
        %1035 = vmatprep.mubr.f32.mxu0 0.0
        %1036 = vmatmul.mubr.f32.gmra.mrb[0].mxu0 %v967
        %v1037 = vpop.f32.mrb[0].mxu0
        %v1038 = vadd.f32 %v846, %v1037
        %v1039 = vpop.f32.mrb[0].mxu0
        %1040 = vdwg.mxu0
        %v1041 = vsel %vm966, %v1038, -inf
        %1042 = vmax.xlane.f32.xlu0 %v1041
        %v1043 = vpop.xlane.xlu0 %1042
        %v1044 = vsub.f32 %v1038, %v1043
        %v1045 = vmul.f32 %v1044, 1.442695
        %v1046 = vpow.pop %v1045
        %v1047 = vsel %vm966, %v1046, 0.0
        %1048 = vadd.xlane.f32.xlu0 %v1047
        %v1049 = vpop.xlane.xlu0 %1048
        %v1050 = vrcp.pop %v1049
        %v1051 = vmul.f32 %v1046, %v1050
        %1052 = vrot.lane.b32.xlu0 %v960, 64
        %v1053 = vpop.permute.xlu0 %1052
        %v1056 = vsel %vm966, %v1051, 0
        %1058 = vmatprep.subr.mxu0 0.0
        %1059 = vmatpush1.msra.mxu0 %v1053
        %1060 = vmatprep.subr.mxu0 0.0
        %1061 = vmatpush1.msra.mxu0 0.0
        %1062 = vmatprep.subr.mxu0 0.0
        %1063 = vmatpush1.msra.mxu0 0.0
        %1064 = vmatprep.subr.mxu0 0.0
        %1065 = vmatpush1.msra.mxu0 0.0
        %1066 = vmatprep.subr.mxu0 0.0
        %1067 = vmatpush1.msra.mxu0 0.0
        %1068 = vmatprep.subr.mxu0 0.0
        %1069 = vmatpush1.msra.mxu0 0.0
        %1070 = vmatprep.subr.mxu0 0.0
        %1071 = vmatpush1.msra.mxu0 0.0
        %1072 = vmatprep.subr.mxu0 0.0
        %1073 = vmatpush1.msra.mxu0 0.0
        %1074 = vmatprep.subr.mxu0 0.0
        %1075 = vmatpush1.msra.mxu0 0.0
        %1076 = vmatprep.subr.mxu0 0.0
        %1077 = vmatpush1.msra.mxu0 0.0
        %1078 = vmatprep.subr.mxu0 0.0
        %1079 = vmatpush1.msra.mxu0 0.0
        %1080 = vmatprep.subr.mxu0 0.0
        %1081 = vmatpush1.msra.mxu0 0.0
        %1082 = vmatprep.subr.mxu0 0.0
        %1083 = vmatpush1.msra.mxu0 0.0
        %1084 = vmatprep.subr.mxu0 0.0
        %1085 = vmatpush1.msra.mxu0 0.0
        %1086 = vmatprep.subr.mxu0 0.0
        %1087 = vmatpush1.msra.mxu0 0.0
        %1088 = vmatprep.subr.mxu0 0.0
        %1089 = vmatpush1.msra.mxu0 0.0
        %1090 = vmatprep.subr.mxu0 0.0
        %1091 = vmatpush1.msra.mxu0 0.0
        %1092 = vmatprep.subr.mxu0 0.0
        %1093 = vmatpush1.msra.mxu0 0.0
        %1094 = vmatprep.subr.mxu0 0.0
        %1095 = vmatpush1.msra.mxu0 0.0
        %1096 = vmatprep.subr.mxu0 0.0
        %1097 = vmatpush1.msra.mxu0 0.0
        %1098 = vmatprep.subr.mxu0 0.0
        %1099 = vmatpush1.msra.mxu0 0.0
        %1100 = vmatprep.subr.mxu0 0.0
        %1101 = vmatpush1.msra.mxu0 0.0
        %1102 = vmatprep.subr.mxu0 0.0
        %1103 = vmatpush1.msra.mxu0 0.0
        %1104 = vmatprep.subr.mxu0 0.0
        %1105 = vmatpush1.msra.mxu0 0.0
        %1106 = vmatprep.subr.mxu0 0.0
        %1107 = vmatpush1.msra.mxu0 0.0
        %1108 = vmatprep.subr.mxu0 0.0
        %1109 = vmatpush1.msra.mxu0 0.0
        %1110 = vmatprep.subr.mxu0 0.0
        %1111 = vmatpush1.msra.mxu0 0.0
        %1112 = vmatprep.subr.mxu0 0.0
        %1113 = vmatpush1.msra.mxu0 0.0
        %1114 = vmatprep.subr.mxu0 0.0
        %1115 = vmatpush1.msra.mxu0 0.0
        %1116 = vmatprep.subr.mxu0 0.0
        %1117 = vmatpush1.msra.mxu0 0.0
        %1118 = vmatprep.subr.mxu0 0.0
        %1119 = vmatpush1.msra.mxu0 0.0
        %1120 = vmatprep.subr.mxu0 0.0
        %1121 = vmatpush1.msra.mxu0 0.0
        %1122 = vmatprep.mubr.f32.mxu0 0.0
        %1123 = vmatmul.mubr.f32.gmra.mrb[0].mxu0 %v1056
        %v1124 = vpop.f32.mrb[0].mxu0
        %v1125 = vadd.f32 0.0, %v1124
        %v1126 = vpop.f32.mrb[0].mxu0
        %1127 = vdwg.mxu0
        %1128 = vrot.lane.b32.xlu0 %v960, 120
        %v1129 = vpop.permute.xlu0 %1128
        %1130 = vrot.lane.b32.xlu0 %v960, 88
        %v1131 = vpop.permute.xlu0 %1130
        %v1132 = vsel %vm966, %v1129, 0
        %v1134 = vsel %vm966, %v1131, 0
        %1136 = vmatprep.subr.mxu0 0.0
        %1137 = vmatpush1.xpose.msra.mxu0 %v1134
        %1138 = vmatprep.subr.mxu0 0.0
        %1139 = vmatpush1.xpose.msra.mxu0 0.0
        %1140 = vmatprep.subr.mxu0 0.0
        %1141 = vmatpush1.xpose.msra.mxu0 0.0
        %1142 = vmatprep.subr.mxu0 0.0
        %1143 = vmatpush1.xpose.msra.mxu0 0.0
        %1144 = vmatprep.subr.mxu0 0.0
        %1145 = vmatpush1.xpose.msra.mxu0 0.0
        %1146 = vmatprep.subr.mxu0 0.0
        %1147 = vmatpush1.xpose.msra.mxu0 0.0
        %1148 = vmatprep.subr.mxu0 0.0
        %1149 = vmatpush1.xpose.msra.mxu0 0.0
        %1150 = vmatprep.subr.mxu0 0.0
        %1151 = vmatpush1.xpose.msra.mxu0 0.0
        %1152 = vmatprep.subr.mxu0 0.0
        %1153 = vmatpush1.xpose.msra.mxu0 0.0
        %1154 = vmatprep.subr.mxu0 0.0
        %1155 = vmatpush1.xpose.msra.mxu0 0.0
        %1156 = vmatprep.subr.mxu0 0.0
        %1157 = vmatpush1.xpose.msra.mxu0 0.0
        %1158 = vmatprep.subr.mxu0 0.0
        %1159 = vmatpush1.xpose.msra.mxu0 0.0
        %1160 = vmatprep.subr.mxu0 0.0
        %1161 = vmatpush1.xpose.msra.mxu0 0.0
        %1162 = vmatprep.subr.mxu0 0.0
        %1163 = vmatpush1.xpose.msra.mxu0 0.0
        %1164 = vmatprep.subr.mxu0 0.0
        %1165 = vmatpush1.xpose.msra.mxu0 0.0
        %1166 = vmatprep.subr.mxu0 0.0
        %1167 = vmatpush1.xpose.msra.mxu0 0.0
        %1168 = vmatprep.subr.mxu0 0.0
        %1169 = vmatpush1.xpose.msra.mxu0 0.0
        %1170 = vmatprep.subr.mxu0 0.0
        %1171 = vmatpush1.xpose.msra.mxu0 0.0
        %1172 = vmatprep.subr.mxu0 0.0
        %1173 = vmatpush1.xpose.msra.mxu0 0.0
        %1174 = vmatprep.subr.mxu0 0.0
        %1175 = vmatpush1.xpose.msra.mxu0 0.0
        %1176 = vmatprep.subr.mxu0 0.0
        %1177 = vmatpush1.xpose.msra.mxu0 0.0
        %1178 = vmatprep.subr.mxu0 0.0
        %1179 = vmatpush1.xpose.msra.mxu0 0.0
        %1180 = vmatprep.subr.mxu0 0.0
        %1181 = vmatpush1.xpose.msra.mxu0 0.0
        %1182 = vmatprep.subr.mxu0 0.0
        %1183 = vmatpush1.xpose.msra.mxu0 0.0
        %1184 = vmatprep.subr.mxu0 0.0
        %1185 = vmatpush1.xpose.msra.mxu0 0.0
        %1186 = vmatprep.subr.mxu0 0.0
        %1187 = vmatpush1.xpose.msra.mxu0 0.0
        %1188 = vmatprep.subr.mxu0 0.0
        %1189 = vmatpush1.xpose.msra.mxu0 0.0
        %1190 = vmatprep.subr.mxu0 0.0
        %1191 = vmatpush1.xpose.msra.mxu0 0.0
        %1192 = vmatprep.subr.mxu0 0.0
        %1193 = vmatpush1.xpose.msra.mxu0 0.0
        %1194 = vmatprep.subr.mxu0 0.0
        %1195 = vmatpush1.xpose.msra.mxu0 0.0
        %1196 = vmatprep.subr.mxu0 0.0
        %1197 = vmatpush1.xpose.msra.mxu0 0.0
        %1198 = vmatprep.subr.mxu0 0.0
        %1199 = vmatpush1.xpose.msra.mxu0 0.0
        %1200 = vmatprep.mubr.f32.mxu0 0.0
        %1201 = vmatmul.mubr.f32.gmra.mrb[0].mxu0 %v1132
        %v1202 = vpop.f32.mrb[0].mxu0
        %v1203 = vadd.f32 %v847, %v1202
        %v1204 = vpop.f32.mrb[0].mxu0
        %1205 = vdwg.mxu0
        %v1206 = vsel %vm966, %v1203, -inf
        %1207 = vmax.xlane.f32.xlu0 %v1206
        %v1208 = vpop.xlane.xlu0 %1207
        %v1209 = vsub.f32 %v1203, %v1208
        %v1210 = vmul.f32 %v1209, 1.442695
        %v1211 = vpow.pop %v1210
        %v1212 = vsel %vm966, %v1211, 0.0
        %1213 = vadd.xlane.f32.xlu0 %v1212
        %v1214 = vpop.xlane.xlu0 %1213
        %v1215 = vrcp.pop %v1214
        %v1216 = vmul.f32 %v1211, %v1215
        %1217 = vrot.lane.b32.xlu0 %v960, 56
        %v1218 = vpop.permute.xlu0 %1217
        %v1221 = vsel %vm966, %v1216, 0
        %1223 = vmatprep.subr.mxu0 0.0
        %1224 = vmatpush1.msra.mxu0 %v1218
        %1225 = vmatprep.subr.mxu0 0.0
        %1226 = vmatpush1.msra.mxu0 0.0
        %1227 = vmatprep.subr.mxu0 0.0
        %1228 = vmatpush1.msra.mxu0 0.0
        %1229 = vmatprep.subr.mxu0 0.0
        %1230 = vmatpush1.msra.mxu0 0.0
        %1231 = vmatprep.subr.mxu0 0.0
        %1232 = vmatpush1.msra.mxu0 0.0
        %1233 = vmatprep.subr.mxu0 0.0
        %1234 = vmatpush1.msra.mxu0 0.0
        %1235 = vmatprep.subr.mxu0 0.0
        %1236 = vmatpush1.msra.mxu0 0.0
        %1237 = vmatprep.subr.mxu0 0.0
        %1238 = vmatpush1.msra.mxu0 0.0
        %1239 = vmatprep.subr.mxu0 0.0
        %1240 = vmatpush1.msra.mxu0 0.0
        %1241 = vmatprep.subr.mxu0 0.0
        %1242 = vmatpush1.msra.mxu0 0.0
        %1243 = vmatprep.subr.mxu0 0.0
        %1244 = vmatpush1.msra.mxu0 0.0
        %1245 = vmatprep.subr.mxu0 0.0
        %1246 = vmatpush1.msra.mxu0 0.0
        %1247 = vmatprep.subr.mxu0 0.0
        %1248 = vmatpush1.msra.mxu0 0.0
        %1249 = vmatprep.subr.mxu0 0.0
        %1250 = vmatpush1.msra.mxu0 0.0
        %1251 = vmatprep.subr.mxu0 0.0
        %1252 = vmatpush1.msra.mxu0 0.0
        %1253 = vmatprep.subr.mxu0 0.0
        %1254 = vmatpush1.msra.mxu0 0.0
        %1255 = vmatprep.subr.mxu0 0.0
        %1256 = vmatpush1.msra.mxu0 0.0
        %1257 = vmatprep.subr.mxu0 0.0
        %1258 = vmatpush1.msra.mxu0 0.0
        %1259 = vmatprep.subr.mxu0 0.0
        %1260 = vmatpush1.msra.mxu0 0.0
        %1261 = vmatprep.subr.mxu0 0.0
        %1262 = vmatpush1.msra.mxu0 0.0
        %1263 = vmatprep.subr.mxu0 0.0
        %1264 = vmatpush1.msra.mxu0 0.0
        %1265 = vmatprep.subr.mxu0 0.0
        %1266 = vmatpush1.msra.mxu0 0.0
        %1267 = vmatprep.subr.mxu0 0.0
        %1268 = vmatpush1.msra.mxu0 0.0
        %1269 = vmatprep.subr.mxu0 0.0
        %1270 = vmatpush1.msra.mxu0 0.0
        %1271 = vmatprep.subr.mxu0 0.0
        %1272 = vmatpush1.msra.mxu0 0.0
        %1273 = vmatprep.subr.mxu0 0.0
        %1274 = vmatpush1.msra.mxu0 0.0
        %1275 = vmatprep.subr.mxu0 0.0
        %1276 = vmatpush1.msra.mxu0 0.0
        %1277 = vmatprep.subr.mxu0 0.0
        %1278 = vmatpush1.msra.mxu0 0.0
        %1279 = vmatprep.subr.mxu0 0.0
        %1280 = vmatpush1.msra.mxu0 0.0
        %1281 = vmatprep.subr.mxu0 0.0
        %1282 = vmatpush1.msra.mxu0 0.0
        %1283 = vmatprep.subr.mxu0 0.0
        %1284 = vmatpush1.msra.mxu0 0.0
        %1285 = vmatprep.subr.mxu0 0.0
        %1286 = vmatpush1.msra.mxu0 0.0
        %1287 = vmatprep.mubr.f32.mxu0 0.0
        %1288 = vmatmul.mubr.f32.gmra.mrb[0].mxu0 %v1221
        %v1289 = vpop.f32.mrb[0].mxu0
        %v1290 = vadd.f32 0.0, %v1289
        %v1291 = vpop.f32.mrb[0].mxu0
        %1292 = vdwg.mxu0
        %1293 = vrot.lane.b32.xlu0 %v960, 112
        %v1294 = vpop.permute.xlu0 %1293
        %1295 = vrot.lane.b32.xlu0 %v960, 80
        %v1296 = vpop.permute.xlu0 %1295
        %v1297 = vsel %vm966, %v1294, 0
        %v1299 = vsel %vm966, %v1296, 0
        %1301 = vmatprep.subr.mxu0 0.0
        %1302 = vmatpush1.xpose.msra.mxu0 %v1299
        %1303 = vmatprep.subr.mxu0 0.0
        %1304 = vmatpush1.xpose.msra.mxu0 0.0
        %1305 = vmatprep.subr.mxu0 0.0
        %1306 = vmatpush1.xpose.msra.mxu0 0.0
        %1307 = vmatprep.subr.mxu0 0.0
        %1308 = vmatpush1.xpose.msra.mxu0 0.0
        %1309 = vmatprep.subr.mxu0 0.0
        %1310 = vmatpush1.xpose.msra.mxu0 0.0
        %1311 = vmatprep.subr.mxu0 0.0
        %1312 = vmatpush1.xpose.msra.mxu0 0.0
        %1313 = vmatprep.subr.mxu0 0.0
        %1314 = vmatpush1.xpose.msra.mxu0 0.0
        %1315 = vmatprep.subr.mxu0 0.0
        %1316 = vmatpush1.xpose.msra.mxu0 0.0
        %1317 = vmatprep.subr.mxu0 0.0
        %1318 = vmatpush1.xpose.msra.mxu0 0.0
        %1319 = vmatprep.subr.mxu0 0.0
        %1320 = vmatpush1.xpose.msra.mxu0 0.0
        %1321 = vmatprep.subr.mxu0 0.0
        %1322 = vmatpush1.xpose.msra.mxu0 0.0
        %1323 = vmatprep.subr.mxu0 0.0
        %1324 = vmatpush1.xpose.msra.mxu0 0.0
        %1325 = vmatprep.subr.mxu0 0.0
        %1326 = vmatpush1.xpose.msra.mxu0 0.0
        %1327 = vmatprep.subr.mxu0 0.0
        %1328 = vmatpush1.xpose.msra.mxu0 0.0
        %1329 = vmatprep.subr.mxu0 0.0
        %1330 = vmatpush1.xpose.msra.mxu0 0.0
        %1331 = vmatprep.subr.mxu0 0.0
        %1332 = vmatpush1.xpose.msra.mxu0 0.0
        %1333 = vmatprep.subr.mxu0 0.0
        %1334 = vmatpush1.xpose.msra.mxu0 0.0
        %1335 = vmatprep.subr.mxu0 0.0
        %1336 = vmatpush1.xpose.msra.mxu0 0.0
        %1337 = vmatprep.subr.mxu0 0.0
        %1338 = vmatpush1.xpose.msra.mxu0 0.0
        %1339 = vmatprep.subr.mxu0 0.0
        %1340 = vmatpush1.xpose.msra.mxu0 0.0
        %1341 = vmatprep.subr.mxu0 0.0
        %1342 = vmatpush1.xpose.msra.mxu0 0.0
        %1343 = vmatprep.subr.mxu0 0.0
        %1344 = vmatpush1.xpose.msra.mxu0 0.0
        %1345 = vmatprep.subr.mxu0 0.0
        %1346 = vmatpush1.xpose.msra.mxu0 0.0
        %1347 = vmatprep.subr.mxu0 0.0
        %1348 = vmatpush1.xpose.msra.mxu0 0.0
        %1349 = vmatprep.subr.mxu0 0.0
        %1350 = vmatpush1.xpose.msra.mxu0 0.0
        %1351 = vmatprep.subr.mxu0 0.0
        %1352 = vmatpush1.xpose.msra.mxu0 0.0
        %1353 = vmatprep.subr.mxu0 0.0
        %1354 = vmatpush1.xpose.msra.mxu0 0.0
        %1355 = vmatprep.subr.mxu0 0.0
        %1356 = vmatpush1.xpose.msra.mxu0 0.0
        %1357 = vmatprep.subr.mxu0 0.0
        %1358 = vmatpush1.xpose.msra.mxu0 0.0
        %1359 = vmatprep.subr.mxu0 0.0
        %1360 = vmatpush1.xpose.msra.mxu0 0.0
        %1361 = vmatprep.subr.mxu0 0.0
        %1362 = vmatpush1.xpose.msra.mxu0 0.0
        %1363 = vmatprep.subr.mxu0 0.0
        %1364 = vmatpush1.xpose.msra.mxu0 0.0
        %1365 = vmatprep.mubr.f32.mxu0 0.0
        %1366 = vmatmul.mubr.f32.gmra.mrb[0].mxu0 %v1297
        %v1367 = vpop.f32.mrb[0].mxu0
        %v1368 = vadd.f32 %v848, %v1367
        %v1369 = vpop.f32.mrb[0].mxu0
        %1370 = vdwg.mxu0
        %v1371 = vsel %vm966, %v1368, -inf
        %1372 = vmax.xlane.f32.xlu0 %v1371
        %v1373 = vpop.xlane.xlu0 %1372
        %v1374 = vsub.f32 %v1368, %v1373
        %v1375 = vmul.f32 %v1374, 1.442695
        %v1376 = vpow.pop %v1375
        %v1377 = vsel %vm966, %v1376, 0.0
        %1378 = vadd.xlane.f32.xlu0 %v1377
        %v1379 = vpop.xlane.xlu0 %1378
        %v1380 = vrcp.pop %v1379
        %v1381 = vmul.f32 %v1376, %v1380
        %1382 = vrot.lane.b32.xlu0 %v960, 48
        %v1383 = vpop.permute.xlu0 %1382
        %v1386 = vsel %vm966, %v1381, 0
        %1388 = vmatprep.subr.mxu0 0.0
        %1389 = vmatpush1.msra.mxu0 %v1383
        %1390 = vmatprep.subr.mxu0 0.0
        %1391 = vmatpush1.msra.mxu0 0.0
        %1392 = vmatprep.subr.mxu0 0.0
        %1393 = vmatpush1.msra.mxu0 0.0
        %1394 = vmatprep.subr.mxu0 0.0
        %1395 = vmatpush1.msra.mxu0 0.0
        %1396 = vmatprep.subr.mxu0 0.0
        %1397 = vmatpush1.msra.mxu0 0.0
        %1398 = vmatprep.subr.mxu0 0.0
        %1399 = vmatpush1.msra.mxu0 0.0
        %1400 = vmatprep.subr.mxu0 0.0
        %1401 = vmatpush1.msra.mxu0 0.0
        %1402 = vmatprep.subr.mxu0 0.0
        %1403 = vmatpush1.msra.mxu0 0.0
        %1404 = vmatprep.subr.mxu0 0.0
        %1405 = vmatpush1.msra.mxu0 0.0
        %1406 = vmatprep.subr.mxu0 0.0
        %1407 = vmatpush1.msra.mxu0 0.0
        %1408 = vmatprep.subr.mxu0 0.0
        %1409 = vmatpush1.msra.mxu0 0.0
        %1410 = vmatprep.subr.mxu0 0.0
        %1411 = vmatpush1.msra.mxu0 0.0
        %1412 = vmatprep.subr.mxu0 0.0
        %1413 = vmatpush1.msra.mxu0 0.0
        %1414 = vmatprep.subr.mxu0 0.0
        %1415 = vmatpush1.msra.mxu0 0.0
        %1416 = vmatprep.subr.mxu0 0.0
        %1417 = vmatpush1.msra.mxu0 0.0
        %1418 = vmatprep.subr.mxu0 0.0
        %1419 = vmatpush1.msra.mxu0 0.0
        %1420 = vmatprep.subr.mxu0 0.0
        %1421 = vmatpush1.msra.mxu0 0.0
        %1422 = vmatprep.subr.mxu0 0.0
        %1423 = vmatpush1.msra.mxu0 0.0
        %1424 = vmatprep.subr.mxu0 0.0
        %1425 = vmatpush1.msra.mxu0 0.0
        %1426 = vmatprep.subr.mxu0 0.0
        %1427 = vmatpush1.msra.mxu0 0.0
        %1428 = vmatprep.subr.mxu0 0.0
        %1429 = vmatpush1.msra.mxu0 0.0
        %1430 = vmatprep.subr.mxu0 0.0
        %1431 = vmatpush1.msra.mxu0 0.0
        %1432 = vmatprep.subr.mxu0 0.0
        %1433 = vmatpush1.msra.mxu0 0.0
        %1434 = vmatprep.subr.mxu0 0.0
        %1435 = vmatpush1.msra.mxu0 0.0
        %1436 = vmatprep.subr.mxu0 0.0
        %1437 = vmatpush1.msra.mxu0 0.0
        %1438 = vmatprep.subr.mxu0 0.0
        %1439 = vmatpush1.msra.mxu0 0.0
        %1440 = vmatprep.subr.mxu0 0.0
        %1441 = vmatpush1.msra.mxu0 0.0
        %1442 = vmatprep.subr.mxu0 0.0
        %1443 = vmatpush1.msra.mxu0 0.0
        %1444 = vmatprep.subr.mxu0 0.0
        %1445 = vmatpush1.msra.mxu0 0.0
        %1446 = vmatprep.subr.mxu0 0.0
        %1447 = vmatpush1.msra.mxu0 0.0
        %1448 = vmatprep.subr.mxu0 0.0
        %1449 = vmatpush1.msra.mxu0 0.0
        %1450 = vmatprep.subr.mxu0 0.0
        %1451 = vmatpush1.msra.mxu0 0.0
        %1452 = vmatprep.mubr.f32.mxu0 0.0
        %1453 = vmatmul.mubr.f32.gmra.mrb[0].mxu0 %v1386
        %v1454 = vpop.f32.mrb[0].mxu0
        %v1455 = vadd.f32 0.0, %v1454
        %v1456 = vpop.f32.mrb[0].mxu0
        %1457 = vdwg.mxu0
        %1458 = vrot.lane.b32.xlu0 %v960, 104
        %v1459 = vpop.permute.xlu0 %1458
        %1460 = vrot.lane.b32.xlu0 %v960, 72
        %v1461 = vpop.permute.xlu0 %1460
        %v1462 = vsel %vm966, %v1459, 0
        %v1464 = vsel %vm966, %v1461, 0
        %1466 = vmatprep.subr.mxu0 0.0
        %1467 = vmatpush1.xpose.msra.mxu0 %v1464
        %1468 = vmatprep.subr.mxu0 0.0
        %1469 = vmatpush1.xpose.msra.mxu0 0.0
        %1470 = vmatprep.subr.mxu0 0.0
        %1471 = vmatpush1.xpose.msra.mxu0 0.0
        %1472 = vmatprep.subr.mxu0 0.0
        %1473 = vmatpush1.xpose.msra.mxu0 0.0
        %1474 = vmatprep.subr.mxu0 0.0
        %1475 = vmatpush1.xpose.msra.mxu0 0.0
        %1476 = vmatprep.subr.mxu0 0.0
        %1477 = vmatpush1.xpose.msra.mxu0 0.0
        %1478 = vmatprep.subr.mxu0 0.0
        %1479 = vmatpush1.xpose.msra.mxu0 0.0
        %1480 = vmatprep.subr.mxu0 0.0
        %1481 = vmatpush1.xpose.msra.mxu0 0.0
        %1482 = vmatprep.subr.mxu0 0.0
        %1483 = vmatpush1.xpose.msra.mxu0 0.0
        %1484 = vmatprep.subr.mxu0 0.0
        %1485 = vmatpush1.xpose.msra.mxu0 0.0
        %1486 = vmatprep.subr.mxu0 0.0
        %1487 = vmatpush1.xpose.msra.mxu0 0.0
        %1488 = vmatprep.subr.mxu0 0.0
        %1489 = vmatpush1.xpose.msra.mxu0 0.0
        %1490 = vmatprep.subr.mxu0 0.0
        %1491 = vmatpush1.xpose.msra.mxu0 0.0
        %1492 = vmatprep.subr.mxu0 0.0
        %1493 = vmatpush1.xpose.msra.mxu0 0.0
        %1494 = vmatprep.subr.mxu0 0.0
        %1495 = vmatpush1.xpose.msra.mxu0 0.0
        %1496 = vmatprep.subr.mxu0 0.0
        %1497 = vmatpush1.xpose.msra.mxu0 0.0
        %1498 = vmatprep.subr.mxu0 0.0
        %1499 = vmatpush1.xpose.msra.mxu0 0.0
        %1500 = vmatprep.subr.mxu0 0.0
        %1501 = vmatpush1.xpose.msra.mxu0 0.0
        %1502 = vmatprep.subr.mxu0 0.0
        %1503 = vmatpush1.xpose.msra.mxu0 0.0
        %1504 = vmatprep.subr.mxu0 0.0
        %1505 = vmatpush1.xpose.msra.mxu0 0.0
        %1506 = vmatprep.subr.mxu0 0.0
        %1507 = vmatpush1.xpose.msra.mxu0 0.0
        %1508 = vmatprep.subr.mxu0 0.0
        %1509 = vmatpush1.xpose.msra.mxu0 0.0
        %1510 = vmatprep.subr.mxu0 0.0
        %1511 = vmatpush1.xpose.msra.mxu0 0.0
        %1512 = vmatprep.subr.mxu0 0.0
        %1513 = vmatpush1.xpose.msra.mxu0 0.0
        %1514 = vmatprep.subr.mxu0 0.0
        %1515 = vmatpush1.xpose.msra.mxu0 0.0
        %1516 = vmatprep.subr.mxu0 0.0
        %1517 = vmatpush1.xpose.msra.mxu0 0.0
        %1518 = vmatprep.subr.mxu0 0.0
        %1519 = vmatpush1.xpose.msra.mxu0 0.0
        %1520 = vmatprep.subr.mxu0 0.0
        %1521 = vmatpush1.xpose.msra.mxu0 0.0
        %1522 = vmatprep.subr.mxu0 0.0
        %1523 = vmatpush1.xpose.msra.mxu0 0.0
        %1524 = vmatprep.subr.mxu0 0.0
        %1525 = vmatpush1.xpose.msra.mxu0 0.0
        %1526 = vmatprep.subr.mxu0 0.0
        %1527 = vmatpush1.xpose.msra.mxu0 0.0
        %1528 = vmatprep.subr.mxu0 0.0
        %1529 = vmatpush1.xpose.msra.mxu0 0.0
        %1530 = vmatprep.mubr.f32.mxu0 0.0
        %1531 = vmatmul.mubr.f32.gmra.mrb[0].mxu0 %v1462
        %v1532 = vpop.f32.mrb[0].mxu0
        %v1533 = vadd.f32 %v849, %v1532
        %v1534 = vpop.f32.mrb[0].mxu0
        %1535 = vdwg.mxu0
        %v1536 = vsel %vm966, %v1533, -inf
        %1537 = vmax.xlane.f32.xlu0 %v1536
        %v1538 = vpop.xlane.xlu0 %1537
        %v1539 = vsub.f32 %v1533, %v1538
        %v1540 = vmul.f32 %v1539, 1.442695
        %v1541 = vpow.pop %v1540
        %v1542 = vsel %vm966, %v1541, 0.0
        %1543 = vadd.xlane.f32.xlu0 %v1542
        %v1544 = vpop.xlane.xlu0 %1543
        %v1545 = vrcp.pop %v1544
        %v1546 = vmul.f32 %v1541, %v1545
        %1547 = vrot.lane.b32.xlu0 %v960, 40
        %v1548 = vpop.permute.xlu0 %1547
        %v1551 = vsel %vm966, %v1546, 0
        %1553 = vmatprep.subr.mxu0 0.0
        %1554 = vmatpush1.msra.mxu0 %v1548
        %1555 = vmatprep.subr.mxu0 0.0
        %1556 = vmatpush1.msra.mxu0 0.0
        %1557 = vmatprep.subr.mxu0 0.0
        %1558 = vmatpush1.msra.mxu0 0.0
        %1559 = vmatprep.subr.mxu0 0.0
        %1560 = vmatpush1.msra.mxu0 0.0
        %1561 = vmatprep.subr.mxu0 0.0
        %1562 = vmatpush1.msra.mxu0 0.0
        %1563 = vmatprep.subr.mxu0 0.0
        %1564 = vmatpush1.msra.mxu0 0.0
        %1565 = vmatprep.subr.mxu0 0.0
        %1566 = vmatpush1.msra.mxu0 0.0
        %1567 = vmatprep.subr.mxu0 0.0
        %1568 = vmatpush1.msra.mxu0 0.0
        %1569 = vmatprep.subr.mxu0 0.0
        %1570 = vmatpush1.msra.mxu0 0.0
        %1571 = vmatprep.subr.mxu0 0.0
        %1572 = vmatpush1.msra.mxu0 0.0
        %1573 = vmatprep.subr.mxu0 0.0
        %1574 = vmatpush1.msra.mxu0 0.0
        %1575 = vmatprep.subr.mxu0 0.0
        %1576 = vmatpush1.msra.mxu0 0.0
        %1577 = vmatprep.subr.mxu0 0.0
        %1578 = vmatpush1.msra.mxu0 0.0
        %1579 = vmatprep.subr.mxu0 0.0
        %1580 = vmatpush1.msra.mxu0 0.0
        %1581 = vmatprep.subr.mxu0 0.0
        %1582 = vmatpush1.msra.mxu0 0.0
        %1583 = vmatprep.subr.mxu0 0.0
        %1584 = vmatpush1.msra.mxu0 0.0
        %1585 = vmatprep.subr.mxu0 0.0
        %1586 = vmatpush1.msra.mxu0 0.0
        %1587 = vmatprep.subr.mxu0 0.0
        %1588 = vmatpush1.msra.mxu0 0.0
        %1589 = vmatprep.subr.mxu0 0.0
        %1590 = vmatpush1.msra.mxu0 0.0
        %1591 = vmatprep.subr.mxu0 0.0
        %1592 = vmatpush1.msra.mxu0 0.0
        %1593 = vmatprep.subr.mxu0 0.0
        %1594 = vmatpush1.msra.mxu0 0.0
        %1595 = vmatprep.subr.mxu0 0.0
        %1596 = vmatpush1.msra.mxu0 0.0
        %1597 = vmatprep.subr.mxu0 0.0
        %1598 = vmatpush1.msra.mxu0 0.0
        %1599 = vmatprep.subr.mxu0 0.0
        %1600 = vmatpush1.msra.mxu0 0.0
        %1601 = vmatprep.subr.mxu0 0.0
        %1602 = vmatpush1.msra.mxu0 0.0
        %1603 = vmatprep.subr.mxu0 0.0
        %1604 = vmatpush1.msra.mxu0 0.0
        %1605 = vmatprep.subr.mxu0 0.0
        %1606 = vmatpush1.msra.mxu0 0.0
        %1607 = vmatprep.subr.mxu0 0.0
        %1608 = vmatpush1.msra.mxu0 0.0
        %1609 = vmatprep.subr.mxu0 0.0
        %1610 = vmatpush1.msra.mxu0 0.0
        %1611 = vmatprep.subr.mxu0 0.0
        %1612 = vmatpush1.msra.mxu0 0.0
        %1613 = vmatprep.subr.mxu0 0.0
        %1614 = vmatpush1.msra.mxu0 0.0
        %1615 = vmatprep.subr.mxu0 0.0
        %1616 = vmatpush1.msra.mxu0 0.0
        %1617 = vmatprep.mubr.f32.mxu0 0.0
        %1618 = vmatmul.mubr.f32.gmra.mrb[0].mxu0 %v1551
        %v1619 = vpop.f32.mrb[0].mxu0
        %v1620 = vadd.f32 0.0, %v1619
        %v1621 = vpop.f32.mrb[0].mxu0
        %1622 = vdwg.mxu0
        %1624 = vrot.lane.b32.xlu0 %v1290, 8
        %v1625 = vpop.permute.xlu0 %1624
        %1628 = vrot.lane.b32.xlu0 %v1455, 16
        %v1629 = vpop.permute.xlu0 %1628
        %1632 = vrot.lane.b32.xlu0 %v1620, 24
        %v1633 = vpop.permute.xlu0 %1632
        %v1635 = vsel %vm966, %v1125, %v1625
        %vm1636 = vcmask 130048
        %v1637 = vsel %vm1636, %v1635, %v1629
        %vm1638 = vcmask 195584
        %v1639 = vsel %vm1638, %v1637, %v1633
        %v1641 = vsel %vm874, %v1639, 0
        %1643 = vmatprep.subr.mxu0 0.0
        %1644 = vmatpush1.msra.mxu0 %v869
        %1645 = vmatprep.subr.mxu0 0.0
        %1646 = vmatpush1.msra.mxu0 %v870
        %1647 = vmatprep.subr.mxu0 0.0
        %1648 = vmatpush1.msra.mxu0 %v871
        %1649 = vmatprep.subr.mxu0 0.0
        %1650 = vmatpush1.msra.mxu0 %v872
        %1651 = vmatprep.subr.mxu0 0.0
        %1652 = vmatpush1.msra.mxu0 0.0
        %1653 = vmatprep.subr.mxu0 0.0
        %1654 = vmatpush1.msra.mxu0 0.0
        %1655 = vmatprep.subr.mxu0 0.0
        %1656 = vmatpush1.msra.mxu0 0.0
        %1657 = vmatprep.subr.mxu0 0.0
        %1658 = vmatpush1.msra.mxu0 0.0
        %1659 = vmatprep.subr.mxu0 0.0
        %1660 = vmatpush1.msra.mxu0 0.0
        %1661 = vmatprep.subr.mxu0 0.0
        %1662 = vmatpush1.msra.mxu0 0.0
        %1663 = vmatprep.subr.mxu0 0.0
        %1664 = vmatpush1.msra.mxu0 0.0
        %1665 = vmatprep.subr.mxu0 0.0
        %1666 = vmatpush1.msra.mxu0 0.0
        %1667 = vmatprep.subr.mxu0 0.0
        %1668 = vmatpush1.msra.mxu0 0.0
        %1669 = vmatprep.subr.mxu0 0.0
        %1670 = vmatpush1.msra.mxu0 0.0
        %1671 = vmatprep.subr.mxu0 0.0
        %1672 = vmatpush1.msra.mxu0 0.0
        %1673 = vmatprep.subr.mxu0 0.0
        %1674 = vmatpush1.msra.mxu0 0.0
        %1675 = vmatprep.subr.mxu0 0.0
        %1676 = vmatpush1.msra.mxu0 0.0
        %1677 = vmatprep.subr.mxu0 0.0
        %1678 = vmatpush1.msra.mxu0 0.0
        %1679 = vmatprep.subr.mxu0 0.0
        %1680 = vmatpush1.msra.mxu0 0.0
        %1681 = vmatprep.subr.mxu0 0.0
        %1682 = vmatpush1.msra.mxu0 0.0
        %1683 = vmatprep.subr.mxu0 0.0
        %1684 = vmatpush1.msra.mxu0 0.0
        %1685 = vmatprep.subr.mxu0 0.0
        %1686 = vmatpush1.msra.mxu0 0.0
        %1687 = vmatprep.subr.mxu0 0.0
        %1688 = vmatpush1.msra.mxu0 0.0
        %1689 = vmatprep.subr.mxu0 0.0
        %1690 = vmatpush1.msra.mxu0 0.0
        %1691 = vmatprep.subr.mxu0 0.0
        %1692 = vmatpush1.msra.mxu0 0.0
        %1693 = vmatprep.subr.mxu0 0.0
        %1694 = vmatpush1.msra.mxu0 0.0
        %1695 = vmatprep.subr.mxu0 0.0
        %1696 = vmatpush1.msra.mxu0 0.0
        %1697 = vmatprep.subr.mxu0 0.0
        %1698 = vmatpush1.msra.mxu0 0.0
        %1699 = vmatprep.subr.mxu0 0.0
        %1700 = vmatpush1.msra.mxu0 0.0
        %1701 = vmatprep.subr.mxu0 0.0
        %1702 = vmatpush1.msra.mxu0 0.0
        %1703 = vmatprep.subr.mxu0 0.0
        %1704 = vmatpush1.msra.mxu0 0.0
        %1705 = vmatprep.subr.mxu0 0.0
        %1706 = vmatpush1.msra.mxu0 0.0
        %1707 = vmatprep.mubr.f32.mxu0 0.0
        %1708 = vmatmul.mubr.f32.gmra.mrb[0].mxu0 %v1641
        %v1709 = vpop.f32.mrb[0].mxu0
        %v1710 = vadd.f32 0.0, %v1709
        %v1711 = vpop.f32.mrb[0].mxu0
        %1712 = vdwg.mxu0
        %v1713 = vadd.f32 %v832, %v1710
        %v1714 = vld [vmem:[%s9] sm:$0x1]
        %v1715 = vld [vmem:[%s10] sm:$0xff]
        %v1716 = vld [vmem:[%s10 + $0x8] sm:$0xff]
        %v1717 = vld [vmem:[%s10 + $0x10] sm:$0xff]
        %v1718 = vld [vmem:[%s10 + $0x18] sm:$0xff]
        %v1719 = vld [vmem:[%s11] sm:$0xff]
        %v1720 = vld [vmem:[%s11 + $0x8] sm:$0xff]
        %v1721 = vld [vmem:[%s11 + $0x10] sm:$0xff]
        %v1722 = vld [vmem:[%s11 + $0x18] sm:$0xff]
        %v1723 = vld [vmem:[%s11 + $0x20] sm:$0xff]
        %v1724 = vld [vmem:[%s11 + $0x28] sm:$0xff]
        %v1725 = vld [vmem:[%s11 + $0x30] sm:$0xff]
        %v1726 = vld [vmem:[%s11 + $0x38] sm:$0xff]
        %v1727 = vmul.f32 %v1713, %v1713
        %v1728 = vsel %vm874, %v1727, 0.0
        %1729 = vadd.xlane.f32.xlu0 %v1728
        %v1730 = vpop.xlane.xlu0 %1729
        %v1731 = vmul.f32 %v1730, %v878
        %v1732 = vadd.f32 %v1731, 1e-06
        %v1733 = vrsqrt.pop %v1732
        %v1734 = vmul.f32 %v1713, %v1733
        %v1736 = vlaneseq
        %v1737 = vshrl.u32 %v1736, 7
        %v1738 = vsub.s32 0, %v1737
        %v1739 = vrot.slane %v1714, %v1738
        %v1741 = vmul.f32 %v1734, %v1739
        %v1743 = vsel %vm874, %v1741, 0
        %1745 = vmatprep.subr.mxu0 0.0
        %1746 = vmatpush1.msra.mxu0 %v1715
        %1747 = vmatprep.subr.mxu0 0.0
        %1748 = vmatpush1.msra.mxu0 %v1716
        %1749 = vmatprep.subr.mxu0 0.0
        %1750 = vmatpush1.msra.mxu0 %v1717
        %1751 = vmatprep.subr.mxu0 0.0
        %1752 = vmatpush1.msra.mxu0 %v1718
        %1753 = vmatprep.subr.mxu0 0.0
        %1754 = vmatpush1.msra.mxu0 0.0
        %1755 = vmatprep.subr.mxu0 0.0
        %1756 = vmatpush1.msra.mxu0 0.0
        %1757 = vmatprep.subr.mxu0 0.0
        %1758 = vmatpush1.msra.mxu0 0.0
        %1759 = vmatprep.subr.mxu0 0.0
        %1760 = vmatpush1.msra.mxu0 0.0
        %1761 = vmatprep.subr.mxu0 0.0
        %1762 = vmatpush1.msra.mxu0 0.0
        %1763 = vmatprep.subr.mxu0 0.0
        %1764 = vmatpush1.msra.mxu0 0.0
        %1765 = vmatprep.subr.mxu0 0.0
        %1766 = vmatpush1.msra.mxu0 0.0
        %1767 = vmatprep.subr.mxu0 0.0
        %1768 = vmatpush1.msra.mxu0 0.0
        %1769 = vmatprep.subr.mxu0 0.0
        %1770 = vmatpush1.msra.mxu0 0.0
        %1771 = vmatprep.subr.mxu0 0.0
        %1772 = vmatpush1.msra.mxu0 0.0
        %1773 = vmatprep.subr.mxu0 0.0
        %1774 = vmatpush1.msra.mxu0 0.0
        %1775 = vmatprep.subr.mxu0 0.0
        %1776 = vmatpush1.msra.mxu0 0.0
        %1777 = vmatprep.subr.mxu0 0.0
        %1778 = vmatpush1.msra.mxu0 0.0
        %1779 = vmatprep.subr.mxu0 0.0
        %1780 = vmatpush1.msra.mxu0 0.0
        %1781 = vmatprep.subr.mxu0 0.0
        %1782 = vmatpush1.msra.mxu0 0.0
        %1783 = vmatprep.subr.mxu0 0.0
        %1784 = vmatpush1.msra.mxu0 0.0
        %1785 = vmatprep.subr.mxu0 0.0
        %1786 = vmatpush1.msra.mxu0 0.0
        %1787 = vmatprep.subr.mxu0 0.0
        %1788 = vmatpush1.msra.mxu0 0.0
        %1789 = vmatprep.subr.mxu0 0.0
        %1790 = vmatpush1.msra.mxu0 0.0
        %1791 = vmatprep.subr.mxu0 0.0
        %1792 = vmatpush1.msra.mxu0 0.0
        %1793 = vmatprep.subr.mxu0 0.0
        %1794 = vmatpush1.msra.mxu0 0.0
        %1795 = vmatprep.subr.mxu0 0.0
        %1796 = vmatpush1.msra.mxu0 0.0
        %1797 = vmatprep.subr.mxu0 0.0
        %1798 = vmatpush1.msra.mxu0 0.0
        %1799 = vmatprep.subr.mxu0 0.0
        %1800 = vmatpush1.msra.mxu0 0.0
        %1801 = vmatprep.subr.mxu0 0.0
        %1802 = vmatpush1.msra.mxu0 0.0
        %1803 = vmatprep.subr.mxu0 0.0
        %1804 = vmatpush1.msra.mxu0 0.0
        %1805 = vmatprep.subr.mxu0 0.0
        %1806 = vmatpush1.msra.mxu0 0.0
        %1807 = vmatprep.subr.mxu0 0.0
        %1808 = vmatpush1.msra.mxu0 0.0
        %1809 = vmatprep.mubr.f32.mxu0 0.0
        %1810 = vmatmul.mubr.f32.gmra.mrb[0].mxu0 %v1743
        %v1811 = vpop.f32.mrb[0].mxu0
        %v1812 = vadd.f32 0.0, %v1811
        %v1813 = vpop.f32.mrb[0].mxu0
        %1814 = vdwg.mxu0
        %v1815 = vmax.f32 %v1812, 0.0
        %vm1816 = vcmask 523264
        %v1818 = vsel %vm1816, %v1815, 0
        %1820 = vmatprep.subr.mxu0 0.0
        %1821 = vmatpush1.msra.mxu0 %v1719
        %1822 = vmatprep.subr.mxu0 0.0
        %1823 = vmatpush1.msra.mxu0 %v1720
        %1824 = vmatprep.subr.mxu0 0.0
        %1825 = vmatpush1.msra.mxu0 %v1721
        %1826 = vmatprep.subr.mxu0 0.0
        %1827 = vmatpush1.msra.mxu0 %v1722
        %1828 = vmatprep.subr.mxu0 0.0
        %1829 = vmatpush1.msra.mxu0 %v1723
        %1830 = vmatprep.subr.mxu0 0.0
        %1831 = vmatpush1.msra.mxu0 %v1724
        %1832 = vmatprep.subr.mxu0 0.0
        %1833 = vmatpush1.msra.mxu0 %v1725
        %1834 = vmatprep.subr.mxu0 0.0
        %1835 = vmatpush1.msra.mxu0 %v1726
        %1836 = vmatprep.subr.mxu0 0.0
        %1837 = vmatpush1.msra.mxu0 0.0
        %1838 = vmatprep.subr.mxu0 0.0
        %1839 = vmatpush1.msra.mxu0 0.0
        %1840 = vmatprep.subr.mxu0 0.0
        %1841 = vmatpush1.msra.mxu0 0.0
        %1842 = vmatprep.subr.mxu0 0.0
        %1843 = vmatpush1.msra.mxu0 0.0
        %1844 = vmatprep.subr.mxu0 0.0
        %1845 = vmatpush1.msra.mxu0 0.0
        %1846 = vmatprep.subr.mxu0 0.0
        %1847 = vmatpush1.msra.mxu0 0.0
        %1848 = vmatprep.subr.mxu0 0.0
        %1849 = vmatpush1.msra.mxu0 0.0
        %1850 = vmatprep.subr.mxu0 0.0
        %1851 = vmatpush1.msra.mxu0 0.0
        %1852 = vmatprep.subr.mxu0 0.0
        %1853 = vmatpush1.msra.mxu0 0.0
        %1854 = vmatprep.subr.mxu0 0.0
        %1855 = vmatpush1.msra.mxu0 0.0
        %1856 = vmatprep.subr.mxu0 0.0
        %1857 = vmatpush1.msra.mxu0 0.0
        %1858 = vmatprep.subr.mxu0 0.0
        %1859 = vmatpush1.msra.mxu0 0.0
        %1860 = vmatprep.subr.mxu0 0.0
        %1861 = vmatpush1.msra.mxu0 0.0
        %1862 = vmatprep.subr.mxu0 0.0
        %1863 = vmatpush1.msra.mxu0 0.0
        %1864 = vmatprep.subr.mxu0 0.0
        %1865 = vmatpush1.msra.mxu0 0.0
        %1866 = vmatprep.subr.mxu0 0.0
        %1867 = vmatpush1.msra.mxu0 0.0
        %1868 = vmatprep.subr.mxu0 0.0
        %1869 = vmatpush1.msra.mxu0 0.0
        %1870 = vmatprep.subr.mxu0 0.0
        %1871 = vmatpush1.msra.mxu0 0.0
        %1872 = vmatprep.subr.mxu0 0.0
        %1873 = vmatpush1.msra.mxu0 0.0
        %1874 = vmatprep.subr.mxu0 0.0
        %1875 = vmatpush1.msra.mxu0 0.0
        %1876 = vmatprep.subr.mxu0 0.0
        %1877 = vmatpush1.msra.mxu0 0.0
        %1878 = vmatprep.subr.mxu0 0.0
        %1879 = vmatpush1.msra.mxu0 0.0
        %1880 = vmatprep.subr.mxu0 0.0
        %1881 = vmatpush1.msra.mxu0 0.0
        %1882 = vmatprep.subr.mxu0 0.0
        %1883 = vmatpush1.msra.mxu0 0.0
        %1884 = vmatprep.mubr.f32.mxu0 0.0
        %1885 = vmatmul.mubr.f32.gmra.mrb[0].mxu0 %v1818
        %v1886 = vpop.f32.mrb[0].mxu0
        %v1887 = vadd.f32 0.0, %v1886
        %v1888 = vpop.f32.mrb[0].mxu0
        %1889 = vdwg.mxu0
        %v1890 = vadd.f32 %v1713, %v1887
        %s1891 = scalar_lea.vmem %s6, 1
        %v1892 = vld [vmem:[%s1891] sm:$0x1]
        %s1893 = scalar_lea.vmem %s7, 32
        %v1894 = vld [vmem:[%s1893] sm:$0xff]
        %v1895 = vld [vmem:[%s1893 + $0x8] sm:$0xff]
        %v1896 = vld [vmem:[%s1893 + $0x10] sm:$0xff]
        %v1897 = vld [vmem:[%s1893 + $0x18] sm:$0xff]
        %s1898 = scalar_lea.vmem %s8, 32
        %v1899 = vld [vmem:[%s1898] sm:$0xff]
        %v1900 = vld [vmem:[%s1898 + $0x8] sm:$0xff]
        %v1901 = vld [vmem:[%s1898 + $0x10] sm:$0xff]
        %v1902 = vld [vmem:[%s1898 + $0x18] sm:$0xff]
        %v1903 = vmul.f32 %v1890, %v1890
        %v1904 = vsel %vm874, %v1903, 0.0
        %1905 = vadd.xlane.f32.xlu0 %v1904
        %v1906 = vpop.xlane.xlu0 %1905
        %v1907 = vmul.f32 %v1906, %v878
        %v1908 = vadd.f32 %v1907, 1e-06
        %v1909 = vrsqrt.pop %v1908
        %v1910 = vmul.f32 %v1890, %v1909
        %v1912 = vlaneseq
        %v1913 = vshrl.u32 %v1912, 7
        %v1914 = vsub.s32 0, %v1913
        %v1915 = vrot.slane %v1892, %v1914
        %v1917 = vmul.f32 %v1910, %v1915
        %v1919 = vsel %vm874, %v1917, 0
        %1921 = vmatprep.subr.mxu0 0.0
        %1922 = vmatpush1.msra.mxu0 %v1894
        %1923 = vmatprep.subr.mxu0 0.0
        %1924 = vmatpush1.msra.mxu0 %v1895
        %1925 = vmatprep.subr.mxu0 0.0
        %1926 = vmatpush1.msra.mxu0 %v1896
        %1927 = vmatprep.subr.mxu0 0.0
        %1928 = vmatpush1.msra.mxu0 %v1897
        %1929 = vmatprep.subr.mxu0 0.0
        %1930 = vmatpush1.msra.mxu0 0.0
        %1931 = vmatprep.subr.mxu0 0.0
        %1932 = vmatpush1.msra.mxu0 0.0
        %1933 = vmatprep.subr.mxu0 0.0
        %1934 = vmatpush1.msra.mxu0 0.0
        %1935 = vmatprep.subr.mxu0 0.0
        %1936 = vmatpush1.msra.mxu0 0.0
        %1937 = vmatprep.subr.mxu0 0.0
        %1938 = vmatpush1.msra.mxu0 0.0
        %1939 = vmatprep.subr.mxu0 0.0
        %1940 = vmatpush1.msra.mxu0 0.0
        %1941 = vmatprep.subr.mxu0 0.0
        %1942 = vmatpush1.msra.mxu0 0.0
        %1943 = vmatprep.subr.mxu0 0.0
        %1944 = vmatpush1.msra.mxu0 0.0
        %1945 = vmatprep.subr.mxu0 0.0
        %1946 = vmatpush1.msra.mxu0 0.0
        %1947 = vmatprep.subr.mxu0 0.0
        %1948 = vmatpush1.msra.mxu0 0.0
        %1949 = vmatprep.subr.mxu0 0.0
        %1950 = vmatpush1.msra.mxu0 0.0
        %1951 = vmatprep.subr.mxu0 0.0
        %1952 = vmatpush1.msra.mxu0 0.0
        %1953 = vmatprep.subr.mxu0 0.0
        %1954 = vmatpush1.msra.mxu0 0.0
        %1955 = vmatprep.subr.mxu0 0.0
        %1956 = vmatpush1.msra.mxu0 0.0
        %1957 = vmatprep.subr.mxu0 0.0
        %1958 = vmatpush1.msra.mxu0 0.0
        %1959 = vmatprep.subr.mxu0 0.0
        %1960 = vmatpush1.msra.mxu0 0.0
        %1961 = vmatprep.subr.mxu0 0.0
        %1962 = vmatpush1.msra.mxu0 0.0
        %1963 = vmatprep.subr.mxu0 0.0
        %1964 = vmatpush1.msra.mxu0 0.0
        %1965 = vmatprep.subr.mxu0 0.0
        %1966 = vmatpush1.msra.mxu0 0.0
        %1967 = vmatprep.subr.mxu0 0.0
        %1968 = vmatpush1.msra.mxu0 0.0
        %1969 = vmatprep.subr.mxu0 0.0
        %1970 = vmatpush1.msra.mxu0 0.0
        %1971 = vmatprep.subr.mxu0 0.0
        %1972 = vmatpush1.msra.mxu0 0.0
        %1973 = vmatprep.subr.mxu0 0.0
        %1974 = vmatpush1.msra.mxu0 0.0
        %1975 = vmatprep.subr.mxu0 0.0
        %1976 = vmatpush1.msra.mxu0 0.0
        %1977 = vmatprep.subr.mxu0 0.0
        %1978 = vmatpush1.msra.mxu0 0.0
        %1979 = vmatprep.subr.mxu0 0.0
        %1980 = vmatpush1.msra.mxu0 0.0
        %1981 = vmatprep.subr.mxu0 0.0
        %1982 = vmatpush1.msra.mxu0 0.0
        %1983 = vmatprep.subr.mxu0 0.0
        %1984 = vmatpush1.msra.mxu0 0.0
        %1985 = vmatprep.mubr.f32.mxu0 0.0
        %1986 = vmatmul.mubr.f32.gmra.mrb[0].mxu0 %v1919
        %v1987 = vpop.f32.mrb[0].mxu0
        %v1988 = vadd.f32 0.0, %v1987
        %v1989 = vpop.f32.mrb[0].mxu0
        %1990 = vdwg.mxu0
        %1992 = vrot.lane.b32.xlu0 %v1988, 96
        %v1993 = vpop.permute.xlu0 %1992
        %v1994 = vsel %vm966, %v1988, 0
        %v1996 = vsel %vm966, %v1993, 0
        %1998 = vmatprep.subr.mxu0 0.0
        %1999 = vmatpush1.xpose.msra.mxu0 %v1996
        %2000 = vmatprep.subr.mxu0 0.0
        %2001 = vmatpush1.xpose.msra.mxu0 0.0
        %2002 = vmatprep.subr.mxu0 0.0
        %2003 = vmatpush1.xpose.msra.mxu0 0.0
        %2004 = vmatprep.subr.mxu0 0.0
        %2005 = vmatpush1.xpose.msra.mxu0 0.0
        %2006 = vmatprep.subr.mxu0 0.0
        %2007 = vmatpush1.xpose.msra.mxu0 0.0
        %2008 = vmatprep.subr.mxu0 0.0
        %2009 = vmatpush1.xpose.msra.mxu0 0.0
        %2010 = vmatprep.subr.mxu0 0.0
        %2011 = vmatpush1.xpose.msra.mxu0 0.0
        %2012 = vmatprep.subr.mxu0 0.0
        %2013 = vmatpush1.xpose.msra.mxu0 0.0
        %2014 = vmatprep.subr.mxu0 0.0
        %2015 = vmatpush1.xpose.msra.mxu0 0.0
        %2016 = vmatprep.subr.mxu0 0.0
        %2017 = vmatpush1.xpose.msra.mxu0 0.0
        %2018 = vmatprep.subr.mxu0 0.0
        %2019 = vmatpush1.xpose.msra.mxu0 0.0
        %2020 = vmatprep.subr.mxu0 0.0
        %2021 = vmatpush1.xpose.msra.mxu0 0.0
        %2022 = vmatprep.subr.mxu0 0.0
        %2023 = vmatpush1.xpose.msra.mxu0 0.0
        %2024 = vmatprep.subr.mxu0 0.0
        %2025 = vmatpush1.xpose.msra.mxu0 0.0
        %2026 = vmatprep.subr.mxu0 0.0
        %2027 = vmatpush1.xpose.msra.mxu0 0.0
        %2028 = vmatprep.subr.mxu0 0.0
        %2029 = vmatpush1.xpose.msra.mxu0 0.0
        %2030 = vmatprep.subr.mxu0 0.0
        %2031 = vmatpush1.xpose.msra.mxu0 0.0
        %2032 = vmatprep.subr.mxu0 0.0
        %2033 = vmatpush1.xpose.msra.mxu0 0.0
        %2034 = vmatprep.subr.mxu0 0.0
        %2035 = vmatpush1.xpose.msra.mxu0 0.0
        %2036 = vmatprep.subr.mxu0 0.0
        %2037 = vmatpush1.xpose.msra.mxu0 0.0
        %2038 = vmatprep.subr.mxu0 0.0
        %2039 = vmatpush1.xpose.msra.mxu0 0.0
        %2040 = vmatprep.subr.mxu0 0.0
        %2041 = vmatpush1.xpose.msra.mxu0 0.0
        %2042 = vmatprep.subr.mxu0 0.0
        %2043 = vmatpush1.xpose.msra.mxu0 0.0
        %2044 = vmatprep.subr.mxu0 0.0
        %2045 = vmatpush1.xpose.msra.mxu0 0.0
        %2046 = vmatprep.subr.mxu0 0.0
        %2047 = vmatpush1.xpose.msra.mxu0 0.0
        %2048 = vmatprep.subr.mxu0 0.0
        %2049 = vmatpush1.xpose.msra.mxu0 0.0
        %2050 = vmatprep.subr.mxu0 0.0
        %2051 = vmatpush1.xpose.msra.mxu0 0.0
        %2052 = vmatprep.subr.mxu0 0.0
        %2053 = vmatpush1.xpose.msra.mxu0 0.0
        %2054 = vmatprep.subr.mxu0 0.0
        %2055 = vmatpush1.xpose.msra.mxu0 0.0
        %2056 = vmatprep.subr.mxu0 0.0
        %2057 = vmatpush1.xpose.msra.mxu0 0.0
        %2058 = vmatprep.subr.mxu0 0.0
        %2059 = vmatpush1.xpose.msra.mxu0 0.0
        %2060 = vmatprep.subr.mxu0 0.0
        %2061 = vmatpush1.xpose.msra.mxu0 0.0
        %2062 = vmatprep.mubr.f32.mxu0 0.0
        %2063 = vmatmul.mubr.f32.gmra.mrb[0].mxu0 %v1994
        %v2064 = vpop.f32.mrb[0].mxu0
        %v2065 = vadd.f32 %v846, %v2064
        %v2066 = vpop.f32.mrb[0].mxu0
        %2067 = vdwg.mxu0
        %v2068 = vsel %vm966, %v2065, -inf
        %2069 = vmax.xlane.f32.xlu0 %v2068
        %v2070 = vpop.xlane.xlu0 %2069
        %v2071 = vsub.f32 %v2065, %v2070
        %v2072 = vmul.f32 %v2071, 1.442695
        %v2073 = vpow.pop %v2072
        %v2074 = vsel %vm966, %v2073, 0.0
        %2075 = vadd.xlane.f32.xlu0 %v2074
        %v2076 = vpop.xlane.xlu0 %2075
        %v2077 = vrcp.pop %v2076
        %v2078 = vmul.f32 %v2073, %v2077
        %2079 = vrot.lane.b32.xlu0 %v1988, 64
        %v2080 = vpop.permute.xlu0 %2079
        %v2083 = vsel %vm966, %v2078, 0
        %2085 = vmatprep.subr.mxu0 0.0
        %2086 = vmatpush1.msra.mxu0 %v2080
        %2087 = vmatprep.subr.mxu0 0.0
        %2088 = vmatpush1.msra.mxu0 0.0
        %2089 = vmatprep.subr.mxu0 0.0
        %2090 = vmatpush1.msra.mxu0 0.0
        %2091 = vmatprep.subr.mxu0 0.0
        %2092 = vmatpush1.msra.mxu0 0.0
        %2093 = vmatprep.subr.mxu0 0.0
        %2094 = vmatpush1.msra.mxu0 0.0
        %2095 = vmatprep.subr.mxu0 0.0
        %2096 = vmatpush1.msra.mxu0 0.0
        %2097 = vmatprep.subr.mxu0 0.0
        %2098 = vmatpush1.msra.mxu0 0.0
        %2099 = vmatprep.subr.mxu0 0.0
        %2100 = vmatpush1.msra.mxu0 0.0
        %2101 = vmatprep.subr.mxu0 0.0
        %2102 = vmatpush1.msra.mxu0 0.0
        %2103 = vmatprep.subr.mxu0 0.0
        %2104 = vmatpush1.msra.mxu0 0.0
        %2105 = vmatprep.subr.mxu0 0.0
        %2106 = vmatpush1.msra.mxu0 0.0
        %2107 = vmatprep.subr.mxu0 0.0
        %2108 = vmatpush1.msra.mxu0 0.0
        %2109 = vmatprep.subr.mxu0 0.0
        %2110 = vmatpush1.msra.mxu0 0.0
        %2111 = vmatprep.subr.mxu0 0.0
        %2112 = vmatpush1.msra.mxu0 0.0
        %2113 = vmatprep.subr.mxu0 0.0
        %2114 = vmatpush1.msra.mxu0 0.0
        %2115 = vmatprep.subr.mxu0 0.0
        %2116 = vmatpush1.msra.mxu0 0.0
        %2117 = vmatprep.subr.mxu0 0.0
        %2118 = vmatpush1.msra.mxu0 0.0
        %2119 = vmatprep.subr.mxu0 0.0
        %2120 = vmatpush1.msra.mxu0 0.0
        %2121 = vmatprep.subr.mxu0 0.0
        %2122 = vmatpush1.msra.mxu0 0.0
        %2123 = vmatprep.subr.mxu0 0.0
        %2124 = vmatpush1.msra.mxu0 0.0
        %2125 = vmatprep.subr.mxu0 0.0
        %2126 = vmatpush1.msra.mxu0 0.0
        %2127 = vmatprep.subr.mxu0 0.0
        %2128 = vmatpush1.msra.mxu0 0.0
        %2129 = vmatprep.subr.mxu0 0.0
        %2130 = vmatpush1.msra.mxu0 0.0
        %2131 = vmatprep.subr.mxu0 0.0
        %2132 = vmatpush1.msra.mxu0 0.0
        %2133 = vmatprep.subr.mxu0 0.0
        %2134 = vmatpush1.msra.mxu0 0.0
        %2135 = vmatprep.subr.mxu0 0.0
        %2136 = vmatpush1.msra.mxu0 0.0
        %2137 = vmatprep.subr.mxu0 0.0
        %2138 = vmatpush1.msra.mxu0 0.0
        %2139 = vmatprep.subr.mxu0 0.0
        %2140 = vmatpush1.msra.mxu0 0.0
        %2141 = vmatprep.subr.mxu0 0.0
        %2142 = vmatpush1.msra.mxu0 0.0
        %2143 = vmatprep.subr.mxu0 0.0
        %2144 = vmatpush1.msra.mxu0 0.0
        %2145 = vmatprep.subr.mxu0 0.0
        %2146 = vmatpush1.msra.mxu0 0.0
        %2147 = vmatprep.subr.mxu0 0.0
        %2148 = vmatpush1.msra.mxu0 0.0
        %2149 = vmatprep.mubr.f32.mxu0 0.0
        %2150 = vmatmul.mubr.f32.gmra.mrb[0].mxu0 %v2083
        %v2151 = vpop.f32.mrb[0].mxu0
        %v2152 = vadd.f32 0.0, %v2151
        %v2153 = vpop.f32.mrb[0].mxu0
        %2154 = vdwg.mxu0
        %2155 = vrot.lane.b32.xlu0 %v1988, 120
        %v2156 = vpop.permute.xlu0 %2155
        %2157 = vrot.lane.b32.xlu0 %v1988, 88
        %v2158 = vpop.permute.xlu0 %2157
        %v2159 = vsel %vm966, %v2156, 0
        %v2161 = vsel %vm966, %v2158, 0
        %2163 = vmatprep.subr.mxu0 0.0
        %2164 = vmatpush1.xpose.msra.mxu0 %v2161
        %2165 = vmatprep.subr.mxu0 0.0
        %2166 = vmatpush1.xpose.msra.mxu0 0.0
        %2167 = vmatprep.subr.mxu0 0.0
        %2168 = vmatpush1.xpose.msra.mxu0 0.0
        %2169 = vmatprep.subr.mxu0 0.0
        %2170 = vmatpush1.xpose.msra.mxu0 0.0
        %2171 = vmatprep.subr.mxu0 0.0
        %2172 = vmatpush1.xpose.msra.mxu0 0.0
        %2173 = vmatprep.subr.mxu0 0.0
        %2174 = vmatpush1.xpose.msra.mxu0 0.0
        %2175 = vmatprep.subr.mxu0 0.0
        %2176 = vmatpush1.xpose.msra.mxu0 0.0
        %2177 = vmatprep.subr.mxu0 0.0
        %2178 = vmatpush1.xpose.msra.mxu0 0.0
        %2179 = vmatprep.subr.mxu0 0.0
        %2180 = vmatpush1.xpose.msra.mxu0 0.0
        %2181 = vmatprep.subr.mxu0 0.0
        %2182 = vmatpush1.xpose.msra.mxu0 0.0
        %2183 = vmatprep.subr.mxu0 0.0
        %2184 = vmatpush1.xpose.msra.mxu0 0.0
        %2185 = vmatprep.subr.mxu0 0.0
        %2186 = vmatpush1.xpose.msra.mxu0 0.0
        %2187 = vmatprep.subr.mxu0 0.0
        %2188 = vmatpush1.xpose.msra.mxu0 0.0
        %2189 = vmatprep.subr.mxu0 0.0
        %2190 = vmatpush1.xpose.msra.mxu0 0.0
        %2191 = vmatprep.subr.mxu0 0.0
        %2192 = vmatpush1.xpose.msra.mxu0 0.0
        %2193 = vmatprep.subr.mxu0 0.0
        %2194 = vmatpush1.xpose.msra.mxu0 0.0
        %2195 = vmatprep.subr.mxu0 0.0
        %2196 = vmatpush1.xpose.msra.mxu0 0.0
        %2197 = vmatprep.subr.mxu0 0.0
        %2198 = vmatpush1.xpose.msra.mxu0 0.0
        %2199 = vmatprep.subr.mxu0 0.0
        %2200 = vmatpush1.xpose.msra.mxu0 0.0
        %2201 = vmatprep.subr.mxu0 0.0
        %2202 = vmatpush1.xpose.msra.mxu0 0.0
        %2203 = vmatprep.subr.mxu0 0.0
        %2204 = vmatpush1.xpose.msra.mxu0 0.0
        %2205 = vmatprep.subr.mxu0 0.0
        %2206 = vmatpush1.xpose.msra.mxu0 0.0
        %2207 = vmatprep.subr.mxu0 0.0
        %2208 = vmatpush1.xpose.msra.mxu0 0.0
        %2209 = vmatprep.subr.mxu0 0.0
        %2210 = vmatpush1.xpose.msra.mxu0 0.0
        %2211 = vmatprep.subr.mxu0 0.0
        %2212 = vmatpush1.xpose.msra.mxu0 0.0
        %2213 = vmatprep.subr.mxu0 0.0
        %2214 = vmatpush1.xpose.msra.mxu0 0.0
        %2215 = vmatprep.subr.mxu0 0.0
        %2216 = vmatpush1.xpose.msra.mxu0 0.0
        %2217 = vmatprep.subr.mxu0 0.0
        %2218 = vmatpush1.xpose.msra.mxu0 0.0
        %2219 = vmatprep.subr.mxu0 0.0
        %2220 = vmatpush1.xpose.msra.mxu0 0.0
        %2221 = vmatprep.subr.mxu0 0.0
        %2222 = vmatpush1.xpose.msra.mxu0 0.0
        %2223 = vmatprep.subr.mxu0 0.0
        %2224 = vmatpush1.xpose.msra.mxu0 0.0
        %2225 = vmatprep.subr.mxu0 0.0
        %2226 = vmatpush1.xpose.msra.mxu0 0.0
        %2227 = vmatprep.mubr.f32.mxu0 0.0
        %2228 = vmatmul.mubr.f32.gmra.mrb[0].mxu0 %v2159
        %v2229 = vpop.f32.mrb[0].mxu0
        %v2230 = vadd.f32 %v847, %v2229
        %v2231 = vpop.f32.mrb[0].mxu0
        %2232 = vdwg.mxu0
        %v2233 = vsel %vm966, %v2230, -inf
        %2234 = vmax.xlane.f32.xlu0 %v2233
        %v2235 = vpop.xlane.xlu0 %2234
        %v2236 = vsub.f32 %v2230, %v2235
        %v2237 = vmul.f32 %v2236, 1.442695
        %v2238 = vpow.pop %v2237
        %v2239 = vsel %vm966, %v2238, 0.0
        %2240 = vadd.xlane.f32.xlu0 %v2239
        %v2241 = vpop.xlane.xlu0 %2240
        %v2242 = vrcp.pop %v2241
        %v2243 = vmul.f32 %v2238, %v2242
        %2244 = vrot.lane.b32.xlu0 %v1988, 56
        %v2245 = vpop.permute.xlu0 %2244
        %v2248 = vsel %vm966, %v2243, 0
        %2250 = vmatprep.subr.mxu0 0.0
        %2251 = vmatpush1.msra.mxu0 %v2245
        %2252 = vmatprep.subr.mxu0 0.0
        %2253 = vmatpush1.msra.mxu0 0.0
        %2254 = vmatprep.subr.mxu0 0.0
        %2255 = vmatpush1.msra.mxu0 0.0
        %2256 = vmatprep.subr.mxu0 0.0
        %2257 = vmatpush1.msra.mxu0 0.0
        %2258 = vmatprep.subr.mxu0 0.0
        %2259 = vmatpush1.msra.mxu0 0.0
        %2260 = vmatprep.subr.mxu0 0.0
        %2261 = vmatpush1.msra.mxu0 0.0
        %2262 = vmatprep.subr.mxu0 0.0
        %2263 = vmatpush1.msra.mxu0 0.0
        %2264 = vmatprep.subr.mxu0 0.0
        %2265 = vmatpush1.msra.mxu0 0.0
        %2266 = vmatprep.subr.mxu0 0.0
        %2267 = vmatpush1.msra.mxu0 0.0
        %2268 = vmatprep.subr.mxu0 0.0
        %2269 = vmatpush1.msra.mxu0 0.0
        %2270 = vmatprep.subr.mxu0 0.0
        %2271 = vmatpush1.msra.mxu0 0.0
        %2272 = vmatprep.subr.mxu0 0.0
        %2273 = vmatpush1.msra.mxu0 0.0
        %2274 = vmatprep.subr.mxu0 0.0
        %2275 = vmatpush1.msra.mxu0 0.0
        %2276 = vmatprep.subr.mxu0 0.0
        %2277 = vmatpush1.msra.mxu0 0.0
        %2278 = vmatprep.subr.mxu0 0.0
        %2279 = vmatpush1.msra.mxu0 0.0
        %2280 = vmatprep.subr.mxu0 0.0
        %2281 = vmatpush1.msra.mxu0 0.0
        %2282 = vmatprep.subr.mxu0 0.0
        %2283 = vmatpush1.msra.mxu0 0.0
        %2284 = vmatprep.subr.mxu0 0.0
        %2285 = vmatpush1.msra.mxu0 0.0
        %2286 = vmatprep.subr.mxu0 0.0
        %2287 = vmatpush1.msra.mxu0 0.0
        %2288 = vmatprep.subr.mxu0 0.0
        %2289 = vmatpush1.msra.mxu0 0.0
        %2290 = vmatprep.subr.mxu0 0.0
        %2291 = vmatpush1.msra.mxu0 0.0
        %2292 = vmatprep.subr.mxu0 0.0
        %2293 = vmatpush1.msra.mxu0 0.0
        %2294 = vmatprep.subr.mxu0 0.0
        %2295 = vmatpush1.msra.mxu0 0.0
        %2296 = vmatprep.subr.mxu0 0.0
        %2297 = vmatpush1.msra.mxu0 0.0
        %2298 = vmatprep.subr.mxu0 0.0
        %2299 = vmatpush1.msra.mxu0 0.0
        %2300 = vmatprep.subr.mxu0 0.0
        %2301 = vmatpush1.msra.mxu0 0.0
        %2302 = vmatprep.subr.mxu0 0.0
        %2303 = vmatpush1.msra.mxu0 0.0
        %2304 = vmatprep.subr.mxu0 0.0
        %2305 = vmatpush1.msra.mxu0 0.0
        %2306 = vmatprep.subr.mxu0 0.0
        %2307 = vmatpush1.msra.mxu0 0.0
        %2308 = vmatprep.subr.mxu0 0.0
        %2309 = vmatpush1.msra.mxu0 0.0
        %2310 = vmatprep.subr.mxu0 0.0
        %2311 = vmatpush1.msra.mxu0 0.0
        %2312 = vmatprep.subr.mxu0 0.0
        %2313 = vmatpush1.msra.mxu0 0.0
        %2314 = vmatprep.mubr.f32.mxu0 0.0
        %2315 = vmatmul.mubr.f32.gmra.mrb[0].mxu0 %v2248
        %v2316 = vpop.f32.mrb[0].mxu0
        %v2317 = vadd.f32 0.0, %v2316
        %v2318 = vpop.f32.mrb[0].mxu0
        %2319 = vdwg.mxu0
        %2320 = vrot.lane.b32.xlu0 %v1988, 112
        %v2321 = vpop.permute.xlu0 %2320
        %2322 = vrot.lane.b32.xlu0 %v1988, 80
        %v2323 = vpop.permute.xlu0 %2322
        %v2324 = vsel %vm966, %v2321, 0
        %v2326 = vsel %vm966, %v2323, 0
        %2328 = vmatprep.subr.mxu0 0.0
        %2329 = vmatpush1.xpose.msra.mxu0 %v2326
        %2330 = vmatprep.subr.mxu0 0.0
        %2331 = vmatpush1.xpose.msra.mxu0 0.0
        %2332 = vmatprep.subr.mxu0 0.0
        %2333 = vmatpush1.xpose.msra.mxu0 0.0
        %2334 = vmatprep.subr.mxu0 0.0
        %2335 = vmatpush1.xpose.msra.mxu0 0.0
        %2336 = vmatprep.subr.mxu0 0.0
        %2337 = vmatpush1.xpose.msra.mxu0 0.0
        %2338 = vmatprep.subr.mxu0 0.0
        %2339 = vmatpush1.xpose.msra.mxu0 0.0
        %2340 = vmatprep.subr.mxu0 0.0
        %2341 = vmatpush1.xpose.msra.mxu0 0.0
        %2342 = vmatprep.subr.mxu0 0.0
        %2343 = vmatpush1.xpose.msra.mxu0 0.0
        %2344 = vmatprep.subr.mxu0 0.0
        %2345 = vmatpush1.xpose.msra.mxu0 0.0
        %2346 = vmatprep.subr.mxu0 0.0
        %2347 = vmatpush1.xpose.msra.mxu0 0.0
        %2348 = vmatprep.subr.mxu0 0.0
        %2349 = vmatpush1.xpose.msra.mxu0 0.0
        %2350 = vmatprep.subr.mxu0 0.0
        %2351 = vmatpush1.xpose.msra.mxu0 0.0
        %2352 = vmatprep.subr.mxu0 0.0
        %2353 = vmatpush1.xpose.msra.mxu0 0.0
        %2354 = vmatprep.subr.mxu0 0.0
        %2355 = vmatpush1.xpose.msra.mxu0 0.0
        %2356 = vmatprep.subr.mxu0 0.0
        %2357 = vmatpush1.xpose.msra.mxu0 0.0
        %2358 = vmatprep.subr.mxu0 0.0
        %2359 = vmatpush1.xpose.msra.mxu0 0.0
        %2360 = vmatprep.subr.mxu0 0.0
        %2361 = vmatpush1.xpose.msra.mxu0 0.0
        %2362 = vmatprep.subr.mxu0 0.0
        %2363 = vmatpush1.xpose.msra.mxu0 0.0
        %2364 = vmatprep.subr.mxu0 0.0
        %2365 = vmatpush1.xpose.msra.mxu0 0.0
        %2366 = vmatprep.subr.mxu0 0.0
        %2367 = vmatpush1.xpose.msra.mxu0 0.0
        %2368 = vmatprep.subr.mxu0 0.0
        %2369 = vmatpush1.xpose.msra.mxu0 0.0
        %2370 = vmatprep.subr.mxu0 0.0
        %2371 = vmatpush1.xpose.msra.mxu0 0.0
        %2372 = vmatprep.subr.mxu0 0.0
        %2373 = vmatpush1.xpose.msra.mxu0 0.0
        %2374 = vmatprep.subr.mxu0 0.0
        %2375 = vmatpush1.xpose.msra.mxu0 0.0
        %2376 = vmatprep.subr.mxu0 0.0
        %2377 = vmatpush1.xpose.msra.mxu0 0.0
        %2378 = vmatprep.subr.mxu0 0.0
        %2379 = vmatpush1.xpose.msra.mxu0 0.0
        %2380 = vmatprep.subr.mxu0 0.0
        %2381 = vmatpush1.xpose.msra.mxu0 0.0
        %2382 = vmatprep.subr.mxu0 0.0
        %2383 = vmatpush1.xpose.msra.mxu0 0.0
        %2384 = vmatprep.subr.mxu0 0.0
        %2385 = vmatpush1.xpose.msra.mxu0 0.0
        %2386 = vmatprep.subr.mxu0 0.0
        %2387 = vmatpush1.xpose.msra.mxu0 0.0
        %2388 = vmatprep.subr.mxu0 0.0
        %2389 = vmatpush1.xpose.msra.mxu0 0.0
        %2390 = vmatprep.subr.mxu0 0.0
        %2391 = vmatpush1.xpose.msra.mxu0 0.0
        %2392 = vmatprep.mubr.f32.mxu0 0.0
        %2393 = vmatmul.mubr.f32.gmra.mrb[0].mxu0 %v2324
        %v2394 = vpop.f32.mrb[0].mxu0
        %v2395 = vadd.f32 %v848, %v2394
        %v2396 = vpop.f32.mrb[0].mxu0
        %2397 = vdwg.mxu0
        %v2398 = vsel %vm966, %v2395, -inf
        %2399 = vmax.xlane.f32.xlu0 %v2398
        %v2400 = vpop.xlane.xlu0 %2399
        %v2401 = vsub.f32 %v2395, %v2400
        %v2402 = vmul.f32 %v2401, 1.442695
        %v2403 = vpow.pop %v2402
        %v2404 = vsel %vm966, %v2403, 0.0
        %2405 = vadd.xlane.f32.xlu0 %v2404
        %v2406 = vpop.xlane.xlu0 %2405
        %v2407 = vrcp.pop %v2406
        %v2408 = vmul.f32 %v2403, %v2407
        %2409 = vrot.lane.b32.xlu0 %v1988, 48
        %v2410 = vpop.permute.xlu0 %2409
        %v2413 = vsel %vm966, %v2408, 0
        %2415 = vmatprep.subr.mxu0 0.0
        %2416 = vmatpush1.msra.mxu0 %v2410
        %2417 = vmatprep.subr.mxu0 0.0
        %2418 = vmatpush1.msra.mxu0 0.0
        %2419 = vmatprep.subr.mxu0 0.0
        %2420 = vmatpush1.msra.mxu0 0.0
        %2421 = vmatprep.subr.mxu0 0.0
        %2422 = vmatpush1.msra.mxu0 0.0
        %2423 = vmatprep.subr.mxu0 0.0
        %2424 = vmatpush1.msra.mxu0 0.0
        %2425 = vmatprep.subr.mxu0 0.0
        %2426 = vmatpush1.msra.mxu0 0.0
        %2427 = vmatprep.subr.mxu0 0.0
        %2428 = vmatpush1.msra.mxu0 0.0
        %2429 = vmatprep.subr.mxu0 0.0
        %2430 = vmatpush1.msra.mxu0 0.0
        %2431 = vmatprep.subr.mxu0 0.0
        %2432 = vmatpush1.msra.mxu0 0.0
        %2433 = vmatprep.subr.mxu0 0.0
        %2434 = vmatpush1.msra.mxu0 0.0
        %2435 = vmatprep.subr.mxu0 0.0
        %2436 = vmatpush1.msra.mxu0 0.0
        %2437 = vmatprep.subr.mxu0 0.0
        %2438 = vmatpush1.msra.mxu0 0.0
        %2439 = vmatprep.subr.mxu0 0.0
        %2440 = vmatpush1.msra.mxu0 0.0
        %2441 = vmatprep.subr.mxu0 0.0
        %2442 = vmatpush1.msra.mxu0 0.0
        %2443 = vmatprep.subr.mxu0 0.0
        %2444 = vmatpush1.msra.mxu0 0.0
        %2445 = vmatprep.subr.mxu0 0.0
        %2446 = vmatpush1.msra.mxu0 0.0
        %2447 = vmatprep.subr.mxu0 0.0
        %2448 = vmatpush1.msra.mxu0 0.0
        %2449 = vmatprep.subr.mxu0 0.0
        %2450 = vmatpush1.msra.mxu0 0.0
        %2451 = vmatprep.subr.mxu0 0.0
        %2452 = vmatpush1.msra.mxu0 0.0
        %2453 = vmatprep.subr.mxu0 0.0
        %2454 = vmatpush1.msra.mxu0 0.0
        %2455 = vmatprep.subr.mxu0 0.0
        %2456 = vmatpush1.msra.mxu0 0.0
        %2457 = vmatprep.subr.mxu0 0.0
        %2458 = vmatpush1.msra.mxu0 0.0
        %2459 = vmatprep.subr.mxu0 0.0
        %2460 = vmatpush1.msra.mxu0 0.0
        %2461 = vmatprep.subr.mxu0 0.0
        %2462 = vmatpush1.msra.mxu0 0.0
        %2463 = vmatprep.subr.mxu0 0.0
        %2464 = vmatpush1.msra.mxu0 0.0
        %2465 = vmatprep.subr.mxu0 0.0
        %2466 = vmatpush1.msra.mxu0 0.0
        %2467 = vmatprep.subr.mxu0 0.0
        %2468 = vmatpush1.msra.mxu0 0.0
        %2469 = vmatprep.subr.mxu0 0.0
        %2470 = vmatpush1.msra.mxu0 0.0
        %2471 = vmatprep.subr.mxu0 0.0
        %2472 = vmatpush1.msra.mxu0 0.0
        %2473 = vmatprep.subr.mxu0 0.0
        %2474 = vmatpush1.msra.mxu0 0.0
        %2475 = vmatprep.subr.mxu0 0.0
        %2476 = vmatpush1.msra.mxu0 0.0
        %2477 = vmatprep.subr.mxu0 0.0
        %2478 = vmatpush1.msra.mxu0 0.0
        %2479 = vmatprep.mubr.f32.mxu0 0.0
        %2480 = vmatmul.mubr.f32.gmra.mrb[0].mxu0 %v2413
        %v2481 = vpop.f32.mrb[0].mxu0
        %v2482 = vadd.f32 0.0, %v2481
        %v2483 = vpop.f32.mrb[0].mxu0
        %2484 = vdwg.mxu0
        %2485 = vrot.lane.b32.xlu0 %v1988, 104
        %v2486 = vpop.permute.xlu0 %2485
        %2487 = vrot.lane.b32.xlu0 %v1988, 72
        %v2488 = vpop.permute.xlu0 %2487
        %v2489 = vsel %vm966, %v2486, 0
        %v2491 = vsel %vm966, %v2488, 0
        %2493 = vmatprep.subr.mxu0 0.0
        %2494 = vmatpush1.xpose.msra.mxu0 %v2491
        %2495 = vmatprep.subr.mxu0 0.0
        %2496 = vmatpush1.xpose.msra.mxu0 0.0
        %2497 = vmatprep.subr.mxu0 0.0
        %2498 = vmatpush1.xpose.msra.mxu0 0.0
        %2499 = vmatprep.subr.mxu0 0.0
        %2500 = vmatpush1.xpose.msra.mxu0 0.0
        %2501 = vmatprep.subr.mxu0 0.0
        %2502 = vmatpush1.xpose.msra.mxu0 0.0
        %2503 = vmatprep.subr.mxu0 0.0
        %2504 = vmatpush1.xpose.msra.mxu0 0.0
        %2505 = vmatprep.subr.mxu0 0.0
        %2506 = vmatpush1.xpose.msra.mxu0 0.0
        %2507 = vmatprep.subr.mxu0 0.0
        %2508 = vmatpush1.xpose.msra.mxu0 0.0
        %2509 = vmatprep.subr.mxu0 0.0
        %2510 = vmatpush1.xpose.msra.mxu0 0.0
        %2511 = vmatprep.subr.mxu0 0.0
        %2512 = vmatpush1.xpose.msra.mxu0 0.0
        %2513 = vmatprep.subr.mxu0 0.0
        %2514 = vmatpush1.xpose.msra.mxu0 0.0
        %2515 = vmatprep.subr.mxu0 0.0
        %2516 = vmatpush1.xpose.msra.mxu0 0.0
        %2517 = vmatprep.subr.mxu0 0.0
        %2518 = vmatpush1.xpose.msra.mxu0 0.0
        %2519 = vmatprep.subr.mxu0 0.0
        %2520 = vmatpush1.xpose.msra.mxu0 0.0
        %2521 = vmatprep.subr.mxu0 0.0
        %2522 = vmatpush1.xpose.msra.mxu0 0.0
        %2523 = vmatprep.subr.mxu0 0.0
        %2524 = vmatpush1.xpose.msra.mxu0 0.0
        %2525 = vmatprep.subr.mxu0 0.0
        %2526 = vmatpush1.xpose.msra.mxu0 0.0
        %2527 = vmatprep.subr.mxu0 0.0
        %2528 = vmatpush1.xpose.msra.mxu0 0.0
        %2529 = vmatprep.subr.mxu0 0.0
        %2530 = vmatpush1.xpose.msra.mxu0 0.0
        %2531 = vmatprep.subr.mxu0 0.0
        %2532 = vmatpush1.xpose.msra.mxu0 0.0
        %2533 = vmatprep.subr.mxu0 0.0
        %2534 = vmatpush1.xpose.msra.mxu0 0.0
        %2535 = vmatprep.subr.mxu0 0.0
        %2536 = vmatpush1.xpose.msra.mxu0 0.0
        %2537 = vmatprep.subr.mxu0 0.0
        %2538 = vmatpush1.xpose.msra.mxu0 0.0
        %2539 = vmatprep.subr.mxu0 0.0
        %2540 = vmatpush1.xpose.msra.mxu0 0.0
        %2541 = vmatprep.subr.mxu0 0.0
        %2542 = vmatpush1.xpose.msra.mxu0 0.0
        %2543 = vmatprep.subr.mxu0 0.0
        %2544 = vmatpush1.xpose.msra.mxu0 0.0
        %2545 = vmatprep.subr.mxu0 0.0
        %2546 = vmatpush1.xpose.msra.mxu0 0.0
        %2547 = vmatprep.subr.mxu0 0.0
        %2548 = vmatpush1.xpose.msra.mxu0 0.0
        %2549 = vmatprep.subr.mxu0 0.0
        %2550 = vmatpush1.xpose.msra.mxu0 0.0
        %2551 = vmatprep.subr.mxu0 0.0
        %2552 = vmatpush1.xpose.msra.mxu0 0.0
        %2553 = vmatprep.subr.mxu0 0.0
        %2554 = vmatpush1.xpose.msra.mxu0 0.0
        %2555 = vmatprep.subr.mxu0 0.0
        %2556 = vmatpush1.xpose.msra.mxu0 0.0
        %2557 = vmatprep.mubr.f32.mxu0 0.0
        %2558 = vmatmul.mubr.f32.gmra.mrb[0].mxu0 %v2489
        %v2559 = vpop.f32.mrb[0].mxu0
        %v2560 = vadd.f32 %v849, %v2559
        %v2561 = vpop.f32.mrb[0].mxu0
        %2562 = vdwg.mxu0
        %v2563 = vsel %vm966, %v2560, -inf
        %2564 = vmax.xlane.f32.xlu0 %v2563
        %v2565 = vpop.xlane.xlu0 %2564
        %v2566 = vsub.f32 %v2560, %v2565
        %v2567 = vmul.f32 %v2566, 1.442695
        %v2568 = vpow.pop %v2567
        %v2569 = vsel %vm966, %v2568, 0.0
        %2570 = vadd.xlane.f32.xlu0 %v2569
        %v2571 = vpop.xlane.xlu0 %2570
        %v2572 = vrcp.pop %v2571
        %v2573 = vmul.f32 %v2568, %v2572
        %2574 = vrot.lane.b32.xlu0 %v1988, 40
        %v2575 = vpop.permute.xlu0 %2574
        %v2578 = vsel %vm966, %v2573, 0
        %2580 = vmatprep.subr.mxu0 0.0
        %2581 = vmatpush1.msra.mxu0 %v2575
        %2582 = vmatprep.subr.mxu0 0.0
        %2583 = vmatpush1.msra.mxu0 0.0
        %2584 = vmatprep.subr.mxu0 0.0
        %2585 = vmatpush1.msra.mxu0 0.0
        %2586 = vmatprep.subr.mxu0 0.0
        %2587 = vmatpush1.msra.mxu0 0.0
        %2588 = vmatprep.subr.mxu0 0.0
        %2589 = vmatpush1.msra.mxu0 0.0
        %2590 = vmatprep.subr.mxu0 0.0
        %2591 = vmatpush1.msra.mxu0 0.0
        %2592 = vmatprep.subr.mxu0 0.0
        %2593 = vmatpush1.msra.mxu0 0.0
        %2594 = vmatprep.subr.mxu0 0.0
        %2595 = vmatpush1.msra.mxu0 0.0
        %2596 = vmatprep.subr.mxu0 0.0
        %2597 = vmatpush1.msra.mxu0 0.0
        %2598 = vmatprep.subr.mxu0 0.0
        %2599 = vmatpush1.msra.mxu0 0.0
        %2600 = vmatprep.subr.mxu0 0.0
        %2601 = vmatpush1.msra.mxu0 0.0
        %2602 = vmatprep.subr.mxu0 0.0
        %2603 = vmatpush1.msra.mxu0 0.0
        %2604 = vmatprep.subr.mxu0 0.0
        %2605 = vmatpush1.msra.mxu0 0.0
        %2606 = vmatprep.subr.mxu0 0.0
        %2607 = vmatpush1.msra.mxu0 0.0
        %2608 = vmatprep.subr.mxu0 0.0
        %2609 = vmatpush1.msra.mxu0 0.0
        %2610 = vmatprep.subr.mxu0 0.0
        %2611 = vmatpush1.msra.mxu0 0.0
        %2612 = vmatprep.subr.mxu0 0.0
        %2613 = vmatpush1.msra.mxu0 0.0
        %2614 = vmatprep.subr.mxu0 0.0
        %2615 = vmatpush1.msra.mxu0 0.0
        %2616 = vmatprep.subr.mxu0 0.0
        %2617 = vmatpush1.msra.mxu0 0.0
        %2618 = vmatprep.subr.mxu0 0.0
        %2619 = vmatpush1.msra.mxu0 0.0
        %2620 = vmatprep.subr.mxu0 0.0
        %2621 = vmatpush1.msra.mxu0 0.0
        %2622 = vmatprep.subr.mxu0 0.0
        %2623 = vmatpush1.msra.mxu0 0.0
        %2624 = vmatprep.subr.mxu0 0.0
        %2625 = vmatpush1.msra.mxu0 0.0
        %2626 = vmatprep.subr.mxu0 0.0
        %2627 = vmatpush1.msra.mxu0 0.0
        %2628 = vmatprep.subr.mxu0 0.0
        %2629 = vmatpush1.msra.mxu0 0.0
        %2630 = vmatprep.subr.mxu0 0.0
        %2631 = vmatpush1.msra.mxu0 0.0
        %2632 = vmatprep.subr.mxu0 0.0
        %2633 = vmatpush1.msra.mxu0 0.0
        %2634 = vmatprep.subr.mxu0 0.0
        %2635 = vmatpush1.msra.mxu0 0.0
        %2636 = vmatprep.subr.mxu0 0.0
        %2637 = vmatpush1.msra.mxu0 0.0
        %2638 = vmatprep.subr.mxu0 0.0
        %2639 = vmatpush1.msra.mxu0 0.0
        %2640 = vmatprep.subr.mxu0 0.0
        %2641 = vmatpush1.msra.mxu0 0.0
        %2642 = vmatprep.subr.mxu0 0.0
        %2643 = vmatpush1.msra.mxu0 0.0
        %2644 = vmatprep.mubr.f32.mxu0 0.0
        %2645 = vmatmul.mubr.f32.gmra.mrb[0].mxu0 %v2578
        %v2646 = vpop.f32.mrb[0].mxu0
        %v2647 = vadd.f32 0.0, %v2646
        %v2648 = vpop.f32.mrb[0].mxu0
        %2649 = vdwg.mxu0
        %2651 = vrot.lane.b32.xlu0 %v2317, 8
        %v2652 = vpop.permute.xlu0 %2651
        %2655 = vrot.lane.b32.xlu0 %v2482, 16
        %v2656 = vpop.permute.xlu0 %2655
        %2659 = vrot.lane.b32.xlu0 %v2647, 24
        %v2660 = vpop.permute.xlu0 %2659
        %v2662 = vsel %vm966, %v2152, %v2652
        %v2663 = vsel %vm1636, %v2662, %v2656
        %v2664 = vsel %vm1638, %v2663, %v2660
        %v2666 = vsel %vm874, %v2664, 0
        %2668 = vmatprep.subr.mxu0 0.0
        %2669 = vmatpush1.msra.mxu0 %v1899
        %2670 = vmatprep.subr.mxu0 0.0
        %2671 = vmatpush1.msra.mxu0 %v1900
        %2672 = vmatprep.subr.mxu0 0.0
        %2673 = vmatpush1.msra.mxu0 %v1901
        %2674 = vmatprep.subr.mxu0 0.0
        %2675 = vmatpush1.msra.mxu0 %v1902
        %2676 = vmatprep.subr.mxu0 0.0
        %2677 = vmatpush1.msra.mxu0 0.0
        %2678 = vmatprep.subr.mxu0 0.0
        %2679 = vmatpush1.msra.mxu0 0.0
        %2680 = vmatprep.subr.mxu0 0.0
        %2681 = vmatpush1.msra.mxu0 0.0
        %2682 = vmatprep.subr.mxu0 0.0
        %2683 = vmatpush1.msra.mxu0 0.0
        %2684 = vmatprep.subr.mxu0 0.0
        %2685 = vmatpush1.msra.mxu0 0.0
        %2686 = vmatprep.subr.mxu0 0.0
        %2687 = vmatpush1.msra.mxu0 0.0
        %2688 = vmatprep.subr.mxu0 0.0
        %2689 = vmatpush1.msra.mxu0 0.0
        %2690 = vmatprep.subr.mxu0 0.0
        %2691 = vmatpush1.msra.mxu0 0.0
        %2692 = vmatprep.subr.mxu0 0.0
        %2693 = vmatpush1.msra.mxu0 0.0
        %2694 = vmatprep.subr.mxu0 0.0
        %2695 = vmatpush1.msra.mxu0 0.0
        %2696 = vmatprep.subr.mxu0 0.0
        %2697 = vmatpush1.msra.mxu0 0.0
        %2698 = vmatprep.subr.mxu0 0.0
        %2699 = vmatpush1.msra.mxu0 0.0
        %2700 = vmatprep.subr.mxu0 0.0
        %2701 = vmatpush1.msra.mxu0 0.0
        %2702 = vmatprep.subr.mxu0 0.0
        %2703 = vmatpush1.msra.mxu0 0.0
        %2704 = vmatprep.subr.mxu0 0.0
        %2705 = vmatpush1.msra.mxu0 0.0
        %2706 = vmatprep.subr.mxu0 0.0
        %2707 = vmatpush1.msra.mxu0 0.0
        %2708 = vmatprep.subr.mxu0 0.0
        %2709 = vmatpush1.msra.mxu0 0.0
        %2710 = vmatprep.subr.mxu0 0.0
        %2711 = vmatpush1.msra.mxu0 0.0
        %2712 = vmatprep.subr.mxu0 0.0
        %2713 = vmatpush1.msra.mxu0 0.0
        %2714 = vmatprep.subr.mxu0 0.0
        %2715 = vmatpush1.msra.mxu0 0.0
        %2716 = vmatprep.subr.mxu0 0.0
        %2717 = vmatpush1.msra.mxu0 0.0
        %2718 = vmatprep.subr.mxu0 0.0
        %2719 = vmatpush1.msra.mxu0 0.0
        %2720 = vmatprep.subr.mxu0 0.0
        %2721 = vmatpush1.msra.mxu0 0.0
        %2722 = vmatprep.subr.mxu0 0.0
        %2723 = vmatpush1.msra.mxu0 0.0
        %2724 = vmatprep.subr.mxu0 0.0
        %2725 = vmatpush1.msra.mxu0 0.0
        %2726 = vmatprep.subr.mxu0 0.0
        %2727 = vmatpush1.msra.mxu0 0.0
        %2728 = vmatprep.subr.mxu0 0.0
        %2729 = vmatpush1.msra.mxu0 0.0
        %2730 = vmatprep.subr.mxu0 0.0
        %2731 = vmatpush1.msra.mxu0 0.0
        %2732 = vmatprep.mubr.f32.mxu0 0.0
        %2733 = vmatmul.mubr.f32.gmra.mrb[0].mxu0 %v2666
        %v2734 = vpop.f32.mrb[0].mxu0
        %v2735 = vadd.f32 0.0, %v2734
        %v2736 = vpop.f32.mrb[0].mxu0
        %2737 = vdwg.mxu0
        %v2738 = vadd.f32 %v1890, %v2735
        %s2739 = scalar_lea.vmem %s9, 1
        %v2740 = vld [vmem:[%s2739] sm:$0x1]
        %s2741 = scalar_lea.vmem %s10, 32
        %v2742 = vld [vmem:[%s2741] sm:$0xff]
        %v2743 = vld [vmem:[%s2741 + $0x8] sm:$0xff]
        %v2744 = vld [vmem:[%s2741 + $0x10] sm:$0xff]
        %v2745 = vld [vmem:[%s2741 + $0x18] sm:$0xff]
        %s2746 = scalar_lea.vmem %s11, 64
        %v2747 = vld [vmem:[%s2746] sm:$0xff]
        %v2748 = vld [vmem:[%s2746 + $0x8] sm:$0xff]
        %v2749 = vld [vmem:[%s2746 + $0x10] sm:$0xff]
        %v2750 = vld [vmem:[%s2746 + $0x18] sm:$0xff]
        %v2751 = vld [vmem:[%s2746 + $0x20] sm:$0xff]
        %v2752 = vld [vmem:[%s2746 + $0x28] sm:$0xff]
        %v2753 = vld [vmem:[%s2746 + $0x30] sm:$0xff]
        %v2754 = vld [vmem:[%s2746 + $0x38] sm:$0xff]
        %v2755 = vmul.f32 %v2738, %v2738
        %v2756 = vsel %vm874, %v2755, 0.0
        %2757 = vadd.xlane.f32.xlu0 %v2756
        %v2758 = vpop.xlane.xlu0 %2757
        %v2759 = vmul.f32 %v2758, %v878
        %v2760 = vadd.f32 %v2759, 1e-06
        %v2761 = vrsqrt.pop %v2760
        %v2762 = vmul.f32 %v2738, %v2761
        %v2764 = vlaneseq
        %v2765 = vshrl.u32 %v2764, 7
        %v2766 = vsub.s32 0, %v2765
        %v2767 = vrot.slane %v2740, %v2766
        %v2769 = vmul.f32 %v2762, %v2767
        %v2771 = vsel %vm874, %v2769, 0
        %2773 = vmatprep.subr.mxu0 0.0
        %2774 = vmatpush1.msra.mxu0 %v2742
        %2775 = vmatprep.subr.mxu0 0.0
        %2776 = vmatpush1.msra.mxu0 %v2743
        %2777 = vmatprep.subr.mxu0 0.0
        %2778 = vmatpush1.msra.mxu0 %v2744
        %2779 = vmatprep.subr.mxu0 0.0
        %2780 = vmatpush1.msra.mxu0 %v2745
        %2781 = vmatprep.subr.mxu0 0.0
        %2782 = vmatpush1.msra.mxu0 0.0
        %2783 = vmatprep.subr.mxu0 0.0
        %2784 = vmatpush1.msra.mxu0 0.0
        %2785 = vmatprep.subr.mxu0 0.0
        %2786 = vmatpush1.msra.mxu0 0.0
        %2787 = vmatprep.subr.mxu0 0.0
        %2788 = vmatpush1.msra.mxu0 0.0
        %2789 = vmatprep.subr.mxu0 0.0
        %2790 = vmatpush1.msra.mxu0 0.0
        %2791 = vmatprep.subr.mxu0 0.0
        %2792 = vmatpush1.msra.mxu0 0.0
        %2793 = vmatprep.subr.mxu0 0.0
        %2794 = vmatpush1.msra.mxu0 0.0
        %2795 = vmatprep.subr.mxu0 0.0
        %2796 = vmatpush1.msra.mxu0 0.0
        %2797 = vmatprep.subr.mxu0 0.0
        %2798 = vmatpush1.msra.mxu0 0.0
        %2799 = vmatprep.subr.mxu0 0.0
        %2800 = vmatpush1.msra.mxu0 0.0
        %2801 = vmatprep.subr.mxu0 0.0
        %2802 = vmatpush1.msra.mxu0 0.0
        %2803 = vmatprep.subr.mxu0 0.0
        %2804 = vmatpush1.msra.mxu0 0.0
        %2805 = vmatprep.subr.mxu0 0.0
        %2806 = vmatpush1.msra.mxu0 0.0
        %2807 = vmatprep.subr.mxu0 0.0
        %2808 = vmatpush1.msra.mxu0 0.0
        %2809 = vmatprep.subr.mxu0 0.0
        %2810 = vmatpush1.msra.mxu0 0.0
        %2811 = vmatprep.subr.mxu0 0.0
        %2812 = vmatpush1.msra.mxu0 0.0
        %2813 = vmatprep.subr.mxu0 0.0
        %2814 = vmatpush1.msra.mxu0 0.0
        %2815 = vmatprep.subr.mxu0 0.0
        %2816 = vmatpush1.msra.mxu0 0.0
        %2817 = vmatprep.subr.mxu0 0.0
        %2818 = vmatpush1.msra.mxu0 0.0
        %2819 = vmatprep.subr.mxu0 0.0
        %2820 = vmatpush1.msra.mxu0 0.0
        %2821 = vmatprep.subr.mxu0 0.0
        %2822 = vmatpush1.msra.mxu0 0.0
        %2823 = vmatprep.subr.mxu0 0.0
        %2824 = vmatpush1.msra.mxu0 0.0
        %2825 = vmatprep.subr.mxu0 0.0
        %2826 = vmatpush1.msra.mxu0 0.0
        %2827 = vmatprep.subr.mxu0 0.0
        %2828 = vmatpush1.msra.mxu0 0.0
        %2829 = vmatprep.subr.mxu0 0.0
        %2830 = vmatpush1.msra.mxu0 0.0
        %2831 = vmatprep.subr.mxu0 0.0
        %2832 = vmatpush1.msra.mxu0 0.0
        %2833 = vmatprep.subr.mxu0 0.0
        %2834 = vmatpush1.msra.mxu0 0.0
        %2835 = vmatprep.subr.mxu0 0.0
        %2836 = vmatpush1.msra.mxu0 0.0
        %2837 = vmatprep.mubr.f32.mxu0 0.0
        %2838 = vmatmul.mubr.f32.gmra.mrb[0].mxu0 %v2771
        %v2839 = vpop.f32.mrb[0].mxu0
        %v2840 = vadd.f32 0.0, %v2839
        %v2841 = vpop.f32.mrb[0].mxu0
        %2842 = vdwg.mxu0
        %v2843 = vmax.f32 %v2840, 0.0
        %v2845 = vsel %vm1816, %v2843, 0
        %2847 = vmatprep.subr.mxu0 0.0
        %2848 = vmatpush1.msra.mxu0 %v2747
        %2849 = vmatprep.subr.mxu0 0.0
        %2850 = vmatpush1.msra.mxu0 %v2748
        %2851 = vmatprep.subr.mxu0 0.0
        %2852 = vmatpush1.msra.mxu0 %v2749
        %2853 = vmatprep.subr.mxu0 0.0
        %2854 = vmatpush1.msra.mxu0 %v2750
        %2855 = vmatprep.subr.mxu0 0.0
        %2856 = vmatpush1.msra.mxu0 %v2751
        %2857 = vmatprep.subr.mxu0 0.0
        %2858 = vmatpush1.msra.mxu0 %v2752
        %2859 = vmatprep.subr.mxu0 0.0
        %2860 = vmatpush1.msra.mxu0 %v2753
        %2861 = vmatprep.subr.mxu0 0.0
        %2862 = vmatpush1.msra.mxu0 %v2754
        %2863 = vmatprep.subr.mxu0 0.0
        %2864 = vmatpush1.msra.mxu0 0.0
        %2865 = vmatprep.subr.mxu0 0.0
        %2866 = vmatpush1.msra.mxu0 0.0
        %2867 = vmatprep.subr.mxu0 0.0
        %2868 = vmatpush1.msra.mxu0 0.0
        %2869 = vmatprep.subr.mxu0 0.0
        %2870 = vmatpush1.msra.mxu0 0.0
        %2871 = vmatprep.subr.mxu0 0.0
        %2872 = vmatpush1.msra.mxu0 0.0
        %2873 = vmatprep.subr.mxu0 0.0
        %2874 = vmatpush1.msra.mxu0 0.0
        %2875 = vmatprep.subr.mxu0 0.0
        %2876 = vmatpush1.msra.mxu0 0.0
        %2877 = vmatprep.subr.mxu0 0.0
        %2878 = vmatpush1.msra.mxu0 0.0
        %2879 = vmatprep.subr.mxu0 0.0
        %2880 = vmatpush1.msra.mxu0 0.0
        %2881 = vmatprep.subr.mxu0 0.0
        %2882 = vmatpush1.msra.mxu0 0.0
        %2883 = vmatprep.subr.mxu0 0.0
        %2884 = vmatpush1.msra.mxu0 0.0
        %2885 = vmatprep.subr.mxu0 0.0
        %2886 = vmatpush1.msra.mxu0 0.0
        %2887 = vmatprep.subr.mxu0 0.0
        %2888 = vmatpush1.msra.mxu0 0.0
        %2889 = vmatprep.subr.mxu0 0.0
        %2890 = vmatpush1.msra.mxu0 0.0
        %2891 = vmatprep.subr.mxu0 0.0
        %2892 = vmatpush1.msra.mxu0 0.0
        %2893 = vmatprep.subr.mxu0 0.0
        %2894 = vmatpush1.msra.mxu0 0.0
        %2895 = vmatprep.subr.mxu0 0.0
        %2896 = vmatpush1.msra.mxu0 0.0
        %2897 = vmatprep.subr.mxu0 0.0
        %2898 = vmatpush1.msra.mxu0 0.0
        %2899 = vmatprep.subr.mxu0 0.0
        %2900 = vmatpush1.msra.mxu0 0.0
        %2901 = vmatprep.subr.mxu0 0.0
        %2902 = vmatpush1.msra.mxu0 0.0
        %2903 = vmatprep.subr.mxu0 0.0
        %2904 = vmatpush1.msra.mxu0 0.0
        %2905 = vmatprep.subr.mxu0 0.0
        %2906 = vmatpush1.msra.mxu0 0.0
        %2907 = vmatprep.subr.mxu0 0.0
        %2908 = vmatpush1.msra.mxu0 0.0
        %2909 = vmatprep.subr.mxu0 0.0
        %2910 = vmatpush1.msra.mxu0 0.0
        %2911 = vmatprep.mubr.f32.mxu0 0.0
        %2912 = vmatmul.mubr.f32.gmra.mrb[0].mxu0 %v2845
        %v2913 = vpop.f32.mrb[0].mxu0
        %v2914 = vadd.f32 0.0, %v2913
        %v2915 = vpop.f32.mrb[0].mxu0
        %2916 = vdwg.mxu0
        %v2917 = vadd.f32 %v2738, %v2914
        %v2918 = vld [vmem:[%s12] sm:$0x1]
        %v2919 = vmul.f32 %v2917, %v2917
        %v2920 = vsel %vm874, %v2919, 0.0
        %2921 = vadd.xlane.f32.xlu0 %v2920
        %v2922 = vpop.xlane.xlu0 %2921
        %v2923 = vmul.f32 %v2922, %v878
        %v2924 = vadd.f32 %v2923, 1e-06
        %v2925 = vrsqrt.pop %v2924
        %v2926 = vmul.f32 %v2917, %v2925
        %v2928 = vlaneseq
        %v2929 = vshrl.u32 %v2928, 7
        %v2930 = vsub.s32 0, %v2929
        %v2931 = vrot.slane %v2918, %v2930
        %v2933 = vmul.f32 %v2926, %v2931
        %v2934 = vld [vmem:[%s13] sm:$0x1]
        %v2935 = vld [vmem:[%s14] sm:$0xff]
        %v2936 = vld [vmem:[%s14 + $0x8] sm:$0xff]
        %v2937 = vld [vmem:[%s14 + $0x10] sm:$0xff]
        %v2938 = vld [vmem:[%s14 + $0x18] sm:$0xff]
        %v2939 = vld [vmem:[%s15] sm:$0xff]
        %v2940 = vld [vmem:[%s15 + $0x8] sm:$0xff]
        %v2941 = vld [vmem:[%s15 + $0x10] sm:$0xff]
        %v2942 = vld [vmem:[%s15 + $0x18] sm:$0xff]
        %v2943 = vmul.f32 %v833, %v833
        %v2944 = vsel %vm874, %v2943, 0.0
        %2945 = vadd.xlane.f32.xlu0 %v2944
        %v2946 = vpop.xlane.xlu0 %2945
        %v2947 = vmul.f32 %v2946, %v878
        %v2948 = vadd.f32 %v2947, 1e-06
        %v2949 = vrsqrt.pop %v2948
        %v2950 = vmul.f32 %v833, %v2949
        %v2952 = vlaneseq
        %v2953 = vshrl.u32 %v2952, 7
        %v2954 = vsub.s32 0, %v2953
        %v2955 = vrot.slane %v2934, %v2954
        %v2957 = vmul.f32 %v2950, %v2955
        %v2959 = vsel %vm874, %v2957, 0
        %2961 = vmatprep.subr.mxu0 0.0
        %2962 = vmatpush1.msra.mxu0 %v2935
        %2963 = vmatprep.subr.mxu0 0.0
        %2964 = vmatpush1.msra.mxu0 %v2936
        %2965 = vmatprep.subr.mxu0 0.0
        %2966 = vmatpush1.msra.mxu0 %v2937
        %2967 = vmatprep.subr.mxu0 0.0
        %2968 = vmatpush1.msra.mxu0 %v2938
        %2969 = vmatprep.subr.mxu0 0.0
        %2970 = vmatpush1.msra.mxu0 0.0
        %2971 = vmatprep.subr.mxu0 0.0
        %2972 = vmatpush1.msra.mxu0 0.0
        %2973 = vmatprep.subr.mxu0 0.0
        %2974 = vmatpush1.msra.mxu0 0.0
        %2975 = vmatprep.subr.mxu0 0.0
        %2976 = vmatpush1.msra.mxu0 0.0
        %2977 = vmatprep.subr.mxu0 0.0
        %2978 = vmatpush1.msra.mxu0 0.0
        %2979 = vmatprep.subr.mxu0 0.0
        %2980 = vmatpush1.msra.mxu0 0.0
        %2981 = vmatprep.subr.mxu0 0.0
        %2982 = vmatpush1.msra.mxu0 0.0
        %2983 = vmatprep.subr.mxu0 0.0
        %2984 = vmatpush1.msra.mxu0 0.0
        %2985 = vmatprep.subr.mxu0 0.0
        %2986 = vmatpush1.msra.mxu0 0.0
        %2987 = vmatprep.subr.mxu0 0.0
        %2988 = vmatpush1.msra.mxu0 0.0
        %2989 = vmatprep.subr.mxu0 0.0
        %2990 = vmatpush1.msra.mxu0 0.0
        %2991 = vmatprep.subr.mxu0 0.0
        %2992 = vmatpush1.msra.mxu0 0.0
        %2993 = vmatprep.subr.mxu0 0.0
        %2994 = vmatpush1.msra.mxu0 0.0
        %2995 = vmatprep.subr.mxu0 0.0
        %2996 = vmatpush1.msra.mxu0 0.0
        %2997 = vmatprep.subr.mxu0 0.0
        %2998 = vmatpush1.msra.mxu0 0.0
        %2999 = vmatprep.subr.mxu0 0.0
        %3000 = vmatpush1.msra.mxu0 0.0
        %3001 = vmatprep.subr.mxu0 0.0
        %3002 = vmatpush1.msra.mxu0 0.0
        %3003 = vmatprep.subr.mxu0 0.0
        %3004 = vmatpush1.msra.mxu0 0.0
        %3005 = vmatprep.subr.mxu0 0.0
        %3006 = vmatpush1.msra.mxu0 0.0
        %3007 = vmatprep.subr.mxu0 0.0
        %3008 = vmatpush1.msra.mxu0 0.0
        %3009 = vmatprep.subr.mxu0 0.0
        %3010 = vmatpush1.msra.mxu0 0.0
        %3011 = vmatprep.subr.mxu0 0.0
        %3012 = vmatpush1.msra.mxu0 0.0
        %3013 = vmatprep.subr.mxu0 0.0
        %3014 = vmatpush1.msra.mxu0 0.0
        %3015 = vmatprep.subr.mxu0 0.0
        %3016 = vmatpush1.msra.mxu0 0.0
        %3017 = vmatprep.subr.mxu0 0.0
        %3018 = vmatpush1.msra.mxu0 0.0
        %3019 = vmatprep.subr.mxu0 0.0
        %3020 = vmatpush1.msra.mxu0 0.0
        %3021 = vmatprep.subr.mxu0 0.0
        %3022 = vmatpush1.msra.mxu0 0.0
        %3023 = vmatprep.subr.mxu0 0.0
        %3024 = vmatpush1.msra.mxu0 0.0
        %3025 = vmatprep.mubr.f32.mxu0 0.0
        %3026 = vmatmul.mubr.f32.gmra.mrb[0].mxu0 %v2959
        %v3027 = vpop.f32.mrb[0].mxu0
        %v3028 = vadd.f32 0.0, %v3027
        %v3029 = vpop.f32.mrb[0].mxu0
        %3030 = vdwg.mxu0
        %3032 = vrot.lane.b32.xlu0 %v3028, 96
        %v3033 = vpop.permute.xlu0 %3032
        %v3034 = vsel %vm966, %v3028, 0
        %v3036 = vsel %vm966, %v3033, 0
        %3038 = vmatprep.subr.mxu0 0.0
        %3039 = vmatpush1.xpose.msra.mxu0 %v3036
        %3040 = vmatprep.subr.mxu0 0.0
        %3041 = vmatpush1.xpose.msra.mxu0 0.0
        %3042 = vmatprep.subr.mxu0 0.0
        %3043 = vmatpush1.xpose.msra.mxu0 0.0
        %3044 = vmatprep.subr.mxu0 0.0
        %3045 = vmatpush1.xpose.msra.mxu0 0.0
        %3046 = vmatprep.subr.mxu0 0.0
        %3047 = vmatpush1.xpose.msra.mxu0 0.0
        %3048 = vmatprep.subr.mxu0 0.0
        %3049 = vmatpush1.xpose.msra.mxu0 0.0
        %3050 = vmatprep.subr.mxu0 0.0
        %3051 = vmatpush1.xpose.msra.mxu0 0.0
        %3052 = vmatprep.subr.mxu0 0.0
        %3053 = vmatpush1.xpose.msra.mxu0 0.0
        %3054 = vmatprep.subr.mxu0 0.0
        %3055 = vmatpush1.xpose.msra.mxu0 0.0
        %3056 = vmatprep.subr.mxu0 0.0
        %3057 = vmatpush1.xpose.msra.mxu0 0.0
        %3058 = vmatprep.subr.mxu0 0.0
        %3059 = vmatpush1.xpose.msra.mxu0 0.0
        %3060 = vmatprep.subr.mxu0 0.0
        %3061 = vmatpush1.xpose.msra.mxu0 0.0
        %3062 = vmatprep.subr.mxu0 0.0
        %3063 = vmatpush1.xpose.msra.mxu0 0.0
        %3064 = vmatprep.subr.mxu0 0.0
        %3065 = vmatpush1.xpose.msra.mxu0 0.0
        %3066 = vmatprep.subr.mxu0 0.0
        %3067 = vmatpush1.xpose.msra.mxu0 0.0
        %3068 = vmatprep.subr.mxu0 0.0
        %3069 = vmatpush1.xpose.msra.mxu0 0.0
        %3070 = vmatprep.subr.mxu0 0.0
        %3071 = vmatpush1.xpose.msra.mxu0 0.0
        %3072 = vmatprep.subr.mxu0 0.0
        %3073 = vmatpush1.xpose.msra.mxu0 0.0
        %3074 = vmatprep.subr.mxu0 0.0
        %3075 = vmatpush1.xpose.msra.mxu0 0.0
        %3076 = vmatprep.subr.mxu0 0.0
        %3077 = vmatpush1.xpose.msra.mxu0 0.0
        %3078 = vmatprep.subr.mxu0 0.0
        %3079 = vmatpush1.xpose.msra.mxu0 0.0
        %3080 = vmatprep.subr.mxu0 0.0
        %3081 = vmatpush1.xpose.msra.mxu0 0.0
        %3082 = vmatprep.subr.mxu0 0.0
        %3083 = vmatpush1.xpose.msra.mxu0 0.0
        %3084 = vmatprep.subr.mxu0 0.0
        %3085 = vmatpush1.xpose.msra.mxu0 0.0
        %3086 = vmatprep.subr.mxu0 0.0
        %3087 = vmatpush1.xpose.msra.mxu0 0.0
        %3088 = vmatprep.subr.mxu0 0.0
        %3089 = vmatpush1.xpose.msra.mxu0 0.0
        %3090 = vmatprep.subr.mxu0 0.0
        %3091 = vmatpush1.xpose.msra.mxu0 0.0
        %3092 = vmatprep.subr.mxu0 0.0
        %3093 = vmatpush1.xpose.msra.mxu0 0.0
        %3094 = vmatprep.subr.mxu0 0.0
        %3095 = vmatpush1.xpose.msra.mxu0 0.0
        %3096 = vmatprep.subr.mxu0 0.0
        %3097 = vmatpush1.xpose.msra.mxu0 0.0
        %3098 = vmatprep.subr.mxu0 0.0
        %3099 = vmatpush1.xpose.msra.mxu0 0.0
        %3100 = vmatprep.subr.mxu0 0.0
        %3101 = vmatpush1.xpose.msra.mxu0 0.0
        %3102 = vmatprep.mubr.f32.mxu0 0.0
        %3103 = vmatmul.mubr.f32.gmra.mrb[0].mxu0 %v3034
        %v3104 = vpop.f32.mrb[0].mxu0
        %v3105 = vadd.f32 %v860, %v3104
        %v3106 = vpop.f32.mrb[0].mxu0
        %3107 = vdwg.mxu0
        %v3108 = vsel %vm966, %v3105, -inf
        %3109 = vmax.xlane.f32.xlu0 %v3108
        %v3110 = vpop.xlane.xlu0 %3109
        %v3111 = vsub.f32 %v3105, %v3110
        %v3112 = vmul.f32 %v3111, 1.442695
        %v3113 = vpow.pop %v3112
        %v3114 = vsel %vm966, %v3113, 0.0
        %3115 = vadd.xlane.f32.xlu0 %v3114
        %v3116 = vpop.xlane.xlu0 %3115
        %v3117 = vrcp.pop %v3116
        %v3118 = vmul.f32 %v3113, %v3117
        %3119 = vrot.lane.b32.xlu0 %v3028, 64
        %v3120 = vpop.permute.xlu0 %3119
        %v3123 = vsel %vm966, %v3118, 0
        %3125 = vmatprep.subr.mxu0 0.0
        %3126 = vmatpush1.msra.mxu0 %v3120
        %3127 = vmatprep.subr.mxu0 0.0
        %3128 = vmatpush1.msra.mxu0 0.0
        %3129 = vmatprep.subr.mxu0 0.0
        %3130 = vmatpush1.msra.mxu0 0.0
        %3131 = vmatprep.subr.mxu0 0.0
        %3132 = vmatpush1.msra.mxu0 0.0
        %3133 = vmatprep.subr.mxu0 0.0
        %3134 = vmatpush1.msra.mxu0 0.0
        %3135 = vmatprep.subr.mxu0 0.0
        %3136 = vmatpush1.msra.mxu0 0.0
        %3137 = vmatprep.subr.mxu0 0.0
        %3138 = vmatpush1.msra.mxu0 0.0
        %3139 = vmatprep.subr.mxu0 0.0
        %3140 = vmatpush1.msra.mxu0 0.0
        %3141 = vmatprep.subr.mxu0 0.0
        %3142 = vmatpush1.msra.mxu0 0.0
        %3143 = vmatprep.subr.mxu0 0.0
        %3144 = vmatpush1.msra.mxu0 0.0
        %3145 = vmatprep.subr.mxu0 0.0
        %3146 = vmatpush1.msra.mxu0 0.0
        %3147 = vmatprep.subr.mxu0 0.0
        %3148 = vmatpush1.msra.mxu0 0.0
        %3149 = vmatprep.subr.mxu0 0.0
        %3150 = vmatpush1.msra.mxu0 0.0
        %3151 = vmatprep.subr.mxu0 0.0
        %3152 = vmatpush1.msra.mxu0 0.0
        %3153 = vmatprep.subr.mxu0 0.0
        %3154 = vmatpush1.msra.mxu0 0.0
        %3155 = vmatprep.subr.mxu0 0.0
        %3156 = vmatpush1.msra.mxu0 0.0
        %3157 = vmatprep.subr.mxu0 0.0
        %3158 = vmatpush1.msra.mxu0 0.0
        %3159 = vmatprep.subr.mxu0 0.0
        %3160 = vmatpush1.msra.mxu0 0.0
        %3161 = vmatprep.subr.mxu0 0.0
        %3162 = vmatpush1.msra.mxu0 0.0
        %3163 = vmatprep.subr.mxu0 0.0
        %3164 = vmatpush1.msra.mxu0 0.0
        %3165 = vmatprep.subr.mxu0 0.0
        %3166 = vmatpush1.msra.mxu0 0.0
        %3167 = vmatprep.subr.mxu0 0.0
        %3168 = vmatpush1.msra.mxu0 0.0
        %3169 = vmatprep.subr.mxu0 0.0
        %3170 = vmatpush1.msra.mxu0 0.0
        %3171 = vmatprep.subr.mxu0 0.0
        %3172 = vmatpush1.msra.mxu0 0.0
        %3173 = vmatprep.subr.mxu0 0.0
        %3174 = vmatpush1.msra.mxu0 0.0
        %3175 = vmatprep.subr.mxu0 0.0
        %3176 = vmatpush1.msra.mxu0 0.0
        %3177 = vmatprep.subr.mxu0 0.0
        %3178 = vmatpush1.msra.mxu0 0.0
        %3179 = vmatprep.subr.mxu0 0.0
        %3180 = vmatpush1.msra.mxu0 0.0
        %3181 = vmatprep.subr.mxu0 0.0
        %3182 = vmatpush1.msra.mxu0 0.0
        %3183 = vmatprep.subr.mxu0 0.0
        %3184 = vmatpush1.msra.mxu0 0.0
        %3185 = vmatprep.subr.mxu0 0.0
        %3186 = vmatpush1.msra.mxu0 0.0
        %3187 = vmatprep.subr.mxu0 0.0
        %3188 = vmatpush1.msra.mxu0 0.0
        %3189 = vmatprep.mubr.f32.mxu0 0.0
        %3190 = vmatmul.mubr.f32.gmra.mrb[0].mxu0 %v3123
        %v3191 = vpop.f32.mrb[0].mxu0
        %v3192 = vadd.f32 0.0, %v3191
        %v3193 = vpop.f32.mrb[0].mxu0
        %3194 = vdwg.mxu0
        %3195 = vrot.lane.b32.xlu0 %v3028, 120
        %v3196 = vpop.permute.xlu0 %3195
        %3197 = vrot.lane.b32.xlu0 %v3028, 88
        %v3198 = vpop.permute.xlu0 %3197
        %v3199 = vsel %vm966, %v3196, 0
        %v3201 = vsel %vm966, %v3198, 0
        %3203 = vmatprep.subr.mxu0 0.0
        %3204 = vmatpush1.xpose.msra.mxu0 %v3201
        %3205 = vmatprep.subr.mxu0 0.0
        %3206 = vmatpush1.xpose.msra.mxu0 0.0
        %3207 = vmatprep.subr.mxu0 0.0
        %3208 = vmatpush1.xpose.msra.mxu0 0.0
        %3209 = vmatprep.subr.mxu0 0.0
        %3210 = vmatpush1.xpose.msra.mxu0 0.0
        %3211 = vmatprep.subr.mxu0 0.0
        %3212 = vmatpush1.xpose.msra.mxu0 0.0
        %3213 = vmatprep.subr.mxu0 0.0
        %3214 = vmatpush1.xpose.msra.mxu0 0.0
        %3215 = vmatprep.subr.mxu0 0.0
        %3216 = vmatpush1.xpose.msra.mxu0 0.0
        %3217 = vmatprep.subr.mxu0 0.0
        %3218 = vmatpush1.xpose.msra.mxu0 0.0
        %3219 = vmatprep.subr.mxu0 0.0
        %3220 = vmatpush1.xpose.msra.mxu0 0.0
        %3221 = vmatprep.subr.mxu0 0.0
        %3222 = vmatpush1.xpose.msra.mxu0 0.0
        %3223 = vmatprep.subr.mxu0 0.0
        %3224 = vmatpush1.xpose.msra.mxu0 0.0
        %3225 = vmatprep.subr.mxu0 0.0
        %3226 = vmatpush1.xpose.msra.mxu0 0.0
        %3227 = vmatprep.subr.mxu0 0.0
        %3228 = vmatpush1.xpose.msra.mxu0 0.0
        %3229 = vmatprep.subr.mxu0 0.0
        %3230 = vmatpush1.xpose.msra.mxu0 0.0
        %3231 = vmatprep.subr.mxu0 0.0
        %3232 = vmatpush1.xpose.msra.mxu0 0.0
        %3233 = vmatprep.subr.mxu0 0.0
        %3234 = vmatpush1.xpose.msra.mxu0 0.0
        %3235 = vmatprep.subr.mxu0 0.0
        %3236 = vmatpush1.xpose.msra.mxu0 0.0
        %3237 = vmatprep.subr.mxu0 0.0
        %3238 = vmatpush1.xpose.msra.mxu0 0.0
        %3239 = vmatprep.subr.mxu0 0.0
        %3240 = vmatpush1.xpose.msra.mxu0 0.0
        %3241 = vmatprep.subr.mxu0 0.0
        %3242 = vmatpush1.xpose.msra.mxu0 0.0
        %3243 = vmatprep.subr.mxu0 0.0
        %3244 = vmatpush1.xpose.msra.mxu0 0.0
        %3245 = vmatprep.subr.mxu0 0.0
        %3246 = vmatpush1.xpose.msra.mxu0 0.0
        %3247 = vmatprep.subr.mxu0 0.0
        %3248 = vmatpush1.xpose.msra.mxu0 0.0
        %3249 = vmatprep.subr.mxu0 0.0
        %3250 = vmatpush1.xpose.msra.mxu0 0.0
        %3251 = vmatprep.subr.mxu0 0.0
        %3252 = vmatpush1.xpose.msra.mxu0 0.0
        %3253 = vmatprep.subr.mxu0 0.0
        %3254 = vmatpush1.xpose.msra.mxu0 0.0
        %3255 = vmatprep.subr.mxu0 0.0
        %3256 = vmatpush1.xpose.msra.mxu0 0.0
        %3257 = vmatprep.subr.mxu0 0.0
        %3258 = vmatpush1.xpose.msra.mxu0 0.0
        %3259 = vmatprep.subr.mxu0 0.0
        %3260 = vmatpush1.xpose.msra.mxu0 0.0
        %3261 = vmatprep.subr.mxu0 0.0
        %3262 = vmatpush1.xpose.msra.mxu0 0.0
        %3263 = vmatprep.subr.mxu0 0.0
        %3264 = vmatpush1.xpose.msra.mxu0 0.0
        %3265 = vmatprep.subr.mxu0 0.0
        %3266 = vmatpush1.xpose.msra.mxu0 0.0
        %3267 = vmatprep.mubr.f32.mxu0 0.0
        %3268 = vmatmul.mubr.f32.gmra.mrb[0].mxu0 %v3199
        %v3269 = vpop.f32.mrb[0].mxu0
        %v3270 = vadd.f32 %v861, %v3269
        %v3271 = vpop.f32.mrb[0].mxu0
        %3272 = vdwg.mxu0
        %v3273 = vsel %vm966, %v3270, -inf
        %3274 = vmax.xlane.f32.xlu0 %v3273
        %v3275 = vpop.xlane.xlu0 %3274
        %v3276 = vsub.f32 %v3270, %v3275
        %v3277 = vmul.f32 %v3276, 1.442695
        %v3278 = vpow.pop %v3277
        %v3279 = vsel %vm966, %v3278, 0.0
        %3280 = vadd.xlane.f32.xlu0 %v3279
        %v3281 = vpop.xlane.xlu0 %3280
        %v3282 = vrcp.pop %v3281
        %v3283 = vmul.f32 %v3278, %v3282
        %3284 = vrot.lane.b32.xlu0 %v3028, 56
        %v3285 = vpop.permute.xlu0 %3284
        %v3288 = vsel %vm966, %v3283, 0
        %3290 = vmatprep.subr.mxu0 0.0
        %3291 = vmatpush1.msra.mxu0 %v3285
        %3292 = vmatprep.subr.mxu0 0.0
        %3293 = vmatpush1.msra.mxu0 0.0
        %3294 = vmatprep.subr.mxu0 0.0
        %3295 = vmatpush1.msra.mxu0 0.0
        %3296 = vmatprep.subr.mxu0 0.0
        %3297 = vmatpush1.msra.mxu0 0.0
        %3298 = vmatprep.subr.mxu0 0.0
        %3299 = vmatpush1.msra.mxu0 0.0
        %3300 = vmatprep.subr.mxu0 0.0
        %3301 = vmatpush1.msra.mxu0 0.0
        %3302 = vmatprep.subr.mxu0 0.0
        %3303 = vmatpush1.msra.mxu0 0.0
        %3304 = vmatprep.subr.mxu0 0.0
        %3305 = vmatpush1.msra.mxu0 0.0
        %3306 = vmatprep.subr.mxu0 0.0
        %3307 = vmatpush1.msra.mxu0 0.0
        %3308 = vmatprep.subr.mxu0 0.0
        %3309 = vmatpush1.msra.mxu0 0.0
        %3310 = vmatprep.subr.mxu0 0.0
        %3311 = vmatpush1.msra.mxu0 0.0
        %3312 = vmatprep.subr.mxu0 0.0
        %3313 = vmatpush1.msra.mxu0 0.0
        %3314 = vmatprep.subr.mxu0 0.0
        %3315 = vmatpush1.msra.mxu0 0.0
        %3316 = vmatprep.subr.mxu0 0.0
        %3317 = vmatpush1.msra.mxu0 0.0
        %3318 = vmatprep.subr.mxu0 0.0
        %3319 = vmatpush1.msra.mxu0 0.0
        %3320 = vmatprep.subr.mxu0 0.0
        %3321 = vmatpush1.msra.mxu0 0.0
        %3322 = vmatprep.subr.mxu0 0.0
        %3323 = vmatpush1.msra.mxu0 0.0
        %3324 = vmatprep.subr.mxu0 0.0
        %3325 = vmatpush1.msra.mxu0 0.0
        %3326 = vmatprep.subr.mxu0 0.0
        %3327 = vmatpush1.msra.mxu0 0.0
        %3328 = vmatprep.subr.mxu0 0.0
        %3329 = vmatpush1.msra.mxu0 0.0
        %3330 = vmatprep.subr.mxu0 0.0
        %3331 = vmatpush1.msra.mxu0 0.0
        %3332 = vmatprep.subr.mxu0 0.0
        %3333 = vmatpush1.msra.mxu0 0.0
        %3334 = vmatprep.subr.mxu0 0.0
        %3335 = vmatpush1.msra.mxu0 0.0
        %3336 = vmatprep.subr.mxu0 0.0
        %3337 = vmatpush1.msra.mxu0 0.0
        %3338 = vmatprep.subr.mxu0 0.0
        %3339 = vmatpush1.msra.mxu0 0.0
        %3340 = vmatprep.subr.mxu0 0.0
        %3341 = vmatpush1.msra.mxu0 0.0
        %3342 = vmatprep.subr.mxu0 0.0
        %3343 = vmatpush1.msra.mxu0 0.0
        %3344 = vmatprep.subr.mxu0 0.0
        %3345 = vmatpush1.msra.mxu0 0.0
        %3346 = vmatprep.subr.mxu0 0.0
        %3347 = vmatpush1.msra.mxu0 0.0
        %3348 = vmatprep.subr.mxu0 0.0
        %3349 = vmatpush1.msra.mxu0 0.0
        %3350 = vmatprep.subr.mxu0 0.0
        %3351 = vmatpush1.msra.mxu0 0.0
        %3352 = vmatprep.subr.mxu0 0.0
        %3353 = vmatpush1.msra.mxu0 0.0
        %3354 = vmatprep.mubr.f32.mxu0 0.0
        %3355 = vmatmul.mubr.f32.gmra.mrb[0].mxu0 %v3288
        %v3356 = vpop.f32.mrb[0].mxu0
        %v3357 = vadd.f32 0.0, %v3356
        %v3358 = vpop.f32.mrb[0].mxu0
        %3359 = vdwg.mxu0
        %3360 = vrot.lane.b32.xlu0 %v3028, 112
        %v3361 = vpop.permute.xlu0 %3360
        %3362 = vrot.lane.b32.xlu0 %v3028, 80
        %v3363 = vpop.permute.xlu0 %3362
        %v3364 = vsel %vm966, %v3361, 0
        %v3366 = vsel %vm966, %v3363, 0
        %3368 = vmatprep.subr.mxu0 0.0
        %3369 = vmatpush1.xpose.msra.mxu0 %v3366
        %3370 = vmatprep.subr.mxu0 0.0
        %3371 = vmatpush1.xpose.msra.mxu0 0.0
        %3372 = vmatprep.subr.mxu0 0.0
        %3373 = vmatpush1.xpose.msra.mxu0 0.0
        %3374 = vmatprep.subr.mxu0 0.0
        %3375 = vmatpush1.xpose.msra.mxu0 0.0
        %3376 = vmatprep.subr.mxu0 0.0
        %3377 = vmatpush1.xpose.msra.mxu0 0.0
        %3378 = vmatprep.subr.mxu0 0.0
        %3379 = vmatpush1.xpose.msra.mxu0 0.0
        %3380 = vmatprep.subr.mxu0 0.0
        %3381 = vmatpush1.xpose.msra.mxu0 0.0
        %3382 = vmatprep.subr.mxu0 0.0
        %3383 = vmatpush1.xpose.msra.mxu0 0.0
        %3384 = vmatprep.subr.mxu0 0.0
        %3385 = vmatpush1.xpose.msra.mxu0 0.0
        %3386 = vmatprep.subr.mxu0 0.0
        %3387 = vmatpush1.xpose.msra.mxu0 0.0
        %3388 = vmatprep.subr.mxu0 0.0
        %3389 = vmatpush1.xpose.msra.mxu0 0.0
        %3390 = vmatprep.subr.mxu0 0.0
        %3391 = vmatpush1.xpose.msra.mxu0 0.0
        %3392 = vmatprep.subr.mxu0 0.0
        %3393 = vmatpush1.xpose.msra.mxu0 0.0
        %3394 = vmatprep.subr.mxu0 0.0
        %3395 = vmatpush1.xpose.msra.mxu0 0.0
        %3396 = vmatprep.subr.mxu0 0.0
        %3397 = vmatpush1.xpose.msra.mxu0 0.0
        %3398 = vmatprep.subr.mxu0 0.0
        %3399 = vmatpush1.xpose.msra.mxu0 0.0
        %3400 = vmatprep.subr.mxu0 0.0
        %3401 = vmatpush1.xpose.msra.mxu0 0.0
        %3402 = vmatprep.subr.mxu0 0.0
        %3403 = vmatpush1.xpose.msra.mxu0 0.0
        %3404 = vmatprep.subr.mxu0 0.0
        %3405 = vmatpush1.xpose.msra.mxu0 0.0
        %3406 = vmatprep.subr.mxu0 0.0
        %3407 = vmatpush1.xpose.msra.mxu0 0.0
        %3408 = vmatprep.subr.mxu0 0.0
        %3409 = vmatpush1.xpose.msra.mxu0 0.0
        %3410 = vmatprep.subr.mxu0 0.0
        %3411 = vmatpush1.xpose.msra.mxu0 0.0
        %3412 = vmatprep.subr.mxu0 0.0
        %3413 = vmatpush1.xpose.msra.mxu0 0.0
        %3414 = vmatprep.subr.mxu0 0.0
        %3415 = vmatpush1.xpose.msra.mxu0 0.0
        %3416 = vmatprep.subr.mxu0 0.0
        %3417 = vmatpush1.xpose.msra.mxu0 0.0
        %3418 = vmatprep.subr.mxu0 0.0
        %3419 = vmatpush1.xpose.msra.mxu0 0.0
        %3420 = vmatprep.subr.mxu0 0.0
        %3421 = vmatpush1.xpose.msra.mxu0 0.0
        %3422 = vmatprep.subr.mxu0 0.0
        %3423 = vmatpush1.xpose.msra.mxu0 0.0
        %3424 = vmatprep.subr.mxu0 0.0
        %3425 = vmatpush1.xpose.msra.mxu0 0.0
        %3426 = vmatprep.subr.mxu0 0.0
        %3427 = vmatpush1.xpose.msra.mxu0 0.0
        %3428 = vmatprep.subr.mxu0 0.0
        %3429 = vmatpush1.xpose.msra.mxu0 0.0
        %3430 = vmatprep.subr.mxu0 0.0
        %3431 = vmatpush1.xpose.msra.mxu0 0.0
        %3432 = vmatprep.mubr.f32.mxu0 0.0
        %3433 = vmatmul.mubr.f32.gmra.mrb[0].mxu0 %v3364
        %v3434 = vpop.f32.mrb[0].mxu0
        %v3435 = vadd.f32 %v862, %v3434
        %v3436 = vpop.f32.mrb[0].mxu0
        %3437 = vdwg.mxu0
        %v3438 = vsel %vm966, %v3435, -inf
        %3439 = vmax.xlane.f32.xlu0 %v3438
        %v3440 = vpop.xlane.xlu0 %3439
        %v3441 = vsub.f32 %v3435, %v3440
        %v3442 = vmul.f32 %v3441, 1.442695
        %v3443 = vpow.pop %v3442
        %v3444 = vsel %vm966, %v3443, 0.0
        %3445 = vadd.xlane.f32.xlu0 %v3444
        %v3446 = vpop.xlane.xlu0 %3445
        %v3447 = vrcp.pop %v3446
        %v3448 = vmul.f32 %v3443, %v3447
        %3449 = vrot.lane.b32.xlu0 %v3028, 48
        %v3450 = vpop.permute.xlu0 %3449
        %v3453 = vsel %vm966, %v3448, 0
        %3455 = vmatprep.subr.mxu0 0.0
        %3456 = vmatpush1.msra.mxu0 %v3450
        %3457 = vmatprep.subr.mxu0 0.0
        %3458 = vmatpush1.msra.mxu0 0.0
        %3459 = vmatprep.subr.mxu0 0.0
        %3460 = vmatpush1.msra.mxu0 0.0
        %3461 = vmatprep.subr.mxu0 0.0
        %3462 = vmatpush1.msra.mxu0 0.0
        %3463 = vmatprep.subr.mxu0 0.0
        %3464 = vmatpush1.msra.mxu0 0.0
        %3465 = vmatprep.subr.mxu0 0.0
        %3466 = vmatpush1.msra.mxu0 0.0
        %3467 = vmatprep.subr.mxu0 0.0
        %3468 = vmatpush1.msra.mxu0 0.0
        %3469 = vmatprep.subr.mxu0 0.0
        %3470 = vmatpush1.msra.mxu0 0.0
        %3471 = vmatprep.subr.mxu0 0.0
        %3472 = vmatpush1.msra.mxu0 0.0
        %3473 = vmatprep.subr.mxu0 0.0
        %3474 = vmatpush1.msra.mxu0 0.0
        %3475 = vmatprep.subr.mxu0 0.0
        %3476 = vmatpush1.msra.mxu0 0.0
        %3477 = vmatprep.subr.mxu0 0.0
        %3478 = vmatpush1.msra.mxu0 0.0
        %3479 = vmatprep.subr.mxu0 0.0
        %3480 = vmatpush1.msra.mxu0 0.0
        %3481 = vmatprep.subr.mxu0 0.0
        %3482 = vmatpush1.msra.mxu0 0.0
        %3483 = vmatprep.subr.mxu0 0.0
        %3484 = vmatpush1.msra.mxu0 0.0
        %3485 = vmatprep.subr.mxu0 0.0
        %3486 = vmatpush1.msra.mxu0 0.0
        %3487 = vmatprep.subr.mxu0 0.0
        %3488 = vmatpush1.msra.mxu0 0.0
        %3489 = vmatprep.subr.mxu0 0.0
        %3490 = vmatpush1.msra.mxu0 0.0
        %3491 = vmatprep.subr.mxu0 0.0
        %3492 = vmatpush1.msra.mxu0 0.0
        %3493 = vmatprep.subr.mxu0 0.0
        %3494 = vmatpush1.msra.mxu0 0.0
        %3495 = vmatprep.subr.mxu0 0.0
        %3496 = vmatpush1.msra.mxu0 0.0
        %3497 = vmatprep.subr.mxu0 0.0
        %3498 = vmatpush1.msra.mxu0 0.0
        %3499 = vmatprep.subr.mxu0 0.0
        %3500 = vmatpush1.msra.mxu0 0.0
        %3501 = vmatprep.subr.mxu0 0.0
        %3502 = vmatpush1.msra.mxu0 0.0
        %3503 = vmatprep.subr.mxu0 0.0
        %3504 = vmatpush1.msra.mxu0 0.0
        %3505 = vmatprep.subr.mxu0 0.0
        %3506 = vmatpush1.msra.mxu0 0.0
        %3507 = vmatprep.subr.mxu0 0.0
        %3508 = vmatpush1.msra.mxu0 0.0
        %3509 = vmatprep.subr.mxu0 0.0
        %3510 = vmatpush1.msra.mxu0 0.0
        %3511 = vmatprep.subr.mxu0 0.0
        %3512 = vmatpush1.msra.mxu0 0.0
        %3513 = vmatprep.subr.mxu0 0.0
        %3514 = vmatpush1.msra.mxu0 0.0
        %3515 = vmatprep.subr.mxu0 0.0
        %3516 = vmatpush1.msra.mxu0 0.0
        %3517 = vmatprep.subr.mxu0 0.0
        %3518 = vmatpush1.msra.mxu0 0.0
        %3519 = vmatprep.mubr.f32.mxu0 0.0
        %3520 = vmatmul.mubr.f32.gmra.mrb[0].mxu0 %v3453
        %v3521 = vpop.f32.mrb[0].mxu0
        %v3522 = vadd.f32 0.0, %v3521
        %v3523 = vpop.f32.mrb[0].mxu0
        %3524 = vdwg.mxu0
        %3525 = vrot.lane.b32.xlu0 %v3028, 104
        %v3526 = vpop.permute.xlu0 %3525
        %3527 = vrot.lane.b32.xlu0 %v3028, 72
        %v3528 = vpop.permute.xlu0 %3527
        %v3529 = vsel %vm966, %v3526, 0
        %v3531 = vsel %vm966, %v3528, 0
        %3533 = vmatprep.subr.mxu0 0.0
        %3534 = vmatpush1.xpose.msra.mxu0 %v3531
        %3535 = vmatprep.subr.mxu0 0.0
        %3536 = vmatpush1.xpose.msra.mxu0 0.0
        %3537 = vmatprep.subr.mxu0 0.0
        %3538 = vmatpush1.xpose.msra.mxu0 0.0
        %3539 = vmatprep.subr.mxu0 0.0
        %3540 = vmatpush1.xpose.msra.mxu0 0.0
        %3541 = vmatprep.subr.mxu0 0.0
        %3542 = vmatpush1.xpose.msra.mxu0 0.0
        %3543 = vmatprep.subr.mxu0 0.0
        %3544 = vmatpush1.xpose.msra.mxu0 0.0
        %3545 = vmatprep.subr.mxu0 0.0
        %3546 = vmatpush1.xpose.msra.mxu0 0.0
        %3547 = vmatprep.subr.mxu0 0.0
        %3548 = vmatpush1.xpose.msra.mxu0 0.0
        %3549 = vmatprep.subr.mxu0 0.0
        %3550 = vmatpush1.xpose.msra.mxu0 0.0
        %3551 = vmatprep.subr.mxu0 0.0
        %3552 = vmatpush1.xpose.msra.mxu0 0.0
        %3553 = vmatprep.subr.mxu0 0.0
        %3554 = vmatpush1.xpose.msra.mxu0 0.0
        %3555 = vmatprep.subr.mxu0 0.0
        %3556 = vmatpush1.xpose.msra.mxu0 0.0
        %3557 = vmatprep.subr.mxu0 0.0
        %3558 = vmatpush1.xpose.msra.mxu0 0.0
        %3559 = vmatprep.subr.mxu0 0.0
        %3560 = vmatpush1.xpose.msra.mxu0 0.0
        %3561 = vmatprep.subr.mxu0 0.0
        %3562 = vmatpush1.xpose.msra.mxu0 0.0
        %3563 = vmatprep.subr.mxu0 0.0
        %3564 = vmatpush1.xpose.msra.mxu0 0.0
        %3565 = vmatprep.subr.mxu0 0.0
        %3566 = vmatpush1.xpose.msra.mxu0 0.0
        %3567 = vmatprep.subr.mxu0 0.0
        %3568 = vmatpush1.xpose.msra.mxu0 0.0
        %3569 = vmatprep.subr.mxu0 0.0
        %3570 = vmatpush1.xpose.msra.mxu0 0.0
        %3571 = vmatprep.subr.mxu0 0.0
        %3572 = vmatpush1.xpose.msra.mxu0 0.0
        %3573 = vmatprep.subr.mxu0 0.0
        %3574 = vmatpush1.xpose.msra.mxu0 0.0
        %3575 = vmatprep.subr.mxu0 0.0
        %3576 = vmatpush1.xpose.msra.mxu0 0.0
        %3577 = vmatprep.subr.mxu0 0.0
        %3578 = vmatpush1.xpose.msra.mxu0 0.0
        %3579 = vmatprep.subr.mxu0 0.0
        %3580 = vmatpush1.xpose.msra.mxu0 0.0
        %3581 = vmatprep.subr.mxu0 0.0
        %3582 = vmatpush1.xpose.msra.mxu0 0.0
        %3583 = vmatprep.subr.mxu0 0.0
        %3584 = vmatpush1.xpose.msra.mxu0 0.0
        %3585 = vmatprep.subr.mxu0 0.0
        %3586 = vmatpush1.xpose.msra.mxu0 0.0
        %3587 = vmatprep.subr.mxu0 0.0
        %3588 = vmatpush1.xpose.msra.mxu0 0.0
        %3589 = vmatprep.subr.mxu0 0.0
        %3590 = vmatpush1.xpose.msra.mxu0 0.0
        %3591 = vmatprep.subr.mxu0 0.0
        %3592 = vmatpush1.xpose.msra.mxu0 0.0
        %3593 = vmatprep.subr.mxu0 0.0
        %3594 = vmatpush1.xpose.msra.mxu0 0.0
        %3595 = vmatprep.subr.mxu0 0.0
        %3596 = vmatpush1.xpose.msra.mxu0 0.0
        %3597 = vmatprep.mubr.f32.mxu0 0.0
        %3598 = vmatmul.mubr.f32.gmra.mrb[0].mxu0 %v3529
        %v3599 = vpop.f32.mrb[0].mxu0
        %v3600 = vadd.f32 %v863, %v3599
        %v3601 = vpop.f32.mrb[0].mxu0
        %3602 = vdwg.mxu0
        %v3603 = vsel %vm966, %v3600, -inf
        %3604 = vmax.xlane.f32.xlu0 %v3603
        %v3605 = vpop.xlane.xlu0 %3604
        %v3606 = vsub.f32 %v3600, %v3605
        %v3607 = vmul.f32 %v3606, 1.442695
        %v3608 = vpow.pop %v3607
        %v3609 = vsel %vm966, %v3608, 0.0
        %3610 = vadd.xlane.f32.xlu0 %v3609
        %v3611 = vpop.xlane.xlu0 %3610
        %v3612 = vrcp.pop %v3611
        %v3613 = vmul.f32 %v3608, %v3612
        %3614 = vrot.lane.b32.xlu0 %v3028, 40
        %v3615 = vpop.permute.xlu0 %3614
        %v3618 = vsel %vm966, %v3613, 0
        %3620 = vmatprep.subr.mxu0 0.0
        %3621 = vmatpush1.msra.mxu0 %v3615
        %3622 = vmatprep.subr.mxu0 0.0
        %3623 = vmatpush1.msra.mxu0 0.0
        %3624 = vmatprep.subr.mxu0 0.0
        %3625 = vmatpush1.msra.mxu0 0.0
        %3626 = vmatprep.subr.mxu0 0.0
        %3627 = vmatpush1.msra.mxu0 0.0
        %3628 = vmatprep.subr.mxu0 0.0
        %3629 = vmatpush1.msra.mxu0 0.0
        %3630 = vmatprep.subr.mxu0 0.0
        %3631 = vmatpush1.msra.mxu0 0.0
        %3632 = vmatprep.subr.mxu0 0.0
        %3633 = vmatpush1.msra.mxu0 0.0
        %3634 = vmatprep.subr.mxu0 0.0
        %3635 = vmatpush1.msra.mxu0 0.0
        %3636 = vmatprep.subr.mxu0 0.0
        %3637 = vmatpush1.msra.mxu0 0.0
        %3638 = vmatprep.subr.mxu0 0.0
        %3639 = vmatpush1.msra.mxu0 0.0
        %3640 = vmatprep.subr.mxu0 0.0
        %3641 = vmatpush1.msra.mxu0 0.0
        %3642 = vmatprep.subr.mxu0 0.0
        %3643 = vmatpush1.msra.mxu0 0.0
        %3644 = vmatprep.subr.mxu0 0.0
        %3645 = vmatpush1.msra.mxu0 0.0
        %3646 = vmatprep.subr.mxu0 0.0
        %3647 = vmatpush1.msra.mxu0 0.0
        %3648 = vmatprep.subr.mxu0 0.0
        %3649 = vmatpush1.msra.mxu0 0.0
        %3650 = vmatprep.subr.mxu0 0.0
        %3651 = vmatpush1.msra.mxu0 0.0
        %3652 = vmatprep.subr.mxu0 0.0
        %3653 = vmatpush1.msra.mxu0 0.0
        %3654 = vmatprep.subr.mxu0 0.0
        %3655 = vmatpush1.msra.mxu0 0.0
        %3656 = vmatprep.subr.mxu0 0.0
        %3657 = vmatpush1.msra.mxu0 0.0
        %3658 = vmatprep.subr.mxu0 0.0
        %3659 = vmatpush1.msra.mxu0 0.0
        %3660 = vmatprep.subr.mxu0 0.0
        %3661 = vmatpush1.msra.mxu0 0.0
        %3662 = vmatprep.subr.mxu0 0.0
        %3663 = vmatpush1.msra.mxu0 0.0
        %3664 = vmatprep.subr.mxu0 0.0
        %3665 = vmatpush1.msra.mxu0 0.0
        %3666 = vmatprep.subr.mxu0 0.0
        %3667 = vmatpush1.msra.mxu0 0.0
        %3668 = vmatprep.subr.mxu0 0.0
        %3669 = vmatpush1.msra.mxu0 0.0
        %3670 = vmatprep.subr.mxu0 0.0
        %3671 = vmatpush1.msra.mxu0 0.0
        %3672 = vmatprep.subr.mxu0 0.0
        %3673 = vmatpush1.msra.mxu0 0.0
        %3674 = vmatprep.subr.mxu0 0.0
        %3675 = vmatpush1.msra.mxu0 0.0
        %3676 = vmatprep.subr.mxu0 0.0
        %3677 = vmatpush1.msra.mxu0 0.0
        %3678 = vmatprep.subr.mxu0 0.0
        %3679 = vmatpush1.msra.mxu0 0.0
        %3680 = vmatprep.subr.mxu0 0.0
        %3681 = vmatpush1.msra.mxu0 0.0
        %3682 = vmatprep.subr.mxu0 0.0
        %3683 = vmatpush1.msra.mxu0 0.0
        %3684 = vmatprep.mubr.f32.mxu0 0.0
        %3685 = vmatmul.mubr.f32.gmra.mrb[0].mxu0 %v3618
        %v3686 = vpop.f32.mrb[0].mxu0
        %v3687 = vadd.f32 0.0, %v3686
        %v3688 = vpop.f32.mrb[0].mxu0
        %3689 = vdwg.mxu0
        %3691 = vrot.lane.b32.xlu0 %v3357, 8
        %v3692 = vpop.permute.xlu0 %3691
        %3695 = vrot.lane.b32.xlu0 %v3522, 16
        %v3696 = vpop.permute.xlu0 %3695
        %3699 = vrot.lane.b32.xlu0 %v3687, 24
        %v3700 = vpop.permute.xlu0 %3699
        %v3702 = vsel %vm966, %v3192, %v3692
        %v3703 = vsel %vm1636, %v3702, %v3696
        %v3704 = vsel %vm1638, %v3703, %v3700
        %v3706 = vsel %vm874, %v3704, 0
        %3708 = vmatprep.subr.mxu0 0.0
        %3709 = vmatpush1.msra.mxu0 %v2939
        %3710 = vmatprep.subr.mxu0 0.0
        %3711 = vmatpush1.msra.mxu0 %v2940
        %3712 = vmatprep.subr.mxu0 0.0
        %3713 = vmatpush1.msra.mxu0 %v2941
        %3714 = vmatprep.subr.mxu0 0.0
        %3715 = vmatpush1.msra.mxu0 %v2942
        %3716 = vmatprep.subr.mxu0 0.0
        %3717 = vmatpush1.msra.mxu0 0.0
        %3718 = vmatprep.subr.mxu0 0.0
        %3719 = vmatpush1.msra.mxu0 0.0
        %3720 = vmatprep.subr.mxu0 0.0
        %3721 = vmatpush1.msra.mxu0 0.0
        %3722 = vmatprep.subr.mxu0 0.0
        %3723 = vmatpush1.msra.mxu0 0.0
        %3724 = vmatprep.subr.mxu0 0.0
        %3725 = vmatpush1.msra.mxu0 0.0
        %3726 = vmatprep.subr.mxu0 0.0
        %3727 = vmatpush1.msra.mxu0 0.0
        %3728 = vmatprep.subr.mxu0 0.0
        %3729 = vmatpush1.msra.mxu0 0.0
        %3730 = vmatprep.subr.mxu0 0.0
        %3731 = vmatpush1.msra.mxu0 0.0
        %3732 = vmatprep.subr.mxu0 0.0
        %3733 = vmatpush1.msra.mxu0 0.0
        %3734 = vmatprep.subr.mxu0 0.0
        %3735 = vmatpush1.msra.mxu0 0.0
        %3736 = vmatprep.subr.mxu0 0.0
        %3737 = vmatpush1.msra.mxu0 0.0
        %3738 = vmatprep.subr.mxu0 0.0
        %3739 = vmatpush1.msra.mxu0 0.0
        %3740 = vmatprep.subr.mxu0 0.0
        %3741 = vmatpush1.msra.mxu0 0.0
        %3742 = vmatprep.subr.mxu0 0.0
        %3743 = vmatpush1.msra.mxu0 0.0
        %3744 = vmatprep.subr.mxu0 0.0
        %3745 = vmatpush1.msra.mxu0 0.0
        %3746 = vmatprep.subr.mxu0 0.0
        %3747 = vmatpush1.msra.mxu0 0.0
        %3748 = vmatprep.subr.mxu0 0.0
        %3749 = vmatpush1.msra.mxu0 0.0
        %3750 = vmatprep.subr.mxu0 0.0
        %3751 = vmatpush1.msra.mxu0 0.0
        %3752 = vmatprep.subr.mxu0 0.0
        %3753 = vmatpush1.msra.mxu0 0.0
        %3754 = vmatprep.subr.mxu0 0.0
        %3755 = vmatpush1.msra.mxu0 0.0
        %3756 = vmatprep.subr.mxu0 0.0
        %3757 = vmatpush1.msra.mxu0 0.0
        %3758 = vmatprep.subr.mxu0 0.0
        %3759 = vmatpush1.msra.mxu0 0.0
        %3760 = vmatprep.subr.mxu0 0.0
        %3761 = vmatpush1.msra.mxu0 0.0
        %3762 = vmatprep.subr.mxu0 0.0
        %3763 = vmatpush1.msra.mxu0 0.0
        %3764 = vmatprep.subr.mxu0 0.0
        %3765 = vmatpush1.msra.mxu0 0.0
        %3766 = vmatprep.subr.mxu0 0.0
        %3767 = vmatpush1.msra.mxu0 0.0
        %3768 = vmatprep.subr.mxu0 0.0
        %3769 = vmatpush1.msra.mxu0 0.0
        %3770 = vmatprep.subr.mxu0 0.0
        %3771 = vmatpush1.msra.mxu0 0.0
        %3772 = vmatprep.mubr.f32.mxu0 0.0
        %3773 = vmatmul.mubr.f32.gmra.mrb[0].mxu0 %v3706
        %v3774 = vpop.f32.mrb[0].mxu0
        %v3775 = vadd.f32 0.0, %v3774
        %v3776 = vpop.f32.mrb[0].mxu0
        %3777 = vdwg.mxu0
        %v3778 = vadd.f32 %v833, %v3775
        %v3779 = vld [vmem:[%s16] sm:$0x1]
        %v3780 = vld [vmem:[%s17] sm:$0xff]
        %v3781 = vld [vmem:[%s17 + $0x8] sm:$0xff]
        %v3782 = vld [vmem:[%s17 + $0x10] sm:$0xff]
        %v3783 = vld [vmem:[%s17 + $0x18] sm:$0xff]
        %v3784 = vld [vmem:[%s18] sm:$0xff]
        %v3785 = vld [vmem:[%s18 + $0x8] sm:$0xff]
        %v3786 = vld [vmem:[%s18 + $0x10] sm:$0xff]
        %v3787 = vld [vmem:[%s18 + $0x18] sm:$0xff]
        %v3788 = vld [vmem:[%s19] sm:$0xff]
        %v3789 = vld [vmem:[%s19 + $0x8] sm:$0xff]
        %v3790 = vld [vmem:[%s19 + $0x10] sm:$0xff]
        %v3791 = vld [vmem:[%s19 + $0x18] sm:$0xff]
        %v3792 = vmul.f32 %v3778, %v3778
        %v3793 = vsel %vm874, %v3792, 0.0
        %3794 = vadd.xlane.f32.xlu0 %v3793
        %v3795 = vpop.xlane.xlu0 %3794
        %v3796 = vmul.f32 %v3795, %v878
        %v3797 = vadd.f32 %v3796, 1e-06
        %v3798 = vrsqrt.pop %v3797
        %v3799 = vmul.f32 %v3778, %v3798
        %v3801 = vlaneseq
        %v3802 = vshrl.u32 %v3801, 7
        %v3803 = vsub.s32 0, %v3802
        %v3804 = vrot.slane %v3779, %v3803
        %v3806 = vmul.f32 %v3799, %v3804
        %v3808 = vsel %vm874, %v3806, 0
        %3810 = vmatprep.subr.mxu0 0.0
        %3811 = vmatpush1.msra.mxu0 %v3780
        %3812 = vmatprep.subr.mxu0 0.0
        %3813 = vmatpush1.msra.mxu0 %v3781
        %3814 = vmatprep.subr.mxu0 0.0
        %3815 = vmatpush1.msra.mxu0 %v3782
        %3816 = vmatprep.subr.mxu0 0.0
        %3817 = vmatpush1.msra.mxu0 %v3783
        %3818 = vmatprep.subr.mxu0 0.0
        %3819 = vmatpush1.msra.mxu0 0.0
        %3820 = vmatprep.subr.mxu0 0.0
        %3821 = vmatpush1.msra.mxu0 0.0
        %3822 = vmatprep.subr.mxu0 0.0
        %3823 = vmatpush1.msra.mxu0 0.0
        %3824 = vmatprep.subr.mxu0 0.0
        %3825 = vmatpush1.msra.mxu0 0.0
        %3826 = vmatprep.subr.mxu0 0.0
        %3827 = vmatpush1.msra.mxu0 0.0
        %3828 = vmatprep.subr.mxu0 0.0
        %3829 = vmatpush1.msra.mxu0 0.0
        %3830 = vmatprep.subr.mxu0 0.0
        %3831 = vmatpush1.msra.mxu0 0.0
        %3832 = vmatprep.subr.mxu0 0.0
        %3833 = vmatpush1.msra.mxu0 0.0
        %3834 = vmatprep.subr.mxu0 0.0
        %3835 = vmatpush1.msra.mxu0 0.0
        %3836 = vmatprep.subr.mxu0 0.0
        %3837 = vmatpush1.msra.mxu0 0.0
        %3838 = vmatprep.subr.mxu0 0.0
        %3839 = vmatpush1.msra.mxu0 0.0
        %3840 = vmatprep.subr.mxu0 0.0
        %3841 = vmatpush1.msra.mxu0 0.0
        %3842 = vmatprep.subr.mxu0 0.0
        %3843 = vmatpush1.msra.mxu0 0.0
        %3844 = vmatprep.subr.mxu0 0.0
        %3845 = vmatpush1.msra.mxu0 0.0
        %3846 = vmatprep.subr.mxu0 0.0
        %3847 = vmatpush1.msra.mxu0 0.0
        %3848 = vmatprep.subr.mxu0 0.0
        %3849 = vmatpush1.msra.mxu0 0.0
        %3850 = vmatprep.subr.mxu0 0.0
        %3851 = vmatpush1.msra.mxu0 0.0
        %3852 = vmatprep.subr.mxu0 0.0
        %3853 = vmatpush1.msra.mxu0 0.0
        %3854 = vmatprep.subr.mxu0 0.0
        %3855 = vmatpush1.msra.mxu0 0.0
        %3856 = vmatprep.subr.mxu0 0.0
        %3857 = vmatpush1.msra.mxu0 0.0
        %3858 = vmatprep.subr.mxu0 0.0
        %3859 = vmatpush1.msra.mxu0 0.0
        %3860 = vmatprep.subr.mxu0 0.0
        %3861 = vmatpush1.msra.mxu0 0.0
        %3862 = vmatprep.subr.mxu0 0.0
        %3863 = vmatpush1.msra.mxu0 0.0
        %3864 = vmatprep.subr.mxu0 0.0
        %3865 = vmatpush1.msra.mxu0 0.0
        %3866 = vmatprep.subr.mxu0 0.0
        %3867 = vmatpush1.msra.mxu0 0.0
        %3868 = vmatprep.subr.mxu0 0.0
        %3869 = vmatpush1.msra.mxu0 0.0
        %3870 = vmatprep.subr.mxu0 0.0
        %3871 = vmatpush1.msra.mxu0 0.0
        %3872 = vmatprep.subr.mxu0 0.0
        %3873 = vmatpush1.msra.mxu0 0.0
        %3874 = vmatprep.mubr.f32.mxu0 0.0
        %3875 = vmatmul.mubr.f32.gmra.mrb[0].mxu0 %v3808
        %v3876 = vpop.f32.mrb[0].mxu0
        %v3877 = vadd.f32 0.0, %v3876
        %v3878 = vpop.f32.mrb[0].mxu0
        %3879 = vdwg.mxu0
        %v3881 = vsel %vm874, %v2933, 0
        %3883 = vmatprep.subr.mxu0 0.0
        %3884 = vmatpush1.msra.mxu0 %v3784
        %3885 = vmatprep.subr.mxu0 0.0
        %3886 = vmatpush1.msra.mxu0 %v3785
        %3887 = vmatprep.subr.mxu0 0.0
        %3888 = vmatpush1.msra.mxu0 %v3786
        %3889 = vmatprep.subr.mxu0 0.0
        %3890 = vmatpush1.msra.mxu0 %v3787
        %3891 = vmatprep.subr.mxu0 0.0
        %3892 = vmatpush1.msra.mxu0 0.0
        %3893 = vmatprep.subr.mxu0 0.0
        %3894 = vmatpush1.msra.mxu0 0.0
        %3895 = vmatprep.subr.mxu0 0.0
        %3896 = vmatpush1.msra.mxu0 0.0
        %3897 = vmatprep.subr.mxu0 0.0
        %3898 = vmatpush1.msra.mxu0 0.0
        %3899 = vmatprep.subr.mxu0 0.0
        %3900 = vmatpush1.msra.mxu0 0.0
        %3901 = vmatprep.subr.mxu0 0.0
        %3902 = vmatpush1.msra.mxu0 0.0
        %3903 = vmatprep.subr.mxu0 0.0
        %3904 = vmatpush1.msra.mxu0 0.0
        %3905 = vmatprep.subr.mxu0 0.0
        %3906 = vmatpush1.msra.mxu0 0.0
        %3907 = vmatprep.subr.mxu0 0.0
        %3908 = vmatpush1.msra.mxu0 0.0
        %3909 = vmatprep.subr.mxu0 0.0
        %3910 = vmatpush1.msra.mxu0 0.0
        %3911 = vmatprep.subr.mxu0 0.0
        %3912 = vmatpush1.msra.mxu0 0.0
        %3913 = vmatprep.subr.mxu0 0.0
        %3914 = vmatpush1.msra.mxu0 0.0
        %3915 = vmatprep.subr.mxu0 0.0
        %3916 = vmatpush1.msra.mxu0 0.0
        %3917 = vmatprep.subr.mxu0 0.0
        %3918 = vmatpush1.msra.mxu0 0.0
        %3919 = vmatprep.subr.mxu0 0.0
        %3920 = vmatpush1.msra.mxu0 0.0
        %3921 = vmatprep.subr.mxu0 0.0
        %3922 = vmatpush1.msra.mxu0 0.0
        %3923 = vmatprep.subr.mxu0 0.0
        %3924 = vmatpush1.msra.mxu0 0.0
        %3925 = vmatprep.subr.mxu0 0.0
        %3926 = vmatpush1.msra.mxu0 0.0
        %3927 = vmatprep.subr.mxu0 0.0
        %3928 = vmatpush1.msra.mxu0 0.0
        %3929 = vmatprep.subr.mxu0 0.0
        %3930 = vmatpush1.msra.mxu0 0.0
        %3931 = vmatprep.subr.mxu0 0.0
        %3932 = vmatpush1.msra.mxu0 0.0
        %3933 = vmatprep.subr.mxu0 0.0
        %3934 = vmatpush1.msra.mxu0 0.0
        %3935 = vmatprep.subr.mxu0 0.0
        %3936 = vmatpush1.msra.mxu0 0.0
        %3937 = vmatprep.subr.mxu0 0.0
        %3938 = vmatpush1.msra.mxu0 0.0
        %3939 = vmatprep.subr.mxu0 0.0
        %3940 = vmatpush1.msra.mxu0 0.0
        %3941 = vmatprep.subr.mxu0 0.0
        %3942 = vmatpush1.msra.mxu0 0.0
        %3943 = vmatprep.subr.mxu0 0.0
        %3944 = vmatpush1.msra.mxu0 0.0
        %3945 = vmatprep.subr.mxu0 0.0
        %3946 = vmatpush1.msra.mxu0 0.0
        %3947 = vmatprep.mubr.f32.mxu0 0.0
        %3948 = vmatmul.mubr.f32.gmra.mrb[0].mxu0 %v3881
        %v3949 = vpop.f32.mrb[0].mxu0
        %v3950 = vadd.f32 0.0, %v3949
        %v3951 = vpop.f32.mrb[0].mxu0
        %3952 = vdwg.mxu0
        %v3954 = vsel %vm966, %v3877, 0
        %v3957 = vsel %vm966, %v3950, 0
        %3959 = vmatprep.subr.mxu0 0.0
        %3960 = vmatpush1.xpose.msra.mxu0 %v3957
        %3961 = vmatprep.subr.mxu0 0.0
        %3962 = vmatpush1.xpose.msra.mxu0 0.0
        %3963 = vmatprep.subr.mxu0 0.0
        %3964 = vmatpush1.xpose.msra.mxu0 0.0
        %3965 = vmatprep.subr.mxu0 0.0
        %3966 = vmatpush1.xpose.msra.mxu0 0.0
        %3967 = vmatprep.subr.mxu0 0.0
        %3968 = vmatpush1.xpose.msra.mxu0 0.0
        %3969 = vmatprep.subr.mxu0 0.0
        %3970 = vmatpush1.xpose.msra.mxu0 0.0
        %3971 = vmatprep.subr.mxu0 0.0
        %3972 = vmatpush1.xpose.msra.mxu0 0.0
        %3973 = vmatprep.subr.mxu0 0.0
        %3974 = vmatpush1.xpose.msra.mxu0 0.0
        %3975 = vmatprep.subr.mxu0 0.0
        %3976 = vmatpush1.xpose.msra.mxu0 0.0
        %3977 = vmatprep.subr.mxu0 0.0
        %3978 = vmatpush1.xpose.msra.mxu0 0.0
        %3979 = vmatprep.subr.mxu0 0.0
        %3980 = vmatpush1.xpose.msra.mxu0 0.0
        %3981 = vmatprep.subr.mxu0 0.0
        %3982 = vmatpush1.xpose.msra.mxu0 0.0
        %3983 = vmatprep.subr.mxu0 0.0
        %3984 = vmatpush1.xpose.msra.mxu0 0.0
        %3985 = vmatprep.subr.mxu0 0.0
        %3986 = vmatpush1.xpose.msra.mxu0 0.0
        %3987 = vmatprep.subr.mxu0 0.0
        %3988 = vmatpush1.xpose.msra.mxu0 0.0
        %3989 = vmatprep.subr.mxu0 0.0
        %3990 = vmatpush1.xpose.msra.mxu0 0.0
        %3991 = vmatprep.subr.mxu0 0.0
        %3992 = vmatpush1.xpose.msra.mxu0 0.0
        %3993 = vmatprep.subr.mxu0 0.0
        %3994 = vmatpush1.xpose.msra.mxu0 0.0
        %3995 = vmatprep.subr.mxu0 0.0
        %3996 = vmatpush1.xpose.msra.mxu0 0.0
        %3997 = vmatprep.subr.mxu0 0.0
        %3998 = vmatpush1.xpose.msra.mxu0 0.0
        %3999 = vmatprep.subr.mxu0 0.0
        %4000 = vmatpush1.xpose.msra.mxu0 0.0
        %4001 = vmatprep.subr.mxu0 0.0
        %4002 = vmatpush1.xpose.msra.mxu0 0.0
        %4003 = vmatprep.subr.mxu0 0.0
        %4004 = vmatpush1.xpose.msra.mxu0 0.0
        %4005 = vmatprep.subr.mxu0 0.0
        %4006 = vmatpush1.xpose.msra.mxu0 0.0
        %4007 = vmatprep.subr.mxu0 0.0
        %4008 = vmatpush1.xpose.msra.mxu0 0.0
        %4009 = vmatprep.subr.mxu0 0.0
        %4010 = vmatpush1.xpose.msra.mxu0 0.0
        %4011 = vmatprep.subr.mxu0 0.0
        %4012 = vmatpush1.xpose.msra.mxu0 0.0
        %4013 = vmatprep.subr.mxu0 0.0
        %4014 = vmatpush1.xpose.msra.mxu0 0.0
        %4015 = vmatprep.subr.mxu0 0.0
        %4016 = vmatpush1.xpose.msra.mxu0 0.0
        %4017 = vmatprep.subr.mxu0 0.0
        %4018 = vmatpush1.xpose.msra.mxu0 0.0
        %4019 = vmatprep.subr.mxu0 0.0
        %4020 = vmatpush1.xpose.msra.mxu0 0.0
        %4021 = vmatprep.subr.mxu0 0.0
        %4022 = vmatpush1.xpose.msra.mxu0 0.0
        %4023 = vmatprep.mubr.f32.mxu0 0.0
        %4024 = vmatmul.mubr.f32.gmra.mrb[0].mxu0 %v3954
        %v4025 = vpop.f32.mrb[0].mxu0
        %v4026 = vadd.f32 %v844, %v4025
        %v4027 = vpop.f32.mrb[0].mxu0
        %4028 = vdwg.mxu0
        %v4029 = vsel %vm966, %v4026, -inf
        %4030 = vmax.xlane.f32.xlu0 %v4029
        %v4031 = vpop.xlane.xlu0 %4030
        %v4032 = vsub.f32 %v4026, %v4031
        %v4033 = vmul.f32 %v4032, 1.442695
        %v4034 = vpow.pop %v4033
        %v4035 = vsel %vm966, %v4034, 0.0
        %4036 = vadd.xlane.f32.xlu0 %v4035
        %v4037 = vpop.xlane.xlu0 %4036
        %v4038 = vrcp.pop %v4037
        %v4039 = vmul.f32 %v4034, %v4038
        %4040 = vrot.lane.b32.xlu0 %v3950, 96
        %v4041 = vpop.permute.xlu0 %4040
        %v4044 = vsel %vm966, %v4039, 0
        %4046 = vmatprep.subr.mxu0 0.0
        %4047 = vmatpush1.msra.mxu0 %v4041
        %4048 = vmatprep.subr.mxu0 0.0
        %4049 = vmatpush1.msra.mxu0 0.0
        %4050 = vmatprep.subr.mxu0 0.0
        %4051 = vmatpush1.msra.mxu0 0.0
        %4052 = vmatprep.subr.mxu0 0.0
        %4053 = vmatpush1.msra.mxu0 0.0
        %4054 = vmatprep.subr.mxu0 0.0
        %4055 = vmatpush1.msra.mxu0 0.0
        %4056 = vmatprep.subr.mxu0 0.0
        %4057 = vmatpush1.msra.mxu0 0.0
        %4058 = vmatprep.subr.mxu0 0.0
        %4059 = vmatpush1.msra.mxu0 0.0
        %4060 = vmatprep.subr.mxu0 0.0
        %4061 = vmatpush1.msra.mxu0 0.0
        %4062 = vmatprep.subr.mxu0 0.0
        %4063 = vmatpush1.msra.mxu0 0.0
        %4064 = vmatprep.subr.mxu0 0.0
        %4065 = vmatpush1.msra.mxu0 0.0
        %4066 = vmatprep.subr.mxu0 0.0
        %4067 = vmatpush1.msra.mxu0 0.0
        %4068 = vmatprep.subr.mxu0 0.0
        %4069 = vmatpush1.msra.mxu0 0.0
        %4070 = vmatprep.subr.mxu0 0.0
        %4071 = vmatpush1.msra.mxu0 0.0
        %4072 = vmatprep.subr.mxu0 0.0
        %4073 = vmatpush1.msra.mxu0 0.0
        %4074 = vmatprep.subr.mxu0 0.0
        %4075 = vmatpush1.msra.mxu0 0.0
        %4076 = vmatprep.subr.mxu0 0.0
        %4077 = vmatpush1.msra.mxu0 0.0
        %4078 = vmatprep.subr.mxu0 0.0
        %4079 = vmatpush1.msra.mxu0 0.0
        %4080 = vmatprep.subr.mxu0 0.0
        %4081 = vmatpush1.msra.mxu0 0.0
        %4082 = vmatprep.subr.mxu0 0.0
        %4083 = vmatpush1.msra.mxu0 0.0
        %4084 = vmatprep.subr.mxu0 0.0
        %4085 = vmatpush1.msra.mxu0 0.0
        %4086 = vmatprep.subr.mxu0 0.0
        %4087 = vmatpush1.msra.mxu0 0.0
        %4088 = vmatprep.subr.mxu0 0.0
        %4089 = vmatpush1.msra.mxu0 0.0
        %4090 = vmatprep.subr.mxu0 0.0
        %4091 = vmatpush1.msra.mxu0 0.0
        %4092 = vmatprep.subr.mxu0 0.0
        %4093 = vmatpush1.msra.mxu0 0.0
        %4094 = vmatprep.subr.mxu0 0.0
        %4095 = vmatpush1.msra.mxu0 0.0
        %4096 = vmatprep.subr.mxu0 0.0
        %4097 = vmatpush1.msra.mxu0 0.0
        %4098 = vmatprep.subr.mxu0 0.0
        %4099 = vmatpush1.msra.mxu0 0.0
        %4100 = vmatprep.subr.mxu0 0.0
        %4101 = vmatpush1.msra.mxu0 0.0
        %4102 = vmatprep.subr.mxu0 0.0
        %4103 = vmatpush1.msra.mxu0 0.0
        %4104 = vmatprep.subr.mxu0 0.0
        %4105 = vmatpush1.msra.mxu0 0.0
        %4106 = vmatprep.subr.mxu0 0.0
        %4107 = vmatpush1.msra.mxu0 0.0
        %4108 = vmatprep.subr.mxu0 0.0
        %4109 = vmatpush1.msra.mxu0 0.0
        %4110 = vmatprep.mubr.f32.mxu0 0.0
        %4111 = vmatmul.mubr.f32.gmra.mrb[0].mxu0 %v4044
        %v4112 = vpop.f32.mrb[0].mxu0
        %v4113 = vadd.f32 0.0, %v4112
        %v4114 = vpop.f32.mrb[0].mxu0
        %4115 = vdwg.mxu0
        %4116 = vrot.lane.b32.xlu0 %v3877, 120
        %v4117 = vpop.permute.xlu0 %4116
        %4118 = vrot.lane.b32.xlu0 %v3950, 120
        %v4119 = vpop.permute.xlu0 %4118
        %v4120 = vsel %vm966, %v4117, 0
        %v4122 = vsel %vm966, %v4119, 0
        %4124 = vmatprep.subr.mxu0 0.0
        %4125 = vmatpush1.xpose.msra.mxu0 %v4122
        %4126 = vmatprep.subr.mxu0 0.0
        %4127 = vmatpush1.xpose.msra.mxu0 0.0
        %4128 = vmatprep.subr.mxu0 0.0
        %4129 = vmatpush1.xpose.msra.mxu0 0.0
        %4130 = vmatprep.subr.mxu0 0.0
        %4131 = vmatpush1.xpose.msra.mxu0 0.0
        %4132 = vmatprep.subr.mxu0 0.0
        %4133 = vmatpush1.xpose.msra.mxu0 0.0
        %4134 = vmatprep.subr.mxu0 0.0
        %4135 = vmatpush1.xpose.msra.mxu0 0.0
        %4136 = vmatprep.subr.mxu0 0.0
        %4137 = vmatpush1.xpose.msra.mxu0 0.0
        %4138 = vmatprep.subr.mxu0 0.0
        %4139 = vmatpush1.xpose.msra.mxu0 0.0
        %4140 = vmatprep.subr.mxu0 0.0
        %4141 = vmatpush1.xpose.msra.mxu0 0.0
        %4142 = vmatprep.subr.mxu0 0.0
        %4143 = vmatpush1.xpose.msra.mxu0 0.0
        %4144 = vmatprep.subr.mxu0 0.0
        %4145 = vmatpush1.xpose.msra.mxu0 0.0
        %4146 = vmatprep.subr.mxu0 0.0
        %4147 = vmatpush1.xpose.msra.mxu0 0.0
        %4148 = vmatprep.subr.mxu0 0.0
        %4149 = vmatpush1.xpose.msra.mxu0 0.0
        %4150 = vmatprep.subr.mxu0 0.0
        %4151 = vmatpush1.xpose.msra.mxu0 0.0
        %4152 = vmatprep.subr.mxu0 0.0
        %4153 = vmatpush1.xpose.msra.mxu0 0.0
        %4154 = vmatprep.subr.mxu0 0.0
        %4155 = vmatpush1.xpose.msra.mxu0 0.0
        %4156 = vmatprep.subr.mxu0 0.0
        %4157 = vmatpush1.xpose.msra.mxu0 0.0
        %4158 = vmatprep.subr.mxu0 0.0
        %4159 = vmatpush1.xpose.msra.mxu0 0.0
        %4160 = vmatprep.subr.mxu0 0.0
        %4161 = vmatpush1.xpose.msra.mxu0 0.0
        %4162 = vmatprep.subr.mxu0 0.0
        %4163 = vmatpush1.xpose.msra.mxu0 0.0
        %4164 = vmatprep.subr.mxu0 0.0
        %4165 = vmatpush1.xpose.msra.mxu0 0.0
        %4166 = vmatprep.subr.mxu0 0.0
        %4167 = vmatpush1.xpose.msra.mxu0 0.0
        %4168 = vmatprep.subr.mxu0 0.0
        %4169 = vmatpush1.xpose.msra.mxu0 0.0
        %4170 = vmatprep.subr.mxu0 0.0
        %4171 = vmatpush1.xpose.msra.mxu0 0.0
        %4172 = vmatprep.subr.mxu0 0.0
        %4173 = vmatpush1.xpose.msra.mxu0 0.0
        %4174 = vmatprep.subr.mxu0 0.0
        %4175 = vmatpush1.xpose.msra.mxu0 0.0
        %4176 = vmatprep.subr.mxu0 0.0
        %4177 = vmatpush1.xpose.msra.mxu0 0.0
        %4178 = vmatprep.subr.mxu0 0.0
        %4179 = vmatpush1.xpose.msra.mxu0 0.0
        %4180 = vmatprep.subr.mxu0 0.0
        %4181 = vmatpush1.xpose.msra.mxu0 0.0
        %4182 = vmatprep.subr.mxu0 0.0
        %4183 = vmatpush1.xpose.msra.mxu0 0.0
        %4184 = vmatprep.subr.mxu0 0.0
        %4185 = vmatpush1.xpose.msra.mxu0 0.0
        %4186 = vmatprep.subr.mxu0 0.0
        %4187 = vmatpush1.xpose.msra.mxu0 0.0
        %4188 = vmatprep.mubr.f32.mxu0 0.0
        %4189 = vmatmul.mubr.f32.gmra.mrb[0].mxu0 %v4120
        %v4190 = vpop.f32.mrb[0].mxu0
        %v4191 = vadd.f32 %v844, %v4190
        %v4192 = vpop.f32.mrb[0].mxu0
        %4193 = vdwg.mxu0
        %v4194 = vsel %vm966, %v4191, -inf
        %4195 = vmax.xlane.f32.xlu0 %v4194
        %v4196 = vpop.xlane.xlu0 %4195
        %v4197 = vsub.f32 %v4191, %v4196
        %v4198 = vmul.f32 %v4197, 1.442695
        %v4199 = vpow.pop %v4198
        %v4200 = vsel %vm966, %v4199, 0.0
        %4201 = vadd.xlane.f32.xlu0 %v4200
        %v4202 = vpop.xlane.xlu0 %4201
        %v4203 = vrcp.pop %v4202
        %v4204 = vmul.f32 %v4199, %v4203
        %4205 = vrot.lane.b32.xlu0 %v3950, 88
        %v4206 = vpop.permute.xlu0 %4205
        %v4209 = vsel %vm966, %v4204, 0
        %4211 = vmatprep.subr.mxu0 0.0
        %4212 = vmatpush1.msra.mxu0 %v4206
        %4213 = vmatprep.subr.mxu0 0.0
        %4214 = vmatpush1.msra.mxu0 0.0
        %4215 = vmatprep.subr.mxu0 0.0
        %4216 = vmatpush1.msra.mxu0 0.0
        %4217 = vmatprep.subr.mxu0 0.0
        %4218 = vmatpush1.msra.mxu0 0.0
        %4219 = vmatprep.subr.mxu0 0.0
        %4220 = vmatpush1.msra.mxu0 0.0
        %4221 = vmatprep.subr.mxu0 0.0
        %4222 = vmatpush1.msra.mxu0 0.0
        %4223 = vmatprep.subr.mxu0 0.0
        %4224 = vmatpush1.msra.mxu0 0.0
        %4225 = vmatprep.subr.mxu0 0.0
        %4226 = vmatpush1.msra.mxu0 0.0
        %4227 = vmatprep.subr.mxu0 0.0
        %4228 = vmatpush1.msra.mxu0 0.0
        %4229 = vmatprep.subr.mxu0 0.0
        %4230 = vmatpush1.msra.mxu0 0.0
        %4231 = vmatprep.subr.mxu0 0.0
        %4232 = vmatpush1.msra.mxu0 0.0
        %4233 = vmatprep.subr.mxu0 0.0
        %4234 = vmatpush1.msra.mxu0 0.0
        %4235 = vmatprep.subr.mxu0 0.0
        %4236 = vmatpush1.msra.mxu0 0.0
        %4237 = vmatprep.subr.mxu0 0.0
        %4238 = vmatpush1.msra.mxu0 0.0
        %4239 = vmatprep.subr.mxu0 0.0
        %4240 = vmatpush1.msra.mxu0 0.0
        %4241 = vmatprep.subr.mxu0 0.0
        %4242 = vmatpush1.msra.mxu0 0.0
        %4243 = vmatprep.subr.mxu0 0.0
        %4244 = vmatpush1.msra.mxu0 0.0
        %4245 = vmatprep.subr.mxu0 0.0
        %4246 = vmatpush1.msra.mxu0 0.0
        %4247 = vmatprep.subr.mxu0 0.0
        %4248 = vmatpush1.msra.mxu0 0.0
        %4249 = vmatprep.subr.mxu0 0.0
        %4250 = vmatpush1.msra.mxu0 0.0
        %4251 = vmatprep.subr.mxu0 0.0
        %4252 = vmatpush1.msra.mxu0 0.0
        %4253 = vmatprep.subr.mxu0 0.0
        %4254 = vmatpush1.msra.mxu0 0.0
        %4255 = vmatprep.subr.mxu0 0.0
        %4256 = vmatpush1.msra.mxu0 0.0
        %4257 = vmatprep.subr.mxu0 0.0
        %4258 = vmatpush1.msra.mxu0 0.0
        %4259 = vmatprep.subr.mxu0 0.0
        %4260 = vmatpush1.msra.mxu0 0.0
        %4261 = vmatprep.subr.mxu0 0.0
        %4262 = vmatpush1.msra.mxu0 0.0
        %4263 = vmatprep.subr.mxu0 0.0
        %4264 = vmatpush1.msra.mxu0 0.0
        %4265 = vmatprep.subr.mxu0 0.0
        %4266 = vmatpush1.msra.mxu0 0.0
        %4267 = vmatprep.subr.mxu0 0.0
        %4268 = vmatpush1.msra.mxu0 0.0
        %4269 = vmatprep.subr.mxu0 0.0
        %4270 = vmatpush1.msra.mxu0 0.0
        %4271 = vmatprep.subr.mxu0 0.0
        %4272 = vmatpush1.msra.mxu0 0.0
        %4273 = vmatprep.subr.mxu0 0.0
        %4274 = vmatpush1.msra.mxu0 0.0
        %4275 = vmatprep.mubr.f32.mxu0 0.0
        %4276 = vmatmul.mubr.f32.gmra.mrb[0].mxu0 %v4209
        %v4277 = vpop.f32.mrb[0].mxu0
        %v4278 = vadd.f32 0.0, %v4277
        %v4279 = vpop.f32.mrb[0].mxu0
        %4280 = vdwg.mxu0
        %4281 = vrot.lane.b32.xlu0 %v3877, 112
        %v4282 = vpop.permute.xlu0 %4281
        %4283 = vrot.lane.b32.xlu0 %v3950, 112
        %v4284 = vpop.permute.xlu0 %4283
        %v4285 = vsel %vm966, %v4282, 0
        %v4287 = vsel %vm966, %v4284, 0
        %4289 = vmatprep.subr.mxu0 0.0
        %4290 = vmatpush1.xpose.msra.mxu0 %v4287
        %4291 = vmatprep.subr.mxu0 0.0
        %4292 = vmatpush1.xpose.msra.mxu0 0.0
        %4293 = vmatprep.subr.mxu0 0.0
        %4294 = vmatpush1.xpose.msra.mxu0 0.0
        %4295 = vmatprep.subr.mxu0 0.0
        %4296 = vmatpush1.xpose.msra.mxu0 0.0
        %4297 = vmatprep.subr.mxu0 0.0
        %4298 = vmatpush1.xpose.msra.mxu0 0.0
        %4299 = vmatprep.subr.mxu0 0.0
        %4300 = vmatpush1.xpose.msra.mxu0 0.0
        %4301 = vmatprep.subr.mxu0 0.0
        %4302 = vmatpush1.xpose.msra.mxu0 0.0
        %4303 = vmatprep.subr.mxu0 0.0
        %4304 = vmatpush1.xpose.msra.mxu0 0.0
        %4305 = vmatprep.subr.mxu0 0.0
        %4306 = vmatpush1.xpose.msra.mxu0 0.0
        %4307 = vmatprep.subr.mxu0 0.0
        %4308 = vmatpush1.xpose.msra.mxu0 0.0
        %4309 = vmatprep.subr.mxu0 0.0
        %4310 = vmatpush1.xpose.msra.mxu0 0.0
        %4311 = vmatprep.subr.mxu0 0.0
        %4312 = vmatpush1.xpose.msra.mxu0 0.0
        %4313 = vmatprep.subr.mxu0 0.0
        %4314 = vmatpush1.xpose.msra.mxu0 0.0
        %4315 = vmatprep.subr.mxu0 0.0
        %4316 = vmatpush1.xpose.msra.mxu0 0.0
        %4317 = vmatprep.subr.mxu0 0.0
        %4318 = vmatpush1.xpose.msra.mxu0 0.0
        %4319 = vmatprep.subr.mxu0 0.0
        %4320 = vmatpush1.xpose.msra.mxu0 0.0
        %4321 = vmatprep.subr.mxu0 0.0
        %4322 = vmatpush1.xpose.msra.mxu0 0.0
        %4323 = vmatprep.subr.mxu0 0.0
        %4324 = vmatpush1.xpose.msra.mxu0 0.0
        %4325 = vmatprep.subr.mxu0 0.0
        %4326 = vmatpush1.xpose.msra.mxu0 0.0
        %4327 = vmatprep.subr.mxu0 0.0
        %4328 = vmatpush1.xpose.msra.mxu0 0.0
        %4329 = vmatprep.subr.mxu0 0.0
        %4330 = vmatpush1.xpose.msra.mxu0 0.0
        %4331 = vmatprep.subr.mxu0 0.0
        %4332 = vmatpush1.xpose.msra.mxu0 0.0
        %4333 = vmatprep.subr.mxu0 0.0
        %4334 = vmatpush1.xpose.msra.mxu0 0.0
        %4335 = vmatprep.subr.mxu0 0.0
        %4336 = vmatpush1.xpose.msra.mxu0 0.0
        %4337 = vmatprep.subr.mxu0 0.0
        %4338 = vmatpush1.xpose.msra.mxu0 0.0
        %4339 = vmatprep.subr.mxu0 0.0
        %4340 = vmatpush1.xpose.msra.mxu0 0.0
        %4341 = vmatprep.subr.mxu0 0.0
        %4342 = vmatpush1.xpose.msra.mxu0 0.0
        %4343 = vmatprep.subr.mxu0 0.0
        %4344 = vmatpush1.xpose.msra.mxu0 0.0
        %4345 = vmatprep.subr.mxu0 0.0
        %4346 = vmatpush1.xpose.msra.mxu0 0.0
        %4347 = vmatprep.subr.mxu0 0.0
        %4348 = vmatpush1.xpose.msra.mxu0 0.0
        %4349 = vmatprep.subr.mxu0 0.0
        %4350 = vmatpush1.xpose.msra.mxu0 0.0
        %4351 = vmatprep.subr.mxu0 0.0
        %4352 = vmatpush1.xpose.msra.mxu0 0.0
        %4353 = vmatprep.mubr.f32.mxu0 0.0
        %4354 = vmatmul.mubr.f32.gmra.mrb[0].mxu0 %v4285
        %v4355 = vpop.f32.mrb[0].mxu0
        %v4356 = vadd.f32 %v844, %v4355
        %v4357 = vpop.f32.mrb[0].mxu0
        %4358 = vdwg.mxu0
        %v4359 = vsel %vm966, %v4356, -inf
        %4360 = vmax.xlane.f32.xlu0 %v4359
        %v4361 = vpop.xlane.xlu0 %4360
        %v4362 = vsub.f32 %v4356, %v4361
        %v4363 = vmul.f32 %v4362, 1.442695
        %v4364 = vpow.pop %v4363
        %v4365 = vsel %vm966, %v4364, 0.0
        %4366 = vadd.xlane.f32.xlu0 %v4365
        %v4367 = vpop.xlane.xlu0 %4366
        %v4368 = vrcp.pop %v4367
        %v4369 = vmul.f32 %v4364, %v4368
        %4370 = vrot.lane.b32.xlu0 %v3950, 80
        %v4371 = vpop.permute.xlu0 %4370
        %v4374 = vsel %vm966, %v4369, 0
        %4376 = vmatprep.subr.mxu0 0.0
        %4377 = vmatpush1.msra.mxu0 %v4371
        %4378 = vmatprep.subr.mxu0 0.0
        %4379 = vmatpush1.msra.mxu0 0.0
        %4380 = vmatprep.subr.mxu0 0.0
        %4381 = vmatpush1.msra.mxu0 0.0
        %4382 = vmatprep.subr.mxu0 0.0
        %4383 = vmatpush1.msra.mxu0 0.0
        %4384 = vmatprep.subr.mxu0 0.0
        %4385 = vmatpush1.msra.mxu0 0.0
        %4386 = vmatprep.subr.mxu0 0.0
        %4387 = vmatpush1.msra.mxu0 0.0
        %4388 = vmatprep.subr.mxu0 0.0
        %4389 = vmatpush1.msra.mxu0 0.0
        %4390 = vmatprep.subr.mxu0 0.0
        %4391 = vmatpush1.msra.mxu0 0.0
        %4392 = vmatprep.subr.mxu0 0.0
        %4393 = vmatpush1.msra.mxu0 0.0
        %4394 = vmatprep.subr.mxu0 0.0
        %4395 = vmatpush1.msra.mxu0 0.0
        %4396 = vmatprep.subr.mxu0 0.0
        %4397 = vmatpush1.msra.mxu0 0.0
        %4398 = vmatprep.subr.mxu0 0.0
        %4399 = vmatpush1.msra.mxu0 0.0
        %4400 = vmatprep.subr.mxu0 0.0
        %4401 = vmatpush1.msra.mxu0 0.0
        %4402 = vmatprep.subr.mxu0 0.0
        %4403 = vmatpush1.msra.mxu0 0.0
        %4404 = vmatprep.subr.mxu0 0.0
        %4405 = vmatpush1.msra.mxu0 0.0
        %4406 = vmatprep.subr.mxu0 0.0
        %4407 = vmatpush1.msra.mxu0 0.0
        %4408 = vmatprep.subr.mxu0 0.0
        %4409 = vmatpush1.msra.mxu0 0.0
        %4410 = vmatprep.subr.mxu0 0.0
        %4411 = vmatpush1.msra.mxu0 0.0
        %4412 = vmatprep.subr.mxu0 0.0
        %4413 = vmatpush1.msra.mxu0 0.0
        %4414 = vmatprep.subr.mxu0 0.0
        %4415 = vmatpush1.msra.mxu0 0.0
        %4416 = vmatprep.subr.mxu0 0.0
        %4417 = vmatpush1.msra.mxu0 0.0
        %4418 = vmatprep.subr.mxu0 0.0
        %4419 = vmatpush1.msra.mxu0 0.0
        %4420 = vmatprep.subr.mxu0 0.0
        %4421 = vmatpush1.msra.mxu0 0.0
        %4422 = vmatprep.subr.mxu0 0.0
        %4423 = vmatpush1.msra.mxu0 0.0
        %4424 = vmatprep.subr.mxu0 0.0
        %4425 = vmatpush1.msra.mxu0 0.0
        %4426 = vmatprep.subr.mxu0 0.0
        %4427 = vmatpush1.msra.mxu0 0.0
        %4428 = vmatprep.subr.mxu0 0.0
        %4429 = vmatpush1.msra.mxu0 0.0
        %4430 = vmatprep.subr.mxu0 0.0
        %4431 = vmatpush1.msra.mxu0 0.0
        %4432 = vmatprep.subr.mxu0 0.0
        %4433 = vmatpush1.msra.mxu0 0.0
        %4434 = vmatprep.subr.mxu0 0.0
        %4435 = vmatpush1.msra.mxu0 0.0
        %4436 = vmatprep.subr.mxu0 0.0
        %4437 = vmatpush1.msra.mxu0 0.0
        %4438 = vmatprep.subr.mxu0 0.0
        %4439 = vmatpush1.msra.mxu0 0.0
        %4440 = vmatprep.mubr.f32.mxu0 0.0
        %4441 = vmatmul.mubr.f32.gmra.mrb[0].mxu0 %v4374
        %v4442 = vpop.f32.mrb[0].mxu0
        %v4443 = vadd.f32 0.0, %v4442
        %v4444 = vpop.f32.mrb[0].mxu0
        %4445 = vdwg.mxu0
        %4446 = vrot.lane.b32.xlu0 %v3877, 104
        %v4447 = vpop.permute.xlu0 %4446
        %4448 = vrot.lane.b32.xlu0 %v3950, 104
        %v4449 = vpop.permute.xlu0 %4448
        %v4450 = vsel %vm966, %v4447, 0
        %v4452 = vsel %vm966, %v4449, 0
        %4454 = vmatprep.subr.mxu0 0.0
        %4455 = vmatpush1.xpose.msra.mxu0 %v4452
        %4456 = vmatprep.subr.mxu0 0.0
        %4457 = vmatpush1.xpose.msra.mxu0 0.0
        %4458 = vmatprep.subr.mxu0 0.0
        %4459 = vmatpush1.xpose.msra.mxu0 0.0
        %4460 = vmatprep.subr.mxu0 0.0
        %4461 = vmatpush1.xpose.msra.mxu0 0.0
        %4462 = vmatprep.subr.mxu0 0.0
        %4463 = vmatpush1.xpose.msra.mxu0 0.0
        %4464 = vmatprep.subr.mxu0 0.0
        %4465 = vmatpush1.xpose.msra.mxu0 0.0
        %4466 = vmatprep.subr.mxu0 0.0
        %4467 = vmatpush1.xpose.msra.mxu0 0.0
        %4468 = vmatprep.subr.mxu0 0.0
        %4469 = vmatpush1.xpose.msra.mxu0 0.0
        %4470 = vmatprep.subr.mxu0 0.0
        %4471 = vmatpush1.xpose.msra.mxu0 0.0
        %4472 = vmatprep.subr.mxu0 0.0
        %4473 = vmatpush1.xpose.msra.mxu0 0.0
        %4474 = vmatprep.subr.mxu0 0.0
        %4475 = vmatpush1.xpose.msra.mxu0 0.0
        %4476 = vmatprep.subr.mxu0 0.0
        %4477 = vmatpush1.xpose.msra.mxu0 0.0
        %4478 = vmatprep.subr.mxu0 0.0
        %4479 = vmatpush1.xpose.msra.mxu0 0.0
        %4480 = vmatprep.subr.mxu0 0.0
        %4481 = vmatpush1.xpose.msra.mxu0 0.0
        %4482 = vmatprep.subr.mxu0 0.0
        %4483 = vmatpush1.xpose.msra.mxu0 0.0
        %4484 = vmatprep.subr.mxu0 0.0
        %4485 = vmatpush1.xpose.msra.mxu0 0.0
        %4486 = vmatprep.subr.mxu0 0.0
        %4487 = vmatpush1.xpose.msra.mxu0 0.0
        %4488 = vmatprep.subr.mxu0 0.0
        %4489 = vmatpush1.xpose.msra.mxu0 0.0
        %4490 = vmatprep.subr.mxu0 0.0
        %4491 = vmatpush1.xpose.msra.mxu0 0.0
        %4492 = vmatprep.subr.mxu0 0.0
        %4493 = vmatpush1.xpose.msra.mxu0 0.0
        %4494 = vmatprep.subr.mxu0 0.0
        %4495 = vmatpush1.xpose.msra.mxu0 0.0
        %4496 = vmatprep.subr.mxu0 0.0
        %4497 = vmatpush1.xpose.msra.mxu0 0.0
        %4498 = vmatprep.subr.mxu0 0.0
        %4499 = vmatpush1.xpose.msra.mxu0 0.0
        %4500 = vmatprep.subr.mxu0 0.0
        %4501 = vmatpush1.xpose.msra.mxu0 0.0
        %4502 = vmatprep.subr.mxu0 0.0
        %4503 = vmatpush1.xpose.msra.mxu0 0.0
        %4504 = vmatprep.subr.mxu0 0.0
        %4505 = vmatpush1.xpose.msra.mxu0 0.0
        %4506 = vmatprep.subr.mxu0 0.0
        %4507 = vmatpush1.xpose.msra.mxu0 0.0
        %4508 = vmatprep.subr.mxu0 0.0
        %4509 = vmatpush1.xpose.msra.mxu0 0.0
        %4510 = vmatprep.subr.mxu0 0.0
        %4511 = vmatpush1.xpose.msra.mxu0 0.0
        %4512 = vmatprep.subr.mxu0 0.0
        %4513 = vmatpush1.xpose.msra.mxu0 0.0
        %4514 = vmatprep.subr.mxu0 0.0
        %4515 = vmatpush1.xpose.msra.mxu0 0.0
        %4516 = vmatprep.subr.mxu0 0.0
        %4517 = vmatpush1.xpose.msra.mxu0 0.0
        %4518 = vmatprep.mubr.f32.mxu0 0.0
        %4519 = vmatmul.mubr.f32.gmra.mrb[0].mxu0 %v4450
        %v4520 = vpop.f32.mrb[0].mxu0
        %v4521 = vadd.f32 %v844, %v4520
        %v4522 = vpop.f32.mrb[0].mxu0
        %4523 = vdwg.mxu0
        %v4524 = vsel %vm966, %v4521, -inf
        %4525 = vmax.xlane.f32.xlu0 %v4524
        %v4526 = vpop.xlane.xlu0 %4525
        %v4527 = vsub.f32 %v4521, %v4526
        %v4528 = vmul.f32 %v4527, 1.442695
        %v4529 = vpow.pop %v4528
        %v4530 = vsel %vm966, %v4529, 0.0
        %4531 = vadd.xlane.f32.xlu0 %v4530
        %v4532 = vpop.xlane.xlu0 %4531
        %v4533 = vrcp.pop %v4532
        %v4534 = vmul.f32 %v4529, %v4533
        %4535 = vrot.lane.b32.xlu0 %v3950, 72
        %v4536 = vpop.permute.xlu0 %4535
        %v4539 = vsel %vm966, %v4534, 0
        %4541 = vmatprep.subr.mxu0 0.0
        %4542 = vmatpush1.msra.mxu0 %v4536
        %4543 = vmatprep.subr.mxu0 0.0
        %4544 = vmatpush1.msra.mxu0 0.0
        %4545 = vmatprep.subr.mxu0 0.0
        %4546 = vmatpush1.msra.mxu0 0.0
        %4547 = vmatprep.subr.mxu0 0.0
        %4548 = vmatpush1.msra.mxu0 0.0
        %4549 = vmatprep.subr.mxu0 0.0
        %4550 = vmatpush1.msra.mxu0 0.0
        %4551 = vmatprep.subr.mxu0 0.0
        %4552 = vmatpush1.msra.mxu0 0.0
        %4553 = vmatprep.subr.mxu0 0.0
        %4554 = vmatpush1.msra.mxu0 0.0
        %4555 = vmatprep.subr.mxu0 0.0
        %4556 = vmatpush1.msra.mxu0 0.0
        %4557 = vmatprep.subr.mxu0 0.0
        %4558 = vmatpush1.msra.mxu0 0.0
        %4559 = vmatprep.subr.mxu0 0.0
        %4560 = vmatpush1.msra.mxu0 0.0
        %4561 = vmatprep.subr.mxu0 0.0
        %4562 = vmatpush1.msra.mxu0 0.0
        %4563 = vmatprep.subr.mxu0 0.0
        %4564 = vmatpush1.msra.mxu0 0.0
        %4565 = vmatprep.subr.mxu0 0.0
        %4566 = vmatpush1.msra.mxu0 0.0
        %4567 = vmatprep.subr.mxu0 0.0
        %4568 = vmatpush1.msra.mxu0 0.0
        %4569 = vmatprep.subr.mxu0 0.0
        %4570 = vmatpush1.msra.mxu0 0.0
        %4571 = vmatprep.subr.mxu0 0.0
        %4572 = vmatpush1.msra.mxu0 0.0
        %4573 = vmatprep.subr.mxu0 0.0
        %4574 = vmatpush1.msra.mxu0 0.0
        %4575 = vmatprep.subr.mxu0 0.0
        %4576 = vmatpush1.msra.mxu0 0.0
        %4577 = vmatprep.subr.mxu0 0.0
        %4578 = vmatpush1.msra.mxu0 0.0
        %4579 = vmatprep.subr.mxu0 0.0
        %4580 = vmatpush1.msra.mxu0 0.0
        %4581 = vmatprep.subr.mxu0 0.0
        %4582 = vmatpush1.msra.mxu0 0.0
        %4583 = vmatprep.subr.mxu0 0.0
        %4584 = vmatpush1.msra.mxu0 0.0
        %4585 = vmatprep.subr.mxu0 0.0
        %4586 = vmatpush1.msra.mxu0 0.0
        %4587 = vmatprep.subr.mxu0 0.0
        %4588 = vmatpush1.msra.mxu0 0.0
        %4589 = vmatprep.subr.mxu0 0.0
        %4590 = vmatpush1.msra.mxu0 0.0
        %4591 = vmatprep.subr.mxu0 0.0
        %4592 = vmatpush1.msra.mxu0 0.0
        %4593 = vmatprep.subr.mxu0 0.0
        %4594 = vmatpush1.msra.mxu0 0.0
        %4595 = vmatprep.subr.mxu0 0.0
        %4596 = vmatpush1.msra.mxu0 0.0
        %4597 = vmatprep.subr.mxu0 0.0
        %4598 = vmatpush1.msra.mxu0 0.0
        %4599 = vmatprep.subr.mxu0 0.0
        %4600 = vmatpush1.msra.mxu0 0.0
        %4601 = vmatprep.subr.mxu0 0.0
        %4602 = vmatpush1.msra.mxu0 0.0
        %4603 = vmatprep.subr.mxu0 0.0
        %4604 = vmatpush1.msra.mxu0 0.0
        %4605 = vmatprep.mubr.f32.mxu0 0.0
        %4606 = vmatmul.mubr.f32.gmra.mrb[0].mxu0 %v4539
        %v4607 = vpop.f32.mrb[0].mxu0
        %v4608 = vadd.f32 0.0, %v4607
        %v4609 = vpop.f32.mrb[0].mxu0
        %4610 = vdwg.mxu0
        %4612 = vrot.lane.b32.xlu0 %v4278, 8
        %v4613 = vpop.permute.xlu0 %4612
        %4616 = vrot.lane.b32.xlu0 %v4443, 16
        %v4617 = vpop.permute.xlu0 %4616
        %4620 = vrot.lane.b32.xlu0 %v4608, 24
        %v4621 = vpop.permute.xlu0 %4620
        %v4623 = vsel %vm966, %v4113, %v4613
        %v4624 = vsel %vm1636, %v4623, %v4617
        %v4625 = vsel %vm1638, %v4624, %v4621
        %v4627 = vsel %vm874, %v4625, 0
        %4629 = vmatprep.subr.mxu0 0.0
        %4630 = vmatpush1.msra.mxu0 %v3788
        %4631 = vmatprep.subr.mxu0 0.0
        %4632 = vmatpush1.msra.mxu0 %v3789
        %4633 = vmatprep.subr.mxu0 0.0
        %4634 = vmatpush1.msra.mxu0 %v3790
        %4635 = vmatprep.subr.mxu0 0.0
        %4636 = vmatpush1.msra.mxu0 %v3791
        %4637 = vmatprep.subr.mxu0 0.0
        %4638 = vmatpush1.msra.mxu0 0.0
        %4639 = vmatprep.subr.mxu0 0.0
        %4640 = vmatpush1.msra.mxu0 0.0
        %4641 = vmatprep.subr.mxu0 0.0
        %4642 = vmatpush1.msra.mxu0 0.0
        %4643 = vmatprep.subr.mxu0 0.0
        %4644 = vmatpush1.msra.mxu0 0.0
        %4645 = vmatprep.subr.mxu0 0.0
        %4646 = vmatpush1.msra.mxu0 0.0
        %4647 = vmatprep.subr.mxu0 0.0
        %4648 = vmatpush1.msra.mxu0 0.0
        %4649 = vmatprep.subr.mxu0 0.0
        %4650 = vmatpush1.msra.mxu0 0.0
        %4651 = vmatprep.subr.mxu0 0.0
        %4652 = vmatpush1.msra.mxu0 0.0
        %4653 = vmatprep.subr.mxu0 0.0
        %4654 = vmatpush1.msra.mxu0 0.0
        %4655 = vmatprep.subr.mxu0 0.0
        %4656 = vmatpush1.msra.mxu0 0.0
        %4657 = vmatprep.subr.mxu0 0.0
        %4658 = vmatpush1.msra.mxu0 0.0
        %4659 = vmatprep.subr.mxu0 0.0
        %4660 = vmatpush1.msra.mxu0 0.0
        %4661 = vmatprep.subr.mxu0 0.0
        %4662 = vmatpush1.msra.mxu0 0.0
        %4663 = vmatprep.subr.mxu0 0.0
        %4664 = vmatpush1.msra.mxu0 0.0
        %4665 = vmatprep.subr.mxu0 0.0
        %4666 = vmatpush1.msra.mxu0 0.0
        %4667 = vmatprep.subr.mxu0 0.0
        %4668 = vmatpush1.msra.mxu0 0.0
        %4669 = vmatprep.subr.mxu0 0.0
        %4670 = vmatpush1.msra.mxu0 0.0
        %4671 = vmatprep.subr.mxu0 0.0
        %4672 = vmatpush1.msra.mxu0 0.0
        %4673 = vmatprep.subr.mxu0 0.0
        %4674 = vmatpush1.msra.mxu0 0.0
        %4675 = vmatprep.subr.mxu0 0.0
        %4676 = vmatpush1.msra.mxu0 0.0
        %4677 = vmatprep.subr.mxu0 0.0
        %4678 = vmatpush1.msra.mxu0 0.0
        %4679 = vmatprep.subr.mxu0 0.0
        %4680 = vmatpush1.msra.mxu0 0.0
        %4681 = vmatprep.subr.mxu0 0.0
        %4682 = vmatpush1.msra.mxu0 0.0
        %4683 = vmatprep.subr.mxu0 0.0
        %4684 = vmatpush1.msra.mxu0 0.0
        %4685 = vmatprep.subr.mxu0 0.0
        %4686 = vmatpush1.msra.mxu0 0.0
        %4687 = vmatprep.subr.mxu0 0.0
        %4688 = vmatpush1.msra.mxu0 0.0
        %4689 = vmatprep.subr.mxu0 0.0
        %4690 = vmatpush1.msra.mxu0 0.0
        %4691 = vmatprep.subr.mxu0 0.0
        %4692 = vmatpush1.msra.mxu0 0.0
        %4693 = vmatprep.mubr.f32.mxu0 0.0
        %4694 = vmatmul.mubr.f32.gmra.mrb[0].mxu0 %v4627
        %v4695 = vpop.f32.mrb[0].mxu0
        %v4696 = vadd.f32 0.0, %v4695
        %v4697 = vpop.f32.mrb[0].mxu0
        %4698 = vdwg.mxu0
        %v4699 = vadd.f32 %v3778, %v4696
        %v4700 = vld [vmem:[%s20] sm:$0x1]
        %v4701 = vld [vmem:[%s21] sm:$0xff]
        %v4702 = vld [vmem:[%s21 + $0x8] sm:$0xff]
        %v4703 = vld [vmem:[%s21 + $0x10] sm:$0xff]
        %v4704 = vld [vmem:[%s21 + $0x18] sm:$0xff]
        %v4705 = vld [vmem:[%s22] sm:$0xff]
        %v4706 = vld [vmem:[%s22 + $0x8] sm:$0xff]
        %v4707 = vld [vmem:[%s22 + $0x10] sm:$0xff]
        %v4708 = vld [vmem:[%s22 + $0x18] sm:$0xff]
        %v4709 = vld [vmem:[%s22 + $0x20] sm:$0xff]
        %v4710 = vld [vmem:[%s22 + $0x28] sm:$0xff]
        %v4711 = vld [vmem:[%s22 + $0x30] sm:$0xff]
        %v4712 = vld [vmem:[%s22 + $0x38] sm:$0xff]
        %v4713 = vmul.f32 %v4699, %v4699
        %v4714 = vsel %vm874, %v4713, 0.0
        %4715 = vadd.xlane.f32.xlu0 %v4714
        %v4716 = vpop.xlane.xlu0 %4715
        %v4717 = vmul.f32 %v4716, %v878
        %v4718 = vadd.f32 %v4717, 1e-06
        %v4719 = vrsqrt.pop %v4718
        %v4720 = vmul.f32 %v4699, %v4719
        %v4722 = vlaneseq
        %v4723 = vshrl.u32 %v4722, 7
        %v4724 = vsub.s32 0, %v4723
        %v4725 = vrot.slane %v4700, %v4724
        %v4727 = vmul.f32 %v4720, %v4725
        %v4729 = vsel %vm874, %v4727, 0
        %4731 = vmatprep.subr.mxu0 0.0
        %4732 = vmatpush1.msra.mxu0 %v4701
        %4733 = vmatprep.subr.mxu0 0.0
        %4734 = vmatpush1.msra.mxu0 %v4702
        %4735 = vmatprep.subr.mxu0 0.0
        %4736 = vmatpush1.msra.mxu0 %v4703
        %4737 = vmatprep.subr.mxu0 0.0
        %4738 = vmatpush1.msra.mxu0 %v4704
        %4739 = vmatprep.subr.mxu0 0.0
        %4740 = vmatpush1.msra.mxu0 0.0
        %4741 = vmatprep.subr.mxu0 0.0
        %4742 = vmatpush1.msra.mxu0 0.0
        %4743 = vmatprep.subr.mxu0 0.0
        %4744 = vmatpush1.msra.mxu0 0.0
        %4745 = vmatprep.subr.mxu0 0.0
        %4746 = vmatpush1.msra.mxu0 0.0
        %4747 = vmatprep.subr.mxu0 0.0
        %4748 = vmatpush1.msra.mxu0 0.0
        %4749 = vmatprep.subr.mxu0 0.0
        %4750 = vmatpush1.msra.mxu0 0.0
        %4751 = vmatprep.subr.mxu0 0.0
        %4752 = vmatpush1.msra.mxu0 0.0
        %4753 = vmatprep.subr.mxu0 0.0
        %4754 = vmatpush1.msra.mxu0 0.0
        %4755 = vmatprep.subr.mxu0 0.0
        %4756 = vmatpush1.msra.mxu0 0.0
        %4757 = vmatprep.subr.mxu0 0.0
        %4758 = vmatpush1.msra.mxu0 0.0
        %4759 = vmatprep.subr.mxu0 0.0
        %4760 = vmatpush1.msra.mxu0 0.0
        %4761 = vmatprep.subr.mxu0 0.0
        %4762 = vmatpush1.msra.mxu0 0.0
        %4763 = vmatprep.subr.mxu0 0.0
        %4764 = vmatpush1.msra.mxu0 0.0
        %4765 = vmatprep.subr.mxu0 0.0
        %4766 = vmatpush1.msra.mxu0 0.0
        %4767 = vmatprep.subr.mxu0 0.0
        %4768 = vmatpush1.msra.mxu0 0.0
        %4769 = vmatprep.subr.mxu0 0.0
        %4770 = vmatpush1.msra.mxu0 0.0
        %4771 = vmatprep.subr.mxu0 0.0
        %4772 = vmatpush1.msra.mxu0 0.0
        %4773 = vmatprep.subr.mxu0 0.0
        %4774 = vmatpush1.msra.mxu0 0.0
        %4775 = vmatprep.subr.mxu0 0.0
        %4776 = vmatpush1.msra.mxu0 0.0
        %4777 = vmatprep.subr.mxu0 0.0
        %4778 = vmatpush1.msra.mxu0 0.0
        %4779 = vmatprep.subr.mxu0 0.0
        %4780 = vmatpush1.msra.mxu0 0.0
        %4781 = vmatprep.subr.mxu0 0.0
        %4782 = vmatpush1.msra.mxu0 0.0
        %4783 = vmatprep.subr.mxu0 0.0
        %4784 = vmatpush1.msra.mxu0 0.0
        %4785 = vmatprep.subr.mxu0 0.0
        %4786 = vmatpush1.msra.mxu0 0.0
        %4787 = vmatprep.subr.mxu0 0.0
        %4788 = vmatpush1.msra.mxu0 0.0
        %4789 = vmatprep.subr.mxu0 0.0
        %4790 = vmatpush1.msra.mxu0 0.0
        %4791 = vmatprep.subr.mxu0 0.0
        %4792 = vmatpush1.msra.mxu0 0.0
        %4793 = vmatprep.subr.mxu0 0.0
        %4794 = vmatpush1.msra.mxu0 0.0
        %4795 = vmatprep.mubr.f32.mxu0 0.0
        %4796 = vmatmul.mubr.f32.gmra.mrb[0].mxu0 %v4729
        %v4797 = vpop.f32.mrb[0].mxu0
        %v4798 = vadd.f32 0.0, %v4797
        %v4799 = vpop.f32.mrb[0].mxu0
        %4800 = vdwg.mxu0
        %v4801 = vmax.f32 %v4798, 0.0
        %v4803 = vsel %vm1816, %v4801, 0
        %4805 = vmatprep.subr.mxu0 0.0
        %4806 = vmatpush1.msra.mxu0 %v4705
        %4807 = vmatprep.subr.mxu0 0.0
        %4808 = vmatpush1.msra.mxu0 %v4706
        %4809 = vmatprep.subr.mxu0 0.0
        %4810 = vmatpush1.msra.mxu0 %v4707
        %4811 = vmatprep.subr.mxu0 0.0
        %4812 = vmatpush1.msra.mxu0 %v4708
        %4813 = vmatprep.subr.mxu0 0.0
        %4814 = vmatpush1.msra.mxu0 %v4709
        %4815 = vmatprep.subr.mxu0 0.0
        %4816 = vmatpush1.msra.mxu0 %v4710
        %4817 = vmatprep.subr.mxu0 0.0
        %4818 = vmatpush1.msra.mxu0 %v4711
        %4819 = vmatprep.subr.mxu0 0.0
        %4820 = vmatpush1.msra.mxu0 %v4712
        %4821 = vmatprep.subr.mxu0 0.0
        %4822 = vmatpush1.msra.mxu0 0.0
        %4823 = vmatprep.subr.mxu0 0.0
        %4824 = vmatpush1.msra.mxu0 0.0
        %4825 = vmatprep.subr.mxu0 0.0
        %4826 = vmatpush1.msra.mxu0 0.0
        %4827 = vmatprep.subr.mxu0 0.0
        %4828 = vmatpush1.msra.mxu0 0.0
        %4829 = vmatprep.subr.mxu0 0.0
        %4830 = vmatpush1.msra.mxu0 0.0
        %4831 = vmatprep.subr.mxu0 0.0
        %4832 = vmatpush1.msra.mxu0 0.0
        %4833 = vmatprep.subr.mxu0 0.0
        %4834 = vmatpush1.msra.mxu0 0.0
        %4835 = vmatprep.subr.mxu0 0.0
        %4836 = vmatpush1.msra.mxu0 0.0
        %4837 = vmatprep.subr.mxu0 0.0
        %4838 = vmatpush1.msra.mxu0 0.0
        %4839 = vmatprep.subr.mxu0 0.0
        %4840 = vmatpush1.msra.mxu0 0.0
        %4841 = vmatprep.subr.mxu0 0.0
        %4842 = vmatpush1.msra.mxu0 0.0
        %4843 = vmatprep.subr.mxu0 0.0
        %4844 = vmatpush1.msra.mxu0 0.0
        %4845 = vmatprep.subr.mxu0 0.0
        %4846 = vmatpush1.msra.mxu0 0.0
        %4847 = vmatprep.subr.mxu0 0.0
        %4848 = vmatpush1.msra.mxu0 0.0
        %4849 = vmatprep.subr.mxu0 0.0
        %4850 = vmatpush1.msra.mxu0 0.0
        %4851 = vmatprep.subr.mxu0 0.0
        %4852 = vmatpush1.msra.mxu0 0.0
        %4853 = vmatprep.subr.mxu0 0.0
        %4854 = vmatpush1.msra.mxu0 0.0
        %4855 = vmatprep.subr.mxu0 0.0
        %4856 = vmatpush1.msra.mxu0 0.0
        %4857 = vmatprep.subr.mxu0 0.0
        %4858 = vmatpush1.msra.mxu0 0.0
        %4859 = vmatprep.subr.mxu0 0.0
        %4860 = vmatpush1.msra.mxu0 0.0
        %4861 = vmatprep.subr.mxu0 0.0
        %4862 = vmatpush1.msra.mxu0 0.0
        %4863 = vmatprep.subr.mxu0 0.0
        %4864 = vmatpush1.msra.mxu0 0.0
        %4865 = vmatprep.subr.mxu0 0.0
        %4866 = vmatpush1.msra.mxu0 0.0
        %4867 = vmatprep.subr.mxu0 0.0
        %4868 = vmatpush1.msra.mxu0 0.0
        %4869 = vmatprep.mubr.f32.mxu0 0.0
        %4870 = vmatmul.mubr.f32.gmra.mrb[0].mxu0 %v4803
        %v4871 = vpop.f32.mrb[0].mxu0
        %v4872 = vadd.f32 0.0, %v4871
        %v4873 = vpop.f32.mrb[0].mxu0
        %4874 = vdwg.mxu0
        %v4875 = vadd.f32 %v4699, %v4872
        %s4876 = scalar_lea.vmem %s13, 1
        %v4877 = vld [vmem:[%s4876] sm:$0x1]
        %s4878 = scalar_lea.vmem %s14, 32
        %v4879 = vld [vmem:[%s4878] sm:$0xff]
        %v4880 = vld [vmem:[%s4878 + $0x8] sm:$0xff]
        %v4881 = vld [vmem:[%s4878 + $0x10] sm:$0xff]
        %v4882 = vld [vmem:[%s4878 + $0x18] sm:$0xff]
        %s4883 = scalar_lea.vmem %s15, 32
        %v4884 = vld [vmem:[%s4883] sm:$0xff]
        %v4885 = vld [vmem:[%s4883 + $0x8] sm:$0xff]
        %v4886 = vld [vmem:[%s4883 + $0x10] sm:$0xff]
        %v4887 = vld [vmem:[%s4883 + $0x18] sm:$0xff]
        %v4888 = vmul.f32 %v4875, %v4875
        %v4889 = vsel %vm874, %v4888, 0.0
        %4890 = vadd.xlane.f32.xlu0 %v4889
        %v4891 = vpop.xlane.xlu0 %4890
        %v4892 = vmul.f32 %v4891, %v878
        %v4893 = vadd.f32 %v4892, 1e-06
        %v4894 = vrsqrt.pop %v4893
        %v4895 = vmul.f32 %v4875, %v4894
        %v4897 = vlaneseq
        %v4898 = vshrl.u32 %v4897, 7
        %v4899 = vsub.s32 0, %v4898
        %v4900 = vrot.slane %v4877, %v4899
        %v4902 = vmul.f32 %v4895, %v4900
        %v4904 = vsel %vm874, %v4902, 0
        %4906 = vmatprep.subr.mxu0 0.0
        %4907 = vmatpush1.msra.mxu0 %v4879
        %4908 = vmatprep.subr.mxu0 0.0
        %4909 = vmatpush1.msra.mxu0 %v4880
        %4910 = vmatprep.subr.mxu0 0.0
        %4911 = vmatpush1.msra.mxu0 %v4881
        %4912 = vmatprep.subr.mxu0 0.0
        %4913 = vmatpush1.msra.mxu0 %v4882
        %4914 = vmatprep.subr.mxu0 0.0
        %4915 = vmatpush1.msra.mxu0 0.0
        %4916 = vmatprep.subr.mxu0 0.0
        %4917 = vmatpush1.msra.mxu0 0.0
        %4918 = vmatprep.subr.mxu0 0.0
        %4919 = vmatpush1.msra.mxu0 0.0
        %4920 = vmatprep.subr.mxu0 0.0
        %4921 = vmatpush1.msra.mxu0 0.0
        %4922 = vmatprep.subr.mxu0 0.0
        %4923 = vmatpush1.msra.mxu0 0.0
        %4924 = vmatprep.subr.mxu0 0.0
        %4925 = vmatpush1.msra.mxu0 0.0
        %4926 = vmatprep.subr.mxu0 0.0
        %4927 = vmatpush1.msra.mxu0 0.0
        %4928 = vmatprep.subr.mxu0 0.0
        %4929 = vmatpush1.msra.mxu0 0.0
        %4930 = vmatprep.subr.mxu0 0.0
        %4931 = vmatpush1.msra.mxu0 0.0
        %4932 = vmatprep.subr.mxu0 0.0
        %4933 = vmatpush1.msra.mxu0 0.0
        %4934 = vmatprep.subr.mxu0 0.0
        %4935 = vmatpush1.msra.mxu0 0.0
        %4936 = vmatprep.subr.mxu0 0.0
        %4937 = vmatpush1.msra.mxu0 0.0
        %4938 = vmatprep.subr.mxu0 0.0
        %4939 = vmatpush1.msra.mxu0 0.0
        %4940 = vmatprep.subr.mxu0 0.0
        %4941 = vmatpush1.msra.mxu0 0.0
        %4942 = vmatprep.subr.mxu0 0.0
        %4943 = vmatpush1.msra.mxu0 0.0
        %4944 = vmatprep.subr.mxu0 0.0
        %4945 = vmatpush1.msra.mxu0 0.0
        %4946 = vmatprep.subr.mxu0 0.0
        %4947 = vmatpush1.msra.mxu0 0.0
        %4948 = vmatprep.subr.mxu0 0.0
        %4949 = vmatpush1.msra.mxu0 0.0
        %4950 = vmatprep.subr.mxu0 0.0
        %4951 = vmatpush1.msra.mxu0 0.0
        %4952 = vmatprep.subr.mxu0 0.0
        %4953 = vmatpush1.msra.mxu0 0.0
        %4954 = vmatprep.subr.mxu0 0.0
        %4955 = vmatpush1.msra.mxu0 0.0
        %4956 = vmatprep.subr.mxu0 0.0
        %4957 = vmatpush1.msra.mxu0 0.0
        %4958 = vmatprep.subr.mxu0 0.0
        %4959 = vmatpush1.msra.mxu0 0.0
        %4960 = vmatprep.subr.mxu0 0.0
        %4961 = vmatpush1.msra.mxu0 0.0
        %4962 = vmatprep.subr.mxu0 0.0
        %4963 = vmatpush1.msra.mxu0 0.0
        %4964 = vmatprep.subr.mxu0 0.0
        %4965 = vmatpush1.msra.mxu0 0.0
        %4966 = vmatprep.subr.mxu0 0.0
        %4967 = vmatpush1.msra.mxu0 0.0
        %4968 = vmatprep.subr.mxu0 0.0
        %4969 = vmatpush1.msra.mxu0 0.0
        %4970 = vmatprep.mubr.f32.mxu0 0.0
        %4971 = vmatmul.mubr.f32.gmra.mrb[0].mxu0 %v4904
        %v4972 = vpop.f32.mrb[0].mxu0
        %v4973 = vadd.f32 0.0, %v4972
        %v4974 = vpop.f32.mrb[0].mxu0
        %4975 = vdwg.mxu0
        %4977 = vrot.lane.b32.xlu0 %v4973, 96
        %v4978 = vpop.permute.xlu0 %4977
        %v4979 = vsel %vm966, %v4973, 0
        %v4981 = vsel %vm966, %v4978, 0
        %4983 = vmatprep.subr.mxu0 0.0
        %4984 = vmatpush1.xpose.msra.mxu0 %v4981
        %4985 = vmatprep.subr.mxu0 0.0
        %4986 = vmatpush1.xpose.msra.mxu0 0.0
        %4987 = vmatprep.subr.mxu0 0.0
        %4988 = vmatpush1.xpose.msra.mxu0 0.0
        %4989 = vmatprep.subr.mxu0 0.0
        %4990 = vmatpush1.xpose.msra.mxu0 0.0
        %4991 = vmatprep.subr.mxu0 0.0
        %4992 = vmatpush1.xpose.msra.mxu0 0.0
        %4993 = vmatprep.subr.mxu0 0.0
        %4994 = vmatpush1.xpose.msra.mxu0 0.0
        %4995 = vmatprep.subr.mxu0 0.0
        %4996 = vmatpush1.xpose.msra.mxu0 0.0
        %4997 = vmatprep.subr.mxu0 0.0
        %4998 = vmatpush1.xpose.msra.mxu0 0.0
        %4999 = vmatprep.subr.mxu0 0.0
        %5000 = vmatpush1.xpose.msra.mxu0 0.0
        %5001 = vmatprep.subr.mxu0 0.0
        %5002 = vmatpush1.xpose.msra.mxu0 0.0
        %5003 = vmatprep.subr.mxu0 0.0
        %5004 = vmatpush1.xpose.msra.mxu0 0.0
        %5005 = vmatprep.subr.mxu0 0.0
        %5006 = vmatpush1.xpose.msra.mxu0 0.0
        %5007 = vmatprep.subr.mxu0 0.0
        %5008 = vmatpush1.xpose.msra.mxu0 0.0
        %5009 = vmatprep.subr.mxu0 0.0
        %5010 = vmatpush1.xpose.msra.mxu0 0.0
        %5011 = vmatprep.subr.mxu0 0.0
        %5012 = vmatpush1.xpose.msra.mxu0 0.0
        %5013 = vmatprep.subr.mxu0 0.0
        %5014 = vmatpush1.xpose.msra.mxu0 0.0
        %5015 = vmatprep.subr.mxu0 0.0
        %5016 = vmatpush1.xpose.msra.mxu0 0.0
        %5017 = vmatprep.subr.mxu0 0.0
        %5018 = vmatpush1.xpose.msra.mxu0 0.0
        %5019 = vmatprep.subr.mxu0 0.0
        %5020 = vmatpush1.xpose.msra.mxu0 0.0
        %5021 = vmatprep.subr.mxu0 0.0
        %5022 = vmatpush1.xpose.msra.mxu0 0.0
        %5023 = vmatprep.subr.mxu0 0.0
        %5024 = vmatpush1.xpose.msra.mxu0 0.0
        %5025 = vmatprep.subr.mxu0 0.0
        %5026 = vmatpush1.xpose.msra.mxu0 0.0
        %5027 = vmatprep.subr.mxu0 0.0
        %5028 = vmatpush1.xpose.msra.mxu0 0.0
        %5029 = vmatprep.subr.mxu0 0.0
        %5030 = vmatpush1.xpose.msra.mxu0 0.0
        %5031 = vmatprep.subr.mxu0 0.0
        %5032 = vmatpush1.xpose.msra.mxu0 0.0
        %5033 = vmatprep.subr.mxu0 0.0
        %5034 = vmatpush1.xpose.msra.mxu0 0.0
        %5035 = vmatprep.subr.mxu0 0.0
        %5036 = vmatpush1.xpose.msra.mxu0 0.0
        %5037 = vmatprep.subr.mxu0 0.0
        %5038 = vmatpush1.xpose.msra.mxu0 0.0
        %5039 = vmatprep.subr.mxu0 0.0
        %5040 = vmatpush1.xpose.msra.mxu0 0.0
        %5041 = vmatprep.subr.mxu0 0.0
        %5042 = vmatpush1.xpose.msra.mxu0 0.0
        %5043 = vmatprep.subr.mxu0 0.0
        %5044 = vmatpush1.xpose.msra.mxu0 0.0
        %5045 = vmatprep.subr.mxu0 0.0
        %5046 = vmatpush1.xpose.msra.mxu0 0.0
        %5047 = vmatprep.mubr.f32.mxu0 0.0
        %5048 = vmatmul.mubr.f32.gmra.mrb[0].mxu0 %v4979
        %v5049 = vpop.f32.mrb[0].mxu0
        %v5050 = vadd.f32 %v860, %v5049
        %v5051 = vpop.f32.mrb[0].mxu0
        %5052 = vdwg.mxu0
        %v5053 = vsel %vm966, %v5050, -inf
        %5054 = vmax.xlane.f32.xlu0 %v5053
        %v5055 = vpop.xlane.xlu0 %5054
        %v5056 = vsub.f32 %v5050, %v5055
        %v5057 = vmul.f32 %v5056, 1.442695
        %v5058 = vpow.pop %v5057
        %v5059 = vsel %vm966, %v5058, 0.0
        %5060 = vadd.xlane.f32.xlu0 %v5059
        %v5061 = vpop.xlane.xlu0 %5060
        %v5062 = vrcp.pop %v5061
        %v5063 = vmul.f32 %v5058, %v5062
        %5064 = vrot.lane.b32.xlu0 %v4973, 64
        %v5065 = vpop.permute.xlu0 %5064
        %v5068 = vsel %vm966, %v5063, 0
        %5070 = vmatprep.subr.mxu0 0.0
        %5071 = vmatpush1.msra.mxu0 %v5065
        %5072 = vmatprep.subr.mxu0 0.0
        %5073 = vmatpush1.msra.mxu0 0.0
        %5074 = vmatprep.subr.mxu0 0.0
        %5075 = vmatpush1.msra.mxu0 0.0
        %5076 = vmatprep.subr.mxu0 0.0
        %5077 = vmatpush1.msra.mxu0 0.0
        %5078 = vmatprep.subr.mxu0 0.0
        %5079 = vmatpush1.msra.mxu0 0.0
        %5080 = vmatprep.subr.mxu0 0.0
        %5081 = vmatpush1.msra.mxu0 0.0
        %5082 = vmatprep.subr.mxu0 0.0
        %5083 = vmatpush1.msra.mxu0 0.0
        %5084 = vmatprep.subr.mxu0 0.0
        %5085 = vmatpush1.msra.mxu0 0.0
        %5086 = vmatprep.subr.mxu0 0.0
        %5087 = vmatpush1.msra.mxu0 0.0
        %5088 = vmatprep.subr.mxu0 0.0
        %5089 = vmatpush1.msra.mxu0 0.0
        %5090 = vmatprep.subr.mxu0 0.0
        %5091 = vmatpush1.msra.mxu0 0.0
        %5092 = vmatprep.subr.mxu0 0.0
        %5093 = vmatpush1.msra.mxu0 0.0
        %5094 = vmatprep.subr.mxu0 0.0
        %5095 = vmatpush1.msra.mxu0 0.0
        %5096 = vmatprep.subr.mxu0 0.0
        %5097 = vmatpush1.msra.mxu0 0.0
        %5098 = vmatprep.subr.mxu0 0.0
        %5099 = vmatpush1.msra.mxu0 0.0
        %5100 = vmatprep.subr.mxu0 0.0
        %5101 = vmatpush1.msra.mxu0 0.0
        %5102 = vmatprep.subr.mxu0 0.0
        %5103 = vmatpush1.msra.mxu0 0.0
        %5104 = vmatprep.subr.mxu0 0.0
        %5105 = vmatpush1.msra.mxu0 0.0
        %5106 = vmatprep.subr.mxu0 0.0
        %5107 = vmatpush1.msra.mxu0 0.0
        %5108 = vmatprep.subr.mxu0 0.0
        %5109 = vmatpush1.msra.mxu0 0.0
        %5110 = vmatprep.subr.mxu0 0.0
        %5111 = vmatpush1.msra.mxu0 0.0
        %5112 = vmatprep.subr.mxu0 0.0
        %5113 = vmatpush1.msra.mxu0 0.0
        %5114 = vmatprep.subr.mxu0 0.0
        %5115 = vmatpush1.msra.mxu0 0.0
        %5116 = vmatprep.subr.mxu0 0.0
        %5117 = vmatpush1.msra.mxu0 0.0
        %5118 = vmatprep.subr.mxu0 0.0
        %5119 = vmatpush1.msra.mxu0 0.0
        %5120 = vmatprep.subr.mxu0 0.0
        %5121 = vmatpush1.msra.mxu0 0.0
        %5122 = vmatprep.subr.mxu0 0.0
        %5123 = vmatpush1.msra.mxu0 0.0
        %5124 = vmatprep.subr.mxu0 0.0
        %5125 = vmatpush1.msra.mxu0 0.0
        %5126 = vmatprep.subr.mxu0 0.0
        %5127 = vmatpush1.msra.mxu0 0.0
        %5128 = vmatprep.subr.mxu0 0.0
        %5129 = vmatpush1.msra.mxu0 0.0
        %5130 = vmatprep.subr.mxu0 0.0
        %5131 = vmatpush1.msra.mxu0 0.0
        %5132 = vmatprep.subr.mxu0 0.0
        %5133 = vmatpush1.msra.mxu0 0.0
        %5134 = vmatprep.mubr.f32.mxu0 0.0
        %5135 = vmatmul.mubr.f32.gmra.mrb[0].mxu0 %v5068
        %v5136 = vpop.f32.mrb[0].mxu0
        %v5137 = vadd.f32 0.0, %v5136
        %v5138 = vpop.f32.mrb[0].mxu0
        %5139 = vdwg.mxu0
        %5140 = vrot.lane.b32.xlu0 %v4973, 120
        %v5141 = vpop.permute.xlu0 %5140
        %5142 = vrot.lane.b32.xlu0 %v4973, 88
        %v5143 = vpop.permute.xlu0 %5142
        %v5144 = vsel %vm966, %v5141, 0
        %v5146 = vsel %vm966, %v5143, 0
        %5148 = vmatprep.subr.mxu0 0.0
        %5149 = vmatpush1.xpose.msra.mxu0 %v5146
        %5150 = vmatprep.subr.mxu0 0.0
        %5151 = vmatpush1.xpose.msra.mxu0 0.0
        %5152 = vmatprep.subr.mxu0 0.0
        %5153 = vmatpush1.xpose.msra.mxu0 0.0
        %5154 = vmatprep.subr.mxu0 0.0
        %5155 = vmatpush1.xpose.msra.mxu0 0.0
        %5156 = vmatprep.subr.mxu0 0.0
        %5157 = vmatpush1.xpose.msra.mxu0 0.0
        %5158 = vmatprep.subr.mxu0 0.0
        %5159 = vmatpush1.xpose.msra.mxu0 0.0
        %5160 = vmatprep.subr.mxu0 0.0
        %5161 = vmatpush1.xpose.msra.mxu0 0.0
        %5162 = vmatprep.subr.mxu0 0.0
        %5163 = vmatpush1.xpose.msra.mxu0 0.0
        %5164 = vmatprep.subr.mxu0 0.0
        %5165 = vmatpush1.xpose.msra.mxu0 0.0
        %5166 = vmatprep.subr.mxu0 0.0
        %5167 = vmatpush1.xpose.msra.mxu0 0.0
        %5168 = vmatprep.subr.mxu0 0.0
        %5169 = vmatpush1.xpose.msra.mxu0 0.0
        %5170 = vmatprep.subr.mxu0 0.0
        %5171 = vmatpush1.xpose.msra.mxu0 0.0
        %5172 = vmatprep.subr.mxu0 0.0
        %5173 = vmatpush1.xpose.msra.mxu0 0.0
        %5174 = vmatprep.subr.mxu0 0.0
        %5175 = vmatpush1.xpose.msra.mxu0 0.0
        %5176 = vmatprep.subr.mxu0 0.0
        %5177 = vmatpush1.xpose.msra.mxu0 0.0
        %5178 = vmatprep.subr.mxu0 0.0
        %5179 = vmatpush1.xpose.msra.mxu0 0.0
        %5180 = vmatprep.subr.mxu0 0.0
        %5181 = vmatpush1.xpose.msra.mxu0 0.0
        %5182 = vmatprep.subr.mxu0 0.0
        %5183 = vmatpush1.xpose.msra.mxu0 0.0
        %5184 = vmatprep.subr.mxu0 0.0
        %5185 = vmatpush1.xpose.msra.mxu0 0.0
        %5186 = vmatprep.subr.mxu0 0.0
        %5187 = vmatpush1.xpose.msra.mxu0 0.0
        %5188 = vmatprep.subr.mxu0 0.0
        %5189 = vmatpush1.xpose.msra.mxu0 0.0
        %5190 = vmatprep.subr.mxu0 0.0
        %5191 = vmatpush1.xpose.msra.mxu0 0.0
        %5192 = vmatprep.subr.mxu0 0.0
        %5193 = vmatpush1.xpose.msra.mxu0 0.0
        %5194 = vmatprep.subr.mxu0 0.0
        %5195 = vmatpush1.xpose.msra.mxu0 0.0
        %5196 = vmatprep.subr.mxu0 0.0
        %5197 = vmatpush1.xpose.msra.mxu0 0.0
        %5198 = vmatprep.subr.mxu0 0.0
        %5199 = vmatpush1.xpose.msra.mxu0 0.0
        %5200 = vmatprep.subr.mxu0 0.0
        %5201 = vmatpush1.xpose.msra.mxu0 0.0
        %5202 = vmatprep.subr.mxu0 0.0
        %5203 = vmatpush1.xpose.msra.mxu0 0.0
        %5204 = vmatprep.subr.mxu0 0.0
        %5205 = vmatpush1.xpose.msra.mxu0 0.0
        %5206 = vmatprep.subr.mxu0 0.0
        %5207 = vmatpush1.xpose.msra.mxu0 0.0
        %5208 = vmatprep.subr.mxu0 0.0
        %5209 = vmatpush1.xpose.msra.mxu0 0.0
        %5210 = vmatprep.subr.mxu0 0.0
        %5211 = vmatpush1.xpose.msra.mxu0 0.0
        %5212 = vmatprep.mubr.f32.mxu0 0.0
        %5213 = vmatmul.mubr.f32.gmra.mrb[0].mxu0 %v5144
        %v5214 = vpop.f32.mrb[0].mxu0
        %v5215 = vadd.f32 %v861, %v5214
        %v5216 = vpop.f32.mrb[0].mxu0
        %5217 = vdwg.mxu0
        %v5218 = vsel %vm966, %v5215, -inf
        %5219 = vmax.xlane.f32.xlu0 %v5218
        %v5220 = vpop.xlane.xlu0 %5219
        %v5221 = vsub.f32 %v5215, %v5220
        %v5222 = vmul.f32 %v5221, 1.442695
        %v5223 = vpow.pop %v5222
        %v5224 = vsel %vm966, %v5223, 0.0
        %5225 = vadd.xlane.f32.xlu0 %v5224
        %v5226 = vpop.xlane.xlu0 %5225
        %v5227 = vrcp.pop %v5226
        %v5228 = vmul.f32 %v5223, %v5227
        %5229 = vrot.lane.b32.xlu0 %v4973, 56
        %v5230 = vpop.permute.xlu0 %5229
        %v5233 = vsel %vm966, %v5228, 0
        %5235 = vmatprep.subr.mxu0 0.0
        %5236 = vmatpush1.msra.mxu0 %v5230
        %5237 = vmatprep.subr.mxu0 0.0
        %5238 = vmatpush1.msra.mxu0 0.0
        %5239 = vmatprep.subr.mxu0 0.0
        %5240 = vmatpush1.msra.mxu0 0.0
        %5241 = vmatprep.subr.mxu0 0.0
        %5242 = vmatpush1.msra.mxu0 0.0
        %5243 = vmatprep.subr.mxu0 0.0
        %5244 = vmatpush1.msra.mxu0 0.0
        %5245 = vmatprep.subr.mxu0 0.0
        %5246 = vmatpush1.msra.mxu0 0.0
        %5247 = vmatprep.subr.mxu0 0.0
        %5248 = vmatpush1.msra.mxu0 0.0
        %5249 = vmatprep.subr.mxu0 0.0
        %5250 = vmatpush1.msra.mxu0 0.0
        %5251 = vmatprep.subr.mxu0 0.0
        %5252 = vmatpush1.msra.mxu0 0.0
        %5253 = vmatprep.subr.mxu0 0.0
        %5254 = vmatpush1.msra.mxu0 0.0
        %5255 = vmatprep.subr.mxu0 0.0
        %5256 = vmatpush1.msra.mxu0 0.0
        %5257 = vmatprep.subr.mxu0 0.0
        %5258 = vmatpush1.msra.mxu0 0.0
        %5259 = vmatprep.subr.mxu0 0.0
        %5260 = vmatpush1.msra.mxu0 0.0
        %5261 = vmatprep.subr.mxu0 0.0
        %5262 = vmatpush1.msra.mxu0 0.0
        %5263 = vmatprep.subr.mxu0 0.0
        %5264 = vmatpush1.msra.mxu0 0.0
        %5265 = vmatprep.subr.mxu0 0.0
        %5266 = vmatpush1.msra.mxu0 0.0
        %5267 = vmatprep.subr.mxu0 0.0
        %5268 = vmatpush1.msra.mxu0 0.0
        %5269 = vmatprep.subr.mxu0 0.0
        %5270 = vmatpush1.msra.mxu0 0.0
        %5271 = vmatprep.subr.mxu0 0.0
        %5272 = vmatpush1.msra.mxu0 0.0
        %5273 = vmatprep.subr.mxu0 0.0
        %5274 = vmatpush1.msra.mxu0 0.0
        %5275 = vmatprep.subr.mxu0 0.0
        %5276 = vmatpush1.msra.mxu0 0.0
        %5277 = vmatprep.subr.mxu0 0.0
        %5278 = vmatpush1.msra.mxu0 0.0
        %5279 = vmatprep.subr.mxu0 0.0
        %5280 = vmatpush1.msra.mxu0 0.0
        %5281 = vmatprep.subr.mxu0 0.0
        %5282 = vmatpush1.msra.mxu0 0.0
        %5283 = vmatprep.subr.mxu0 0.0
        %5284 = vmatpush1.msra.mxu0 0.0
        %5285 = vmatprep.subr.mxu0 0.0
        %5286 = vmatpush1.msra.mxu0 0.0
        %5287 = vmatprep.subr.mxu0 0.0
        %5288 = vmatpush1.msra.mxu0 0.0
        %5289 = vmatprep.subr.mxu0 0.0
        %5290 = vmatpush1.msra.mxu0 0.0
        %5291 = vmatprep.subr.mxu0 0.0
        %5292 = vmatpush1.msra.mxu0 0.0
        %5293 = vmatprep.subr.mxu0 0.0
        %5294 = vmatpush1.msra.mxu0 0.0
        %5295 = vmatprep.subr.mxu0 0.0
        %5296 = vmatpush1.msra.mxu0 0.0
        %5297 = vmatprep.subr.mxu0 0.0
        %5298 = vmatpush1.msra.mxu0 0.0
        %5299 = vmatprep.mubr.f32.mxu0 0.0
        %5300 = vmatmul.mubr.f32.gmra.mrb[0].mxu0 %v5233
        %v5301 = vpop.f32.mrb[0].mxu0
        %v5302 = vadd.f32 0.0, %v5301
        %v5303 = vpop.f32.mrb[0].mxu0
        %5304 = vdwg.mxu0
        %5305 = vrot.lane.b32.xlu0 %v4973, 112
        %v5306 = vpop.permute.xlu0 %5305
        %5307 = vrot.lane.b32.xlu0 %v4973, 80
        %v5308 = vpop.permute.xlu0 %5307
        %v5309 = vsel %vm966, %v5306, 0
        %v5311 = vsel %vm966, %v5308, 0
        %5313 = vmatprep.subr.mxu0 0.0
        %5314 = vmatpush1.xpose.msra.mxu0 %v5311
        %5315 = vmatprep.subr.mxu0 0.0
        %5316 = vmatpush1.xpose.msra.mxu0 0.0
        %5317 = vmatprep.subr.mxu0 0.0
        %5318 = vmatpush1.xpose.msra.mxu0 0.0
        %5319 = vmatprep.subr.mxu0 0.0
        %5320 = vmatpush1.xpose.msra.mxu0 0.0
        %5321 = vmatprep.subr.mxu0 0.0
        %5322 = vmatpush1.xpose.msra.mxu0 0.0
        %5323 = vmatprep.subr.mxu0 0.0
        %5324 = vmatpush1.xpose.msra.mxu0 0.0
        %5325 = vmatprep.subr.mxu0 0.0
        %5326 = vmatpush1.xpose.msra.mxu0 0.0
        %5327 = vmatprep.subr.mxu0 0.0
        %5328 = vmatpush1.xpose.msra.mxu0 0.0
        %5329 = vmatprep.subr.mxu0 0.0
        %5330 = vmatpush1.xpose.msra.mxu0 0.0
        %5331 = vmatprep.subr.mxu0 0.0
        %5332 = vmatpush1.xpose.msra.mxu0 0.0
        %5333 = vmatprep.subr.mxu0 0.0
        %5334 = vmatpush1.xpose.msra.mxu0 0.0
        %5335 = vmatprep.subr.mxu0 0.0
        %5336 = vmatpush1.xpose.msra.mxu0 0.0
        %5337 = vmatprep.subr.mxu0 0.0
        %5338 = vmatpush1.xpose.msra.mxu0 0.0
        %5339 = vmatprep.subr.mxu0 0.0
        %5340 = vmatpush1.xpose.msra.mxu0 0.0
        %5341 = vmatprep.subr.mxu0 0.0
        %5342 = vmatpush1.xpose.msra.mxu0 0.0
        %5343 = vmatprep.subr.mxu0 0.0
        %5344 = vmatpush1.xpose.msra.mxu0 0.0
        %5345 = vmatprep.subr.mxu0 0.0
        %5346 = vmatpush1.xpose.msra.mxu0 0.0
        %5347 = vmatprep.subr.mxu0 0.0
        %5348 = vmatpush1.xpose.msra.mxu0 0.0
        %5349 = vmatprep.subr.mxu0 0.0
        %5350 = vmatpush1.xpose.msra.mxu0 0.0
        %5351 = vmatprep.subr.mxu0 0.0
        %5352 = vmatpush1.xpose.msra.mxu0 0.0
        %5353 = vmatprep.subr.mxu0 0.0
        %5354 = vmatpush1.xpose.msra.mxu0 0.0
        %5355 = vmatprep.subr.mxu0 0.0
        %5356 = vmatpush1.xpose.msra.mxu0 0.0
        %5357 = vmatprep.subr.mxu0 0.0
        %5358 = vmatpush1.xpose.msra.mxu0 0.0
        %5359 = vmatprep.subr.mxu0 0.0
        %5360 = vmatpush1.xpose.msra.mxu0 0.0
        %5361 = vmatprep.subr.mxu0 0.0
        %5362 = vmatpush1.xpose.msra.mxu0 0.0
        %5363 = vmatprep.subr.mxu0 0.0
        %5364 = vmatpush1.xpose.msra.mxu0 0.0
        %5365 = vmatprep.subr.mxu0 0.0
        %5366 = vmatpush1.xpose.msra.mxu0 0.0
        %5367 = vmatprep.subr.mxu0 0.0
        %5368 = vmatpush1.xpose.msra.mxu0 0.0
        %5369 = vmatprep.subr.mxu0 0.0
        %5370 = vmatpush1.xpose.msra.mxu0 0.0
        %5371 = vmatprep.subr.mxu0 0.0
        %5372 = vmatpush1.xpose.msra.mxu0 0.0
        %5373 = vmatprep.subr.mxu0 0.0
        %5374 = vmatpush1.xpose.msra.mxu0 0.0
        %5375 = vmatprep.subr.mxu0 0.0
        %5376 = vmatpush1.xpose.msra.mxu0 0.0
        %5377 = vmatprep.mubr.f32.mxu0 0.0
        %5378 = vmatmul.mubr.f32.gmra.mrb[0].mxu0 %v5309
        %v5379 = vpop.f32.mrb[0].mxu0
        %v5380 = vadd.f32 %v862, %v5379
        %v5381 = vpop.f32.mrb[0].mxu0
        %5382 = vdwg.mxu0
        %v5383 = vsel %vm966, %v5380, -inf
        %5384 = vmax.xlane.f32.xlu0 %v5383
        %v5385 = vpop.xlane.xlu0 %5384
        %v5386 = vsub.f32 %v5380, %v5385
        %v5387 = vmul.f32 %v5386, 1.442695
        %v5388 = vpow.pop %v5387
        %v5389 = vsel %vm966, %v5388, 0.0
        %5390 = vadd.xlane.f32.xlu0 %v5389
        %v5391 = vpop.xlane.xlu0 %5390
        %v5392 = vrcp.pop %v5391
        %v5393 = vmul.f32 %v5388, %v5392
        %5394 = vrot.lane.b32.xlu0 %v4973, 48
        %v5395 = vpop.permute.xlu0 %5394
        %v5398 = vsel %vm966, %v5393, 0
        %5400 = vmatprep.subr.mxu0 0.0
        %5401 = vmatpush1.msra.mxu0 %v5395
        %5402 = vmatprep.subr.mxu0 0.0
        %5403 = vmatpush1.msra.mxu0 0.0
        %5404 = vmatprep.subr.mxu0 0.0
        %5405 = vmatpush1.msra.mxu0 0.0
        %5406 = vmatprep.subr.mxu0 0.0
        %5407 = vmatpush1.msra.mxu0 0.0
        %5408 = vmatprep.subr.mxu0 0.0
        %5409 = vmatpush1.msra.mxu0 0.0
        %5410 = vmatprep.subr.mxu0 0.0
        %5411 = vmatpush1.msra.mxu0 0.0
        %5412 = vmatprep.subr.mxu0 0.0
        %5413 = vmatpush1.msra.mxu0 0.0
        %5414 = vmatprep.subr.mxu0 0.0
        %5415 = vmatpush1.msra.mxu0 0.0
        %5416 = vmatprep.subr.mxu0 0.0
        %5417 = vmatpush1.msra.mxu0 0.0
        %5418 = vmatprep.subr.mxu0 0.0
        %5419 = vmatpush1.msra.mxu0 0.0
        %5420 = vmatprep.subr.mxu0 0.0
        %5421 = vmatpush1.msra.mxu0 0.0
        %5422 = vmatprep.subr.mxu0 0.0
        %5423 = vmatpush1.msra.mxu0 0.0
        %5424 = vmatprep.subr.mxu0 0.0
        %5425 = vmatpush1.msra.mxu0 0.0
        %5426 = vmatprep.subr.mxu0 0.0
        %5427 = vmatpush1.msra.mxu0 0.0
        %5428 = vmatprep.subr.mxu0 0.0
        %5429 = vmatpush1.msra.mxu0 0.0
        %5430 = vmatprep.subr.mxu0 0.0
        %5431 = vmatpush1.msra.mxu0 0.0
        %5432 = vmatprep.subr.mxu0 0.0
        %5433 = vmatpush1.msra.mxu0 0.0
        %5434 = vmatprep.subr.mxu0 0.0
        %5435 = vmatpush1.msra.mxu0 0.0
        %5436 = vmatprep.subr.mxu0 0.0
        %5437 = vmatpush1.msra.mxu0 0.0
        %5438 = vmatprep.subr.mxu0 0.0
        %5439 = vmatpush1.msra.mxu0 0.0
        %5440 = vmatprep.subr.mxu0 0.0
        %5441 = vmatpush1.msra.mxu0 0.0
        %5442 = vmatprep.subr.mxu0 0.0
        %5443 = vmatpush1.msra.mxu0 0.0
        %5444 = vmatprep.subr.mxu0 0.0
        %5445 = vmatpush1.msra.mxu0 0.0
        %5446 = vmatprep.subr.mxu0 0.0
        %5447 = vmatpush1.msra.mxu0 0.0
        %5448 = vmatprep.subr.mxu0 0.0
        %5449 = vmatpush1.msra.mxu0 0.0
        %5450 = vmatprep.subr.mxu0 0.0
        %5451 = vmatpush1.msra.mxu0 0.0
        %5452 = vmatprep.subr.mxu0 0.0
        %5453 = vmatpush1.msra.mxu0 0.0
        %5454 = vmatprep.subr.mxu0 0.0
        %5455 = vmatpush1.msra.mxu0 0.0
        %5456 = vmatprep.subr.mxu0 0.0
        %5457 = vmatpush1.msra.mxu0 0.0
        %5458 = vmatprep.subr.mxu0 0.0
        %5459 = vmatpush1.msra.mxu0 0.0
        %5460 = vmatprep.subr.mxu0 0.0
        %5461 = vmatpush1.msra.mxu0 0.0
        %5462 = vmatprep.subr.mxu0 0.0
        %5463 = vmatpush1.msra.mxu0 0.0
        %5464 = vmatprep.mubr.f32.mxu0 0.0
        %5465 = vmatmul.mubr.f32.gmra.mrb[0].mxu0 %v5398
        %v5466 = vpop.f32.mrb[0].mxu0
        %v5467 = vadd.f32 0.0, %v5466
        %v5468 = vpop.f32.mrb[0].mxu0
        %5469 = vdwg.mxu0
        %5470 = vrot.lane.b32.xlu0 %v4973, 104
        %v5471 = vpop.permute.xlu0 %5470
        %5472 = vrot.lane.b32.xlu0 %v4973, 72
        %v5473 = vpop.permute.xlu0 %5472
        %v5474 = vsel %vm966, %v5471, 0
        %v5476 = vsel %vm966, %v5473, 0
        %5478 = vmatprep.subr.mxu0 0.0
        %5479 = vmatpush1.xpose.msra.mxu0 %v5476
        %5480 = vmatprep.subr.mxu0 0.0
        %5481 = vmatpush1.xpose.msra.mxu0 0.0
        %5482 = vmatprep.subr.mxu0 0.0
        %5483 = vmatpush1.xpose.msra.mxu0 0.0
        %5484 = vmatprep.subr.mxu0 0.0
        %5485 = vmatpush1.xpose.msra.mxu0 0.0
        %5486 = vmatprep.subr.mxu0 0.0
        %5487 = vmatpush1.xpose.msra.mxu0 0.0
        %5488 = vmatprep.subr.mxu0 0.0
        %5489 = vmatpush1.xpose.msra.mxu0 0.0
        %5490 = vmatprep.subr.mxu0 0.0
        %5491 = vmatpush1.xpose.msra.mxu0 0.0
        %5492 = vmatprep.subr.mxu0 0.0
        %5493 = vmatpush1.xpose.msra.mxu0 0.0
        %5494 = vmatprep.subr.mxu0 0.0
        %5495 = vmatpush1.xpose.msra.mxu0 0.0
        %5496 = vmatprep.subr.mxu0 0.0
        %5497 = vmatpush1.xpose.msra.mxu0 0.0
        %5498 = vmatprep.subr.mxu0 0.0
        %5499 = vmatpush1.xpose.msra.mxu0 0.0
        %5500 = vmatprep.subr.mxu0 0.0
        %5501 = vmatpush1.xpose.msra.mxu0 0.0
        %5502 = vmatprep.subr.mxu0 0.0
        %5503 = vmatpush1.xpose.msra.mxu0 0.0
        %5504 = vmatprep.subr.mxu0 0.0
        %5505 = vmatpush1.xpose.msra.mxu0 0.0
        %5506 = vmatprep.subr.mxu0 0.0
        %5507 = vmatpush1.xpose.msra.mxu0 0.0
        %5508 = vmatprep.subr.mxu0 0.0
        %5509 = vmatpush1.xpose.msra.mxu0 0.0
        %5510 = vmatprep.subr.mxu0 0.0
        %5511 = vmatpush1.xpose.msra.mxu0 0.0
        %5512 = vmatprep.subr.mxu0 0.0
        %5513 = vmatpush1.xpose.msra.mxu0 0.0
        %5514 = vmatprep.subr.mxu0 0.0
        %5515 = vmatpush1.xpose.msra.mxu0 0.0
        %5516 = vmatprep.subr.mxu0 0.0
        %5517 = vmatpush1.xpose.msra.mxu0 0.0
        %5518 = vmatprep.subr.mxu0 0.0
        %5519 = vmatpush1.xpose.msra.mxu0 0.0
        %5520 = vmatprep.subr.mxu0 0.0
        %5521 = vmatpush1.xpose.msra.mxu0 0.0
        %5522 = vmatprep.subr.mxu0 0.0
        %5523 = vmatpush1.xpose.msra.mxu0 0.0
        %5524 = vmatprep.subr.mxu0 0.0
        %5525 = vmatpush1.xpose.msra.mxu0 0.0
        %5526 = vmatprep.subr.mxu0 0.0
        %5527 = vmatpush1.xpose.msra.mxu0 0.0
        %5528 = vmatprep.subr.mxu0 0.0
        %5529 = vmatpush1.xpose.msra.mxu0 0.0
        %5530 = vmatprep.subr.mxu0 0.0
        %5531 = vmatpush1.xpose.msra.mxu0 0.0
        %5532 = vmatprep.subr.mxu0 0.0
        %5533 = vmatpush1.xpose.msra.mxu0 0.0
        %5534 = vmatprep.subr.mxu0 0.0
        %5535 = vmatpush1.xpose.msra.mxu0 0.0
        %5536 = vmatprep.subr.mxu0 0.0
        %5537 = vmatpush1.xpose.msra.mxu0 0.0
        %5538 = vmatprep.subr.mxu0 0.0
        %5539 = vmatpush1.xpose.msra.mxu0 0.0
        %5540 = vmatprep.subr.mxu0 0.0
        %5541 = vmatpush1.xpose.msra.mxu0 0.0
        %5542 = vmatprep.mubr.f32.mxu0 0.0
        %5543 = vmatmul.mubr.f32.gmra.mrb[0].mxu0 %v5474
        %v5544 = vpop.f32.mrb[0].mxu0
        %v5545 = vadd.f32 %v863, %v5544
        %v5546 = vpop.f32.mrb[0].mxu0
        %5547 = vdwg.mxu0
        %v5548 = vsel %vm966, %v5545, -inf
        %5549 = vmax.xlane.f32.xlu0 %v5548
        %v5550 = vpop.xlane.xlu0 %5549
        %v5551 = vsub.f32 %v5545, %v5550
        %v5552 = vmul.f32 %v5551, 1.442695
        %v5553 = vpow.pop %v5552
        %v5554 = vsel %vm966, %v5553, 0.0
        %5555 = vadd.xlane.f32.xlu0 %v5554
        %v5556 = vpop.xlane.xlu0 %5555
        %v5557 = vrcp.pop %v5556
        %v5558 = vmul.f32 %v5553, %v5557
        %5559 = vrot.lane.b32.xlu0 %v4973, 40
        %v5560 = vpop.permute.xlu0 %5559
        %v5563 = vsel %vm966, %v5558, 0
        %5565 = vmatprep.subr.mxu0 0.0
        %5566 = vmatpush1.msra.mxu0 %v5560
        %5567 = vmatprep.subr.mxu0 0.0
        %5568 = vmatpush1.msra.mxu0 0.0
        %5569 = vmatprep.subr.mxu0 0.0
        %5570 = vmatpush1.msra.mxu0 0.0
        %5571 = vmatprep.subr.mxu0 0.0
        %5572 = vmatpush1.msra.mxu0 0.0
        %5573 = vmatprep.subr.mxu0 0.0
        %5574 = vmatpush1.msra.mxu0 0.0
        %5575 = vmatprep.subr.mxu0 0.0
        %5576 = vmatpush1.msra.mxu0 0.0
        %5577 = vmatprep.subr.mxu0 0.0
        %5578 = vmatpush1.msra.mxu0 0.0
        %5579 = vmatprep.subr.mxu0 0.0
        %5580 = vmatpush1.msra.mxu0 0.0
        %5581 = vmatprep.subr.mxu0 0.0
        %5582 = vmatpush1.msra.mxu0 0.0
        %5583 = vmatprep.subr.mxu0 0.0
        %5584 = vmatpush1.msra.mxu0 0.0
        %5585 = vmatprep.subr.mxu0 0.0
        %5586 = vmatpush1.msra.mxu0 0.0
        %5587 = vmatprep.subr.mxu0 0.0
        %5588 = vmatpush1.msra.mxu0 0.0
        %5589 = vmatprep.subr.mxu0 0.0
        %5590 = vmatpush1.msra.mxu0 0.0
        %5591 = vmatprep.subr.mxu0 0.0
        %5592 = vmatpush1.msra.mxu0 0.0
        %5593 = vmatprep.subr.mxu0 0.0
        %5594 = vmatpush1.msra.mxu0 0.0
        %5595 = vmatprep.subr.mxu0 0.0
        %5596 = vmatpush1.msra.mxu0 0.0
        %5597 = vmatprep.subr.mxu0 0.0
        %5598 = vmatpush1.msra.mxu0 0.0
        %5599 = vmatprep.subr.mxu0 0.0
        %5600 = vmatpush1.msra.mxu0 0.0
        %5601 = vmatprep.subr.mxu0 0.0
        %5602 = vmatpush1.msra.mxu0 0.0
        %5603 = vmatprep.subr.mxu0 0.0
        %5604 = vmatpush1.msra.mxu0 0.0
        %5605 = vmatprep.subr.mxu0 0.0
        %5606 = vmatpush1.msra.mxu0 0.0
        %5607 = vmatprep.subr.mxu0 0.0
        %5608 = vmatpush1.msra.mxu0 0.0
        %5609 = vmatprep.subr.mxu0 0.0
        %5610 = vmatpush1.msra.mxu0 0.0
        %5611 = vmatprep.subr.mxu0 0.0
        %5612 = vmatpush1.msra.mxu0 0.0
        %5613 = vmatprep.subr.mxu0 0.0
        %5614 = vmatpush1.msra.mxu0 0.0
        %5615 = vmatprep.subr.mxu0 0.0
        %5616 = vmatpush1.msra.mxu0 0.0
        %5617 = vmatprep.subr.mxu0 0.0
        %5618 = vmatpush1.msra.mxu0 0.0
        %5619 = vmatprep.subr.mxu0 0.0
        %5620 = vmatpush1.msra.mxu0 0.0
        %5621 = vmatprep.subr.mxu0 0.0
        %5622 = vmatpush1.msra.mxu0 0.0
        %5623 = vmatprep.subr.mxu0 0.0
        %5624 = vmatpush1.msra.mxu0 0.0
        %5625 = vmatprep.subr.mxu0 0.0
        %5626 = vmatpush1.msra.mxu0 0.0
        %5627 = vmatprep.subr.mxu0 0.0
        %5628 = vmatpush1.msra.mxu0 0.0
        %5629 = vmatprep.mubr.f32.mxu0 0.0
        %5630 = vmatmul.mubr.f32.gmra.mrb[0].mxu0 %v5563
        %v5631 = vpop.f32.mrb[0].mxu0
        %v5632 = vadd.f32 0.0, %v5631
        %v5633 = vpop.f32.mrb[0].mxu0
        %5634 = vdwg.mxu0
        %5636 = vrot.lane.b32.xlu0 %v5302, 8
        %v5637 = vpop.permute.xlu0 %5636
        %5640 = vrot.lane.b32.xlu0 %v5467, 16
        %v5641 = vpop.permute.xlu0 %5640
        %5644 = vrot.lane.b32.xlu0 %v5632, 24
        %v5645 = vpop.permute.xlu0 %5644
        %v5647 = vsel %vm966, %v5137, %v5637
        %v5648 = vsel %vm1636, %v5647, %v5641
        %v5649 = vsel %vm1638, %v5648, %v5645
        %v5651 = vsel %vm874, %v5649, 0
        %5653 = vmatprep.subr.mxu0 0.0
        %5654 = vmatpush1.msra.mxu0 %v4884
        %5655 = vmatprep.subr.mxu0 0.0
        %5656 = vmatpush1.msra.mxu0 %v4885
        %5657 = vmatprep.subr.mxu0 0.0
        %5658 = vmatpush1.msra.mxu0 %v4886
        %5659 = vmatprep.subr.mxu0 0.0
        %5660 = vmatpush1.msra.mxu0 %v4887
        %5661 = vmatprep.subr.mxu0 0.0
        %5662 = vmatpush1.msra.mxu0 0.0
        %5663 = vmatprep.subr.mxu0 0.0
        %5664 = vmatpush1.msra.mxu0 0.0
        %5665 = vmatprep.subr.mxu0 0.0
        %5666 = vmatpush1.msra.mxu0 0.0
        %5667 = vmatprep.subr.mxu0 0.0
        %5668 = vmatpush1.msra.mxu0 0.0
        %5669 = vmatprep.subr.mxu0 0.0
        %5670 = vmatpush1.msra.mxu0 0.0
        %5671 = vmatprep.subr.mxu0 0.0
        %5672 = vmatpush1.msra.mxu0 0.0
        %5673 = vmatprep.subr.mxu0 0.0
        %5674 = vmatpush1.msra.mxu0 0.0
        %5675 = vmatprep.subr.mxu0 0.0
        %5676 = vmatpush1.msra.mxu0 0.0
        %5677 = vmatprep.subr.mxu0 0.0
        %5678 = vmatpush1.msra.mxu0 0.0
        %5679 = vmatprep.subr.mxu0 0.0
        %5680 = vmatpush1.msra.mxu0 0.0
        %5681 = vmatprep.subr.mxu0 0.0
        %5682 = vmatpush1.msra.mxu0 0.0
        %5683 = vmatprep.subr.mxu0 0.0
        %5684 = vmatpush1.msra.mxu0 0.0
        %5685 = vmatprep.subr.mxu0 0.0
        %5686 = vmatpush1.msra.mxu0 0.0
        %5687 = vmatprep.subr.mxu0 0.0
        %5688 = vmatpush1.msra.mxu0 0.0
        %5689 = vmatprep.subr.mxu0 0.0
        %5690 = vmatpush1.msra.mxu0 0.0
        %5691 = vmatprep.subr.mxu0 0.0
        %5692 = vmatpush1.msra.mxu0 0.0
        %5693 = vmatprep.subr.mxu0 0.0
        %5694 = vmatpush1.msra.mxu0 0.0
        %5695 = vmatprep.subr.mxu0 0.0
        %5696 = vmatpush1.msra.mxu0 0.0
        %5697 = vmatprep.subr.mxu0 0.0
        %5698 = vmatpush1.msra.mxu0 0.0
        %5699 = vmatprep.subr.mxu0 0.0
        %5700 = vmatpush1.msra.mxu0 0.0
        %5701 = vmatprep.subr.mxu0 0.0
        %5702 = vmatpush1.msra.mxu0 0.0
        %5703 = vmatprep.subr.mxu0 0.0
        %5704 = vmatpush1.msra.mxu0 0.0
        %5705 = vmatprep.subr.mxu0 0.0
        %5706 = vmatpush1.msra.mxu0 0.0
        %5707 = vmatprep.subr.mxu0 0.0
        %5708 = vmatpush1.msra.mxu0 0.0
        %5709 = vmatprep.subr.mxu0 0.0
        %5710 = vmatpush1.msra.mxu0 0.0
        %5711 = vmatprep.subr.mxu0 0.0
        %5712 = vmatpush1.msra.mxu0 0.0
        %5713 = vmatprep.subr.mxu0 0.0
        %5714 = vmatpush1.msra.mxu0 0.0
        %5715 = vmatprep.subr.mxu0 0.0
        %5716 = vmatpush1.msra.mxu0 0.0
        %5717 = vmatprep.mubr.f32.mxu0 0.0
        %5718 = vmatmul.mubr.f32.gmra.mrb[0].mxu0 %v5651
        %v5719 = vpop.f32.mrb[0].mxu0
        %v5720 = vadd.f32 0.0, %v5719
        %v5721 = vpop.f32.mrb[0].mxu0
        %5722 = vdwg.mxu0
        %v5723 = vadd.f32 %v4875, %v5720
        %s5724 = scalar_lea.vmem %s16, 1
        %v5725 = vld [vmem:[%s5724] sm:$0x1]
        %s5726 = scalar_lea.vmem %s17, 32
        %v5727 = vld [vmem:[%s5726] sm:$0xff]
        %v5728 = vld [vmem:[%s5726 + $0x8] sm:$0xff]
        %v5729 = vld [vmem:[%s5726 + $0x10] sm:$0xff]
        %v5730 = vld [vmem:[%s5726 + $0x18] sm:$0xff]
        %s5731 = scalar_lea.vmem %s18, 32
        %v5732 = vld [vmem:[%s5731] sm:$0xff]
        %v5733 = vld [vmem:[%s5731 + $0x8] sm:$0xff]
        %v5734 = vld [vmem:[%s5731 + $0x10] sm:$0xff]
        %v5735 = vld [vmem:[%s5731 + $0x18] sm:$0xff]
        %s5736 = scalar_lea.vmem %s19, 32
        %v5737 = vld [vmem:[%s5736] sm:$0xff]
        %v5738 = vld [vmem:[%s5736 + $0x8] sm:$0xff]
        %v5739 = vld [vmem:[%s5736 + $0x10] sm:$0xff]
        %v5740 = vld [vmem:[%s5736 + $0x18] sm:$0xff]
        %v5741 = vmul.f32 %v5723, %v5723
        %v5742 = vsel %vm874, %v5741, 0.0
        %5743 = vadd.xlane.f32.xlu0 %v5742
        %v5744 = vpop.xlane.xlu0 %5743
        %v5745 = vmul.f32 %v5744, %v878
        %v5746 = vadd.f32 %v5745, 1e-06
        %v5747 = vrsqrt.pop %v5746
        %v5748 = vmul.f32 %v5723, %v5747
        %v5750 = vlaneseq
        %v5751 = vshrl.u32 %v5750, 7
        %v5752 = vsub.s32 0, %v5751
        %v5753 = vrot.slane %v5725, %v5752
        %v5755 = vmul.f32 %v5748, %v5753
        %v5757 = vsel %vm874, %v5755, 0
        %5759 = vmatprep.subr.mxu0 0.0
        %5760 = vmatpush1.msra.mxu0 %v5727
        %5761 = vmatprep.subr.mxu0 0.0
        %5762 = vmatpush1.msra.mxu0 %v5728
        %5763 = vmatprep.subr.mxu0 0.0
        %5764 = vmatpush1.msra.mxu0 %v5729
        %5765 = vmatprep.subr.mxu0 0.0
        %5766 = vmatpush1.msra.mxu0 %v5730
        %5767 = vmatprep.subr.mxu0 0.0
        %5768 = vmatpush1.msra.mxu0 0.0
        %5769 = vmatprep.subr.mxu0 0.0
        %5770 = vmatpush1.msra.mxu0 0.0
        %5771 = vmatprep.subr.mxu0 0.0
        %5772 = vmatpush1.msra.mxu0 0.0
        %5773 = vmatprep.subr.mxu0 0.0
        %5774 = vmatpush1.msra.mxu0 0.0
        %5775 = vmatprep.subr.mxu0 0.0
        %5776 = vmatpush1.msra.mxu0 0.0
        %5777 = vmatprep.subr.mxu0 0.0
        %5778 = vmatpush1.msra.mxu0 0.0
        %5779 = vmatprep.subr.mxu0 0.0
        %5780 = vmatpush1.msra.mxu0 0.0
        %5781 = vmatprep.subr.mxu0 0.0
        %5782 = vmatpush1.msra.mxu0 0.0
        %5783 = vmatprep.subr.mxu0 0.0
        %5784 = vmatpush1.msra.mxu0 0.0
        %5785 = vmatprep.subr.mxu0 0.0
        %5786 = vmatpush1.msra.mxu0 0.0
        %5787 = vmatprep.subr.mxu0 0.0
        %5788 = vmatpush1.msra.mxu0 0.0
        %5789 = vmatprep.subr.mxu0 0.0
        %5790 = vmatpush1.msra.mxu0 0.0
        %5791 = vmatprep.subr.mxu0 0.0
        %5792 = vmatpush1.msra.mxu0 0.0
        %5793 = vmatprep.subr.mxu0 0.0
        %5794 = vmatpush1.msra.mxu0 0.0
        %5795 = vmatprep.subr.mxu0 0.0
        %5796 = vmatpush1.msra.mxu0 0.0
        %5797 = vmatprep.subr.mxu0 0.0
        %5798 = vmatpush1.msra.mxu0 0.0
        %5799 = vmatprep.subr.mxu0 0.0
        %5800 = vmatpush1.msra.mxu0 0.0
        %5801 = vmatprep.subr.mxu0 0.0
        %5802 = vmatpush1.msra.mxu0 0.0
        %5803 = vmatprep.subr.mxu0 0.0
        %5804 = vmatpush1.msra.mxu0 0.0
        %5805 = vmatprep.subr.mxu0 0.0
        %5806 = vmatpush1.msra.mxu0 0.0
        %5807 = vmatprep.subr.mxu0 0.0
        %5808 = vmatpush1.msra.mxu0 0.0
        %5809 = vmatprep.subr.mxu0 0.0
        %5810 = vmatpush1.msra.mxu0 0.0
        %5811 = vmatprep.subr.mxu0 0.0
        %5812 = vmatpush1.msra.mxu0 0.0
        %5813 = vmatprep.subr.mxu0 0.0
        %5814 = vmatpush1.msra.mxu0 0.0
        %5815 = vmatprep.subr.mxu0 0.0
        %5816 = vmatpush1.msra.mxu0 0.0
        %5817 = vmatprep.subr.mxu0 0.0
        %5818 = vmatpush1.msra.mxu0 0.0
        %5819 = vmatprep.subr.mxu0 0.0
        %5820 = vmatpush1.msra.mxu0 0.0
        %5821 = vmatprep.subr.mxu0 0.0
        %5822 = vmatpush1.msra.mxu0 0.0
        %5823 = vmatprep.mubr.f32.mxu0 0.0
        %5824 = vmatmul.mubr.f32.gmra.mrb[0].mxu0 %v5757
        %v5825 = vpop.f32.mrb[0].mxu0
        %v5826 = vadd.f32 0.0, %v5825
        %v5827 = vpop.f32.mrb[0].mxu0
        %5828 = vdwg.mxu0
        %5829 = vmatprep.subr.mxu0 0.0
        %5830 = vmatpush1.msra.mxu0 %v5732
        %5831 = vmatprep.subr.mxu0 0.0
        %5832 = vmatpush1.msra.mxu0 %v5733
        %5833 = vmatprep.subr.mxu0 0.0
        %5834 = vmatpush1.msra.mxu0 %v5734
        %5835 = vmatprep.subr.mxu0 0.0
        %5836 = vmatpush1.msra.mxu0 %v5735
        %5837 = vmatprep.subr.mxu0 0.0
        %5838 = vmatpush1.msra.mxu0 0.0
        %5839 = vmatprep.subr.mxu0 0.0
        %5840 = vmatpush1.msra.mxu0 0.0
        %5841 = vmatprep.subr.mxu0 0.0
        %5842 = vmatpush1.msra.mxu0 0.0
        %5843 = vmatprep.subr.mxu0 0.0
        %5844 = vmatpush1.msra.mxu0 0.0
        %5845 = vmatprep.subr.mxu0 0.0
        %5846 = vmatpush1.msra.mxu0 0.0
        %5847 = vmatprep.subr.mxu0 0.0
        %5848 = vmatpush1.msra.mxu0 0.0
        %5849 = vmatprep.subr.mxu0 0.0
        %5850 = vmatpush1.msra.mxu0 0.0
        %5851 = vmatprep.subr.mxu0 0.0
        %5852 = vmatpush1.msra.mxu0 0.0
        %5853 = vmatprep.subr.mxu0 0.0
        %5854 = vmatpush1.msra.mxu0 0.0
        %5855 = vmatprep.subr.mxu0 0.0
        %5856 = vmatpush1.msra.mxu0 0.0
        %5857 = vmatprep.subr.mxu0 0.0
        %5858 = vmatpush1.msra.mxu0 0.0
        %5859 = vmatprep.subr.mxu0 0.0
        %5860 = vmatpush1.msra.mxu0 0.0
        %5861 = vmatprep.subr.mxu0 0.0
        %5862 = vmatpush1.msra.mxu0 0.0
        %5863 = vmatprep.subr.mxu0 0.0
        %5864 = vmatpush1.msra.mxu0 0.0
        %5865 = vmatprep.subr.mxu0 0.0
        %5866 = vmatpush1.msra.mxu0 0.0
        %5867 = vmatprep.subr.mxu0 0.0
        %5868 = vmatpush1.msra.mxu0 0.0
        %5869 = vmatprep.subr.mxu0 0.0
        %5870 = vmatpush1.msra.mxu0 0.0
        %5871 = vmatprep.subr.mxu0 0.0
        %5872 = vmatpush1.msra.mxu0 0.0
        %5873 = vmatprep.subr.mxu0 0.0
        %5874 = vmatpush1.msra.mxu0 0.0
        %5875 = vmatprep.subr.mxu0 0.0
        %5876 = vmatpush1.msra.mxu0 0.0
        %5877 = vmatprep.subr.mxu0 0.0
        %5878 = vmatpush1.msra.mxu0 0.0
        %5879 = vmatprep.subr.mxu0 0.0
        %5880 = vmatpush1.msra.mxu0 0.0
        %5881 = vmatprep.subr.mxu0 0.0
        %5882 = vmatpush1.msra.mxu0 0.0
        %5883 = vmatprep.subr.mxu0 0.0
        %5884 = vmatpush1.msra.mxu0 0.0
        %5885 = vmatprep.subr.mxu0 0.0
        %5886 = vmatpush1.msra.mxu0 0.0
        %5887 = vmatprep.subr.mxu0 0.0
        %5888 = vmatpush1.msra.mxu0 0.0
        %5889 = vmatprep.subr.mxu0 0.0
        %5890 = vmatpush1.msra.mxu0 0.0
        %5891 = vmatprep.subr.mxu0 0.0
        %5892 = vmatpush1.msra.mxu0 0.0
        %5893 = vmatprep.mubr.f32.mxu0 0.0
        %5894 = vmatmul.mubr.f32.gmra.mrb[0].mxu0 %v3881
        %v5895 = vpop.f32.mrb[0].mxu0
        %v5896 = vadd.f32 0.0, %v5895
        %v5897 = vpop.f32.mrb[0].mxu0
        %5898 = vdwg.mxu0
        %v5900 = vsel %vm966, %v5826, 0
        %v5903 = vsel %vm966, %v5896, 0
        %5905 = vmatprep.subr.mxu0 0.0
        %5906 = vmatpush1.xpose.msra.mxu0 %v5903
        %5907 = vmatprep.subr.mxu0 0.0
        %5908 = vmatpush1.xpose.msra.mxu0 0.0
        %5909 = vmatprep.subr.mxu0 0.0
        %5910 = vmatpush1.xpose.msra.mxu0 0.0
        %5911 = vmatprep.subr.mxu0 0.0
        %5912 = vmatpush1.xpose.msra.mxu0 0.0
        %5913 = vmatprep.subr.mxu0 0.0
        %5914 = vmatpush1.xpose.msra.mxu0 0.0
        %5915 = vmatprep.subr.mxu0 0.0
        %5916 = vmatpush1.xpose.msra.mxu0 0.0
        %5917 = vmatprep.subr.mxu0 0.0
        %5918 = vmatpush1.xpose.msra.mxu0 0.0
        %5919 = vmatprep.subr.mxu0 0.0
        %5920 = vmatpush1.xpose.msra.mxu0 0.0
        %5921 = vmatprep.subr.mxu0 0.0
        %5922 = vmatpush1.xpose.msra.mxu0 0.0
        %5923 = vmatprep.subr.mxu0 0.0
        %5924 = vmatpush1.xpose.msra.mxu0 0.0
        %5925 = vmatprep.subr.mxu0 0.0
        %5926 = vmatpush1.xpose.msra.mxu0 0.0
        %5927 = vmatprep.subr.mxu0 0.0
        %5928 = vmatpush1.xpose.msra.mxu0 0.0
        %5929 = vmatprep.subr.mxu0 0.0
        %5930 = vmatpush1.xpose.msra.mxu0 0.0
        %5931 = vmatprep.subr.mxu0 0.0
        %5932 = vmatpush1.xpose.msra.mxu0 0.0
        %5933 = vmatprep.subr.mxu0 0.0
        %5934 = vmatpush1.xpose.msra.mxu0 0.0
        %5935 = vmatprep.subr.mxu0 0.0
        %5936 = vmatpush1.xpose.msra.mxu0 0.0
        %5937 = vmatprep.subr.mxu0 0.0
        %5938 = vmatpush1.xpose.msra.mxu0 0.0
        %5939 = vmatprep.subr.mxu0 0.0
        %5940 = vmatpush1.xpose.msra.mxu0 0.0
        %5941 = vmatprep.subr.mxu0 0.0
        %5942 = vmatpush1.xpose.msra.mxu0 0.0
        %5943 = vmatprep.subr.mxu0 0.0
        %5944 = vmatpush1.xpose.msra.mxu0 0.0
        %5945 = vmatprep.subr.mxu0 0.0
        %5946 = vmatpush1.xpose.msra.mxu0 0.0
        %5947 = vmatprep.subr.mxu0 0.0
        %5948 = vmatpush1.xpose.msra.mxu0 0.0
        %5949 = vmatprep.subr.mxu0 0.0
        %5950 = vmatpush1.xpose.msra.mxu0 0.0
        %5951 = vmatprep.subr.mxu0 0.0
        %5952 = vmatpush1.xpose.msra.mxu0 0.0
        %5953 = vmatprep.subr.mxu0 0.0
        %5954 = vmatpush1.xpose.msra.mxu0 0.0
        %5955 = vmatprep.subr.mxu0 0.0
        %5956 = vmatpush1.xpose.msra.mxu0 0.0
        %5957 = vmatprep.subr.mxu0 0.0
        %5958 = vmatpush1.xpose.msra.mxu0 0.0
        %5959 = vmatprep.subr.mxu0 0.0
        %5960 = vmatpush1.xpose.msra.mxu0 0.0
        %5961 = vmatprep.subr.mxu0 0.0
        %5962 = vmatpush1.xpose.msra.mxu0 0.0
        %5963 = vmatprep.subr.mxu0 0.0
        %5964 = vmatpush1.xpose.msra.mxu0 0.0
        %5965 = vmatprep.subr.mxu0 0.0
        %5966 = vmatpush1.xpose.msra.mxu0 0.0
        %5967 = vmatprep.subr.mxu0 0.0
        %5968 = vmatpush1.xpose.msra.mxu0 0.0
        %5969 = vmatprep.mubr.f32.mxu0 0.0
        %5970 = vmatmul.mubr.f32.gmra.mrb[0].mxu0 %v5900
        %v5971 = vpop.f32.mrb[0].mxu0
        %v5972 = vadd.f32 %v844, %v5971
        %v5973 = vpop.f32.mrb[0].mxu0
        %5974 = vdwg.mxu0
        %v5975 = vsel %vm966, %v5972, -inf
        %5976 = vmax.xlane.f32.xlu0 %v5975
        %v5977 = vpop.xlane.xlu0 %5976
        %v5978 = vsub.f32 %v5972, %v5977
        %v5979 = vmul.f32 %v5978, 1.442695
        %v5980 = vpow.pop %v5979
        %v5981 = vsel %vm966, %v5980, 0.0
        %5982 = vadd.xlane.f32.xlu0 %v5981
        %v5983 = vpop.xlane.xlu0 %5982
        %v5984 = vrcp.pop %v5983
        %v5985 = vmul.f32 %v5980, %v5984
        %5986 = vrot.lane.b32.xlu0 %v5896, 96
        %v5987 = vpop.permute.xlu0 %5986
        %v5990 = vsel %vm966, %v5985, 0
        %5992 = vmatprep.subr.mxu0 0.0
        %5993 = vmatpush1.msra.mxu0 %v5987
        %5994 = vmatprep.subr.mxu0 0.0
        %5995 = vmatpush1.msra.mxu0 0.0
        %5996 = vmatprep.subr.mxu0 0.0
        %5997 = vmatpush1.msra.mxu0 0.0
        %5998 = vmatprep.subr.mxu0 0.0
        %5999 = vmatpush1.msra.mxu0 0.0
        %6000 = vmatprep.subr.mxu0 0.0
        %6001 = vmatpush1.msra.mxu0 0.0
        %6002 = vmatprep.subr.mxu0 0.0
        %6003 = vmatpush1.msra.mxu0 0.0
        %6004 = vmatprep.subr.mxu0 0.0
        %6005 = vmatpush1.msra.mxu0 0.0
        %6006 = vmatprep.subr.mxu0 0.0
        %6007 = vmatpush1.msra.mxu0 0.0
        %6008 = vmatprep.subr.mxu0 0.0
        %6009 = vmatpush1.msra.mxu0 0.0
        %6010 = vmatprep.subr.mxu0 0.0
        %6011 = vmatpush1.msra.mxu0 0.0
        %6012 = vmatprep.subr.mxu0 0.0
        %6013 = vmatpush1.msra.mxu0 0.0
        %6014 = vmatprep.subr.mxu0 0.0
        %6015 = vmatpush1.msra.mxu0 0.0
        %6016 = vmatprep.subr.mxu0 0.0
        %6017 = vmatpush1.msra.mxu0 0.0
        %6018 = vmatprep.subr.mxu0 0.0
        %6019 = vmatpush1.msra.mxu0 0.0
        %6020 = vmatprep.subr.mxu0 0.0
        %6021 = vmatpush1.msra.mxu0 0.0
        %6022 = vmatprep.subr.mxu0 0.0
        %6023 = vmatpush1.msra.mxu0 0.0
        %6024 = vmatprep.subr.mxu0 0.0
        %6025 = vmatpush1.msra.mxu0 0.0
        %6026 = vmatprep.subr.mxu0 0.0
        %6027 = vmatpush1.msra.mxu0 0.0
        %6028 = vmatprep.subr.mxu0 0.0
        %6029 = vmatpush1.msra.mxu0 0.0
        %6030 = vmatprep.subr.mxu0 0.0
        %6031 = vmatpush1.msra.mxu0 0.0
        %6032 = vmatprep.subr.mxu0 0.0
        %6033 = vmatpush1.msra.mxu0 0.0
        %6034 = vmatprep.subr.mxu0 0.0
        %6035 = vmatpush1.msra.mxu0 0.0
        %6036 = vmatprep.subr.mxu0 0.0
        %6037 = vmatpush1.msra.mxu0 0.0
        %6038 = vmatprep.subr.mxu0 0.0
        %6039 = vmatpush1.msra.mxu0 0.0
        %6040 = vmatprep.subr.mxu0 0.0
        %6041 = vmatpush1.msra.mxu0 0.0
        %6042 = vmatprep.subr.mxu0 0.0
        %6043 = vmatpush1.msra.mxu0 0.0
        %6044 = vmatprep.subr.mxu0 0.0
        %6045 = vmatpush1.msra.mxu0 0.0
        %6046 = vmatprep.subr.mxu0 0.0
        %6047 = vmatpush1.msra.mxu0 0.0
        %6048 = vmatprep.subr.mxu0 0.0
        %6049 = vmatpush1.msra.mxu0 0.0
        %6050 = vmatprep.subr.mxu0 0.0
        %6051 = vmatpush1.msra.mxu0 0.0
        %6052 = vmatprep.subr.mxu0 0.0
        %6053 = vmatpush1.msra.mxu0 0.0
        %6054 = vmatprep.subr.mxu0 0.0
        %6055 = vmatpush1.msra.mxu0 0.0
        %6056 = vmatprep.mubr.f32.mxu0 0.0
        %6057 = vmatmul.mubr.f32.gmra.mrb[0].mxu0 %v5990
        %v6058 = vpop.f32.mrb[0].mxu0
        %v6059 = vadd.f32 0.0, %v6058
        %v6060 = vpop.f32.mrb[0].mxu0
        %6061 = vdwg.mxu0
        %6062 = vrot.lane.b32.xlu0 %v5826, 120
        %v6063 = vpop.permute.xlu0 %6062
        %6064 = vrot.lane.b32.xlu0 %v5896, 120
        %v6065 = vpop.permute.xlu0 %6064
        %v6066 = vsel %vm966, %v6063, 0
        %v6068 = vsel %vm966, %v6065, 0
        %6070 = vmatprep.subr.mxu0 0.0
        %6071 = vmatpush1.xpose.msra.mxu0 %v6068
        %6072 = vmatprep.subr.mxu0 0.0
        %6073 = vmatpush1.xpose.msra.mxu0 0.0
        %6074 = vmatprep.subr.mxu0 0.0
        %6075 = vmatpush1.xpose.msra.mxu0 0.0
        %6076 = vmatprep.subr.mxu0 0.0
        %6077 = vmatpush1.xpose.msra.mxu0 0.0
        %6078 = vmatprep.subr.mxu0 0.0
        %6079 = vmatpush1.xpose.msra.mxu0 0.0
        %6080 = vmatprep.subr.mxu0 0.0
        %6081 = vmatpush1.xpose.msra.mxu0 0.0
        %6082 = vmatprep.subr.mxu0 0.0
        %6083 = vmatpush1.xpose.msra.mxu0 0.0
        %6084 = vmatprep.subr.mxu0 0.0
        %6085 = vmatpush1.xpose.msra.mxu0 0.0
        %6086 = vmatprep.subr.mxu0 0.0
        %6087 = vmatpush1.xpose.msra.mxu0 0.0
        %6088 = vmatprep.subr.mxu0 0.0
        %6089 = vmatpush1.xpose.msra.mxu0 0.0
        %6090 = vmatprep.subr.mxu0 0.0
        %6091 = vmatpush1.xpose.msra.mxu0 0.0
        %6092 = vmatprep.subr.mxu0 0.0
        %6093 = vmatpush1.xpose.msra.mxu0 0.0
        %6094 = vmatprep.subr.mxu0 0.0
        %6095 = vmatpush1.xpose.msra.mxu0 0.0
        %6096 = vmatprep.subr.mxu0 0.0
        %6097 = vmatpush1.xpose.msra.mxu0 0.0
        %6098 = vmatprep.subr.mxu0 0.0
        %6099 = vmatpush1.xpose.msra.mxu0 0.0
        %6100 = vmatprep.subr.mxu0 0.0
        %6101 = vmatpush1.xpose.msra.mxu0 0.0
        %6102 = vmatprep.subr.mxu0 0.0
        %6103 = vmatpush1.xpose.msra.mxu0 0.0
        %6104 = vmatprep.subr.mxu0 0.0
        %6105 = vmatpush1.xpose.msra.mxu0 0.0
        %6106 = vmatprep.subr.mxu0 0.0
        %6107 = vmatpush1.xpose.msra.mxu0 0.0
        %6108 = vmatprep.subr.mxu0 0.0
        %6109 = vmatpush1.xpose.msra.mxu0 0.0
        %6110 = vmatprep.subr.mxu0 0.0
        %6111 = vmatpush1.xpose.msra.mxu0 0.0
        %6112 = vmatprep.subr.mxu0 0.0
        %6113 = vmatpush1.xpose.msra.mxu0 0.0
        %6114 = vmatprep.subr.mxu0 0.0
        %6115 = vmatpush1.xpose.msra.mxu0 0.0
        %6116 = vmatprep.subr.mxu0 0.0
        %6117 = vmatpush1.xpose.msra.mxu0 0.0
        %6118 = vmatprep.subr.mxu0 0.0
        %6119 = vmatpush1.xpose.msra.mxu0 0.0
        %6120 = vmatprep.subr.mxu0 0.0
        %6121 = vmatpush1.xpose.msra.mxu0 0.0
        %6122 = vmatprep.subr.mxu0 0.0
        %6123 = vmatpush1.xpose.msra.mxu0 0.0
        %6124 = vmatprep.subr.mxu0 0.0
        %6125 = vmatpush1.xpose.msra.mxu0 0.0
        %6126 = vmatprep.subr.mxu0 0.0
        %6127 = vmatpush1.xpose.msra.mxu0 0.0
        %6128 = vmatprep.subr.mxu0 0.0
        %6129 = vmatpush1.xpose.msra.mxu0 0.0
        %6130 = vmatprep.subr.mxu0 0.0
        %6131 = vmatpush1.xpose.msra.mxu0 0.0
        %6132 = vmatprep.subr.mxu0 0.0
        %6133 = vmatpush1.xpose.msra.mxu0 0.0
        %6134 = vmatprep.mubr.f32.mxu0 0.0
        %6135 = vmatmul.mubr.f32.gmra.mrb[0].mxu0 %v6066
        %v6136 = vpop.f32.mrb[0].mxu0
        %v6137 = vadd.f32 %v844, %v6136
        %v6138 = vpop.f32.mrb[0].mxu0
        %6139 = vdwg.mxu0
        %v6140 = vsel %vm966, %v6137, -inf
        %6141 = vmax.xlane.f32.xlu0 %v6140
        %v6142 = vpop.xlane.xlu0 %6141
        %v6143 = vsub.f32 %v6137, %v6142
        %v6144 = vmul.f32 %v6143, 1.442695
        %v6145 = vpow.pop %v6144
        %v6146 = vsel %vm966, %v6145, 0.0
        %6147 = vadd.xlane.f32.xlu0 %v6146
        %v6148 = vpop.xlane.xlu0 %6147
        %v6149 = vrcp.pop %v6148
        %v6150 = vmul.f32 %v6145, %v6149
        %6151 = vrot.lane.b32.xlu0 %v5896, 88
        %v6152 = vpop.permute.xlu0 %6151
        %v6155 = vsel %vm966, %v6150, 0
        %6157 = vmatprep.subr.mxu0 0.0
        %6158 = vmatpush1.msra.mxu0 %v6152
        %6159 = vmatprep.subr.mxu0 0.0
        %6160 = vmatpush1.msra.mxu0 0.0
        %6161 = vmatprep.subr.mxu0 0.0
        %6162 = vmatpush1.msra.mxu0 0.0
        %6163 = vmatprep.subr.mxu0 0.0
        %6164 = vmatpush1.msra.mxu0 0.0
        %6165 = vmatprep.subr.mxu0 0.0
        %6166 = vmatpush1.msra.mxu0 0.0
        %6167 = vmatprep.subr.mxu0 0.0
        %6168 = vmatpush1.msra.mxu0 0.0
        %6169 = vmatprep.subr.mxu0 0.0
        %6170 = vmatpush1.msra.mxu0 0.0
        %6171 = vmatprep.subr.mxu0 0.0
        %6172 = vmatpush1.msra.mxu0 0.0
        %6173 = vmatprep.subr.mxu0 0.0
        %6174 = vmatpush1.msra.mxu0 0.0
        %6175 = vmatprep.subr.mxu0 0.0
        %6176 = vmatpush1.msra.mxu0 0.0
        %6177 = vmatprep.subr.mxu0 0.0
        %6178 = vmatpush1.msra.mxu0 0.0
        %6179 = vmatprep.subr.mxu0 0.0
        %6180 = vmatpush1.msra.mxu0 0.0
        %6181 = vmatprep.subr.mxu0 0.0
        %6182 = vmatpush1.msra.mxu0 0.0
        %6183 = vmatprep.subr.mxu0 0.0
        %6184 = vmatpush1.msra.mxu0 0.0
        %6185 = vmatprep.subr.mxu0 0.0
        %6186 = vmatpush1.msra.mxu0 0.0
        %6187 = vmatprep.subr.mxu0 0.0
        %6188 = vmatpush1.msra.mxu0 0.0
        %6189 = vmatprep.subr.mxu0 0.0
        %6190 = vmatpush1.msra.mxu0 0.0
        %6191 = vmatprep.subr.mxu0 0.0
        %6192 = vmatpush1.msra.mxu0 0.0
        %6193 = vmatprep.subr.mxu0 0.0
        %6194 = vmatpush1.msra.mxu0 0.0
        %6195 = vmatprep.subr.mxu0 0.0
        %6196 = vmatpush1.msra.mxu0 0.0
        %6197 = vmatprep.subr.mxu0 0.0
        %6198 = vmatpush1.msra.mxu0 0.0
        %6199 = vmatprep.subr.mxu0 0.0
        %6200 = vmatpush1.msra.mxu0 0.0
        %6201 = vmatprep.subr.mxu0 0.0
        %6202 = vmatpush1.msra.mxu0 0.0
        %6203 = vmatprep.subr.mxu0 0.0
        %6204 = vmatpush1.msra.mxu0 0.0
        %6205 = vmatprep.subr.mxu0 0.0
        %6206 = vmatpush1.msra.mxu0 0.0
        %6207 = vmatprep.subr.mxu0 0.0
        %6208 = vmatpush1.msra.mxu0 0.0
        %6209 = vmatprep.subr.mxu0 0.0
        %6210 = vmatpush1.msra.mxu0 0.0
        %6211 = vmatprep.subr.mxu0 0.0
        %6212 = vmatpush1.msra.mxu0 0.0
        %6213 = vmatprep.subr.mxu0 0.0
        %6214 = vmatpush1.msra.mxu0 0.0
        %6215 = vmatprep.subr.mxu0 0.0
        %6216 = vmatpush1.msra.mxu0 0.0
        %6217 = vmatprep.subr.mxu0 0.0
        %6218 = vmatpush1.msra.mxu0 0.0
        %6219 = vmatprep.subr.mxu0 0.0
        %6220 = vmatpush1.msra.mxu0 0.0
        %6221 = vmatprep.mubr.f32.mxu0 0.0
        %6222 = vmatmul.mubr.f32.gmra.mrb[0].mxu0 %v6155
        %v6223 = vpop.f32.mrb[0].mxu0
        %v6224 = vadd.f32 0.0, %v6223
        %v6225 = vpop.f32.mrb[0].mxu0
        %6226 = vdwg.mxu0
        %6227 = vrot.lane.b32.xlu0 %v5826, 112
        %v6228 = vpop.permute.xlu0 %6227
        %6229 = vrot.lane.b32.xlu0 %v5896, 112
        %v6230 = vpop.permute.xlu0 %6229
        %v6231 = vsel %vm966, %v6228, 0
        %v6233 = vsel %vm966, %v6230, 0
        %6235 = vmatprep.subr.mxu0 0.0
        %6236 = vmatpush1.xpose.msra.mxu0 %v6233
        %6237 = vmatprep.subr.mxu0 0.0
        %6238 = vmatpush1.xpose.msra.mxu0 0.0
        %6239 = vmatprep.subr.mxu0 0.0
        %6240 = vmatpush1.xpose.msra.mxu0 0.0
        %6241 = vmatprep.subr.mxu0 0.0
        %6242 = vmatpush1.xpose.msra.mxu0 0.0
        %6243 = vmatprep.subr.mxu0 0.0
        %6244 = vmatpush1.xpose.msra.mxu0 0.0
        %6245 = vmatprep.subr.mxu0 0.0
        %6246 = vmatpush1.xpose.msra.mxu0 0.0
        %6247 = vmatprep.subr.mxu0 0.0
        %6248 = vmatpush1.xpose.msra.mxu0 0.0
        %6249 = vmatprep.subr.mxu0 0.0
        %6250 = vmatpush1.xpose.msra.mxu0 0.0
        %6251 = vmatprep.subr.mxu0 0.0
        %6252 = vmatpush1.xpose.msra.mxu0 0.0
        %6253 = vmatprep.subr.mxu0 0.0
        %6254 = vmatpush1.xpose.msra.mxu0 0.0
        %6255 = vmatprep.subr.mxu0 0.0
        %6256 = vmatpush1.xpose.msra.mxu0 0.0
        %6257 = vmatprep.subr.mxu0 0.0
        %6258 = vmatpush1.xpose.msra.mxu0 0.0
        %6259 = vmatprep.subr.mxu0 0.0
        %6260 = vmatpush1.xpose.msra.mxu0 0.0
        %6261 = vmatprep.subr.mxu0 0.0
        %6262 = vmatpush1.xpose.msra.mxu0 0.0
        %6263 = vmatprep.subr.mxu0 0.0
        %6264 = vmatpush1.xpose.msra.mxu0 0.0
        %6265 = vmatprep.subr.mxu0 0.0
        %6266 = vmatpush1.xpose.msra.mxu0 0.0
        %6267 = vmatprep.subr.mxu0 0.0
        %6268 = vmatpush1.xpose.msra.mxu0 0.0
        %6269 = vmatprep.subr.mxu0 0.0
        %6270 = vmatpush1.xpose.msra.mxu0 0.0
        %6271 = vmatprep.subr.mxu0 0.0
        %6272 = vmatpush1.xpose.msra.mxu0 0.0
        %6273 = vmatprep.subr.mxu0 0.0
        %6274 = vmatpush1.xpose.msra.mxu0 0.0
        %6275 = vmatprep.subr.mxu0 0.0
        %6276 = vmatpush1.xpose.msra.mxu0 0.0
        %6277 = vmatprep.subr.mxu0 0.0
        %6278 = vmatpush1.xpose.msra.mxu0 0.0
        %6279 = vmatprep.subr.mxu0 0.0
        %6280 = vmatpush1.xpose.msra.mxu0 0.0
        %6281 = vmatprep.subr.mxu0 0.0
        %6282 = vmatpush1.xpose.msra.mxu0 0.0
        %6283 = vmatprep.subr.mxu0 0.0
        %6284 = vmatpush1.xpose.msra.mxu0 0.0
        %6285 = vmatprep.subr.mxu0 0.0
        %6286 = vmatpush1.xpose.msra.mxu0 0.0
        %6287 = vmatprep.subr.mxu0 0.0
        %6288 = vmatpush1.xpose.msra.mxu0 0.0
        %6289 = vmatprep.subr.mxu0 0.0
        %6290 = vmatpush1.xpose.msra.mxu0 0.0
        %6291 = vmatprep.subr.mxu0 0.0
        %6292 = vmatpush1.xpose.msra.mxu0 0.0
        %6293 = vmatprep.subr.mxu0 0.0
        %6294 = vmatpush1.xpose.msra.mxu0 0.0
        %6295 = vmatprep.subr.mxu0 0.0
        %6296 = vmatpush1.xpose.msra.mxu0 0.0
        %6297 = vmatprep.subr.mxu0 0.0
        %6298 = vmatpush1.xpose.msra.mxu0 0.0
        %6299 = vmatprep.mubr.f32.mxu0 0.0
        %6300 = vmatmul.mubr.f32.gmra.mrb[0].mxu0 %v6231
        %v6301 = vpop.f32.mrb[0].mxu0
        %v6302 = vadd.f32 %v844, %v6301
        %v6303 = vpop.f32.mrb[0].mxu0
        %6304 = vdwg.mxu0
        %v6305 = vsel %vm966, %v6302, -inf
        %6306 = vmax.xlane.f32.xlu0 %v6305
        %v6307 = vpop.xlane.xlu0 %6306
        %v6308 = vsub.f32 %v6302, %v6307
        %v6309 = vmul.f32 %v6308, 1.442695
        %v6310 = vpow.pop %v6309
        %v6311 = vsel %vm966, %v6310, 0.0
        %6312 = vadd.xlane.f32.xlu0 %v6311
        %v6313 = vpop.xlane.xlu0 %6312
        %v6314 = vrcp.pop %v6313
        %v6315 = vmul.f32 %v6310, %v6314
        %6316 = vrot.lane.b32.xlu0 %v5896, 80
        %v6317 = vpop.permute.xlu0 %6316
        %v6320 = vsel %vm966, %v6315, 0
        %6322 = vmatprep.subr.mxu0 0.0
        %6323 = vmatpush1.msra.mxu0 %v6317
        %6324 = vmatprep.subr.mxu0 0.0
        %6325 = vmatpush1.msra.mxu0 0.0
        %6326 = vmatprep.subr.mxu0 0.0
        %6327 = vmatpush1.msra.mxu0 0.0
        %6328 = vmatprep.subr.mxu0 0.0
        %6329 = vmatpush1.msra.mxu0 0.0
        %6330 = vmatprep.subr.mxu0 0.0
        %6331 = vmatpush1.msra.mxu0 0.0
        %6332 = vmatprep.subr.mxu0 0.0
        %6333 = vmatpush1.msra.mxu0 0.0
        %6334 = vmatprep.subr.mxu0 0.0
        %6335 = vmatpush1.msra.mxu0 0.0
        %6336 = vmatprep.subr.mxu0 0.0
        %6337 = vmatpush1.msra.mxu0 0.0
        %6338 = vmatprep.subr.mxu0 0.0
        %6339 = vmatpush1.msra.mxu0 0.0
        %6340 = vmatprep.subr.mxu0 0.0
        %6341 = vmatpush1.msra.mxu0 0.0
        %6342 = vmatprep.subr.mxu0 0.0
        %6343 = vmatpush1.msra.mxu0 0.0
        %6344 = vmatprep.subr.mxu0 0.0
        %6345 = vmatpush1.msra.mxu0 0.0
        %6346 = vmatprep.subr.mxu0 0.0
        %6347 = vmatpush1.msra.mxu0 0.0
        %6348 = vmatprep.subr.mxu0 0.0
        %6349 = vmatpush1.msra.mxu0 0.0
        %6350 = vmatprep.subr.mxu0 0.0
        %6351 = vmatpush1.msra.mxu0 0.0
        %6352 = vmatprep.subr.mxu0 0.0
        %6353 = vmatpush1.msra.mxu0 0.0
        %6354 = vmatprep.subr.mxu0 0.0
        %6355 = vmatpush1.msra.mxu0 0.0
        %6356 = vmatprep.subr.mxu0 0.0
        %6357 = vmatpush1.msra.mxu0 0.0
        %6358 = vmatprep.subr.mxu0 0.0
        %6359 = vmatpush1.msra.mxu0 0.0
        %6360 = vmatprep.subr.mxu0 0.0
        %6361 = vmatpush1.msra.mxu0 0.0
        %6362 = vmatprep.subr.mxu0 0.0
        %6363 = vmatpush1.msra.mxu0 0.0
        %6364 = vmatprep.subr.mxu0 0.0
        %6365 = vmatpush1.msra.mxu0 0.0
        %6366 = vmatprep.subr.mxu0 0.0
        %6367 = vmatpush1.msra.mxu0 0.0
        %6368 = vmatprep.subr.mxu0 0.0
        %6369 = vmatpush1.msra.mxu0 0.0
        %6370 = vmatprep.subr.mxu0 0.0
        %6371 = vmatpush1.msra.mxu0 0.0
        %6372 = vmatprep.subr.mxu0 0.0
        %6373 = vmatpush1.msra.mxu0 0.0
        %6374 = vmatprep.subr.mxu0 0.0
        %6375 = vmatpush1.msra.mxu0 0.0
        %6376 = vmatprep.subr.mxu0 0.0
        %6377 = vmatpush1.msra.mxu0 0.0
        %6378 = vmatprep.subr.mxu0 0.0
        %6379 = vmatpush1.msra.mxu0 0.0
        %6380 = vmatprep.subr.mxu0 0.0
        %6381 = vmatpush1.msra.mxu0 0.0
        %6382 = vmatprep.subr.mxu0 0.0
        %6383 = vmatpush1.msra.mxu0 0.0
        %6384 = vmatprep.subr.mxu0 0.0
        %6385 = vmatpush1.msra.mxu0 0.0
        %6386 = vmatprep.mubr.f32.mxu0 0.0
        %6387 = vmatmul.mubr.f32.gmra.mrb[0].mxu0 %v6320
        %v6388 = vpop.f32.mrb[0].mxu0
        %v6389 = vadd.f32 0.0, %v6388
        %v6390 = vpop.f32.mrb[0].mxu0
        %6391 = vdwg.mxu0
        %6392 = vrot.lane.b32.xlu0 %v5826, 104
        %v6393 = vpop.permute.xlu0 %6392
        %6394 = vrot.lane.b32.xlu0 %v5896, 104
        %v6395 = vpop.permute.xlu0 %6394
        %v6396 = vsel %vm966, %v6393, 0
        %v6398 = vsel %vm966, %v6395, 0
        %6400 = vmatprep.subr.mxu0 0.0
        %6401 = vmatpush1.xpose.msra.mxu0 %v6398
        %6402 = vmatprep.subr.mxu0 0.0
        %6403 = vmatpush1.xpose.msra.mxu0 0.0
        %6404 = vmatprep.subr.mxu0 0.0
        %6405 = vmatpush1.xpose.msra.mxu0 0.0
        %6406 = vmatprep.subr.mxu0 0.0
        %6407 = vmatpush1.xpose.msra.mxu0 0.0
        %6408 = vmatprep.subr.mxu0 0.0
        %6409 = vmatpush1.xpose.msra.mxu0 0.0
        %6410 = vmatprep.subr.mxu0 0.0
        %6411 = vmatpush1.xpose.msra.mxu0 0.0
        %6412 = vmatprep.subr.mxu0 0.0
        %6413 = vmatpush1.xpose.msra.mxu0 0.0
        %6414 = vmatprep.subr.mxu0 0.0
        %6415 = vmatpush1.xpose.msra.mxu0 0.0
        %6416 = vmatprep.subr.mxu0 0.0
        %6417 = vmatpush1.xpose.msra.mxu0 0.0
        %6418 = vmatprep.subr.mxu0 0.0
        %6419 = vmatpush1.xpose.msra.mxu0 0.0
        %6420 = vmatprep.subr.mxu0 0.0
        %6421 = vmatpush1.xpose.msra.mxu0 0.0
        %6422 = vmatprep.subr.mxu0 0.0
        %6423 = vmatpush1.xpose.msra.mxu0 0.0
        %6424 = vmatprep.subr.mxu0 0.0
        %6425 = vmatpush1.xpose.msra.mxu0 0.0
        %6426 = vmatprep.subr.mxu0 0.0
        %6427 = vmatpush1.xpose.msra.mxu0 0.0
        %6428 = vmatprep.subr.mxu0 0.0
        %6429 = vmatpush1.xpose.msra.mxu0 0.0
        %6430 = vmatprep.subr.mxu0 0.0
        %6431 = vmatpush1.xpose.msra.mxu0 0.0
        %6432 = vmatprep.subr.mxu0 0.0
        %6433 = vmatpush1.xpose.msra.mxu0 0.0
        %6434 = vmatprep.subr.mxu0 0.0
        %6435 = vmatpush1.xpose.msra.mxu0 0.0
        %6436 = vmatprep.subr.mxu0 0.0
        %6437 = vmatpush1.xpose.msra.mxu0 0.0
        %6438 = vmatprep.subr.mxu0 0.0
        %6439 = vmatpush1.xpose.msra.mxu0 0.0
        %6440 = vmatprep.subr.mxu0 0.0
        %6441 = vmatpush1.xpose.msra.mxu0 0.0
        %6442 = vmatprep.subr.mxu0 0.0
        %6443 = vmatpush1.xpose.msra.mxu0 0.0
        %6444 = vmatprep.subr.mxu0 0.0
        %6445 = vmatpush1.xpose.msra.mxu0 0.0
        %6446 = vmatprep.subr.mxu0 0.0
        %6447 = vmatpush1.xpose.msra.mxu0 0.0
        %6448 = vmatprep.subr.mxu0 0.0
        %6449 = vmatpush1.xpose.msra.mxu0 0.0
        %6450 = vmatprep.subr.mxu0 0.0
        %6451 = vmatpush1.xpose.msra.mxu0 0.0
        %6452 = vmatprep.subr.mxu0 0.0
        %6453 = vmatpush1.xpose.msra.mxu0 0.0
        %6454 = vmatprep.subr.mxu0 0.0
        %6455 = vmatpush1.xpose.msra.mxu0 0.0
        %6456 = vmatprep.subr.mxu0 0.0
        %6457 = vmatpush1.xpose.msra.mxu0 0.0
        %6458 = vmatprep.subr.mxu0 0.0
        %6459 = vmatpush1.xpose.msra.mxu0 0.0
        %6460 = vmatprep.subr.mxu0 0.0
        %6461 = vmatpush1.xpose.msra.mxu0 0.0
        %6462 = vmatprep.subr.mxu0 0.0
        %6463 = vmatpush1.xpose.msra.mxu0 0.0
        %6464 = vmatprep.mubr.f32.mxu0 0.0
        %6465 = vmatmul.mubr.f32.gmra.mrb[0].mxu0 %v6396
        %v6466 = vpop.f32.mrb[0].mxu0
        %v6467 = vadd.f32 %v844, %v6466
        %v6468 = vpop.f32.mrb[0].mxu0
        %6469 = vdwg.mxu0
        %v6470 = vsel %vm966, %v6467, -inf
        %6471 = vmax.xlane.f32.xlu0 %v6470
        %v6472 = vpop.xlane.xlu0 %6471
        %v6473 = vsub.f32 %v6467, %v6472
        %v6474 = vmul.f32 %v6473, 1.442695
        %v6475 = vpow.pop %v6474
        %v6476 = vsel %vm966, %v6475, 0.0
        %6477 = vadd.xlane.f32.xlu0 %v6476
        %v6478 = vpop.xlane.xlu0 %6477
        %v6479 = vrcp.pop %v6478
        %v6480 = vmul.f32 %v6475, %v6479
        %6481 = vrot.lane.b32.xlu0 %v5896, 72
        %v6482 = vpop.permute.xlu0 %6481
        %v6485 = vsel %vm966, %v6480, 0
        %6487 = vmatprep.subr.mxu0 0.0
        %6488 = vmatpush1.msra.mxu0 %v6482
        %6489 = vmatprep.subr.mxu0 0.0
        %6490 = vmatpush1.msra.mxu0 0.0
        %6491 = vmatprep.subr.mxu0 0.0
        %6492 = vmatpush1.msra.mxu0 0.0
        %6493 = vmatprep.subr.mxu0 0.0
        %6494 = vmatpush1.msra.mxu0 0.0
        %6495 = vmatprep.subr.mxu0 0.0
        %6496 = vmatpush1.msra.mxu0 0.0
        %6497 = vmatprep.subr.mxu0 0.0
        %6498 = vmatpush1.msra.mxu0 0.0
        %6499 = vmatprep.subr.mxu0 0.0
        %6500 = vmatpush1.msra.mxu0 0.0
        %6501 = vmatprep.subr.mxu0 0.0
        %6502 = vmatpush1.msra.mxu0 0.0
        %6503 = vmatprep.subr.mxu0 0.0
        %6504 = vmatpush1.msra.mxu0 0.0
        %6505 = vmatprep.subr.mxu0 0.0
        %6506 = vmatpush1.msra.mxu0 0.0
        %6507 = vmatprep.subr.mxu0 0.0
        %6508 = vmatpush1.msra.mxu0 0.0
        %6509 = vmatprep.subr.mxu0 0.0
        %6510 = vmatpush1.msra.mxu0 0.0
        %6511 = vmatprep.subr.mxu0 0.0
        %6512 = vmatpush1.msra.mxu0 0.0
        %6513 = vmatprep.subr.mxu0 0.0
        %6514 = vmatpush1.msra.mxu0 0.0
        %6515 = vmatprep.subr.mxu0 0.0
        %6516 = vmatpush1.msra.mxu0 0.0
        %6517 = vmatprep.subr.mxu0 0.0
        %6518 = vmatpush1.msra.mxu0 0.0
        %6519 = vmatprep.subr.mxu0 0.0
        %6520 = vmatpush1.msra.mxu0 0.0
        %6521 = vmatprep.subr.mxu0 0.0
        %6522 = vmatpush1.msra.mxu0 0.0
        %6523 = vmatprep.subr.mxu0 0.0
        %6524 = vmatpush1.msra.mxu0 0.0
        %6525 = vmatprep.subr.mxu0 0.0
        %6526 = vmatpush1.msra.mxu0 0.0
        %6527 = vmatprep.subr.mxu0 0.0
        %6528 = vmatpush1.msra.mxu0 0.0
        %6529 = vmatprep.subr.mxu0 0.0
        %6530 = vmatpush1.msra.mxu0 0.0
        %6531 = vmatprep.subr.mxu0 0.0
        %6532 = vmatpush1.msra.mxu0 0.0
        %6533 = vmatprep.subr.mxu0 0.0
        %6534 = vmatpush1.msra.mxu0 0.0
        %6535 = vmatprep.subr.mxu0 0.0
        %6536 = vmatpush1.msra.mxu0 0.0
        %6537 = vmatprep.subr.mxu0 0.0
        %6538 = vmatpush1.msra.mxu0 0.0
        %6539 = vmatprep.subr.mxu0 0.0
        %6540 = vmatpush1.msra.mxu0 0.0
        %6541 = vmatprep.subr.mxu0 0.0
        %6542 = vmatpush1.msra.mxu0 0.0
        %6543 = vmatprep.subr.mxu0 0.0
        %6544 = vmatpush1.msra.mxu0 0.0
        %6545 = vmatprep.subr.mxu0 0.0
        %6546 = vmatpush1.msra.mxu0 0.0
        %6547 = vmatprep.subr.mxu0 0.0
        %6548 = vmatpush1.msra.mxu0 0.0
        %6549 = vmatprep.subr.mxu0 0.0
        %6550 = vmatpush1.msra.mxu0 0.0
        %6551 = vmatprep.mubr.f32.mxu0 0.0
        %6552 = vmatmul.mubr.f32.gmra.mrb[0].mxu0 %v6485
        %v6553 = vpop.f32.mrb[0].mxu0
        %v6554 = vadd.f32 0.0, %v6553
        %v6555 = vpop.f32.mrb[0].mxu0
        %6556 = vdwg.mxu0
        %6558 = vrot.lane.b32.xlu0 %v6224, 8
        %v6559 = vpop.permute.xlu0 %6558
        %6562 = vrot.lane.b32.xlu0 %v6389, 16
        %v6563 = vpop.permute.xlu0 %6562
        %6566 = vrot.lane.b32.xlu0 %v6554, 24
        %v6567 = vpop.permute.xlu0 %6566
        %v6569 = vsel %vm966, %v6059, %v6559
        %v6570 = vsel %vm1636, %v6569, %v6563
        %v6571 = vsel %vm1638, %v6570, %v6567
        %v6573 = vsel %vm874, %v6571, 0
        %6575 = vmatprep.subr.mxu0 0.0
        %6576 = vmatpush1.msra.mxu0 %v5737
        %6577 = vmatprep.subr.mxu0 0.0
        %6578 = vmatpush1.msra.mxu0 %v5738
        %6579 = vmatprep.subr.mxu0 0.0
        %6580 = vmatpush1.msra.mxu0 %v5739
        %6581 = vmatprep.subr.mxu0 0.0
        %6582 = vmatpush1.msra.mxu0 %v5740
        %6583 = vmatprep.subr.mxu0 0.0
        %6584 = vmatpush1.msra.mxu0 0.0
        %6585 = vmatprep.subr.mxu0 0.0
        %6586 = vmatpush1.msra.mxu0 0.0
        %6587 = vmatprep.subr.mxu0 0.0
        %6588 = vmatpush1.msra.mxu0 0.0
        %6589 = vmatprep.subr.mxu0 0.0
        %6590 = vmatpush1.msra.mxu0 0.0
        %6591 = vmatprep.subr.mxu0 0.0
        %6592 = vmatpush1.msra.mxu0 0.0
        %6593 = vmatprep.subr.mxu0 0.0
        %6594 = vmatpush1.msra.mxu0 0.0
        %6595 = vmatprep.subr.mxu0 0.0
        %6596 = vmatpush1.msra.mxu0 0.0
        %6597 = vmatprep.subr.mxu0 0.0
        %6598 = vmatpush1.msra.mxu0 0.0
        %6599 = vmatprep.subr.mxu0 0.0
        %6600 = vmatpush1.msra.mxu0 0.0
        %6601 = vmatprep.subr.mxu0 0.0
        %6602 = vmatpush1.msra.mxu0 0.0
        %6603 = vmatprep.subr.mxu0 0.0
        %6604 = vmatpush1.msra.mxu0 0.0
        %6605 = vmatprep.subr.mxu0 0.0
        %6606 = vmatpush1.msra.mxu0 0.0
        %6607 = vmatprep.subr.mxu0 0.0
        %6608 = vmatpush1.msra.mxu0 0.0
        %6609 = vmatprep.subr.mxu0 0.0
        %6610 = vmatpush1.msra.mxu0 0.0
        %6611 = vmatprep.subr.mxu0 0.0
        %6612 = vmatpush1.msra.mxu0 0.0
        %6613 = vmatprep.subr.mxu0 0.0
        %6614 = vmatpush1.msra.mxu0 0.0
        %6615 = vmatprep.subr.mxu0 0.0
        %6616 = vmatpush1.msra.mxu0 0.0
        %6617 = vmatprep.subr.mxu0 0.0
        %6618 = vmatpush1.msra.mxu0 0.0
        %6619 = vmatprep.subr.mxu0 0.0
        %6620 = vmatpush1.msra.mxu0 0.0
        %6621 = vmatprep.subr.mxu0 0.0
        %6622 = vmatpush1.msra.mxu0 0.0
        %6623 = vmatprep.subr.mxu0 0.0
        %6624 = vmatpush1.msra.mxu0 0.0
        %6625 = vmatprep.subr.mxu0 0.0
        %6626 = vmatpush1.msra.mxu0 0.0
        %6627 = vmatprep.subr.mxu0 0.0
        %6628 = vmatpush1.msra.mxu0 0.0
        %6629 = vmatprep.subr.mxu0 0.0
        %6630 = vmatpush1.msra.mxu0 0.0
        %6631 = vmatprep.subr.mxu0 0.0
        %6632 = vmatpush1.msra.mxu0 0.0
        %6633 = vmatprep.subr.mxu0 0.0
        %6634 = vmatpush1.msra.mxu0 0.0
        %6635 = vmatprep.subr.mxu0 0.0
        %6636 = vmatpush1.msra.mxu0 0.0
        %6637 = vmatprep.subr.mxu0 0.0
        %6638 = vmatpush1.msra.mxu0 0.0
        %6639 = vmatprep.mubr.f32.mxu0 0.0
        %6640 = vmatmul.mubr.f32.gmra.mrb[0].mxu0 %v6573
        %v6641 = vpop.f32.mrb[0].mxu0
        %v6642 = vadd.f32 0.0, %v6641
        %v6643 = vpop.f32.mrb[0].mxu0
        %6644 = vdwg.mxu0
        %v6645 = vadd.f32 %v5723, %v6642
        %s6646 = scalar_lea.vmem %s20, 1
        %v6647 = vld [vmem:[%s6646] sm:$0x1]
        %s6648 = scalar_lea.vmem %s21, 32
        %v6649 = vld [vmem:[%s6648] sm:$0xff]
        %v6650 = vld [vmem:[%s6648 + $0x8] sm:$0xff]
        %v6651 = vld [vmem:[%s6648 + $0x10] sm:$0xff]
        %v6652 = vld [vmem:[%s6648 + $0x18] sm:$0xff]
        %s6653 = scalar_lea.vmem %s22, 64
        %v6654 = vld [vmem:[%s6653] sm:$0xff]
        %v6655 = vld [vmem:[%s6653 + $0x8] sm:$0xff]
        %v6656 = vld [vmem:[%s6653 + $0x10] sm:$0xff]
        %v6657 = vld [vmem:[%s6653 + $0x18] sm:$0xff]
        %v6658 = vld [vmem:[%s6653 + $0x20] sm:$0xff]
        %v6659 = vld [vmem:[%s6653 + $0x28] sm:$0xff]
        %v6660 = vld [vmem:[%s6653 + $0x30] sm:$0xff]
        %v6661 = vld [vmem:[%s6653 + $0x38] sm:$0xff]
        %v6662 = vmul.f32 %v6645, %v6645
        %v6663 = vsel %vm874, %v6662, 0.0
        %6664 = vadd.xlane.f32.xlu0 %v6663
        %v6665 = vpop.xlane.xlu0 %6664
        %v6666 = vmul.f32 %v6665, %v878
        %v6667 = vadd.f32 %v6666, 1e-06
        %v6668 = vrsqrt.pop %v6667
        %v6669 = vmul.f32 %v6645, %v6668
        %v6671 = vlaneseq
        %v6672 = vshrl.u32 %v6671, 7
        %v6673 = vsub.s32 0, %v6672
        %v6674 = vrot.slane %v6647, %v6673
        %v6676 = vmul.f32 %v6669, %v6674
        %v6678 = vsel %vm874, %v6676, 0
        %6680 = vmatprep.subr.mxu0 0.0
        %6681 = vmatpush1.msra.mxu0 %v6649
        %6682 = vmatprep.subr.mxu0 0.0
        %6683 = vmatpush1.msra.mxu0 %v6650
        %6684 = vmatprep.subr.mxu0 0.0
        %6685 = vmatpush1.msra.mxu0 %v6651
        %6686 = vmatprep.subr.mxu0 0.0
        %6687 = vmatpush1.msra.mxu0 %v6652
        %6688 = vmatprep.subr.mxu0 0.0
        %6689 = vmatpush1.msra.mxu0 0.0
        %6690 = vmatprep.subr.mxu0 0.0
        %6691 = vmatpush1.msra.mxu0 0.0
        %6692 = vmatprep.subr.mxu0 0.0
        %6693 = vmatpush1.msra.mxu0 0.0
        %6694 = vmatprep.subr.mxu0 0.0
        %6695 = vmatpush1.msra.mxu0 0.0
        %6696 = vmatprep.subr.mxu0 0.0
        %6697 = vmatpush1.msra.mxu0 0.0
        %6698 = vmatprep.subr.mxu0 0.0
        %6699 = vmatpush1.msra.mxu0 0.0
        %6700 = vmatprep.subr.mxu0 0.0
        %6701 = vmatpush1.msra.mxu0 0.0
        %6702 = vmatprep.subr.mxu0 0.0
        %6703 = vmatpush1.msra.mxu0 0.0
        %6704 = vmatprep.subr.mxu0 0.0
        %6705 = vmatpush1.msra.mxu0 0.0
        %6706 = vmatprep.subr.mxu0 0.0
        %6707 = vmatpush1.msra.mxu0 0.0
        %6708 = vmatprep.subr.mxu0 0.0
        %6709 = vmatpush1.msra.mxu0 0.0
        %6710 = vmatprep.subr.mxu0 0.0
        %6711 = vmatpush1.msra.mxu0 0.0
        %6712 = vmatprep.subr.mxu0 0.0
        %6713 = vmatpush1.msra.mxu0 0.0
        %6714 = vmatprep.subr.mxu0 0.0
        %6715 = vmatpush1.msra.mxu0 0.0
        %6716 = vmatprep.subr.mxu0 0.0
        %6717 = vmatpush1.msra.mxu0 0.0
        %6718 = vmatprep.subr.mxu0 0.0
        %6719 = vmatpush1.msra.mxu0 0.0
        %6720 = vmatprep.subr.mxu0 0.0
        %6721 = vmatpush1.msra.mxu0 0.0
        %6722 = vmatprep.subr.mxu0 0.0
        %6723 = vmatpush1.msra.mxu0 0.0
        %6724 = vmatprep.subr.mxu0 0.0
        %6725 = vmatpush1.msra.mxu0 0.0
        %6726 = vmatprep.subr.mxu0 0.0
        %6727 = vmatpush1.msra.mxu0 0.0
        %6728 = vmatprep.subr.mxu0 0.0
        %6729 = vmatpush1.msra.mxu0 0.0
        %6730 = vmatprep.subr.mxu0 0.0
        %6731 = vmatpush1.msra.mxu0 0.0
        %6732 = vmatprep.subr.mxu0 0.0
        %6733 = vmatpush1.msra.mxu0 0.0
        %6734 = vmatprep.subr.mxu0 0.0
        %6735 = vmatpush1.msra.mxu0 0.0
        %6736 = vmatprep.subr.mxu0 0.0
        %6737 = vmatpush1.msra.mxu0 0.0
        %6738 = vmatprep.subr.mxu0 0.0
        %6739 = vmatpush1.msra.mxu0 0.0
        %6740 = vmatprep.subr.mxu0 0.0
        %6741 = vmatpush1.msra.mxu0 0.0
        %6742 = vmatprep.subr.mxu0 0.0
        %6743 = vmatpush1.msra.mxu0 0.0
        %6744 = vmatprep.mubr.f32.mxu0 0.0
        %6745 = vmatmul.mubr.f32.gmra.mrb[0].mxu0 %v6678
        %v6746 = vpop.f32.mrb[0].mxu0
        %v6747 = vadd.f32 0.0, %v6746
        %v6748 = vpop.f32.mrb[0].mxu0
        %6749 = vdwg.mxu0
        %v6750 = vmax.f32 %v6747, 0.0
        %v6752 = vsel %vm1816, %v6750, 0
        %6754 = vmatprep.subr.mxu0 0.0
        %6755 = vmatpush1.msra.mxu0 %v6654
        %6756 = vmatprep.subr.mxu0 0.0
        %6757 = vmatpush1.msra.mxu0 %v6655
        %6758 = vmatprep.subr.mxu0 0.0
        %6759 = vmatpush1.msra.mxu0 %v6656
        %6760 = vmatprep.subr.mxu0 0.0
        %6761 = vmatpush1.msra.mxu0 %v6657
        %6762 = vmatprep.subr.mxu0 0.0
        %6763 = vmatpush1.msra.mxu0 %v6658
        %6764 = vmatprep.subr.mxu0 0.0
        %6765 = vmatpush1.msra.mxu0 %v6659
        %6766 = vmatprep.subr.mxu0 0.0
        %6767 = vmatpush1.msra.mxu0 %v6660
        %6768 = vmatprep.subr.mxu0 0.0
        %6769 = vmatpush1.msra.mxu0 %v6661
        %6770 = vmatprep.subr.mxu0 0.0
        %6771 = vmatpush1.msra.mxu0 0.0
        %6772 = vmatprep.subr.mxu0 0.0
        %6773 = vmatpush1.msra.mxu0 0.0
        %6774 = vmatprep.subr.mxu0 0.0
        %6775 = vmatpush1.msra.mxu0 0.0
        %6776 = vmatprep.subr.mxu0 0.0
        %6777 = vmatpush1.msra.mxu0 0.0
        %6778 = vmatprep.subr.mxu0 0.0
        %6779 = vmatpush1.msra.mxu0 0.0
        %6780 = vmatprep.subr.mxu0 0.0
        %6781 = vmatpush1.msra.mxu0 0.0
        %6782 = vmatprep.subr.mxu0 0.0
        %6783 = vmatpush1.msra.mxu0 0.0
        %6784 = vmatprep.subr.mxu0 0.0
        %6785 = vmatpush1.msra.mxu0 0.0
        %6786 = vmatprep.subr.mxu0 0.0
        %6787 = vmatpush1.msra.mxu0 0.0
        %6788 = vmatprep.subr.mxu0 0.0
        %6789 = vmatpush1.msra.mxu0 0.0
        %6790 = vmatprep.subr.mxu0 0.0
        %6791 = vmatpush1.msra.mxu0 0.0
        %6792 = vmatprep.subr.mxu0 0.0
        %6793 = vmatpush1.msra.mxu0 0.0
        %6794 = vmatprep.subr.mxu0 0.0
        %6795 = vmatpush1.msra.mxu0 0.0
        %6796 = vmatprep.subr.mxu0 0.0
        %6797 = vmatpush1.msra.mxu0 0.0
        %6798 = vmatprep.subr.mxu0 0.0
        %6799 = vmatpush1.msra.mxu0 0.0
        %6800 = vmatprep.subr.mxu0 0.0
        %6801 = vmatpush1.msra.mxu0 0.0
        %6802 = vmatprep.subr.mxu0 0.0
        %6803 = vmatpush1.msra.mxu0 0.0
        %6804 = vmatprep.subr.mxu0 0.0
        %6805 = vmatpush1.msra.mxu0 0.0
        %6806 = vmatprep.subr.mxu0 0.0
        %6807 = vmatpush1.msra.mxu0 0.0
        %6808 = vmatprep.subr.mxu0 0.0
        %6809 = vmatpush1.msra.mxu0 0.0
        %6810 = vmatprep.subr.mxu0 0.0
        %6811 = vmatpush1.msra.mxu0 0.0
        %6812 = vmatprep.subr.mxu0 0.0
        %6813 = vmatpush1.msra.mxu0 0.0
        %6814 = vmatprep.subr.mxu0 0.0
        %6815 = vmatpush1.msra.mxu0 0.0
        %6816 = vmatprep.subr.mxu0 0.0
        %6817 = vmatpush1.msra.mxu0 0.0
        %6818 = vmatprep.mubr.f32.mxu0 0.0
        %6819 = vmatmul.mubr.f32.gmra.mrb[0].mxu0 %v6752
        %v6820 = vpop.f32.mrb[0].mxu0
        %v6821 = vadd.f32 0.0, %v6820
        %v6822 = vpop.f32.mrb[0].mxu0
        %6823 = vdwg.mxu0
        %v6824 = vadd.f32 %v6645, %v6821
        %v6825 = vld [vmem:[%s23] sm:$0x1]
        %v6826 = vmul.f32 %v6824, %v6824
        %v6827 = vsel %vm874, %v6826, 0.0
        %6828 = vadd.xlane.f32.xlu0 %v6827
        %v6829 = vpop.xlane.xlu0 %6828
        %v6830 = vmul.f32 %v6829, %v878
        %v6831 = vadd.f32 %v6830, 1e-06
        %v6832 = vrsqrt.pop %v6831
        %v6833 = vmul.f32 %v6824, %v6832
        %v6835 = vlaneseq
        %v6836 = vshrl.u32 %v6835, 7
        %v6837 = vsub.s32 0, %v6836
        %v6838 = vrot.slane %v6825, %v6837
        %v6840 = vmul.f32 %v6833, %v6838
        %v6841 = vld [vmem:[%s24] sm:$0xff]
        %v6842 = vld [vmem:[%s24 + $0x8] sm:$0xff]
        %v6843 = vld [vmem:[%s24 + $0x10] sm:$0xff]
        %v6844 = vld [vmem:[%s24 + $0x18] sm:$0xff]
        %v6845 = vld [vmem:[%s25] sm:$0x1]
        %v6847 = vlaneseq
        %v6848 = vshrl.u32 %v6847, 7
        %v6849 = vsub.s32 0, %v6848
        %v6850 = vrot.slane %v6845, %v6849
        %v6853 = vsel %vm874, %v6840, 0
        %6855 = vmatprep.subr.mxu0 0.0
        %6856 = vmatpush1.msra.mxu0 %v6841
        %6857 = vmatprep.subr.mxu0 0.0
        %6858 = vmatpush1.msra.mxu0 %v6842
        %6859 = vmatprep.subr.mxu0 0.0
        %6860 = vmatpush1.msra.mxu0 %v6843
        %6861 = vmatprep.subr.mxu0 0.0
        %6862 = vmatpush1.msra.mxu0 %v6844
        %6863 = vmatprep.subr.mxu0 0.0
        %6864 = vmatpush1.msra.mxu0 0.0
        %6865 = vmatprep.subr.mxu0 0.0
        %6866 = vmatpush1.msra.mxu0 0.0
        %6867 = vmatprep.subr.mxu0 0.0
        %6868 = vmatpush1.msra.mxu0 0.0
        %6869 = vmatprep.subr.mxu0 0.0
        %6870 = vmatpush1.msra.mxu0 0.0
        %6871 = vmatprep.subr.mxu0 0.0
        %6872 = vmatpush1.msra.mxu0 0.0
        %6873 = vmatprep.subr.mxu0 0.0
        %6874 = vmatpush1.msra.mxu0 0.0
        %6875 = vmatprep.subr.mxu0 0.0
        %6876 = vmatpush1.msra.mxu0 0.0
        %6877 = vmatprep.subr.mxu0 0.0
        %6878 = vmatpush1.msra.mxu0 0.0
        %6879 = vmatprep.subr.mxu0 0.0
        %6880 = vmatpush1.msra.mxu0 0.0
        %6881 = vmatprep.subr.mxu0 0.0
        %6882 = vmatpush1.msra.mxu0 0.0
        %6883 = vmatprep.subr.mxu0 0.0
        %6884 = vmatpush1.msra.mxu0 0.0
        %6885 = vmatprep.subr.mxu0 0.0
        %6886 = vmatpush1.msra.mxu0 0.0
        %6887 = vmatprep.subr.mxu0 0.0
        %6888 = vmatpush1.msra.mxu0 0.0
        %6889 = vmatprep.subr.mxu0 0.0
        %6890 = vmatpush1.msra.mxu0 0.0
        %6891 = vmatprep.subr.mxu0 0.0
        %6892 = vmatpush1.msra.mxu0 0.0
        %6893 = vmatprep.subr.mxu0 0.0
        %6894 = vmatpush1.msra.mxu0 0.0
        %6895 = vmatprep.subr.mxu0 0.0
        %6896 = vmatpush1.msra.mxu0 0.0
        %6897 = vmatprep.subr.mxu0 0.0
        %6898 = vmatpush1.msra.mxu0 0.0
        %6899 = vmatprep.subr.mxu0 0.0
        %6900 = vmatpush1.msra.mxu0 0.0
        %6901 = vmatprep.subr.mxu0 0.0
        %6902 = vmatpush1.msra.mxu0 0.0
        %6903 = vmatprep.subr.mxu0 0.0
        %6904 = vmatpush1.msra.mxu0 0.0
        %6905 = vmatprep.subr.mxu0 0.0
        %6906 = vmatpush1.msra.mxu0 0.0
        %6907 = vmatprep.subr.mxu0 0.0
        %6908 = vmatpush1.msra.mxu0 0.0
        %6909 = vmatprep.subr.mxu0 0.0
        %6910 = vmatpush1.msra.mxu0 0.0
        %6911 = vmatprep.subr.mxu0 0.0
        %6912 = vmatpush1.msra.mxu0 0.0
        %6913 = vmatprep.subr.mxu0 0.0
        %6914 = vmatpush1.msra.mxu0 0.0
        %6915 = vmatprep.subr.mxu0 0.0
        %6916 = vmatpush1.msra.mxu0 0.0
        %6917 = vmatprep.subr.mxu0 0.0
        %6918 = vmatpush1.msra.mxu0 0.0
        %6919 = vmatprep.mubr.f32.mxu0 0.0
        %6920 = vmatmul.mubr.f32.gmra.mrb[0].mxu0 %v6853
        %v6921 = vpop.f32.mrb[0].mxu0
        %v6922 = vadd.f32 %v6850, %v6921
        %v6923 = vpop.f32.mrb[0].mxu0
        %6924 = vdwg.mxu0
        %6925 = vst [vmem:[%s817] sm:$0xff] %v6922
        %s6926 = sand.u32 %s614, 1
        %s6927 = scalar_lea.sflag [#allocation3], %s6926
        %s6928 = sand.u32 %s614, 1
        %s6929 = smul.addr %s6928, 8
        %s6930 = scalar_lea.vmem [#allocation2], %s6929
        // Predicated region
        $region125: #{t5_network.1} parent=123 // pred_check
          %p6931 = pneg %p624
        $region126: #{t5_network.1} parent=123 // pred_check_branch
          %6933 = sbr.rel (%p6931) target = $region128
        $region127: #{t5_network.1} parent=123 // pred_region
          %s6935 = ssub.s32 128, 128
          %6936 = vsyncadd %s6927, %s6935
          %s6937 = smul.addr %s40, 128
          %s6938 = scalar_lea.hbm %s26, %s6937
          %s6940 = sshll.u32 %s6930, 4
          %s6941 = int_to_ptr.vmem [resolvable:$true] %s6940
          %6943 = dma.vmem_to_hbm [thread:$0]  %s6941, 128, %s6938, %s6927
        $region128: #{t5_network.1} parent=123 // pred_fallthru
          _
      $region124: #{t5_network.1} parent=5 // pred_fallthru
        _
      %p6944 = scmp.le.s32.totalorder 2, %s35
      // Predicated region
      $region129: #{t5_network.1} parent=5 // pred_check
        %p6945 = pneg %p6944
      $region130: #{t5_network.1} parent=5 // pred_check_branch
        %6947 = sbr.rel (%p6945) target = $region132
      $region131: #{t5_network.1} parent=5 // pred_region
        %s6948 = ssub.s32 %s35, 2
        // Predicated region
        $region133: #{t5_network.1} parent=131 // pred_check
          %p6949 = pneg %p630
        $region134: #{t5_network.1} parent=131 // pred_check_branch
          %6951 = sbr.rel (%p6949) target = $region136
        $region135: #{t5_network.1} parent=131 // pred_region
          %s6952 = sand.u32 %s615, 1
          %s6953 = scalar_lea.sflag [#allocation3], %s6952
          %s6954 = sand.u32 %s615, 1
          %s6955 = smul.addr %s6954, 8
          %s6956 = scalar_lea.vmem [#allocation2], %s6955
          %6957 = dma.done %s6953, 128
        $region136: #{t5_network.1} parent=131 // pred_fallthru
          _
      $region132: #{t5_network.1} parent=5 // pred_fallthru
        _
    $region6: #{t5_network.1} parent=1 // loop_footer
      %s39 = sadd.s32 1, %s35
    $region7: #{t5_network.1} parent=1 // loop_footer_branch
      %34 = sbr.rel target = $region3
    $region8: #{t5_network.1} parent=1 // loop_exit
      _
    %6958 = vsyncpa [#allocation3], 1
    %s6959 = scalar_lea.sflag [#allocation3], 1
    %6960 = vsyncpa %s6959, 1

</llo_original>
